<compile_context>
chip_gen: v7x
topology: tpu7x:2x2x1
jax: 0.10.0
libtpu: 0.0.40
codegen_flags: <defaults>
</compile_context>

<pallas_src>
import functools
import math

import jax
import jax.numpy as jnp
from jax import lax
from jax.experimental import pallas as pl
from jax.experimental.pallas import tpu as pltpu


# ----------------------------------------------------------------------------
# Pallas kernels
# ----------------------------------------------------------------------------
def gru_layer_kernel(num_dirs, *refs):
    """One GRU layer, all directions fused, time-major.

    Ref layout (in order):
      inputs : x (T,TB,I) bf16, mask (T,TB,1) f32,
               then per direction: wih (I,3H) bf16, whh (H,3H) bf16,
                                   bcomb (1,3H) f32, bhn (1,H) f32
      outputs: per direction out (T,TB,H) bf16, then per direction hfin (TB,H) f32
      scratch: per direction gi (T,TB,3H) f32, then per direction h (TB,H) f32
    PyTorch gate order r, z, n.  Direction 0 = forward, 1 = backward (reversed time).
    """
    x_ref, m_ref = refs[0], refs[1]
    pos = 2
    wih, whh, bcomb, bhn = [], [], [], []
    for _ in range(num_dirs):
        wih.append(refs[pos]); whh.append(refs[pos + 1])
        bcomb.append(refs[pos + 2]); bhn.append(refs[pos + 3])
        pos += 4
    outs = refs[pos:pos + num_dirs]; pos += num_dirs
    hfin = refs[pos:pos + num_dirs]; pos += num_dirs
    gi_scr = refs[pos:pos + num_dirs]; pos += num_dirs
    h_scr = refs[pos:pos + num_dirs]

    T = x_ref.shape[0]
    H = h_scr[0].shape[1]

    # ---- Hoisted input projections: every x_t @ W_ih is off the serial chain and
    # pipelines back-to-back on the MXU.  r/z biases (input+hidden) are pre-added here.
    for d in range(num_dirs):
        h_scr[d][...] = jnp.zeros_like(h_scr[d])
    for t in range(T):                           # static unroll (T is a Python int)
        x_t = x_ref[t]                           # (TB, I) bf16
        for d in range(num_dirs):
            gi_scr[d][t] = (jnp.dot(x_t, wih[d][...],
                                    preferred_element_type=jnp.float32)
                            + bcomb[d][...])     # (TB, 3H) f32

    # ---- Serial recurrence: one h @ W_hh matmul per direction per step.
    def step(t, carry):
        for d in range(num_dirs):
            td = t if d == 0 else T - 1 - t      # backward direction walks reversed time
            h = h_scr[d][...]                    # (TB, H) f32
            gi = gi_scr[d][td]                   # (TB, 3H) f32
            gh = jnp.dot(h.astype(whh[d].dtype), whh[d][...],
                         preferred_element_type=jnp.float32)      # (TB, 3H) f32
            r = jax.nn.sigmoid(gi[:, 0:H] + gh[:, 0:H])
            z = jax.nn.sigmoid(gi[:, H:2 * H] + gh[:, H:2 * H])
            n = jnp.tanh(gi[:, 2 * H:] + r * (gh[:, 2 * H:] + bhn[d][...]))
            h_new = n + z * (h - n)              # == (1-z)*n + z*h
            # Padded steps keep the old hidden (packed-sequence semantics): one select.
            keep = jnp.broadcast_to(m_ref[td], h.shape) > 0.0
            h_upd = jnp.where(keep, h_new, h)
            h_scr[d][...] = h_upd
            outs[d][td] = h_upd.astype(outs[d].dtype)
        return carry

    lax.fori_loop(0, T, step, 0, unroll=True)

    for d in range(num_dirs):
        hfin[d][...] = h_scr[d][...]


def fc_head_kernel(h_ref, w_ref, b_ref, out_ref):
    """Fused fc_mu|fc_logvar: one (B, D) @ (D, 2L) matmul, bf16 in / f32 accumulate."""
    out_ref[...] = (jnp.dot(h_ref[...], w_ref[...],
                            preferred_element_type=jnp.float32) + b_ref[...])


# ----------------------------------------------------------------------------
# Wrappers around pallas_call
# ----------------------------------------------------------------------------
_VMEM_SPEC = pl.BlockSpec(memory_space=pltpu.MemorySpace.VMEM)


def run_gru_layer(x_tbi, mask_tb1, dir_params, H, batch_tile=None):
    """Run one (bi)directional GRU layer over the whole sequence in a single pallas_call."""
    T, B, I = x_tbi.shape
    num_dirs = len(dir_params)
    TB = B if batch_tile is None else min(batch_tile, B)
    assert B % TB == 0
    grid = (B // TB,)                 # batch tiles: "parallel" -> shardable on v7x 2xTC

    in_specs = [
        pl.BlockSpec((T, TB, I), lambda b: (0, b, 0)),
        pl.BlockSpec((T, TB, 1), lambda b: (0, b, 0)),
    ]
    inputs = [x_tbi, mask_tb1]
    for w in dir_params:
        in_specs += [
            pl.BlockSpec((I, 3 * H), lambda b: (0, 0)),
            pl.BlockSpec((H, 3 * H), lambda b: (0, 0)),
            pl.BlockSpec((1, 3 * H), lambda b: (0, 0)),
            pl.BlockSpec((1, H), lambda b: (0, 0)),
        ]
        inputs += [w["wih"], w["whh"], w["bcomb"], w["bhn"]]

    out_shape = tuple(
        [jax.ShapeDtypeStruct((T, B, H), jnp.bfloat16) for _ in range(num_dirs)]
        + [jax.ShapeDtypeStruct((B, H), jnp.float32) for _ in range(num_dirs)])
    out_specs = tuple(
        [pl.BlockSpec((T, TB, H), lambda b: (0, b, 0)) for _ in range(num_dirs)]
        + [pl.BlockSpec((TB, H), lambda b: (b, 0)) for _ in range(num_dirs)])

    scratch_shapes = (
        [pltpu.VMEM((T, TB, 3 * H), jnp.float32) for _ in range(num_dirs)]
        + [pltpu.VMEM((TB, H), jnp.float32) for _ in range(num_dirs)])

    results = pl.pallas_call(
        functools.partial(gru_layer_kernel, num_dirs),
        out_shape=out_shape,
        grid=grid,
        in_specs=in_specs,
        out_specs=out_specs,
        scratch_shapes=scratch_shapes,
        compiler_params=pltpu.CompilerParams(
            dimension_semantics=("parallel",)),
    )(*inputs)

    outs = list(results[:num_dirs])
    hfins = list(results[num_dirs:])
    return outs, hfins


def run_fc_head(hidden_bf16, w, b):
    B = hidden_bf16.shape[0]
    out_dim = w.shape[1]
    return pl.pallas_call(
        fc_head_kernel,
        out_shape=jax.ShapeDtypeStruct((B, out_dim), jnp.float32),
        in_specs=[_VMEM_SPEC] * 3,
        out_specs=_VMEM_SPEC,
    )(hidden_bf16, w, b)


# ----------------------------------------------------------------------------
# Parameter init (deterministic, mirrors PyTorch init semantics; fused layout)
# ----------------------------------------------------------------------------
def init_params(key, vocab_size, emb_size, hidden_size, latent_size,
                num_layers, bidirectional):
    H = hidden_size
    num_dirs = 2 if bidirectional else 1
    params = {}

    key, k_emb = jax.random.split(key)
    # nn.init.uniform_(embedding.weight, -0.001, 0.001)
    params["embedding"] = jax.random.uniform(
        k_emb, (vocab_size, emb_size), jnp.float32, -0.001, 0.001)

    # GRU default init: U(-1/sqrt(H), 1/sqrt(H)) for all weights/biases (gate order r,z,n)
    kgru = 1.0 / math.sqrt(H)
    gru = {}
    for layer in range(num_layers):
        in_size = emb_size if layer == 0 else H * num_dirs
        for d in range(num_dirs):
            key, k1, k2, k3, k4 = jax.random.split(key, 5)
            w_ih = jax.random.uniform(k1, (3 * H, in_size), jnp.float32, -kgru, kgru)
            w_hh = jax.random.uniform(k2, (3 * H, H), jnp.float32, -kgru, kgru)
            b_ih = jax.random.uniform(k3, (3 * H,), jnp.float32, -kgru, kgru)
            b_hh = jax.random.uniform(k4, (3 * H,), jnp.float32, -kgru, kgru)
            # r/z hidden biases folded into the hoisted input projection; b_hn stays
            # separate because PyTorch multiplies it by r inside the n-gate.
            b_comb = b_ih.at[:2 * H].add(b_hh[:2 * H])
            gru[(layer, d)] = {
                "wih": w_ih.T.astype(jnp.bfloat16),     # (in_size, 3H)
                "whh": w_hh.T.astype(jnp.bfloat16),     # (H, 3H)
                "bcomb": b_comb[None, :],               # (1, 3H) f32
                "bhn": b_hh[2 * H:][None, :],           # (1, H)  f32
            }
    params["gru"] = gru

    # fc_mu / fc_logvar: xavier_uniform weight, bias = 0.01; fused into one (D, 2L) head.
    factor = num_dirs * num_layers
    D = H * factor
    bound = math.sqrt(6.0 / (D + latent_size))
    key, kmu, klv = jax.random.split(key, 3)
    w_mu = jax.random.uniform(kmu, (latent_size, D), jnp.float32, -bound, bound)
    w_lv = jax.random.uniform(klv, (latent_size, D), jnp.float32, -bound, bound)
    params["fc_w"] = jnp.concatenate([w_mu.T, w_lv.T], axis=1).astype(jnp.bfloat16)
    params["fc_b"] = jnp.full((1, 2 * latent_size), 0.01, jnp.float32)
    return params


# ----------------------------------------------------------------------------
# Forward pass (glue in JAX, hot path in Pallas kernels)
# ----------------------------------------------------------------------------
def rnn_encoder_forward(params, input_ids, input_ids_length,
                        hidden_size, num_layers, bidirectional):
    B, T = input_ids.shape
    H = hidden_size
    num_dirs = 2 if bidirectional else 1
    hidden_factor = num_dirs * num_layers

    # Embedding lookup (gather) in plain JAX glue; activations cast to bf16 for the MXU.
    emb = jnp.take(params["embedding"], input_ids, axis=0)          # (B, T, E)
    x = jnp.transpose(emb, (1, 0, 2)).astype(jnp.bfloat16)          # (T, B, E) time-major

    # Validity mask replaces pack_padded_sequence(enforce_sorted=False).
    t_idx = jnp.arange(T, dtype=jnp.int32)[:, None]                 # (T, 1)
    mask = (t_idx < input_ids_length[None, :]).astype(jnp.float32)[:, :, None]  # (T,B,1)

    finals = []
    layer_in = x
    for layer in range(num_layers):
        dir_params = [params["gru"][(layer, d)] for d in range(num_dirs)]
        outs, hfins = run_gru_layer(layer_in, mask, dir_params, H)
        finals.extend(hfins)
        layer_in = outs[0] if num_dirs == 1 else jnp.concatenate(outs, axis=-1)
        # TODO(synk): inter-layer dropout (p=0.1) omitted — eval-mode semantics.

    # h_n layout matches PyTorch: (num_layers*num_dirs, B, H), layer-major, dir-minor.
    h_n = jnp.stack(finals, axis=0)

    if bidirectional or num_layers > 1:
        # Exact reproduction of `hidden.view(batch_size, hidden_size*hidden_factor)`
        # (row-major reshape of the contiguous (F, B, H) tensor).
        hidden = jnp.reshape(h_n, (B, H * hidden_factor))
    else:
        hidden = h_n[0]   # (B, H); avoids squeezing a size-1 batch dim

    L = params["fc_w"].shape[1] // 2
    y = run_fc_head(hidden.astype(jnp.bfloat16), params["fc_w"], params["fc_b"])
    return y[:, :L], y[:, L:]


# ----------------------------------------------------------------------------
# Main
# ----------------------------------------------------------------------------
if __name__ == "__main__":
    vocab_size = 50
    embedding_size = 32
    hidden_size = 32
    latent_size = 16
    num_layers = 2
    bidirectional = True
    B, T = 2, 8

    key = jax.random.PRNGKey(0)
    k_params, k_ids = jax.random.split(key)

    params = init_params(k_params, vocab_size, embedding_size, hidden_size,
                         latent_size, num_layers, bidirectional)

    input_ids = jax.random.randint(k_ids, (B, T), 0, vocab_size, dtype=jnp.int32)
    input_ids_length = jnp.array([8, 5], dtype=jnp.int32)  # unsorted ok (enforce_sorted=False)

    fwd = jax.jit(functools.partial(rnn_encoder_forward,
                                    hidden_size=hidden_size,
                                    num_layers=num_layers,
                                    bidirectional=bidirectional))
    x_mu, x_logvar = fwd(params, input_ids, input_ids_length)
    jax.block_until_ready((x_mu, x_logvar))

    assert x_mu.shape == (B, latent_size)
    assert x_logvar.shape == (B, latent_size)
    print("KERNEL_OK")
</pallas_src>

<mosaic_0001>
module attributes {stable_mosaic.version = 11 : i64} {
  func.func @fc_head_kernel(%arg0: memref<2x128xbf16, #tpu.memory_space<vmem>>, %arg1: memref<128x32xbf16, #tpu.memory_space<vmem>>, %arg2: memref<1x32xf32, #tpu.memory_space<vmem>>, %arg3: memref<2x32xf32, #tpu.memory_space<vmem>>) attributes {dimension_semantics = [], scalar_prefetch = 0 : i64, scratch_operands = 0 : i64, tpu.core_type = #tpu.core_type<tc>} {
    %c0 = arith.constant 0 : index
    %c0_0 = arith.constant 0 : index
    %0 = vector.load %arg0[%c0, %c0_0] : memref<2x128xbf16, #tpu.memory_space<vmem>>, vector<2x128xbf16>
    %c0_1 = arith.constant 0 : index
    %c0_2 = arith.constant 0 : index
    %1 = vector.load %arg1[%c0_1, %c0_2] : memref<128x32xbf16, #tpu.memory_space<vmem>>, vector<128x32xbf16>
    %cst = arith.constant dense<0.000000e+00> : vector<2x32xf32>
    %2 = tpu.matmul %0, %1, %cst {dimension_numbers = #tpu.dot_dimension_numbers<[1], [0], [0], [1], [0, 0, 1, 1], [], []>} : vector<2x128xbf16>, vector<128x32xbf16>, vector<2x32xf32> -> vector<2x32xf32>
    %c0_3 = arith.constant 0 : index
    %c0_4 = arith.constant 0 : index
    %3 = vector.load %arg2[%c0_3, %c0_4] : memref<1x32xf32, #tpu.memory_space<vmem>>, vector<1x32xf32>
    %4 = vector.broadcast %3 : vector<1x32xf32> to vector<2x32xf32>
    %5 = arith.addf %2, %4 : vector<2x32xf32>
    %c0_5 = arith.constant 0 : index
    %c0_6 = arith.constant 0 : index
    %6 = vector.load %arg3[%c0_5, %c0_6] : memref<2x32xf32, #tpu.memory_space<vmem>>, vector<2x32xf32>
    tpu.vector_store %arg3[%c0_5, %c0_6], %5 {strides = array<i32>} : memref<2x32xf32, #tpu.memory_space<vmem>>, vector<2x32xf32>,
    return
  }
}

module attributes {stable_mosaic.version = 11 : i64} {
  func.func @gru_layer_kernel(%arg0: i32, %arg1: memref<8x2x64xbf16, #tpu.memory_space<vmem>>, %arg2: memref<8x2x1xf32, #tpu.memory_space<vmem>>, %arg3: memref<64x96xbf16, #tpu.memory_space<vmem>>, %arg4: memref<32x96xbf16, #tpu.memory_space<vmem>>, %arg5: memref<1x96xf32, #tpu.memory_space<vmem>>, %arg6: memref<1x32xf32, #tpu.memory_space<vmem>>, %arg7: memref<64x96xbf16, #tpu.memory_space<vmem>>, %arg8: memref<32x96xbf16, #tpu.memory_space<vmem>>, %arg9: memref<1x96xf32, #tpu.memory_space<vmem>>, %arg10: memref<1x32xf32, #tpu.memory_space<vmem>>, %arg11: memref<8x2x32xbf16, #tpu.memory_space<vmem>>, %arg12: memref<8x2x32xbf16, #tpu.memory_space<vmem>>, %arg13: memref<2x32xf32, #tpu.memory_space<vmem>>, %arg14: memref<2x32xf32, #tpu.memory_space<vmem>>, %arg15: memref<8x2x96xf32, #tpu.memory_space<vmem>>, %arg16: memref<8x2x96xf32, #tpu.memory_space<vmem>>, %arg17: memref<2x32xf32, #tpu.memory_space<vmem>>, %arg18: memref<2x32xf32, #tpu.memory_space<vmem>>) attributes {dimension_semantics = [#tpu.dimension_semantics<parallel>], iteration_bounds = array<i64: 1>, scalar_prefetch = 0 : i64, scratch_operands = 4 : i64, tpu.core_type = #tpu.core_type<tc>, window_params = [{transform_indices = @transform_0, window_bounds = array<i64: 8, 2, 64>}, {transform_indices = @transform_1, window_bounds = array<i64: 8, 2, 1>}, {pipeline_mode = #tpu.pipeline_mode<synchronous>, transform_indices = @transform_2, window_bounds = array<i64: 64, 96>}, {pipeline_mode = #tpu.pipeline_mode<synchronous>, transform_indices = @transform_3, window_bounds = array<i64: 32, 96>}, {pipeline_mode = #tpu.pipeline_mode<synchronous>, transform_indices = @transform_4, window_bounds = array<i64: 1, 96>}, {pipeline_mode = #tpu.pipeline_mode<synchronous>, transform_indices = @transform_5, window_bounds = array<i64: 1, 32>}, {pipeline_mode = #tpu.pipeline_mode<synchronous>, transform_indices = @transform_6, window_bounds = array<i64: 64, 96>}, {pipeline_mode = #tpu.pipeline_mode<synchronous>, transform_indices = @transform_7, window_bounds = array<i64: 32, 96>}, {pipeline_mode = #tpu.pipeline_mode<synchronous>, transform_indices = @transform_8, window_bounds = array<i64: 1, 96>}, {pipeline_mode = #tpu.pipeline_mode<synchronous>, transform_indices = @transform_9, window_bounds = array<i64: 1, 32>}, {transform_indices = @transform_10, window_bounds = array<i64: 8, 2, 32>}, {transform_indices = @transform_11, window_bounds = array<i64: 8, 2, 32>}, {transform_indices = @transform_12, window_bounds = array<i64: 2, 32>}, {transform_indices = @transform_13, window_bounds = array<i64: 2, 32>}]} {
    %cst = arith.constant 0.000000e+00 : f32
    %0 = vector.broadcast %cst : f32 to vector<2x32xf32>
    %c0 = arith.constant 0 : index
    %c0_0 = arith.constant 0 : index
    %1 = vector.load %arg17[%c0, %c0_0] : memref<2x32xf32, #tpu.memory_space<vmem>>, vector<2x32xf32>
    tpu.vector_store %arg17[%c0, %c0_0], %0 {strides = array<i32>} : memref<2x32xf32, #tpu.memory_space<vmem>>, vector<2x32xf32>,
    %cst_1 = arith.constant 0.000000e+00 : f32
    %2 = vector.broadcast %cst_1 : f32 to vector<2x32xf32>
    %c0_2 = arith.constant 0 : index
    %c0_3 = arith.constant 0 : index
    %3 = vector.load %arg18[%c0_2, %c0_3] : memref<2x32xf32, #tpu.memory_space<vmem>>, vector<2x32xf32>
    tpu.vector_store %arg18[%c0_2, %c0_3], %2 {strides = array<i32>} : memref<2x32xf32, #tpu.memory_space<vmem>>, vector<2x32xf32>,
    %c0_4 = arith.constant 0 : index
    %c0_5 = arith.constant 0 : index
    %c0_6 = arith.constant 0 : index
    %4 = vector.load %arg1[%c0_4, %c0_5, %c0_6] : memref<8x2x64xbf16, #tpu.memory_space<vmem>>, vector<1x2x64xbf16>
    %5 = vector.shape_cast %4 : vector<1x2x64xbf16> to vector<2x64xbf16>
    %c0_7 = arith.constant 0 : index
    %c0_8 = arith.constant 0 : index
    %6 = vector.load %arg3[%c0_7, %c0_8] : memref<64x96xbf16, #tpu.memory_space<vmem>>, vector<64x96xbf16>
    %cst_9 = arith.constant dense<0.000000e+00> : vector<2x96xf32>
    %7 = tpu.matmul %5, %6, %cst_9 {dimension_numbers = #tpu.dot_dimension_numbers<[1], [0], [0], [1], [0, 0, 1, 1], [], []>} : vector<2x64xbf16>, vector<64x96xbf16>, vector<2x96xf32> -> vector<2x96xf32>
    %c0_10 = arith.constant 0 : index
    %c0_11 = arith.constant 0 : index
    %8 = vector.load %arg5[%c0_10, %c0_11] : memref<1x96xf32, #tpu.memory_space<vmem>>, vector<1x96xf32>
    %9 = vector.broadcast %8 : vector<1x96xf32> to vector<2x96xf32>
    %10 = arith.addf %7, %9 : vector<2x96xf32>
    %c0_12 = arith.constant 0 : index
    %c0_13 = arith.constant 0 : index
    %c0_14 = arith.constant 0 : index
    %11 = vector.load %arg15[%c0_12, %c0_13, %c0_14] : memref<8x2x96xf32, #tpu.memory_space<vmem>>, vector<1x2x96xf32>
    %12 = vector.shape_cast %11 : vector<1x2x96xf32> to vector<2x96xf32>
    %13 = vector.shape_cast %10 : vector<2x96xf32> to vector<1x2x96xf32>
    tpu.vector_store %arg15[%c0_12, %c0_13, %c0_14], %13 {strides = array<i32>} : memref<8x2x96xf32, #tpu.memory_space<vmem>>, vector<1x2x96xf32>,
    %c0_15 = arith.constant 0 : index
    %c0_16 = arith.constant 0 : index
    %14 = vector.load %arg7[%c0_15, %c0_16] : memref<64x96xbf16, #tpu.memory_space<vmem>>, vector<64x96xbf16>
    %cst_17 = arith.constant dense<0.000000e+00> : vector<2x96xf32>
    %15 = tpu.matmul %5, %14, %cst_17 {dimension_numbers = #tpu.dot_dimension_numbers<[1], [0], [0], [1], [0, 0, 1, 1], [], []>} : vector<2x64xbf16>, vector<64x96xbf16>, vector<2x96xf32> -> vector<2x96xf32>
    %c0_18 = arith.constant 0 : index
    %c0_19 = arith.constant 0 : index
    %16 = vector.load %arg9[%c0_18, %c0_19] : memref<1x96xf32, #tpu.memory_space<vmem>>, vector<1x96xf32>
    %17 = vector.broadcast %16 : vector<1x96xf32> to vector<2x96xf32>
    %18 = arith.addf %15, %17 : vector<2x96xf32>
    %c0_20 = arith.constant 0 : index
    %c0_21 = arith.constant 0 : index
    %c0_22 = arith.constant 0 : index
    %19 = vector.load %arg16[%c0_20, %c0_21, %c0_22] : memref<8x2x96xf32, #tpu.memory_space<vmem>>, vector<1x2x96xf32>
    %20 = vector.shape_cast %19 : vector<1x2x96xf32> to vector<2x96xf32>
    %21 = vector.shape_cast %18 : vector<2x96xf32> to vector<1x2x96xf32>
    tpu.vector_store %arg16[%c0_20, %c0_21, %c0_22], %21 {strides = array<i32>} : memref<8x2x96xf32, #tpu.memory_space<vmem>>, vector<1x2x96xf32>,
    %c1 = arith.constant 1 : index
    %c0_23 = arith.constant 0 : index
    %c0_24 = arith.constant 0 : index
    %22 = vector.load %arg1[%c1, %c0_23, %c0_24] : memref<8x2x64xbf16, #tpu.memory_space<vmem>>, vector<1x2x64xbf16>
    %23 = vector.shape_cast %22 : vector<1x2x64xbf16> to vector<2x64xbf16>
    %c0_25 = arith.constant 0 : index
    %c0_26 = arith.constant 0 : index
    %24 = vector.load %arg3[%c0_25, %c0_26] : memref<64x96xbf16, #tpu.memory_space<vmem>>, vector<64x96xbf16>
    %cst_27 = arith.constant dense<0.000000e+00> : vector<2x96xf32>
    %25 = tpu.matmul %23, %24, %cst_27 {dimension_numbers = #tpu.dot_dimension_numbers<[1], [0], [0], [1], [0, 0, 1, 1], [], []>} : vector<2x64xbf16>, vector<64x96xbf16>, vector<2x96xf32> -> vector<2x96xf32>
    %c0_28 = arith.constant 0 : index
    %c0_29 = arith.constant 0 : index
    %26 = vector.load %arg5[%c0_28, %c0_29] : memref<1x96xf32, #tpu.memory_space<vmem>>, vector<1x96xf32>
    %27 = vector.broadcast %26 : vector<1x96xf32> to vector<2x96xf32>
    %28 = arith.addf %25, %27 : vector<2x96xf32>
    %c1_30 = arith.constant 1 : index
    %c0_31 = arith.constant 0 : index
    %c0_32 = arith.constant 0 : index
    %29 = vector.load %arg15[%c1_30, %c0_31, %c0_32] : memref<8x2x96xf32, #tpu.memory_space<vmem>>, vector<1x2x96xf32>
    %30 = vector.shape_cast %29 : vector<1x2x96xf32> to vector<2x96xf32>
    %31 = vector.shape_cast %28 : vector<2x96xf32> to vector<1x2x96xf32>
    tpu.vector_store %arg15[%c1_30, %c0_31, %c0_32], %31 {strides = array<i32>} : memref<8x2x96xf32, #tpu.memory_space<vmem>>, vector<1x2x96xf32>,
    %c0_33 = arith.constant 0 : index
    %c0_34 = arith.constant 0 : index
    %32 = vector.load %arg7[%c0_33, %c0_34] : memref<64x96xbf16, #tpu.memory_space<vmem>>, vector<64x96xbf16>
    %cst_35 = arith.constant dense<0.000000e+00> : vector<2x96xf32>
    %33 = tpu.matmul %23, %32, %cst_35 {dimension_numbers = #tpu.dot_dimension_numbers<[1], [0], [0], [1], [0, 0, 1, 1], [], []>} : vector<2x64xbf16>, vector<64x96xbf16>, vector<2x96xf32> -> vector<2x96xf32>
    %c0_36 = arith.constant 0 : index
    %c0_37 = arith.constant 0 : index
    %34 = vector.load %arg9[%c0_36, %c0_37] : memref<1x96xf32, #tpu.memory_space<vmem>>, vector<1x96xf32>
    %35 = vector.broadcast %34 : vector<1x96xf32> to vector<2x96xf32>
    %36 = arith.addf %33, %35 : vector<2x96xf32>
    %c1_38 = arith.constant 1 : index
    %c0_39 = arith.constant 0 : index
    %c0_40 = arith.constant 0 : index
    %37 = vector.load %arg16[%c1_38, %c0_39, %c0_40] : memref<8x2x96xf32, #tpu.memory_space<vmem>>, vector<1x2x96xf32>
    %38 = vector.shape_cast %37 : vector<1x2x96xf32> to vector<2x96xf32>
    %39 = vector.shape_cast %36 : vector<2x96xf32> to vector<1x2x96xf32>
    tpu.vector_store %arg16[%c1_38, %c0_39, %c0_40], %39 {strides = array<i32>} : memref<8x2x96xf32, #tpu.memory_space<vmem>>, vector<1x2x96xf32>,
    %c2 = arith.constant 2 : index
    %c0_41 = arith.constant 0 : index
    %c0_42 = arith.constant 0 : index
    %40 = vector.load %arg1[%c2, %c0_41, %c0_42] : memref<8x2x64xbf16, #tpu.memory_space<vmem>>, vector<1x2x64xbf16>
    %41 = vector.shape_cast %40 : vector<1x2x64xbf16> to vector<2x64xbf16>
    %c0_43 = arith.constant 0 : index
    %c0_44 = arith.constant 0 : index
    %42 = vector.load %arg3[%c0_43, %c0_44] : memref<64x96xbf16, #tpu.memory_space<vmem>>, vector<64x96xbf16>
    %cst_45 = arith.constant dense<0.000000e+00> : vector<2x96xf32>
    %43 = tpu.matmul %41, %42, %cst_45 {dimension_numbers = #tpu.dot_dimension_numbers<[1], [0], [0], [1], [0, 0, 1, 1], [], []>} : vector<2x64xbf16>, vector<64x96xbf16>, vector<2x96xf32> -> vector<2x96xf32>
    %c0_46 = arith.constant 0 : index
    %c0_47 = arith.constant 0 : index
    %44 = vector.load %arg5[%c0_46, %c0_47] : memref<1x96xf32, #tpu.memory_space<vmem>>, vector<1x96xf32>
    %45 = vector.broadcast %44 : vector<1x96xf32> to vector<2x96xf32>
    %46 = arith.addf %43, %45 : vector<2x96xf32>
    %c2_48 = arith.constant 2 : index
    %c0_49 = arith.constant 0 : index
    %c0_50 = arith.constant 0 : index
    %47 = vector.load %arg15[%c2_48, %c0_49, %c0_50] : memref<8x2x96xf32, #tpu.memory_space<vmem>>, vector<1x2x96xf32>
    %48 = vector.shape_cast %47 : vector<1x2x96xf32> to vector<2x96xf32>
    %49 = vector.shape_cast %46 : vector<2x96xf32> to vector<1x2x96xf32>
    tpu.vector_store %arg15[%c2_48, %c0_49, %c0_50], %49 {strides = array<i32>} : memref<8x2x96xf32, #tpu.memory_space<vmem>>, vector<1x2x96xf32>,
    %c0_51 = arith.constant 0 : index
    %c0_52 = arith.constant 0 : index
    %50 = vector.load %arg7[%c0_51, %c0_52] : memref<64x96xbf16, #tpu.memory_space<vmem>>, vector<64x96xbf16>
    %cst_53 = arith.constant dense<0.000000e+00> : vector<2x96xf32>
    %51 = tpu.matmul %41, %50, %cst_53 {dimension_numbers = #tpu.dot_dimension_numbers<[1], [0], [0], [1], [0, 0, 1, 1], [], []>} : vector<2x64xbf16>, vector<64x96xbf16>, vector<2x96xf32> -> vector<2x96xf32>
    %c0_54 = arith.constant 0 : index
    %c0_55 = arith.constant 0 : index
    %52 = vector.load %arg9[%c0_54, %c0_55] : memref<1x96xf32, #tpu.memory_space<vmem>>, vector<1x96xf32>
    %53 = vector.broadcast %52 : vector<1x96xf32> to vector<2x96xf32>
    %54 = arith.addf %51, %53 : vector<2x96xf32>
    %c2_56 = arith.constant 2 : index
    %c0_57 = arith.constant 0 : index
    %c0_58 = arith.constant 0 : index
    %55 = vector.load %arg16[%c2_56, %c0_57, %c0_58] : memref<8x2x96xf32, #tpu.memory_space<vmem>>, vector<1x2x96xf32>
    %56 = vector.shape_cast %55 : vector<1x2x96xf32> to vector<2x96xf32>
    %57 = vector.shape_cast %54 : vector<2x96xf32> to vector<1x2x96xf32>
    tpu.vector_store %arg16[%c2_56, %c0_57, %c0_58], %57 {strides = array<i32>} : memref<8x2x96xf32, #tpu.memory_space<vmem>>, vector<1x2x96xf32>,
    %c3 = arith.constant 3 : index
    %c0_59 = arith.constant 0 : index
    %c0_60 = arith.constant 0 : index
    %58 = vector.load %arg1[%c3, %c0_59, %c0_60] : memref<8x2x64xbf16, #tpu.memory_space<vmem>>, vector<1x2x64xbf16>
    %59 = vector.shape_cast %58 : vector<1x2x64xbf16> to vector<2x64xbf16>
    %c0_61 = arith.constant 0 : index
    %c0_62 = arith.constant 0 : index
    %60 = vector.load %arg3[%c0_61, %c0_62] : memref<64x96xbf16, #tpu.memory_space<vmem>>, vector<64x96xbf16>
    %cst_63 = arith.constant dense<0.000000e+00> : vector<2x96xf32>
    %61 = tpu.matmul %59, %60, %cst_63 {dimension_numbers = #tpu.dot_dimension_numbers<[1], [0], [0], [1], [0, 0, 1, 1], [], []>} : vector<2x64xbf16>, vector<64x96xbf16>, vector<2x96xf32> -> vector<2x96xf32>
    %c0_64 = arith.constant 0 : index
    %c0_65 = arith.constant 0 : index
    %62 = vector.load %arg5[%c0_64, %c0_65] : memref<1x96xf32, #tpu.memory_space<vmem>>, vector<1x96xf32>
    %63 = vector.broadcast %62 : vector<1x96xf32> to vector<2x96xf32>
    %64 = arith.addf %61, %63 : vector<2x96xf32>
    %c3_66 = arith.constant 3 : index
    %c0_67 = arith.constant 0 : index
    %c0_68 = arith.constant 0 : index
    %65 = vector.load %arg15[%c3_66, %c0_67, %c0_68] : memref<8x2x96xf32, #tpu.memory_space<vmem>>, vector<1x2x96xf32>
    %66 = vector.shape_cast %65 : vector<1x2x96xf32> to vector<2x96xf32>
    %67 = vector.shape_cast %64 : vector<2x96xf32> to vector<1x2x96xf32>
    tpu.vector_store %arg15[%c3_66, %c0_67, %c0_68], %67 {strides = array<i32>} : memref<8x2x96xf32, #tpu.memory_space<vmem>>, vector<1x2x96xf32>,
    %c0_69 = arith.constant 0 : index
    %c0_70 = arith.constant 0 : index
    %68 = vector.load %arg7[%c0_69, %c0_70] : memref<64x96xbf16, #tpu.memory_space<vmem>>, vector<64x96xbf16>
    %cst_71 = arith.constant dense<0.000000e+00> : vector<2x96xf32>
    %69 = tpu.matmul %59, %68, %cst_71 {dimension_numbers = #tpu.dot_dimension_numbers<[1], [0], [0], [1], [0, 0, 1, 1], [], []>} : vector<2x64xbf16>, vector<64x96xbf16>, vector<2x96xf32> -> vector<2x96xf32>
    %c0_72 = arith.constant 0 : index
    %c0_73 = arith.constant 0 : index
    %70 = vector.load %arg9[%c0_72, %c0_73] : memref<1x96xf32, #tpu.memory_space<vmem>>, vector<1x96xf32>
    %71 = vector.broadcast %70 : vector<1x96xf32> to vector<2x96xf32>
    %72 = arith.addf %69, %71 : vector<2x96xf32>
    %c3_74 = arith.constant 3 : index
    %c0_75 = arith.constant 0 : index
    %c0_76 = arith.constant 0 : index
    %73 = vector.load %arg16[%c3_74, %c0_75, %c0_76] : memref<8x2x96xf32, #tpu.memory_space<vmem>>, vector<1x2x96xf32>
    %74 = vector.shape_cast %73 : vector<1x2x96xf32> to vector<2x96xf32>
    %75 = vector.shape_cast %72 : vector<2x96xf32> to vector<1x2x96xf32>
    tpu.vector_store %arg16[%c3_74, %c0_75, %c0_76], %75 {strides = array<i32>} : memref<8x2x96xf32, #tpu.memory_space<vmem>>, vector<1x2x96xf32>,
    %c4 = arith.constant 4 : index
    %c0_77 = arith.constant 0 : index
    %c0_78 = arith.constant 0 : index
    %76 = vector.load %arg1[%c4, %c0_77, %c0_78] : memref<8x2x64xbf16, #tpu.memory_space<vmem>>, vector<1x2x64xbf16>
    %77 = vector.shape_cast %76 : vector<1x2x64xbf16> to vector<2x64xbf16>
    %c0_79 = arith.constant 0 : index
    %c0_80 = arith.constant 0 : index
    %78 = vector.load %arg3[%c0_79, %c0_80] : memref<64x96xbf16, #tpu.memory_space<vmem>>, vector<64x96xbf16>
    %cst_81 = arith.constant dense<0.000000e+00> : vector<2x96xf32>
    %79 = tpu.matmul %77, %78, %cst_81 {dimension_numbers = #tpu.dot_dimension_numbers<[1], [0], [0], [1], [0, 0, 1, 1], [], []>} : vector<2x64xbf16>, vector<64x96xbf16>, vector<2x96xf32> -> vector<2x96xf32>
    %c0_82 = arith.constant 0 : index
    %c0_83 = arith.constant 0 : index
    %80 = vector.load %arg5[%c0_82, %c0_83] : memref<1x96xf32, #tpu.memory_space<vmem>>, vector<1x96xf32>
    %81 = vector.broadcast %80 : vector<1x96xf32> to vector<2x96xf32>
    %82 = arith.addf %79, %81 : vector<2x96xf32>
    %c4_84 = arith.constant 4 : index
    %c0_85 = arith.constant 0 : index
    %c0_86 = arith.constant 0 : index
    %83 = vector.load %arg15[%c4_84, %c0_85, %c0_86] : memref<8x2x96xf32, #tpu.memory_space<vmem>>, vector<1x2x96xf32>
    %84 = vector.shape_cast %83 : vector<1x2x96xf32> to vector<2x96xf32>
    %85 = vector.shape_cast %82 : vector<2x96xf32> to vector<1x2x96xf32>
    tpu.vector_store %arg15[%c4_84, %c0_85, %c0_86], %85 {strides = array<i32>} : memref<8x2x96xf32, #tpu.memory_space<vmem>>, vector<1x2x96xf32>,
    %c0_87 = arith.constant 0 : index
    %c0_88 = arith.constant 0 : index
    %86 = vector.load %arg7[%c0_87, %c0_88] : memref<64x96xbf16, #tpu.memory_space<vmem>>, vector<64x96xbf16>
    %cst_89 = arith.constant dense<0.000000e+00> : vector<2x96xf32>
    %87 = tpu.matmul %77, %86, %cst_89 {dimension_numbers = #tpu.dot_dimension_numbers<[1], [0], [0], [1], [0, 0, 1, 1], [], []>} : vector<2x64xbf16>, vector<64x96xbf16>, vector<2x96xf32> -> vector<2x96xf32>
    %c0_90 = arith.constant 0 : index
    %c0_91 = arith.constant 0 : index
    %88 = vector.load %arg9[%c0_90, %c0_91] : memref<1x96xf32, #tpu.memory_space<vmem>>, vector<1x96xf32>
    %89 = vector.broadcast %88 : vector<1x96xf32> to vector<2x96xf32>
    %90 = arith.addf %87, %89 : vector<2x96xf32>
    %c4_92 = arith.constant 4 : index
    %c0_93 = arith.constant 0 : index
    %c0_94 = arith.constant 0 : index
    %91 = vector.load %arg16[%c4_92, %c0_93, %c0_94] : memref<8x2x96xf32, #tpu.memory_space<vmem>>, vector<1x2x96xf32>
    %92 = vector.shape_cast %91 : vector<1x2x96xf32> to vector<2x96xf32>
    %93 = vector.shape_cast %90 : vector<2x96xf32> to vector<1x2x96xf32>
    tpu.vector_store %arg16[%c4_92, %c0_93, %c0_94], %93 {strides = array<i32>} : memref<8x2x96xf32, #tpu.memory_space<vmem>>, vector<1x2x96xf32>,
    %c5 = arith.constant 5 : index
    %c0_95 = arith.constant 0 : index
    %c0_96 = arith.constant 0 : index
    %94 = vector.load %arg1[%c5, %c0_95, %c0_96] : memref<8x2x64xbf16, #tpu.memory_space<vmem>>, vector<1x2x64xbf16>
    %95 = vector.shape_cast %94 : vector<1x2x64xbf16> to vector<2x64xbf16>
    %c0_97 = arith.constant 0 : index
    %c0_98 = arith.constant 0 : index
    %96 = vector.load %arg3[%c0_97, %c0_98] : memref<64x96xbf16, #tpu.memory_space<vmem>>, vector<64x96xbf16>
    %cst_99 = arith.constant dense<0.000000e+00> : vector<2x96xf32>
    %97 = tpu.matmul %95, %96, %cst_99 {dimension_numbers = #tpu.dot_dimension_numbers<[1], [0], [0], [1], [0, 0, 1, 1], [], []>} : vector<2x64xbf16>, vector<64x96xbf16>, vector<2x96xf32> -> vector<2x96xf32>
    %c0_100 = arith.constant 0 : index
    %c0_101 = arith.constant 0 : index
    %98 = vector.load %arg5[%c0_100, %c0_101] : memref<1x96xf32, #tpu.memory_space<vmem>>, vector<1x96xf32>
    %99 = vector.broadcast %98 : vector<1x96xf32> to vector<2x96xf32>
    %100 = arith.addf %97, %99 : vector<2x96xf32>
    %c5_102 = arith.constant 5 : index
    %c0_103 = arith.constant 0 : index
    %c0_104 = arith.constant 0 : index
    %101 = vector.load %arg15[%c5_102, %c0_103, %c0_104] : memref<8x2x96xf32, #tpu.memory_space<vmem>>, vector<1x2x96xf32>
    %102 = vector.shape_cast %101 : vector<1x2x96xf32> to vector<2x96xf32>
    %103 = vector.shape_cast %100 : vector<2x96xf32> to vector<1x2x96xf32>
    tpu.vector_store %arg15[%c5_102, %c0_103, %c0_104], %103 {strides = array<i32>} : memref<8x2x96xf32, #tpu.memory_space<vmem>>, vector<1x2x96xf32>,
    %c0_105 = arith.constant 0 : index
    %c0_106 = arith.constant 0 : index
    %104 = vector.load %arg7[%c0_105, %c0_106] : memref<64x96xbf16, #tpu.memory_space<vmem>>, vector<64x96xbf16>
    %cst_107 = arith.constant dense<0.000000e+00> : vector<2x96xf32>
    %105 = tpu.matmul %95, %104, %cst_107 {dimension_numbers = #tpu.dot_dimension_numbers<[1], [0], [0], [1], [0, 0, 1, 1], [], []>} : vector<2x64xbf16>, vector<64x96xbf16>, vector<2x96xf32> -> vector<2x96xf32>
    %c0_108 = arith.constant 0 : index
    %c0_109 = arith.constant 0 : index
    %106 = vector.load %arg9[%c0_108, %c0_109] : memref<1x96xf32, #tpu.memory_space<vmem>>, vector<1x96xf32>
    %107 = vector.broadcast %106 : vector<1x96xf32> to vector<2x96xf32>
    %108 = arith.addf %105, %107 : vector<2x96xf32>
    %c5_110 = arith.constant 5 : index
    %c0_111 = arith.constant 0 : index
    %c0_112 = arith.constant 0 : index
    %109 = vector.load %arg16[%c5_110, %c0_111, %c0_112] : memref<8x2x96xf32, #tpu.memory_space<vmem>>, vector<1x2x96xf32>
    %110 = vector.shape_cast %109 : vector<1x2x96xf32> to vector<2x96xf32>
    %111 = vector.shape_cast %108 : vector<2x96xf32> to vector<1x2x96xf32>
    tpu.vector_store %arg16[%c5_110, %c0_111, %c0_112], %111 {strides = array<i32>} : memref<8x2x96xf32, #tpu.memory_space<vmem>>, vector<1x2x96xf32>,
    %c6 = arith.constant 6 : index
    %c0_113 = arith.constant 0 : index
    %c0_114 = arith.constant 0 : index
    %112 = vector.load %arg1[%c6, %c0_113, %c0_114] : memref<8x2x64xbf16, #tpu.memory_space<vmem>>, vector<1x2x64xbf16>
    %113 = vector.shape_cast %112 : vector<1x2x64xbf16> to vector<2x64xbf16>
    %c0_115 = arith.constant 0 : index
    %c0_116 = arith.constant 0 : index
    %114 = vector.load %arg3[%c0_115, %c0_116] : memref<64x96xbf16, #tpu.memory_space<vmem>>, vector<64x96xbf16>
    %cst_117 = arith.constant dense<0.000000e+00> : vector<2x96xf32>
    %115 = tpu.matmul %113, %114, %cst_117 {dimension_numbers = #tpu.dot_dimension_numbers<[1], [0], [0], [1], [0, 0, 1, 1], [], []>} : vector<2x64xbf16>, vector<64x96xbf16>, vector<2x96xf32> -> vector<2x96xf32>
    %c0_118 = arith.constant 0 : index
    %c0_119 = arith.constant 0 : index
    %116 = vector.load %arg5[%c0_118, %c0_119] : memref<1x96xf32, #tpu.memory_space<vmem>>, vector<1x96xf32>
    %117 = vector.broadcast %116 : vector<1x96xf32> to vector<2x96xf32>
    %118 = arith.addf %115, %117 : vector<2x96xf32>
    %c6_120 = arith.constant 6 : index
    %c0_121 = arith.constant 0 : index
    %c0_122 = arith.constant 0 : index
    %119 = vector.load %arg15[%c6_120, %c0_121, %c0_122] : memref<8x2x96xf32, #tpu.memory_space<vmem>>, vector<1x2x96xf32>
    %120 = vector.shape_cast %119 : vector<1x2x96xf32> to vector<2x96xf32>
    %121 = vector.shape_cast %118 : vector<2x96xf32> to vector<1x2x96xf32>
    tpu.vector_store %arg15[%c6_120, %c0_121, %c0_122], %121 {strides = array<i32>} : memref<8x2x96xf32, #tpu.memory_space<vmem>>, vector<1x2x96xf32>,
    %c0_123 = arith.constant 0 : index
    %c0_124 = arith.constant 0 : index
    %122 = vector.load %arg7[%c0_123, %c0_124] : memref<64x96xbf16, #tpu.memory_space<vmem>>, vector<64x96xbf16>
    %cst_125 = arith.constant dense<0.000000e+00> : vector<2x96xf32>
    %123 = tpu.matmul %113, %122, %cst_125 {dimension_numbers = #tpu.dot_dimension_numbers<[1], [0], [0], [1], [0, 0, 1, 1], [], []>} : vector<2x64xbf16>, vector<64x96xbf16>, vector<2x96xf32> -> vector<2x96xf32>
    %c0_126 = arith.constant 0 : index
    %c0_127 = arith.constant 0 : index
    %124 = vector.load %arg9[%c0_126, %c0_127] : memref<1x96xf32, #tpu.memory_space<vmem>>, vector<1x96xf32>
    %125 = vector.broadcast %124 : vector<1x96xf32> to vector<2x96xf32>
    %126 = arith.addf %123, %125 : vector<2x96xf32>
    %c6_128 = arith.constant 6 : index
    %c0_129 = arith.constant 0 : index
    %c0_130 = arith.constant 0 : index
    %127 = vector.load %arg16[%c6_128, %c0_129, %c0_130] : memref<8x2x96xf32, #tpu.memory_space<vmem>>, vector<1x2x96xf32>
    %128 = vector.shape_cast %127 : vector<1x2x96xf32> to vector<2x96xf32>
    %129 = vector.shape_cast %126 : vector<2x96xf32> to vector<1x2x96xf32>
    tpu.vector_store %arg16[%c6_128, %c0_129, %c0_130], %129 {strides = array<i32>} : memref<8x2x96xf32, #tpu.memory_space<vmem>>, vector<1x2x96xf32>,
    %c7 = arith.constant 7 : index
    %c0_131 = arith.constant 0 : index
    %c0_132 = arith.constant 0 : index
    %130 = vector.load %arg1[%c7, %c0_131, %c0_132] : memref<8x2x64xbf16, #tpu.memory_space<vmem>>, vector<1x2x64xbf16>
    %131 = vector.shape_cast %130 : vector<1x2x64xbf16> to vector<2x64xbf16>
    %c0_133 = arith.constant 0 : index
    %c0_134 = arith.constant 0 : index
    %132 = vector.load %arg3[%c0_133, %c0_134] : memref<64x96xbf16, #tpu.memory_space<vmem>>, vector<64x96xbf16>
    %cst_135 = arith.constant dense<0.000000e+00> : vector<2x96xf32>
    %133 = tpu.matmul %131, %132, %cst_135 {dimension_numbers = #tpu.dot_dimension_numbers<[1], [0], [0], [1], [0, 0, 1, 1], [], []>} : vector<2x64xbf16>, vector<64x96xbf16>, vector<2x96xf32> -> vector<2x96xf32>
    %c0_136 = arith.constant 0 : index
    %c0_137 = arith.constant 0 : index
    %134 = vector.load %arg5[%c0_136, %c0_137] : memref<1x96xf32, #tpu.memory_space<vmem>>, vector<1x96xf32>
    %135 = vector.broadcast %134 : vector<1x96xf32> to vector<2x96xf32>
    %136 = arith.addf %133, %135 : vector<2x96xf32>
    %c7_138 = arith.constant 7 : index
    %c0_139 = arith.constant 0 : index
    %c0_140 = arith.constant 0 : index
    %137 = vector.load %arg15[%c7_138, %c0_139, %c0_140] : memref<8x2x96xf32, #tpu.memory_space<vmem>>, vector<1x2x96xf32>
    %138 = vector.shape_cast %137 : vector<1x2x96xf32> to vector<2x96xf32>
    %139 = vector.shape_cast %136 : vector<2x96xf32> to vector<1x2x96xf32>
    tpu.vector_store %arg15[%c7_138, %c0_139, %c0_140], %139 {strides = array<i32>} : memref<8x2x96xf32, #tpu.memory_space<vmem>>, vector<1x2x96xf32>,
    %c0_141 = arith.constant 0 : index
    %c0_142 = arith.constant 0 : index
    %140 = vector.load %arg7[%c0_141, %c0_142] : memref<64x96xbf16, #tpu.memory_space<vmem>>, vector<64x96xbf16>
    %cst_143 = arith.constant dense<0.000000e+00> : vector<2x96xf32>
    %141 = tpu.matmul %131, %140, %cst_143 {dimension_numbers = #tpu.dot_dimension_numbers<[1], [0], [0], [1], [0, 0, 1, 1], [], []>} : vector<2x64xbf16>, vector<64x96xbf16>, vector<2x96xf32> -> vector<2x96xf32>
    %c0_144 = arith.constant 0 : index
    %c0_145 = arith.constant 0 : index
    %142 = vector.load %arg9[%c0_144, %c0_145] : memref<1x96xf32, #tpu.memory_space<vmem>>, vector<1x96xf32>
    %143 = vector.broadcast %142 : vector<1x96xf32> to vector<2x96xf32>
    %144 = arith.addf %141, %143 : vector<2x96xf32>
    %c7_146 = arith.constant 7 : index
    %c0_147 = arith.constant 0 : index
    %c0_148 = arith.constant 0 : index
    %145 = vector.load %arg16[%c7_146, %c0_147, %c0_148] : memref<8x2x96xf32, #tpu.memory_space<vmem>>, vector<1x2x96xf32>
    %146 = vector.shape_cast %145 : vector<1x2x96xf32> to vector<2x96xf32>
    %147 = vector.shape_cast %144 : vector<2x96xf32> to vector<1x2x96xf32>
    tpu.vector_store %arg16[%c7_146, %c0_147, %c0_148], %147 {strides = array<i32>} : memref<8x2x96xf32, #tpu.memory_space<vmem>>, vector<1x2x96xf32>,
    %c0_i32 = arith.constant 0 : i32
    %c0_149 = arith.constant 0 : index
    %c0_150 = arith.constant 0 : index
    %148 = vector.load %arg17[%c0_149, %c0_150] : memref<2x32xf32, #tpu.memory_space<vmem>>, vector<2x32xf32>
    %149 = arith.index_cast %c0_i32 : i32 to index
    %c0_151 = arith.constant 0 : index
    %c0_152 = arith.constant 0 : index
    %150 = vector.load %arg15[%149, %c0_151, %c0_152] : memref<8x2x96xf32, #tpu.memory_space<vmem>>, vector<1x2x96xf32>
    %151 = vector.shape_cast %150 : vector<1x2x96xf32> to vector<2x96xf32>
    %152 = arith.truncf %148 : vector<2x32xf32> to vector<2x32xbf16>
    %c0_153 = arith.constant 0 : index
    %c0_154 = arith.constant 0 : index
    %153 = vector.load %arg4[%c0_153, %c0_154] : memref<32x96xbf16, #tpu.memory_space<vmem>>, vector<32x96xbf16>
    %cst_155 = arith.constant dense<0.000000e+00> : vector<2x96xf32>
    %154 = tpu.matmul %152, %153, %cst_155 {dimension_numbers = #tpu.dot_dimension_numbers<[1], [0], [0], [1], [0, 0, 1, 1], [], []>} : vector<2x32xbf16>, vector<32x96xbf16>, vector<2x96xf32> -> vector<2x96xf32>
    %155 = vector.extract_strided_slice %151 {offsets = [0, 0], sizes = [2, 32], strides = [1, 1]} : vector<2x96xf32> to vector<2x32xf32>
    %156 = vector.extract_strided_slice %154 {offsets = [0, 0], sizes = [2, 32], strides = [1, 1]} : vector<2x96xf32> to vector<2x32xf32>
    %157 = arith.addf %155, %156 : vector<2x32xf32>
    %158 = arith.negf %157 : vector<2x32xf32>
    %159 = math.exp %158 : vector<2x32xf32>
    %cst_156 = arith.constant 1.000000e+00 : f32
    %160 = vector.broadcast %cst_156 : f32 to vector<2x32xf32>
    %161 = arith.addf %160, %159 : vector<2x32xf32>
    %162 = arith.divf %160, %161 : vector<2x32xf32>
    %163 = vector.extract_strided_slice %151 {offsets = [0, 32], sizes = [2, 32], strides = [1, 1]} : vector<2x96xf32> to vector<2x32xf32>
    %164 = vector.extract_strided_slice %154 {offsets = [0, 32], sizes = [2, 32], strides = [1, 1]} : vector<2x96xf32> to vector<2x32xf32>
    %165 = arith.addf %163, %164 : vector<2x32xf32>
    %166 = arith.negf %165 : vector<2x32xf32>
    %167 = math.exp %166 : vector<2x32xf32>
    %cst_157 = arith.constant 1.000000e+00 : f32
    %168 = vector.broadcast %cst_157 : f32 to vector<2x32xf32>
    %169 = arith.addf %168, %167 : vector<2x32xf32>
    %170 = arith.divf %168, %169 : vector<2x32xf32>
    %171 = vector.extract_strided_slice %151 {offsets = [0, 64], sizes = [2, 32], strides = [1, 1]} : vector<2x96xf32> to vector<2x32xf32>
    %172 = vector.extract_strided_slice %154 {offsets = [0, 64], sizes = [2, 32], strides = [1, 1]} : vector<2x96xf32> to vector<2x32xf32>
    %c0_158 = arith.constant 0 : index
    %c0_159 = arith.constant 0 : index
    %173 = vector.load %arg6[%c0_158, %c0_159] : memref<1x32xf32, #tpu.memory_space<vmem>>, vector<1x32xf32>
    %174 = vector.broadcast %173 : vector<1x32xf32> to vector<2x32xf32>
    %175 = arith.addf %172, %174 : vector<2x32xf32>
    %176 = arith.mulf %162, %175 : vector<2x32xf32>
    %177 = arith.addf %171, %176 : vector<2x32xf32>
    %178 = math.tanh %177 : vector<2x32xf32>
    %179 = arith.subf %148, %178 : vector<2x32xf32>
    %180 = arith.mulf %170, %179 : vector<2x32xf32>
    %181 = arith.addf %178, %180 : vector<2x32xf32>
    %182 = arith.index_cast %c0_i32 : i32 to index
    %c0_160 = arith.constant 0 : index
    %c0_161 = arith.constant 0 : index
    %183 = vector.load %arg2[%182, %c0_160, %c0_161] : memref<8x2x1xf32, #tpu.memory_space<vmem>>, vector<1x2x1xf32>
    %184 = vector.shape_cast %183 : vector<1x2x1xf32> to vector<2x1xf32>
    %185 = vector.shape_cast %184 : vector<2x1xf32> to vector<2x1xf32>
    %186 = vector.broadcast %185 : vector<2x1xf32> to vector<2x32xf32>
    %cst_162 = arith.constant 0.000000e+00 : f32
    %187 = vector.broadcast %cst_162 : f32 to vector<2x32xf32>
    %188 = arith.cmpf ogt, %186, %187 : vector<2x32xf32>
    %189 = arith.select %188, %181, %148 : vector<2x32xi1>, vector<2x32xf32>
    %c0_163 = arith.constant 0 : index
    %c0_164 = arith.constant 0 : index
    %190 = vector.load %arg17[%c0_163, %c0_164] : memref<2x32xf32, #tpu.memory_space<vmem>>, vector<2x32xf32>
    tpu.vector_store %arg17[%c0_163, %c0_164], %189 {strides = array<i32>} : memref<2x32xf32, #tpu.memory_space<vmem>>, vector<2x32xf32>,
    %191 = arith.truncf %189 : vector<2x32xf32> to vector<2x32xbf16>
    %192 = arith.index_cast %c0_i32 : i32 to index
    %c0_165 = arith.constant 0 : index
    %c0_166 = arith.constant 0 : index
    %193 = vector.load %arg11[%192, %c0_165, %c0_166] : memref<8x2x32xbf16, #tpu.memory_space<vmem>>, vector<1x2x32xbf16>
    %194 = vector.shape_cast %193 : vector<1x2x32xbf16> to vector<2x32xbf16>
    %195 = vector.shape_cast %191 : vector<2x32xbf16> to vector<1x2x32xbf16>
    tpu.vector_store %arg11[%192, %c0_165, %c0_166], %195 {strides = array<i32>} : memref<8x2x32xbf16, #tpu.memory_space<vmem>>, vector<1x2x32xbf16>,
    %c7_i32 = arith.constant 7 : i32
    %196 = arith.subi %c7_i32, %c0_i32 : i32
    %c0_167 = arith.constant 0 : index
    %c0_168 = arith.constant 0 : index
    %197 = vector.load %arg18[%c0_167, %c0_168] : memref<2x32xf32, #tpu.memory_space<vmem>>, vector<2x32xf32>
    %198 = arith.index_cast %196 : i32 to index
    %c0_169 = arith.constant 0 : index
    %c0_170 = arith.constant 0 : index
    %199 = vector.load %arg16[%198, %c0_169, %c0_170] : memref<8x2x96xf32, #tpu.memory_space<vmem>>, vector<1x2x96xf32>
    %200 = vector.shape_cast %199 : vector<1x2x96xf32> to vector<2x96xf32>
    %201 = arith.truncf %197 : vector<2x32xf32> to vector<2x32xbf16>
    %c0_171 = arith.constant 0 : index
    %c0_172 = arith.constant 0 : index
    %202 = vector.load %arg8[%c0_171, %c0_172] : memref<32x96xbf16, #tpu.memory_space<vmem>>, vector<32x96xbf16>
    %cst_173 = arith.constant dense<0.000000e+00> : vector<2x96xf32>
    %203 = tpu.matmul %201, %202, %cst_173 {dimension_numbers = #tpu.dot_dimension_numbers<[1], [0], [0], [1], [0, 0, 1, 1], [], []>} : vector<2x32xbf16>, vector<32x96xbf16>, vector<2x96xf32> -> vector<2x96xf32>
    %204 = vector.extract_strided_slice %200 {offsets = [0, 0], sizes = [2, 32], strides = [1, 1]} : vector<2x96xf32> to vector<2x32xf32>
    %205 = vector.extract_strided_slice %203 {offsets = [0, 0], sizes = [2, 32], strides = [1, 1]} : vector<2x96xf32> to vector<2x32xf32>
    %206 = arith.addf %204, %205 : vector<2x32xf32>
    %207 = arith.negf %206 : vector<2x32xf32>
    %208 = math.exp %207 : vector<2x32xf32>
    %cst_174 = arith.constant 1.000000e+00 : f32
    %209 = vector.broadcast %cst_174 : f32 to vector<2x32xf32>
    %210 = arith.addf %209, %208 : vector<2x32xf32>
    %211 = arith.divf %209, %210 : vector<2x32xf32>
    %212 = vector.extract_strided_slice %200 {offsets = [0, 32], sizes = [2, 32], strides = [1, 1]} : vector<2x96xf32> to vector<2x32xf32>
    %213 = vector.extract_strided_slice %203 {offsets = [0, 32], sizes = [2, 32], strides = [1, 1]} : vector<2x96xf32> to vector<2x32xf32>
    %214 = arith.addf %212, %213 : vector<2x32xf32>
    %215 = arith.negf %214 : vector<2x32xf32>
    %216 = math.exp %215 : vector<2x32xf32>
    %cst_175 = arith.constant 1.000000e+00 : f32
    %217 = vector.broadcast %cst_175 : f32 to vector<2x32xf32>
    %218 = arith.addf %217, %216 : vector<2x32xf32>
    %219 = arith.divf %217, %218 : vector<2x32xf32>
    %220 = vector.extract_strided_slice %200 {offsets = [0, 64], sizes = [2, 32], strides = [1, 1]} : vector<2x96xf32> to vector<2x32xf32>
    %221 = vector.extract_strided_slice %203 {offsets = [0, 64], sizes = [2, 32], strides = [1, 1]} : vector<2x96xf32> to vector<2x32xf32>
    %c0_176 = arith.constant 0 : index
    %c0_177 = arith.constant 0 : index
    %222 = vector.load %arg10[%c0_176, %c0_177] : memref<1x32xf32, #tpu.memory_space<vmem>>, vector<1x32xf32>
    %223 = vector.broadcast %222 : vector<1x32xf32> to vector<2x32xf32>
    %224 = arith.addf %221, %223 : vector<2x32xf32>
    %225 = arith.mulf %211, %224 : vector<2x32xf32>
    %226 = arith.addf %220, %225 : vector<2x32xf32>
    %227 = math.tanh %226 : vector<2x32xf32>
    %228 = arith.subf %197, %227 : vector<2x32xf32>
    %229 = arith.mulf %219, %228 : vector<2x32xf32>
    %230 = arith.addf %227, %229 : vector<2x32xf32>
    %231 = arith.index_cast %196 : i32 to index
    %c0_178 = arith.constant 0 : index
    %c0_179 = arith.constant 0 : index
    %232 = vector.load %arg2[%231, %c0_178, %c0_179] : memref<8x2x1xf32, #tpu.memory_space<vmem>>, vector<1x2x1xf32>
    %233 = vector.shape_cast %232 : vector<1x2x1xf32> to vector<2x1xf32>
    %234 = vector.shape_cast %233 : vector<2x1xf32> to vector<2x1xf32>
    %235 = vector.broadcast %234 : vector<2x1xf32> to vector<2x32xf32>
    %cst_180 = arith.constant 0.000000e+00 : f32
    %236 = vector.broadcast %cst_180 : f32 to vector<2x32xf32>
    %237 = arith.cmpf ogt, %235, %236 : vector<2x32xf32>
    %238 = arith.select %237, %230, %197 : vector<2x32xi1>, vector<2x32xf32>
    %c0_181 = arith.constant 0 : index
    %c0_182 = arith.constant 0 : index
    %239 = vector.load %arg18[%c0_181, %c0_182] : memref<2x32xf32, #tpu.memory_space<vmem>>, vector<2x32xf32>
    tpu.vector_store %arg18[%c0_181, %c0_182], %238 {strides = array<i32>} : memref<2x32xf32, #tpu.memory_space<vmem>>, vector<2x32xf32>,
    %240 = arith.truncf %238 : vector<2x32xf32> to vector<2x32xbf16>
    %241 = arith.index_cast %196 : i32 to index
    %c0_183 = arith.constant 0 : index
    %c0_184 = arith.constant 0 : index
    %242 = vector.load %arg12[%241, %c0_183, %c0_184] : memref<8x2x32xbf16, #tpu.memory_space<vmem>>, vector<1x2x32xbf16>
    %243 = vector.shape_cast %242 : vector<1x2x32xbf16> to vector<2x32xbf16>
    %244 = vector.shape_cast %240 : vector<2x32xbf16> to vector<1x2x32xbf16>
    tpu.vector_store %arg12[%241, %c0_183, %c0_184], %244 {strides = array<i32>} : memref<8x2x32xbf16, #tpu.memory_space<vmem>>, vector<1x2x32xbf16>,
    %c1_i32 = arith.constant 1 : i32
    %c0_185 = arith.constant 0 : index
    %c0_186 = arith.constant 0 : index
    %245 = vector.load %arg17[%c0_185, %c0_186] : memref<2x32xf32, #tpu.memory_space<vmem>>, vector<2x32xf32>
    %246 = arith.index_cast %c1_i32 : i32 to index
    %c0_187 = arith.constant 0 : index
    %c0_188 = arith.constant 0 : index
    %247 = vector.load %arg15[%246, %c0_187, %c0_188] : memref<8x2x96xf32, #tpu.memory_space<vmem>>, vector<1x2x96xf32>
    %248 = vector.shape_cast %247 : vector<1x2x96xf32> to vector<2x96xf32>
    %249 = arith.truncf %245 : vector<2x32xf32> to vector<2x32xbf16>
    %c0_189 = arith.constant 0 : index
    %c0_190 = arith.constant 0 : index
    %250 = vector.load %arg4[%c0_189, %c0_190] : memref<32x96xbf16, #tpu.memory_space<vmem>>, vector<32x96xbf16>
    %cst_191 = arith.constant dense<0.000000e+00> : vector<2x96xf32>
    %251 = tpu.matmul %249, %250, %cst_191 {dimension_numbers = #tpu.dot_dimension_numbers<[1], [0], [0], [1], [0, 0, 1, 1], [], []>} : vector<2x32xbf16>, vector<32x96xbf16>, vector<2x96xf32> -> vector<2x96xf32>
    %252 = vector.extract_strided_slice %248 {offsets = [0, 0], sizes = [2, 32], strides = [1, 1]} : vector<2x96xf32> to vector<2x32xf32>
    %253 = vector.extract_strided_slice %251 {offsets = [0, 0], sizes = [2, 32], strides = [1, 1]} : vector<2x96xf32> to vector<2x32xf32>
    %254 = arith.addf %252, %253 : vector<2x32xf32>
    %255 = arith.negf %254 : vector<2x32xf32>
    %256 = math.exp %255 : vector<2x32xf32>
    %cst_192 = arith.constant 1.000000e+00 : f32
    %257 = vector.broadcast %cst_192 : f32 to vector<2x32xf32>
    %258 = arith.addf %257, %256 : vector<2x32xf32>
    %259 = arith.divf %257, %258 : vector<2x32xf32>
    %260 = vector.extract_strided_slice %248 {offsets = [0, 32], sizes = [2, 32], strides = [1, 1]} : vector<2x96xf32> to vector<2x32xf32>
    %261 = vector.extract_strided_slice %251 {offsets = [0, 32], sizes = [2, 32], strides = [1, 1]} : vector<2x96xf32> to vector<2x32xf32>
    %262 = arith.addf %260, %261 : vector<2x32xf32>
    %263 = arith.negf %262 : vector<2x32xf32>
    %264 = math.exp %263 : vector<2x32xf32>
    %cst_193 = arith.constant 1.000000e+00 : f32
    %265 = vector.broadcast %cst_193 : f32 to vector<2x32xf32>
    %266 = arith.addf %265, %264 : vector<2x32xf32>
    %267 = arith.divf %265, %266 : vector<2x32xf32>
    %268 = vector.extract_strided_slice %248 {offsets = [0, 64], sizes = [2, 32], strides = [1, 1]} : vector<2x96xf32> to vector<2x32xf32>
    %269 = vector.extract_strided_slice %251 {offsets = [0, 64], sizes = [2, 32], strides = [1, 1]} : vector<2x96xf32> to vector<2x32xf32>
    %c0_194 = arith.constant 0 : index
    %c0_195 = arith.constant 0 : index
    %270 = vector.load %arg6[%c0_194, %c0_195] : memref<1x32xf32, #tpu.memory_space<vmem>>, vector<1x32xf32>
    %271 = vector.broadcast %270 : vector<1x32xf32> to vector<2x32xf32>
    %272 = arith.addf %269, %271 : vector<2x32xf32>
    %273 = arith.mulf %259, %272 : vector<2x32xf32>
    %274 = arith.addf %268, %273 : vector<2x32xf32>
    %275 = math.tanh %274 : vector<2x32xf32>
    %276 = arith.subf %245, %275 : vector<2x32xf32>
    %277 = arith.mulf %267, %276 : vector<2x32xf32>
    %278 = arith.addf %275, %277 : vector<2x32xf32>
    %279 = arith.index_cast %c1_i32 : i32 to index
    %c0_196 = arith.constant 0 : index
    %c0_197 = arith.constant 0 : index
    %280 = vector.load %arg2[%279, %c0_196, %c0_197] : memref<8x2x1xf32, #tpu.memory_space<vmem>>, vector<1x2x1xf32>
    %281 = vector.shape_cast %280 : vector<1x2x1xf32> to vector<2x1xf32>
    %282 = vector.shape_cast %281 : vector<2x1xf32> to vector<2x1xf32>
    %283 = vector.broadcast %282 : vector<2x1xf32> to vector<2x32xf32>
    %cst_198 = arith.constant 0.000000e+00 : f32
    %284 = vector.broadcast %cst_198 : f32 to vector<2x32xf32>
    %285 = arith.cmpf ogt, %283, %284 : vector<2x32xf32>
    %286 = arith.select %285, %278, %245 : vector<2x32xi1>, vector<2x32xf32>
    %c0_199 = arith.constant 0 : index
    %c0_200 = arith.constant 0 : index
    %287 = vector.load %arg17[%c0_199, %c0_200] : memref<2x32xf32, #tpu.memory_space<vmem>>, vector<2x32xf32>
    tpu.vector_store %arg17[%c0_199, %c0_200], %286 {strides = array<i32>} : memref<2x32xf32, #tpu.memory_space<vmem>>, vector<2x32xf32>,
    %288 = arith.truncf %286 : vector<2x32xf32> to vector<2x32xbf16>
    %289 = arith.index_cast %c1_i32 : i32 to index
    %c0_201 = arith.constant 0 : index
    %c0_202 = arith.constant 0 : index
    %290 = vector.load %arg11[%289, %c0_201, %c0_202] : memref<8x2x32xbf16, #tpu.memory_space<vmem>>, vector<1x2x32xbf16>
    %291 = vector.shape_cast %290 : vector<1x2x32xbf16> to vector<2x32xbf16>
    %292 = vector.shape_cast %288 : vector<2x32xbf16> to vector<1x2x32xbf16>
    tpu.vector_store %arg11[%289, %c0_201, %c0_202], %292 {strides = array<i32>} : memref<8x2x32xbf16, #tpu.memory_space<vmem>>, vector<1x2x32xbf16>,
    %c7_i32_203 = arith.constant 7 : i32
    %293 = arith.subi %c7_i32_203, %c1_i32 : i32
    %c0_204 = arith.constant 0 : index
    %c0_205 = arith.constant 0 : index
    %294 = vector.load %arg18[%c0_204, %c0_205] : memref<2x32xf32, #tpu.memory_space<vmem>>, vector<2x32xf32>
    %295 = arith.index_cast %293 : i32 to index
    %c0_206 = arith.constant 0 : index
    %c0_207 = arith.constant 0 : index
    %296 = vector.load %arg16[%295, %c0_206, %c0_207] : memref<8x2x96xf32, #tpu.memory_space<vmem>>, vector<1x2x96xf32>
    %297 = vector.shape_cast %296 : vector<1x2x96xf32> to vector<2x96xf32>
    %298 = arith.truncf %294 : vector<2x32xf32> to vector<2x32xbf16>
    %c0_208 = arith.constant 0 : index
    %c0_209 = arith.constant 0 : index
    %299 = vector.load %arg8[%c0_208, %c0_209] : memref<32x96xbf16, #tpu.memory_space<vmem>>, vector<32x96xbf16>
    %cst_210 = arith.constant dense<0.000000e+00> : vector<2x96xf32>
    %300 = tpu.matmul %298, %299, %cst_210 {dimension_numbers = #tpu.dot_dimension_numbers<[1], [0], [0], [1], [0, 0, 1, 1], [], []>} : vector<2x32xbf16>, vector<32x96xbf16>, vector<2x96xf32> -> vector<2x96xf32>
    %301 = vector.extract_strided_slice %297 {offsets = [0, 0], sizes = [2, 32], strides = [1, 1]} : vector<2x96xf32> to vector<2x32xf32>
    %302 = vector.extract_strided_slice %300 {offsets = [0, 0], sizes = [2, 32], strides = [1, 1]} : vector<2x96xf32> to vector<2x32xf32>
    %303 = arith.addf %301, %302 : vector<2x32xf32>
    %304 = arith.negf %303 : vector<2x32xf32>
    %305 = math.exp %304 : vector<2x32xf32>
    %cst_211 = arith.constant 1.000000e+00 : f32
    %306 = vector.broadcast %cst_211 : f32 to vector<2x32xf32>
    %307 = arith.addf %306, %305 : vector<2x32xf32>
    %308 = arith.divf %306, %307 : vector<2x32xf32>
    %309 = vector.extract_strided_slice %297 {offsets = [0, 32], sizes = [2, 32], strides = [1, 1]} : vector<2x96xf32> to vector<2x32xf32>
    %310 = vector.extract_strided_slice %300 {offsets = [0, 32], sizes = [2, 32], strides = [1, 1]} : vector<2x96xf32> to vector<2x32xf32>
    %311 = arith.addf %309, %310 : vector<2x32xf32>
    %312 = arith.negf %311 : vector<2x32xf32>
    %313 = math.exp %312 : vector<2x32xf32>
    %cst_212 = arith.constant 1.000000e+00 : f32
    %314 = vector.broadcast %cst_212 : f32 to vector<2x32xf32>
    %315 = arith.addf %314, %313 : vector<2x32xf32>
    %316 = arith.divf %314, %315 : vector<2x32xf32>
    %317 = vector.extract_strided_slice %297 {offsets = [0, 64], sizes = [2, 32], strides = [1, 1]} : vector<2x96xf32> to vector<2x32xf32>
    %318 = vector.extract_strided_slice %300 {offsets = [0, 64], sizes = [2, 32], strides = [1, 1]} : vector<2x96xf32> to vector<2x32xf32>
    %c0_213 = arith.constant 0 : index
    %c0_214 = arith.constant 0 : index
    %319 = vector.load %arg10[%c0_213, %c0_214] : memref<1x32xf32, #tpu.memory_space<vmem>>, vector<1x32xf32>
    %320 = vector.broadcast %319 : vector<1x32xf32> to vector<2x32xf32>
    %321 = arith.addf %318, %320 : vector<2x32xf32>
    %322 = arith.mulf %308, %321 : vector<2x32xf32>
    %323 = arith.addf %317, %322 : vector<2x32xf32>
    %324 = math.tanh %323 : vector<2x32xf32>
    %325 = arith.subf %294, %324 : vector<2x32xf32>
    %326 = arith.mulf %316, %325 : vector<2x32xf32>
    %327 = arith.addf %324, %326 : vector<2x32xf32>
    %328 = arith.index_cast %293 : i32 to index
    %c0_215 = arith.constant 0 : index
    %c0_216 = arith.constant 0 : index
    %329 = vector.load %arg2[%328, %c0_215, %c0_216] : memref<8x2x1xf32, #tpu.memory_space<vmem>>, vector<1x2x1xf32>
    %330 = vector.shape_cast %329 : vector<1x2x1xf32> to vector<2x1xf32>
    %331 = vector.shape_cast %330 : vector<2x1xf32> to vector<2x1xf32>
    %332 = vector.broadcast %331 : vector<2x1xf32> to vector<2x32xf32>
    %cst_217 = arith.constant 0.000000e+00 : f32
    %333 = vector.broadcast %cst_217 : f32 to vector<2x32xf32>
    %334 = arith.cmpf ogt, %332, %333 : vector<2x32xf32>
    %335 = arith.select %334, %327, %294 : vector<2x32xi1>, vector<2x32xf32>
    %c0_218 = arith.constant 0 : index
    %c0_219 = arith.constant 0 : index
    %336 = vector.load %arg18[%c0_218, %c0_219] : memref<2x32xf32, #tpu.memory_space<vmem>>, vector<2x32xf32>
    tpu.vector_store %arg18[%c0_218, %c0_219], %335 {strides = array<i32>} : memref<2x32xf32, #tpu.memory_space<vmem>>, vector<2x32xf32>,
    %337 = arith.truncf %335 : vector<2x32xf32> to vector<2x32xbf16>
    %338 = arith.index_cast %293 : i32 to index
    %c0_220 = arith.constant 0 : index
    %c0_221 = arith.constant 0 : index
    %339 = vector.load %arg12[%338, %c0_220, %c0_221] : memref<8x2x32xbf16, #tpu.memory_space<vmem>>, vector<1x2x32xbf16>
    %340 = vector.shape_cast %339 : vector<1x2x32xbf16> to vector<2x32xbf16>
    %341 = vector.shape_cast %337 : vector<2x32xbf16> to vector<1x2x32xbf16>
    tpu.vector_store %arg12[%338, %c0_220, %c0_221], %341 {strides = array<i32>} : memref<8x2x32xbf16, #tpu.memory_space<vmem>>, vector<1x2x32xbf16>,
    %c2_i32 = arith.constant 2 : i32
    %c0_222 = arith.constant 0 : index
    %c0_223 = arith.constant 0 : index
    %342 = vector.load %arg17[%c0_222, %c0_223] : memref<2x32xf32, #tpu.memory_space<vmem>>, vector<2x32xf32>
    %343 = arith.index_cast %c2_i32 : i32 to index
    %c0_224 = arith.constant 0 : index
    %c0_225 = arith.constant 0 : index
    %344 = vector.load %arg15[%343, %c0_224, %c0_225] : memref<8x2x96xf32, #tpu.memory_space<vmem>>, vector<1x2x96xf32>
    %345 = vector.shape_cast %344 : vector<1x2x96xf32> to vector<2x96xf32>
    %346 = arith.truncf %342 : vector<2x32xf32> to vector<2x32xbf16>
    %c0_226 = arith.constant 0 : index
    %c0_227 = arith.constant 0 : index
    %347 = vector.load %arg4[%c0_226, %c0_227] : memref<32x96xbf16, #tpu.memory_space<vmem>>, vector<32x96xbf16>
    %cst_228 = arith.constant dense<0.000000e+00> : vector<2x96xf32>
    %348 = tpu.matmul %346, %347, %cst_228 {dimension_numbers = #tpu.dot_dimension_numbers<[1], [0], [0], [1], [0, 0, 1, 1], [], []>} : vector<2x32xbf16>, vector<32x96xbf16>, vector<2x96xf32> -> vector<2x96xf32>
    %349 = vector.extract_strided_slice %345 {offsets = [0, 0], sizes = [2, 32], strides = [1, 1]} : vector<2x96xf32> to vector<2x32xf32>
    %350 = vector.extract_strided_slice %348 {offsets = [0, 0], sizes = [2, 32], strides = [1, 1]} : vector<2x96xf32> to vector<2x32xf32>
    %351 = arith.addf %349, %350 : vector<2x32xf32>
    %352 = arith.negf %351 : vector<2x32xf32>
    %353 = math.exp %352 : vector<2x32xf32>
    %cst_229 = arith.constant 1.000000e+00 : f32
    %354 = vector.broadcast %cst_229 : f32 to vector<2x32xf32>
    %355 = arith.addf %354, %353 : vector<2x32xf32>
    %356 = arith.divf %354, %355 : vector<2x32xf32>
    %357 = vector.extract_strided_slice %345 {offsets = [0, 32], sizes = [2, 32], strides = [1, 1]} : vector<2x96xf32> to vector<2x32xf32>
    %358 = vector.extract_strided_slice %348 {offsets = [0, 32], sizes = [2, 32], strides = [1, 1]} : vector<2x96xf32> to vector<2x32xf32>
    %359 = arith.addf %357, %358 : vector<2x32xf32>
    %360 = arith.negf %359 : vector<2x32xf32>
    %361 = math.exp %360 : vector<2x32xf32>
    %cst_230 = arith.constant 1.000000e+00 : f32
    %362 = vector.broadcast %cst_230 : f32 to vector<2x32xf32>
    %363 = arith.addf %362, %361 : vector<2x32xf32>
    %364 = arith.divf %362, %363 : vector<2x32xf32>
    %365 = vector.extract_strided_slice %345 {offsets = [0, 64], sizes = [2, 32], strides = [1, 1]} : vector<2x96xf32> to vector<2x32xf32>
    %366 = vector.extract_strided_slice %348 {offsets = [0, 64], sizes = [2, 32], strides = [1, 1]} : vector<2x96xf32> to vector<2x32xf32>
    %c0_231 = arith.constant 0 : index
    %c0_232 = arith.constant 0 : index
    %367 = vector.load %arg6[%c0_231, %c0_232] : memref<1x32xf32, #tpu.memory_space<vmem>>, vector<1x32xf32>
    %368 = vector.broadcast %367 : vector<1x32xf32> to vector<2x32xf32>
    %369 = arith.addf %366, %368 : vector<2x32xf32>
    %370 = arith.mulf %356, %369 : vector<2x32xf32>
    %371 = arith.addf %365, %370 : vector<2x32xf32>
    %372 = math.tanh %371 : vector<2x32xf32>
    %373 = arith.subf %342, %372 : vector<2x32xf32>
    %374 = arith.mulf %364, %373 : vector<2x32xf32>
    %375 = arith.addf %372, %374 : vector<2x32xf32>
    %376 = arith.index_cast %c2_i32 : i32 to index
    %c0_233 = arith.constant 0 : index
    %c0_234 = arith.constant 0 : index
    %377 = vector.load %arg2[%376, %c0_233, %c0_234] : memref<8x2x1xf32, #tpu.memory_space<vmem>>, vector<1x2x1xf32>
    %378 = vector.shape_cast %377 : vector<1x2x1xf32> to vector<2x1xf32>
    %379 = vector.shape_cast %378 : vector<2x1xf32> to vector<2x1xf32>
    %380 = vector.broadcast %379 : vector<2x1xf32> to vector<2x32xf32>
    %cst_235 = arith.constant 0.000000e+00 : f32
    %381 = vector.broadcast %cst_235 : f32 to vector<2x32xf32>
    %382 = arith.cmpf ogt, %380, %381 : vector<2x32xf32>
    %383 = arith.select %382, %375, %342 : vector<2x32xi1>, vector<2x32xf32>
    %c0_236 = arith.constant 0 : index
    %c0_237 = arith.constant 0 : index
    %384 = vector.load %arg17[%c0_236, %c0_237] : memref<2x32xf32, #tpu.memory_space<vmem>>, vector<2x32xf32>
    tpu.vector_store %arg17[%c0_236, %c0_237], %383 {strides = array<i32>} : memref<2x32xf32, #tpu.memory_space<vmem>>, vector<2x32xf32>,
    %385 = arith.truncf %383 : vector<2x32xf32> to vector<2x32xbf16>
    %386 = arith.index_cast %c2_i32 : i32 to index
    %c0_238 = arith.constant 0 : index
    %c0_239 = arith.constant 0 : index
    %387 = vector.load %arg11[%386, %c0_238, %c0_239] : memref<8x2x32xbf16, #tpu.memory_space<vmem>>, vector<1x2x32xbf16>
    %388 = vector.shape_cast %387 : vector<1x2x32xbf16> to vector<2x32xbf16>
    %389 = vector.shape_cast %385 : vector<2x32xbf16> to vector<1x2x32xbf16>
    tpu.vector_store %arg11[%386, %c0_238, %c0_239], %389 {strides = array<i32>} : memref<8x2x32xbf16, #tpu.memory_space<vmem>>, vector<1x2x32xbf16>,
    %c7_i32_240 = arith.constant 7 : i32
    %390 = arith.subi %c7_i32_240, %c2_i32 : i32
    %c0_241 = arith.constant 0 : index
    %c0_242 = arith.constant 0 : index
    %391 = vector.load %arg18[%c0_241, %c0_242] : memref<2x32xf32, #tpu.memory_space<vmem>>, vector<2x32xf32>
    %392 = arith.index_cast %390 : i32 to index
    %c0_243 = arith.constant 0 : index
    %c0_244 = arith.constant 0 : index
    %393 = vector.load %arg16[%392, %c0_243, %c0_244] : memref<8x2x96xf32, #tpu.memory_space<vmem>>, vector<1x2x96xf32>
    %394 = vector.shape_cast %393 : vector<1x2x96xf32> to vector<2x96xf32>
    %395 = arith.truncf %391 : vector<2x32xf32> to vector<2x32xbf16>
    %c0_245 = arith.constant 0 : index
    %c0_246 = arith.constant 0 : index
    %396 = vector.load %arg8[%c0_245, %c0_246] : memref<32x96xbf16, #tpu.memory_space<vmem>>, vector<32x96xbf16>
    %cst_247 = arith.constant dense<0.000000e+00> : vector<2x96xf32>
    %397 = tpu.matmul %395, %396, %cst_247 {dimension_numbers = #tpu.dot_dimension_numbers<[1], [0], [0], [1], [0, 0, 1, 1], [], []>} : vector<2x32xbf16>, vector<32x96xbf16>, vector<2x96xf32> -> vector<2x96xf32>
    %398 = vector.extract_strided_slice %394 {offsets = [0, 0], sizes = [2, 32], strides = [1, 1]} : vector<2x96xf32> to vector<2x32xf32>
    %399 = vector.extract_strided_slice %397 {offsets = [0, 0], sizes = [2, 32], strides = [1, 1]} : vector<2x96xf32> to vector<2x32xf32>
    %400 = arith.addf %398, %399 : vector<2x32xf32>
    %401 = arith.negf %400 : vector<2x32xf32>
    %402 = math.exp %401 : vector<2x32xf32>
    %cst_248 = arith.constant 1.000000e+00 : f32
    %403 = vector.broadcast %cst_248 : f32 to vector<2x32xf32>
    %404 = arith.addf %403, %402 : vector<2x32xf32>
    %405 = arith.divf %403, %404 : vector<2x32xf32>
    %406 = vector.extract_strided_slice %394 {offsets = [0, 32], sizes = [2, 32], strides = [1, 1]} : vector<2x96xf32> to vector<2x32xf32>
    %407 = vector.extract_strided_slice %397 {offsets = [0, 32], sizes = [2, 32], strides = [1, 1]} : vector<2x96xf32> to vector<2x32xf32>
    %408 = arith.addf %406, %407 : vector<2x32xf32>
    %409 = arith.negf %408 : vector<2x32xf32>
    %410 = math.exp %409 : vector<2x32xf32>
    %cst_249 = arith.constant 1.000000e+00 : f32
    %411 = vector.broadcast %cst_249 : f32 to vector<2x32xf32>
    %412 = arith.addf %411, %410 : vector<2x32xf32>
    %413 = arith.divf %411, %412 : vector<2x32xf32>
    %414 = vector.extract_strided_slice %394 {offsets = [0, 64], sizes = [2, 32], strides = [1, 1]} : vector<2x96xf32> to vector<2x32xf32>
    %415 = vector.extract_strided_slice %397 {offsets = [0, 64], sizes = [2, 32], strides = [1, 1]} : vector<2x96xf32> to vector<2x32xf32>
    %c0_250 = arith.constant 0 : index
    %c0_251 = arith.constant 0 : index
    %416 = vector.load %arg10[%c0_250, %c0_251] : memref<1x32xf32, #tpu.memory_space<vmem>>, vector<1x32xf32>
    %417 = vector.broadcast %416 : vector<1x32xf32> to vector<2x32xf32>
    %418 = arith.addf %415, %417 : vector<2x32xf32>
    %419 = arith.mulf %405, %418 : vector<2x32xf32>
    %420 = arith.addf %414, %419 : vector<2x32xf32>
    %421 = math.tanh %420 : vector<2x32xf32>
    %422 = arith.subf %391, %421 : vector<2x32xf32>
    %423 = arith.mulf %413, %422 : vector<2x32xf32>
    %424 = arith.addf %421, %423 : vector<2x32xf32>
    %425 = arith.index_cast %390 : i32 to index
    %c0_252 = arith.constant 0 : index
    %c0_253 = arith.constant 0 : index
    %426 = vector.load %arg2[%425, %c0_252, %c0_253] : memref<8x2x1xf32, #tpu.memory_space<vmem>>, vector<1x2x1xf32>
    %427 = vector.shape_cast %426 : vector<1x2x1xf32> to vector<2x1xf32>
    %428 = vector.shape_cast %427 : vector<2x1xf32> to vector<2x1xf32>
    %429 = vector.broadcast %428 : vector<2x1xf32> to vector<2x32xf32>
    %cst_254 = arith.constant 0.000000e+00 : f32
    %430 = vector.broadcast %cst_254 : f32 to vector<2x32xf32>
    %431 = arith.cmpf ogt, %429, %430 : vector<2x32xf32>
    %432 = arith.select %431, %424, %391 : vector<2x32xi1>, vector<2x32xf32>
    %c0_255 = arith.constant 0 : index
    %c0_256 = arith.constant 0 : index
    %433 = vector.load %arg18[%c0_255, %c0_256] : memref<2x32xf32, #tpu.memory_space<vmem>>, vector<2x32xf32>
    tpu.vector_store %arg18[%c0_255, %c0_256], %432 {strides = array<i32>} : memref<2x32xf32, #tpu.memory_space<vmem>>, vector<2x32xf32>,
    %434 = arith.truncf %432 : vector<2x32xf32> to vector<2x32xbf16>
    %435 = arith.index_cast %390 : i32 to index
    %c0_257 = arith.constant 0 : index
    %c0_258 = arith.constant 0 : index
    %436 = vector.load %arg12[%435, %c0_257, %c0_258] : memref<8x2x32xbf16, #tpu.memory_space<vmem>>, vector<1x2x32xbf16>
    %437 = vector.shape_cast %436 : vector<1x2x32xbf16> to vector<2x32xbf16>
    %438 = vector.shape_cast %434 : vector<2x32xbf16> to vector<1x2x32xbf16>
    tpu.vector_store %arg12[%435, %c0_257, %c0_258], %438 {strides = array<i32>} : memref<8x2x32xbf16, #tpu.memory_space<vmem>>, vector<1x2x32xbf16>,
    %c3_i32 = arith.constant 3 : i32
    %c0_259 = arith.constant 0 : index
    %c0_260 = arith.constant 0 : index
    %439 = vector.load %arg17[%c0_259, %c0_260] : memref<2x32xf32, #tpu.memory_space<vmem>>, vector<2x32xf32>
    %440 = arith.index_cast %c3_i32 : i32 to index
    %c0_261 = arith.constant 0 : index
    %c0_262 = arith.constant 0 : index
    %441 = vector.load %arg15[%440, %c0_261, %c0_262] : memref<8x2x96xf32, #tpu.memory_space<vmem>>, vector<1x2x96xf32>
    %442 = vector.shape_cast %441 : vector<1x2x96xf32> to vector<2x96xf32>
    %443 = arith.truncf %439 : vector<2x32xf32> to vector<2x32xbf16>
    %c0_263 = arith.constant 0 : index
    %c0_264 = arith.constant 0 : index
    %444 = vector.load %arg4[%c0_263, %c0_264] : memref<32x96xbf16, #tpu.memory_space<vmem>>, vector<32x96xbf16>
    %cst_265 = arith.constant dense<0.000000e+00> : vector<2x96xf32>
    %445 = tpu.matmul %443, %444, %cst_265 {dimension_numbers = #tpu.dot_dimension_numbers<[1], [0], [0], [1], [0, 0, 1, 1], [], []>} : vector<2x32xbf16>, vector<32x96xbf16>, vector<2x96xf32> -> vector<2x96xf32>
    %446 = vector.extract_strided_slice %442 {offsets = [0, 0], sizes = [2, 32], strides = [1, 1]} : vector<2x96xf32> to vector<2x32xf32>
    %447 = vector.extract_strided_slice %445 {offsets = [0, 0], sizes = [2, 32], strides = [1, 1]} : vector<2x96xf32> to vector<2x32xf32>
    %448 = arith.addf %446, %447 : vector<2x32xf32>
    %449 = arith.negf %448 : vector<2x32xf32>
    %450 = math.exp %449 : vector<2x32xf32>
    %cst_266 = arith.constant 1.000000e+00 : f32
    %451 = vector.broadcast %cst_266 : f32 to vector<2x32xf32>
    %452 = arith.addf %451, %450 : vector<2x32xf32>
    %453 = arith.divf %451, %452 : vector<2x32xf32>
    %454 = vector.extract_strided_slice %442 {offsets = [0, 32], sizes = [2, 32], strides = [1, 1]} : vector<2x96xf32> to vector<2x32xf32>
    %455 = vector.extract_strided_slice %445 {offsets = [0, 32], sizes = [2, 32], strides = [1, 1]} : vector<2x96xf32> to vector<2x32xf32>
    %456 = arith.addf %454, %455 : vector<2x32xf32>
    %457 = arith.negf %456 : vector<2x32xf32>
    %458 = math.exp %457 : vector<2x32xf32>
    %cst_267 = arith.constant 1.000000e+00 : f32
    %459 = vector.broadcast %cst_267 : f32 to vector<2x32xf32>
    %460 = arith.addf %459, %458 : vector<2x32xf32>
    %461 = arith.divf %459, %460 : vector<2x32xf32>
    %462 = vector.extract_strided_slice %442 {offsets = [0, 64], sizes = [2, 32], strides = [1, 1]} : vector<2x96xf32> to vector<2x32xf32>
    %463 = vector.extract_strided_slice %445 {offsets = [0, 64], sizes = [2, 32], strides = [1, 1]} : vector<2x96xf32> to vector<2x32xf32>
    %c0_268 = arith.constant 0 : index
    %c0_269 = arith.constant 0 : index
    %464 = vector.load %arg6[%c0_268, %c0_269] : memref<1x32xf32, #tpu.memory_space<vmem>>, vector<1x32xf32>
    %465 = vector.broadcast %464 : vector<1x32xf32> to vector<2x32xf32>
    %466 = arith.addf %463, %465 : vector<2x32xf32>
    %467 = arith.mulf %453, %466 : vector<2x32xf32>
    %468 = arith.addf %462, %467 : vector<2x32xf32>
    %469 = math.tanh %468 : vector<2x32xf32>
    %470 = arith.subf %439, %469 : vector<2x32xf32>
    %471 = arith.mulf %461, %470 : vector<2x32xf32>
    %472 = arith.addf %469, %471 : vector<2x32xf32>
    %473 = arith.index_cast %c3_i32 : i32 to index
    %c0_270 = arith.constant 0 : index
    %c0_271 = arith.constant 0 : index
    %474 = vector.load %arg2[%473, %c0_270, %c0_271] : memref<8x2x1xf32, #tpu.memory_space<vmem>>, vector<1x2x1xf32>
    %475 = vector.shape_cast %474 : vector<1x2x1xf32> to vector<2x1xf32>
    %476 = vector.shape_cast %475 : vector<2x1xf32> to vector<2x1xf32>
    %477 = vector.broadcast %476 : vector<2x1xf32> to vector<2x32xf32>
    %cst_272 = arith.constant 0.000000e+00 : f32
    %478 = vector.broadcast %cst_272 : f32 to vector<2x32xf32>
    %479 = arith.cmpf ogt, %477, %478 : vector<2x32xf32>
    %480 = arith.select %479, %472, %439 : vector<2x32xi1>, vector<2x32xf32>
    %c0_273 = arith.constant 0 : index
    %c0_274 = arith.constant 0 : index
    %481 = vector.load %arg17[%c0_273, %c0_274] : memref<2x32xf32, #tpu.memory_space<vmem>>, vector<2x32xf32>
    tpu.vector_store %arg17[%c0_273, %c0_274], %480 {strides = array<i32>} : memref<2x32xf32, #tpu.memory_space<vmem>>, vector<2x32xf32>,
    %482 = arith.truncf %480 : vector<2x32xf32> to vector<2x32xbf16>
    %483 = arith.index_cast %c3_i32 : i32 to index
    %c0_275 = arith.constant 0 : index
    %c0_276 = arith.constant 0 : index
    %484 = vector.load %arg11[%483, %c0_275, %c0_276] : memref<8x2x32xbf16, #tpu.memory_space<vmem>>, vector<1x2x32xbf16>
    %485 = vector.shape_cast %484 : vector<1x2x32xbf16> to vector<2x32xbf16>
    %486 = vector.shape_cast %482 : vector<2x32xbf16> to vector<1x2x32xbf16>
    tpu.vector_store %arg11[%483, %c0_275, %c0_276], %486 {strides = array<i32>} : memref<8x2x32xbf16, #tpu.memory_space<vmem>>, vector<1x2x32xbf16>,
    %c7_i32_277 = arith.constant 7 : i32
    %487 = arith.subi %c7_i32_277, %c3_i32 : i32
    %c0_278 = arith.constant 0 : index
    %c0_279 = arith.constant 0 : index
    %488 = vector.load %arg18[%c0_278, %c0_279] : memref<2x32xf32, #tpu.memory_space<vmem>>, vector<2x32xf32>
    %489 = arith.index_cast %487 : i32 to index
    %c0_280 = arith.constant 0 : index
    %c0_281 = arith.constant 0 : index
    %490 = vector.load %arg16[%489, %c0_280, %c0_281] : memref<8x2x96xf32, #tpu.memory_space<vmem>>, vector<1x2x96xf32>
    %491 = vector.shape_cast %490 : vector<1x2x96xf32> to vector<2x96xf32>
    %492 = arith.truncf %488 : vector<2x32xf32> to vector<2x32xbf16>
    %c0_282 = arith.constant 0 : index
    %c0_283 = arith.constant 0 : index
    %493 = vector.load %arg8[%c0_282, %c0_283] : memref<32x96xbf16, #tpu.memory_space<vmem>>, vector<32x96xbf16>
    %cst_284 = arith.constant dense<0.000000e+00> : vector<2x96xf32>
    %494 = tpu.matmul %492, %493, %cst_284 {dimension_numbers = #tpu.dot_dimension_numbers<[1], [0], [0], [1], [0, 0, 1, 1], [], []>} : vector<2x32xbf16>, vector<32x96xbf16>, vector<2x96xf32> -> vector<2x96xf32>
    %495 = vector.extract_strided_slice %491 {offsets = [0, 0], sizes = [2, 32], strides = [1, 1]} : vector<2x96xf32> to vector<2x32xf32>
    %496 = vector.extract_strided_slice %494 {offsets = [0, 0], sizes = [2, 32], strides = [1, 1]} : vector<2x96xf32> to vector<2x32xf32>
    %497 = arith.addf %495, %496 : vector<2x32xf32>
    %498 = arith.negf %497 : vector<2x32xf32>
    %499 = math.exp %498 : vector<2x32xf32>
    %cst_285 = arith.constant 1.000000e+00 : f32
    %500 = vector.broadcast %cst_285 : f32 to vector<2x32xf32>
    %501 = arith.addf %500, %499 : vector<2x32xf32>
    %502 = arith.divf %500, %501 : vector<2x32xf32>
    %503 = vector.extract_strided_slice %491 {offsets = [0, 32], sizes = [2, 32], strides = [1, 1]} : vector<2x96xf32> to vector<2x32xf32>
    %504 = vector.extract_strided_slice %494 {offsets = [0, 32], sizes = [2, 32], strides = [1, 1]} : vector<2x96xf32> to vector<2x32xf32>
    %505 = arith.addf %503, %504 : vector<2x32xf32>
    %506 = arith.negf %505 : vector<2x32xf32>
    %507 = math.exp %506 : vector<2x32xf32>
    %cst_286 = arith.constant 1.000000e+00 : f32
    %508 = vector.broadcast %cst_286 : f32 to vector<2x32xf32>
    %509 = arith.addf %508, %507 : vector<2x32xf32>
    %510 = arith.divf %508, %509 : vector<2x32xf32>
    %511 = vector.extract_strided_slice %491 {offsets = [0, 64], sizes = [2, 32], strides = [1, 1]} : vector<2x96xf32> to vector<2x32xf32>
    %512 = vector.extract_strided_slice %494 {offsets = [0, 64], sizes = [2, 32], strides = [1, 1]} : vector<2x96xf32> to vector<2x32xf32>
    %c0_287 = arith.constant 0 : index
    %c0_288 = arith.constant 0 : index
    %513 = vector.load %arg10[%c0_287, %c0_288] : memref<1x32xf32, #tpu.memory_space<vmem>>, vector<1x32xf32>
    %514 = vector.broadcast %513 : vector<1x32xf32> to vector<2x32xf32>
    %515 = arith.addf %512, %514 : vector<2x32xf32>
    %516 = arith.mulf %502, %515 : vector<2x32xf32>
    %517 = arith.addf %511, %516 : vector<2x32xf32>
    %518 = math.tanh %517 : vector<2x32xf32>
    %519 = arith.subf %488, %518 : vector<2x32xf32>
    %520 = arith.mulf %510, %519 : vector<2x32xf32>
    %521 = arith.addf %518, %520 : vector<2x32xf32>
    %522 = arith.index_cast %487 : i32 to index
    %c0_289 = arith.constant 0 : index
    %c0_290 = arith.constant 0 : index
    %523 = vector.load %arg2[%522, %c0_289, %c0_290] : memref<8x2x1xf32, #tpu.memory_space<vmem>>, vector<1x2x1xf32>
    %524 = vector.shape_cast %523 : vector<1x2x1xf32> to vector<2x1xf32>
    %525 = vector.shape_cast %524 : vector<2x1xf32> to vector<2x1xf32>
    %526 = vector.broadcast %525 : vector<2x1xf32> to vector<2x32xf32>
    %cst_291 = arith.constant 0.000000e+00 : f32
    %527 = vector.broadcast %cst_291 : f32 to vector<2x32xf32>
    %528 = arith.cmpf ogt, %526, %527 : vector<2x32xf32>
    %529 = arith.select %528, %521, %488 : vector<2x32xi1>, vector<2x32xf32>
    %c0_292 = arith.constant 0 : index
    %c0_293 = arith.constant 0 : index
    %530 = vector.load %arg18[%c0_292, %c0_293] : memref<2x32xf32, #tpu.memory_space<vmem>>, vector<2x32xf32>
    tpu.vector_store %arg18[%c0_292, %c0_293], %529 {strides = array<i32>} : memref<2x32xf32, #tpu.memory_space<vmem>>, vector<2x32xf32>,
    %531 = arith.truncf %529 : vector<2x32xf32> to vector<2x32xbf16>
    %532 = arith.index_cast %487 : i32 to index
    %c0_294 = arith.constant 0 : index
    %c0_295 = arith.constant 0 : index
    %533 = vector.load %arg12[%532, %c0_294, %c0_295] : memref<8x2x32xbf16, #tpu.memory_space<vmem>>, vector<1x2x32xbf16>
    %534 = vector.shape_cast %533 : vector<1x2x32xbf16> to vector<2x32xbf16>
    %535 = vector.shape_cast %531 : vector<2x32xbf16> to vector<1x2x32xbf16>
    tpu.vector_store %arg12[%532, %c0_294, %c0_295], %535 {strides = array<i32>} : memref<8x2x32xbf16, #tpu.memory_space<vmem>>, vector<1x2x32xbf16>,
    %c4_i32 = arith.constant 4 : i32
    %c0_296 = arith.constant 0 : index
    %c0_297 = arith.constant 0 : index
    %536 = vector.load %arg17[%c0_296, %c0_297] : memref<2x32xf32, #tpu.memory_space<vmem>>, vector<2x32xf32>
    %537 = arith.index_cast %c4_i32 : i32 to index
    %c0_298 = arith.constant 0 : index
    %c0_299 = arith.constant 0 : index
    %538 = vector.load %arg15[%537, %c0_298, %c0_299] : memref<8x2x96xf32, #tpu.memory_space<vmem>>, vector<1x2x96xf32>
    %539 = vector.shape_cast %538 : vector<1x2x96xf32> to vector<2x96xf32>
    %540 = arith.truncf %536 : vector<2x32xf32> to vector<2x32xbf16>
    %c0_300 = arith.constant 0 : index
    %c0_301 = arith.constant 0 : index
    %541 = vector.load %arg4[%c0_300, %c0_301] : memref<32x96xbf16, #tpu.memory_space<vmem>>, vector<32x96xbf16>
    %cst_302 = arith.constant dense<0.000000e+00> : vector<2x96xf32>
    %542 = tpu.matmul %540, %541, %cst_302 {dimension_numbers = #tpu.dot_dimension_numbers<[1], [0], [0], [1], [0, 0, 1, 1], [], []>} : vector<2x32xbf16>, vector<32x96xbf16>, vector<2x96xf32> -> vector<2x96xf32>
    %543 = vector.extract_strided_slice %539 {offsets = [0, 0], sizes = [2, 32], strides = [1, 1]} : vector<2x96xf32> to vector<2x32xf32>
    %544 = vector.extract_strided_slice %542 {offsets = [0, 0], sizes = [2, 32], strides = [1, 1]} : vector<2x96xf32> to vector<2x32xf32>
    %545 = arith.addf %543, %544 : vector<2x32xf32>
    %546 = arith.negf %545 : vector<2x32xf32>
    %547 = math.exp %546 : vector<2x32xf32>
    %cst_303 = arith.constant 1.000000e+00 : f32
    %548 = vector.broadcast %cst_303 : f32 to vector<2x32xf32>
    %549 = arith.addf %548, %547 : vector<2x32xf32>
    %550 = arith.divf %548, %549 : vector<2x32xf32>
    %551 = vector.extract_strided_slice %539 {offsets = [0, 32], sizes = [2, 32], strides = [1, 1]} : vector<2x96xf32> to vector<2x32xf32>
    %552 = vector.extract_strided_slice %542 {offsets = [0, 32], sizes = [2, 32], strides = [1, 1]} : vector<2x96xf32> to vector<2x32xf32>
    %553 = arith.addf %551, %552 : vector<2x32xf32>
    %554 = arith.negf %553 : vector<2x32xf32>
    %555 = math.exp %554 : vector<2x32xf32>
    %cst_304 = arith.constant 1.000000e+00 : f32
    %556 = vector.broadcast %cst_304 : f32 to vector<2x32xf32>
    %557 = arith.addf %556, %555 : vector<2x32xf32>
    %558 = arith.divf %556, %557 : vector<2x32xf32>
    %559 = vector.extract_strided_slice %539 {offsets = [0, 64], sizes = [2, 32], strides = [1, 1]} : vector<2x96xf32> to vector<2x32xf32>
    %560 = vector.extract_strided_slice %542 {offsets = [0, 64], sizes = [2, 32], strides = [1, 1]} : vector<2x96xf32> to vector<2x32xf32>
    %c0_305 = arith.constant 0 : index
    %c0_306 = arith.constant 0 : index
    %561 = vector.load %arg6[%c0_305, %c0_306] : memref<1x32xf32, #tpu.memory_space<vmem>>, vector<1x32xf32>
    %562 = vector.broadcast %561 : vector<1x32xf32> to vector<2x32xf32>
    %563 = arith.addf %560, %562 : vector<2x32xf32>
    %564 = arith.mulf %550, %563 : vector<2x32xf32>
    %565 = arith.addf %559, %564 : vector<2x32xf32>
    %566 = math.tanh %565 : vector<2x32xf32>
    %567 = arith.subf %536, %566 : vector<2x32xf32>
    %568 = arith.mulf %558, %567 : vector<2x32xf32>
    %569 = arith.addf %566, %568 : vector<2x32xf32>
    %570 = arith.index_cast %c4_i32 : i32 to index
    %c0_307 = arith.constant 0 : index
    %c0_308 = arith.constant 0 : index
    %571 = vector.load %arg2[%570, %c0_307, %c0_308] : memref<8x2x1xf32, #tpu.memory_space<vmem>>, vector<1x2x1xf32>
    %572 = vector.shape_cast %571 : vector<1x2x1xf32> to vector<2x1xf32>
    %573 = vector.shape_cast %572 : vector<2x1xf32> to vector<2x1xf32>
    %574 = vector.broadcast %573 : vector<2x1xf32> to vector<2x32xf32>
    %cst_309 = arith.constant 0.000000e+00 : f32
    %575 = vector.broadcast %cst_309 : f32 to vector<2x32xf32>
    %576 = arith.cmpf ogt, %574, %575 : vector<2x32xf32>
    %577 = arith.select %576, %569, %536 : vector<2x32xi1>, vector<2x32xf32>
    %c0_310 = arith.constant 0 : index
    %c0_311 = arith.constant 0 : index
    %578 = vector.load %arg17[%c0_310, %c0_311] : memref<2x32xf32, #tpu.memory_space<vmem>>, vector<2x32xf32>
    tpu.vector_store %arg17[%c0_310, %c0_311], %577 {strides = array<i32>} : memref<2x32xf32, #tpu.memory_space<vmem>>, vector<2x32xf32>,
    %579 = arith.truncf %577 : vector<2x32xf32> to vector<2x32xbf16>
    %580 = arith.index_cast %c4_i32 : i32 to index
    %c0_312 = arith.constant 0 : index
    %c0_313 = arith.constant 0 : index
    %581 = vector.load %arg11[%580, %c0_312, %c0_313] : memref<8x2x32xbf16, #tpu.memory_space<vmem>>, vector<1x2x32xbf16>
    %582 = vector.shape_cast %581 : vector<1x2x32xbf16> to vector<2x32xbf16>
    %583 = vector.shape_cast %579 : vector<2x32xbf16> to vector<1x2x32xbf16>
    tpu.vector_store %arg11[%580, %c0_312, %c0_313], %583 {strides = array<i32>} : memref<8x2x32xbf16, #tpu.memory_space<vmem>>, vector<1x2x32xbf16>,
    %c7_i32_314 = arith.constant 7 : i32
    %584 = arith.subi %c7_i32_314, %c4_i32 : i32
    %c0_315 = arith.constant 0 : index
    %c0_316 = arith.constant 0 : index
    %585 = vector.load %arg18[%c0_315, %c0_316] : memref<2x32xf32, #tpu.memory_space<vmem>>, vector<2x32xf32>
    %586 = arith.index_cast %584 : i32 to index
    %c0_317 = arith.constant 0 : index
    %c0_318 = arith.constant 0 : index
    %587 = vector.load %arg16[%586, %c0_317, %c0_318] : memref<8x2x96xf32, #tpu.memory_space<vmem>>, vector<1x2x96xf32>
    %588 = vector.shape_cast %587 : vector<1x2x96xf32> to vector<2x96xf32>
    %589 = arith.truncf %585 : vector<2x32xf32> to vector<2x32xbf16>
    %c0_319 = arith.constant 0 : index
    %c0_320 = arith.constant 0 : index
    %590 = vector.load %arg8[%c0_319, %c0_320] : memref<32x96xbf16, #tpu.memory_space<vmem>>, vector<32x96xbf16>
    %cst_321 = arith.constant dense<0.000000e+00> : vector<2x96xf32>
    %591 = tpu.matmul %589, %590, %cst_321 {dimension_numbers = #tpu.dot_dimension_numbers<[1], [0], [0], [1], [0, 0, 1, 1], [], []>} : vector<2x32xbf16>, vector<32x96xbf16>, vector<2x96xf32> -> vector<2x96xf32>
    %592 = vector.extract_strided_slice %588 {offsets = [0, 0], sizes = [2, 32], strides = [1, 1]} : vector<2x96xf32> to vector<2x32xf32>
    %593 = vector.extract_strided_slice %591 {offsets = [0, 0], sizes = [2, 32], strides = [1, 1]} : vector<2x96xf32> to vector<2x32xf32>
    %594 = arith.addf %592, %593 : vector<2x32xf32>
    %595 = arith.negf %594 : vector<2x32xf32>
    %596 = math.exp %595 : vector<2x32xf32>
    %cst_322 = arith.constant 1.000000e+00 : f32
    %597 = vector.broadcast %cst_322 : f32 to vector<2x32xf32>
    %598 = arith.addf %597, %596 : vector<2x32xf32>
    %599 = arith.divf %597, %598 : vector<2x32xf32>
    %600 = vector.extract_strided_slice %588 {offsets = [0, 32], sizes = [2, 32], strides = [1, 1]} : vector<2x96xf32> to vector<2x32xf32>
    %601 = vector.extract_strided_slice %591 {offsets = [0, 32], sizes = [2, 32], strides = [1, 1]} : vector<2x96xf32> to vector<2x32xf32>
    %602 = arith.addf %600, %601 : vector<2x32xf32>
    %603 = arith.negf %602 : vector<2x32xf32>
    %604 = math.exp %603 : vector<2x32xf32>
    %cst_323 = arith.constant 1.000000e+00 : f32
    %605 = vector.broadcast %cst_323 : f32 to vector<2x32xf32>
    %606 = arith.addf %605, %604 : vector<2x32xf32>
    %607 = arith.divf %605, %606 : vector<2x32xf32>
    %608 = vector.extract_strided_slice %588 {offsets = [0, 64], sizes = [2, 32], strides = [1, 1]} : vector<2x96xf32> to vector<2x32xf32>
    %609 = vector.extract_strided_slice %591 {offsets = [0, 64], sizes = [2, 32], strides = [1, 1]} : vector<2x96xf32> to vector<2x32xf32>
    %c0_324 = arith.constant 0 : index
    %c0_325 = arith.constant 0 : index
    %610 = vector.load %arg10[%c0_324, %c0_325] : memref<1x32xf32, #tpu.memory_space<vmem>>, vector<1x32xf32>
    %611 = vector.broadcast %610 : vector<1x32xf32> to vector<2x32xf32>
    %612 = arith.addf %609, %611 : vector<2x32xf32>
    %613 = arith.mulf %599, %612 : vector<2x32xf32>
    %614 = arith.addf %608, %613 : vector<2x32xf32>
    %615 = math.tanh %614 : vector<2x32xf32>
    %616 = arith.subf %585, %615 : vector<2x32xf32>
    %617 = arith.mulf %607, %616 : vector<2x32xf32>
    %618 = arith.addf %615, %617 : vector<2x32xf32>
    %619 = arith.index_cast %584 : i32 to index
    %c0_326 = arith.constant 0 : index
    %c0_327 = arith.constant 0 : index
    %620 = vector.load %arg2[%619, %c0_326, %c0_327] : memref<8x2x1xf32, #tpu.memory_space<vmem>>, vector<1x2x1xf32>
    %621 = vector.shape_cast %620 : vector<1x2x1xf32> to vector<2x1xf32>
    %622 = vector.shape_cast %621 : vector<2x1xf32> to vector<2x1xf32>
    %623 = vector.broadcast %622 : vector<2x1xf32> to vector<2x32xf32>
    %cst_328 = arith.constant 0.000000e+00 : f32
    %624 = vector.broadcast %cst_328 : f32 to vector<2x32xf32>
    %625 = arith.cmpf ogt, %623, %624 : vector<2x32xf32>
    %626 = arith.select %625, %618, %585 : vector<2x32xi1>, vector<2x32xf32>
    %c0_329 = arith.constant 0 : index
    %c0_330 = arith.constant 0 : index
    %627 = vector.load %arg18[%c0_329, %c0_330] : memref<2x32xf32, #tpu.memory_space<vmem>>, vector<2x32xf32>
    tpu.vector_store %arg18[%c0_329, %c0_330], %626 {strides = array<i32>} : memref<2x32xf32, #tpu.memory_space<vmem>>, vector<2x32xf32>,
    %628 = arith.truncf %626 : vector<2x32xf32> to vector<2x32xbf16>
    %629 = arith.index_cast %584 : i32 to index
    %c0_331 = arith.constant 0 : index
    %c0_332 = arith.constant 0 : index
    %630 = vector.load %arg12[%629, %c0_331, %c0_332] : memref<8x2x32xbf16, #tpu.memory_space<vmem>>, vector<1x2x32xbf16>
    %631 = vector.shape_cast %630 : vector<1x2x32xbf16> to vector<2x32xbf16>
    %632 = vector.shape_cast %628 : vector<2x32xbf16> to vector<1x2x32xbf16>
    tpu.vector_store %arg12[%629, %c0_331, %c0_332], %632 {strides = array<i32>} : memref<8x2x32xbf16, #tpu.memory_space<vmem>>, vector<1x2x32xbf16>,
    %c5_i32 = arith.constant 5 : i32
    %c0_333 = arith.constant 0 : index
    %c0_334 = arith.constant 0 : index
    %633 = vector.load %arg17[%c0_333, %c0_334] : memref<2x32xf32, #tpu.memory_space<vmem>>, vector<2x32xf32>
    %634 = arith.index_cast %c5_i32 : i32 to index
    %c0_335 = arith.constant 0 : index
    %c0_336 = arith.constant 0 : index
    %635 = vector.load %arg15[%634, %c0_335, %c0_336] : memref<8x2x96xf32, #tpu.memory_space<vmem>>, vector<1x2x96xf32>
    %636 = vector.shape_cast %635 : vector<1x2x96xf32> to vector<2x96xf32>
    %637 = arith.truncf %633 : vector<2x32xf32> to vector<2x32xbf16>
    %c0_337 = arith.constant 0 : index
    %c0_338 = arith.constant 0 : index
    %638 = vector.load %arg4[%c0_337, %c0_338] : memref<32x96xbf16, #tpu.memory_space<vmem>>, vector<32x96xbf16>
    %cst_339 = arith.constant dense<0.000000e+00> : vector<2x96xf32>
    %639 = tpu.matmul %637, %638, %cst_339 {dimension_numbers = #tpu.dot_dimension_numbers<[1], [0], [0], [1], [0, 0, 1, 1], [], []>} : vector<2x32xbf16>, vector<32x96xbf16>, vector<2x96xf32> -> vector<2x96xf32>
    %640 = vector.extract_strided_slice %636 {offsets = [0, 0], sizes = [2, 32], strides = [1, 1]} : vector<2x96xf32> to vector<2x32xf32>
    %641 = vector.extract_strided_slice %639 {offsets = [0, 0], sizes = [2, 32], strides = [1, 1]} : vector<2x96xf32> to vector<2x32xf32>
    %642 = arith.addf %640, %641 : vector<2x32xf32>
    %643 = arith.negf %642 : vector<2x32xf32>
    %644 = math.exp %643 : vector<2x32xf32>
    %cst_340 = arith.constant 1.000000e+00 : f32
    %645 = vector.broadcast %cst_340 : f32 to vector<2x32xf32>
    %646 = arith.addf %645, %644 : vector<2x32xf32>
    %647 = arith.divf %645, %646 : vector<2x32xf32>
    %648 = vector.extract_strided_slice %636 {offsets = [0, 32], sizes = [2, 32], strides = [1, 1]} : vector<2x96xf32> to vector<2x32xf32>
    %649 = vector.extract_strided_slice %639 {offsets = [0, 32], sizes = [2, 32], strides = [1, 1]} : vector<2x96xf32> to vector<2x32xf32>
    %650 = arith.addf %648, %649 : vector<2x32xf32>
    %651 = arith.negf %650 : vector<2x32xf32>
    %652 = math.exp %651 : vector<2x32xf32>
    %cst_341 = arith.constant 1.000000e+00 : f32
    %653 = vector.broadcast %cst_341 : f32 to vector<2x32xf32>
    %654 = arith.addf %653, %652 : vector<2x32xf32>
    %655 = arith.divf %653, %654 : vector<2x32xf32>
    %656 = vector.extract_strided_slice %636 {offsets = [0, 64], sizes = [2, 32], strides = [1, 1]} : vector<2x96xf32> to vector<2x32xf32>
    %657 = vector.extract_strided_slice %639 {offsets = [0, 64], sizes = [2, 32], strides = [1, 1]} : vector<2x96xf32> to vector<2x32xf32>
    %c0_342 = arith.constant 0 : index
    %c0_343 = arith.constant 0 : index
    %658 = vector.load %arg6[%c0_342, %c0_343] : memref<1x32xf32, #tpu.memory_space<vmem>>, vector<1x32xf32>
    %659 = vector.broadcast %658 : vector<1x32xf32> to vector<2x32xf32>
    %660 = arith.addf %657, %659 : vector<2x32xf32>
    %661 = arith.mulf %647, %660 : vector<2x32xf32>
    %662 = arith.addf %656, %661 : vector<2x32xf32>
    %663 = math.tanh %662 : vector<2x32xf32>
    %664 = arith.subf %633, %663 : vector<2x32xf32>
    %665 = arith.mulf %655, %664 : vector<2x32xf32>
    %666 = arith.addf %663, %665 : vector<2x32xf32>
    %667 = arith.index_cast %c5_i32 : i32 to index
    %c0_344 = arith.constant 0 : index
    %c0_345 = arith.constant 0 : index
    %668 = vector.load %arg2[%667, %c0_344, %c0_345] : memref<8x2x1xf32, #tpu.memory_space<vmem>>, vector<1x2x1xf32>
    %669 = vector.shape_cast %668 : vector<1x2x1xf32> to vector<2x1xf32>
    %670 = vector.shape_cast %669 : vector<2x1xf32> to vector<2x1xf32>
    %671 = vector.broadcast %670 : vector<2x1xf32> to vector<2x32xf32>
    %cst_346 = arith.constant 0.000000e+00 : f32
    %672 = vector.broadcast %cst_346 : f32 to vector<2x32xf32>
    %673 = arith.cmpf ogt, %671, %672 : vector<2x32xf32>
    %674 = arith.select %673, %666, %633 : vector<2x32xi1>, vector<2x32xf32>
    %c0_347 = arith.constant 0 : index
    %c0_348 = arith.constant 0 : index
    %675 = vector.load %arg17[%c0_347, %c0_348] : memref<2x32xf32, #tpu.memory_space<vmem>>, vector<2x32xf32>
    tpu.vector_store %arg17[%c0_347, %c0_348], %674 {strides = array<i32>} : memref<2x32xf32, #tpu.memory_space<vmem>>, vector<2x32xf32>,
    %676 = arith.truncf %674 : vector<2x32xf32> to vector<2x32xbf16>
    %677 = arith.index_cast %c5_i32 : i32 to index
    %c0_349 = arith.constant 0 : index
    %c0_350 = arith.constant 0 : index
    %678 = vector.load %arg11[%677, %c0_349, %c0_350] : memref<8x2x32xbf16, #tpu.memory_space<vmem>>, vector<1x2x32xbf16>
    %679 = vector.shape_cast %678 : vector<1x2x32xbf16> to vector<2x32xbf16>
    %680 = vector.shape_cast %676 : vector<2x32xbf16> to vector<1x2x32xbf16>
    tpu.vector_store %arg11[%677, %c0_349, %c0_350], %680 {strides = array<i32>} : memref<8x2x32xbf16, #tpu.memory_space<vmem>>, vector<1x2x32xbf16>,
    %c7_i32_351 = arith.constant 7 : i32
    %681 = arith.subi %c7_i32_351, %c5_i32 : i32
    %c0_352 = arith.constant 0 : index
    %c0_353 = arith.constant 0 : index
    %682 = vector.load %arg18[%c0_352, %c0_353] : memref<2x32xf32, #tpu.memory_space<vmem>>, vector<2x32xf32>
    %683 = arith.index_cast %681 : i32 to index
    %c0_354 = arith.constant 0 : index
    %c0_355 = arith.constant 0 : index
    %684 = vector.load %arg16[%683, %c0_354, %c0_355] : memref<8x2x96xf32, #tpu.memory_space<vmem>>, vector<1x2x96xf32>
    %685 = vector.shape_cast %684 : vector<1x2x96xf32> to vector<2x96xf32>
    %686 = arith.truncf %682 : vector<2x32xf32> to vector<2x32xbf16>
    %c0_356 = arith.constant 0 : index
    %c0_357 = arith.constant 0 : index
    %687 = vector.load %arg8[%c0_356, %c0_357] : memref<32x96xbf16, #tpu.memory_space<vmem>>, vector<32x96xbf16>
    %cst_358 = arith.constant dense<0.000000e+00> : vector<2x96xf32>
    %688 = tpu.matmul %686, %687, %cst_358 {dimension_numbers = #tpu.dot_dimension_numbers<[1], [0], [0], [1], [0, 0, 1, 1], [], []>} : vector<2x32xbf16>, vector<32x96xbf16>, vector<2x96xf32> -> vector<2x96xf32>
    %689 = vector.extract_strided_slice %685 {offsets = [0, 0], sizes = [2, 32], strides = [1, 1]} : vector<2x96xf32> to vector<2x32xf32>
    %690 = vector.extract_strided_slice %688 {offsets = [0, 0], sizes = [2, 32], strides = [1, 1]} : vector<2x96xf32> to vector<2x32xf32>
    %691 = arith.addf %689, %690 : vector<2x32xf32>
    %692 = arith.negf %691 : vector<2x32xf32>
    %693 = math.exp %692 : vector<2x32xf32>
    %cst_359 = arith.constant 1.000000e+00 : f32
    %694 = vector.broadcast %cst_359 : f32 to vector<2x32xf32>
    %695 = arith.addf %694, %693 : vector<2x32xf32>
    %696 = arith.divf %694, %695 : vector<2x32xf32>
    %697 = vector.extract_strided_slice %685 {offsets = [0, 32], sizes = [2, 32], strides = [1, 1]} : vector<2x96xf32> to vector<2x32xf32>
    %698 = vector.extract_strided_slice %688 {offsets = [0, 32], sizes = [2, 32], strides = [1, 1]} : vector<2x96xf32> to vector<2x32xf32>
    %699 = arith.addf %697, %698 : vector<2x32xf32>
    %700 = arith.negf %699 : vector<2x32xf32>
    %701 = math.exp %700 : vector<2x32xf32>
    %cst_360 = arith.constant 1.000000e+00 : f32
    %702 = vector.broadcast %cst_360 : f32 to vector<2x32xf32>
    %703 = arith.addf %702, %701 : vector<2x32xf32>
    %704 = arith.divf %702, %703 : vector<2x32xf32>
    %705 = vector.extract_strided_slice %685 {offsets = [0, 64], sizes = [2, 32], strides = [1, 1]} : vector<2x96xf32> to vector<2x32xf32>
    %706 = vector.extract_strided_slice %688 {offsets = [0, 64], sizes = [2, 32], strides = [1, 1]} : vector<2x96xf32> to vector<2x32xf32>
    %c0_361 = arith.constant 0 : index
    %c0_362 = arith.constant 0 : index
    %707 = vector.load %arg10[%c0_361, %c0_362] : memref<1x32xf32, #tpu.memory_space<vmem>>, vector<1x32xf32>
    %708 = vector.broadcast %707 : vector<1x32xf32> to vector<2x32xf32>
    %709 = arith.addf %706, %708 : vector<2x32xf32>
    %710 = arith.mulf %696, %709 : vector<2x32xf32>
    %711 = arith.addf %705, %710 : vector<2x32xf32>
    %712 = math.tanh %711 : vector<2x32xf32>
    %713 = arith.subf %682, %712 : vector<2x32xf32>
    %714 = arith.mulf %704, %713 : vector<2x32xf32>
    %715 = arith.addf %712, %714 : vector<2x32xf32>
    %716 = arith.index_cast %681 : i32 to index
    %c0_363 = arith.constant 0 : index
    %c0_364 = arith.constant 0 : index
    %717 = vector.load %arg2[%716, %c0_363, %c0_364] : memref<8x2x1xf32, #tpu.memory_space<vmem>>, vector<1x2x1xf32>
    %718 = vector.shape_cast %717 : vector<1x2x1xf32> to vector<2x1xf32>
    %719 = vector.shape_cast %718 : vector<2x1xf32> to vector<2x1xf32>
    %720 = vector.broadcast %719 : vector<2x1xf32> to vector<2x32xf32>
    %cst_365 = arith.constant 0.000000e+00 : f32
    %721 = vector.broadcast %cst_365 : f32 to vector<2x32xf32>
    %722 = arith.cmpf ogt, %720, %721 : vector<2x32xf32>
    %723 = arith.select %722, %715, %682 : vector<2x32xi1>, vector<2x32xf32>
    %c0_366 = arith.constant 0 : index
    %c0_367 = arith.constant 0 : index
    %724 = vector.load %arg18[%c0_366, %c0_367] : memref<2x32xf32, #tpu.memory_space<vmem>>, vector<2x32xf32>
    tpu.vector_store %arg18[%c0_366, %c0_367], %723 {strides = array<i32>} : memref<2x32xf32, #tpu.memory_space<vmem>>, vector<2x32xf32>,
    %725 = arith.truncf %723 : vector<2x32xf32> to vector<2x32xbf16>
    %726 = arith.index_cast %681 : i32 to index
    %c0_368 = arith.constant 0 : index
    %c0_369 = arith.constant 0 : index
    %727 = vector.load %arg12[%726, %c0_368, %c0_369] : memref<8x2x32xbf16, #tpu.memory_space<vmem>>, vector<1x2x32xbf16>
    %728 = vector.shape_cast %727 : vector<1x2x32xbf16> to vector<2x32xbf16>
    %729 = vector.shape_cast %725 : vector<2x32xbf16> to vector<1x2x32xbf16>
    tpu.vector_store %arg12[%726, %c0_368, %c0_369], %729 {strides = array<i32>} : memref<8x2x32xbf16, #tpu.memory_space<vmem>>, vector<1x2x32xbf16>,
    %c6_i32 = arith.constant 6 : i32
    %c0_370 = arith.constant 0 : index
    %c0_371 = arith.constant 0 : index
    %730 = vector.load %arg17[%c0_370, %c0_371] : memref<2x32xf32, #tpu.memory_space<vmem>>, vector<2x32xf32>
    %731 = arith.index_cast %c6_i32 : i32 to index
    %c0_372 = arith.constant 0 : index
    %c0_373 = arith.constant 0 : index
    %732 = vector.load %arg15[%731, %c0_372, %c0_373] : memref<8x2x96xf32, #tpu.memory_space<vmem>>, vector<1x2x96xf32>
    %733 = vector.shape_cast %732 : vector<1x2x96xf32> to vector<2x96xf32>
    %734 = arith.truncf %730 : vector<2x32xf32> to vector<2x32xbf16>
    %c0_374 = arith.constant 0 : index
    %c0_375 = arith.constant 0 : index
    %735 = vector.load %arg4[%c0_374, %c0_375] : memref<32x96xbf16, #tpu.memory_space<vmem>>, vector<32x96xbf16>
    %cst_376 = arith.constant dense<0.000000e+00> : vector<2x96xf32>
    %736 = tpu.matmul %734, %735, %cst_376 {dimension_numbers = #tpu.dot_dimension_numbers<[1], [0], [0], [1], [0, 0, 1, 1], [], []>} : vector<2x32xbf16>, vector<32x96xbf16>, vector<2x96xf32> -> vector<2x96xf32>
    %737 = vector.extract_strided_slice %733 {offsets = [0, 0], sizes = [2, 32], strides = [1, 1]} : vector<2x96xf32> to vector<2x32xf32>
    %738 = vector.extract_strided_slice %736 {offsets = [0, 0], sizes = [2, 32], strides = [1, 1]} : vector<2x96xf32> to vector<2x32xf32>
    %739 = arith.addf %737, %738 : vector<2x32xf32>
    %740 = arith.negf %739 : vector<2x32xf32>
    %741 = math.exp %740 : vector<2x32xf32>
    %cst_377 = arith.constant 1.000000e+00 : f32
    %742 = vector.broadcast %cst_377 : f32 to vector<2x32xf32>
    %743 = arith.addf %742, %741 : vector<2x32xf32>
    %744 = arith.divf %742, %743 : vector<2x32xf32>
    %745 = vector.extract_strided_slice %733 {offsets = [0, 32], sizes = [2, 32], strides = [1, 1]} : vector<2x96xf32> to vector<2x32xf32>
    %746 = vector.extract_strided_slice %736 {offsets = [0, 32], sizes = [2, 32], strides = [1, 1]} : vector<2x96xf32> to vector<2x32xf32>
    %747 = arith.addf %745, %746 : vector<2x32xf32>
    %748 = arith.negf %747 : vector<2x32xf32>
    %749 = math.exp %748 : vector<2x32xf32>
    %cst_378 = arith.constant 1.000000e+00 : f32
    %750 = vector.broadcast %cst_378 : f32 to vector<2x32xf32>
    %751 = arith.addf %750, %749 : vector<2x32xf32>
    %752 = arith.divf %750, %751 : vector<2x32xf32>
    %753 = vector.extract_strided_slice %733 {offsets = [0, 64], sizes = [2, 32], strides = [1, 1]} : vector<2x96xf32> to vector<2x32xf32>
    %754 = vector.extract_strided_slice %736 {offsets = [0, 64], sizes = [2, 32], strides = [1, 1]} : vector<2x96xf32> to vector<2x32xf32>
    %c0_379 = arith.constant 0 : index
    %c0_380 = arith.constant 0 : index
    %755 = vector.load %arg6[%c0_379, %c0_380] : memref<1x32xf32, #tpu.memory_space<vmem>>, vector<1x32xf32>
    %756 = vector.broadcast %755 : vector<1x32xf32> to vector<2x32xf32>
    %757 = arith.addf %754, %756 : vector<2x32xf32>
    %758 = arith.mulf %744, %757 : vector<2x32xf32>
    %759 = arith.addf %753, %758 : vector<2x32xf32>
    %760 = math.tanh %759 : vector<2x32xf32>
    %761 = arith.subf %730, %760 : vector<2x32xf32>
    %762 = arith.mulf %752, %761 : vector<2x32xf32>
    %763 = arith.addf %760, %762 : vector<2x32xf32>
    %764 = arith.index_cast %c6_i32 : i32 to index
    %c0_381 = arith.constant 0 : index
    %c0_382 = arith.constant 0 : index
    %765 = vector.load %arg2[%764, %c0_381, %c0_382] : memref<8x2x1xf32, #tpu.memory_space<vmem>>, vector<1x2x1xf32>
    %766 = vector.shape_cast %765 : vector<1x2x1xf32> to vector<2x1xf32>
    %767 = vector.shape_cast %766 : vector<2x1xf32> to vector<2x1xf32>
    %768 = vector.broadcast %767 : vector<2x1xf32> to vector<2x32xf32>
    %cst_383 = arith.constant 0.000000e+00 : f32
    %769 = vector.broadcast %cst_383 : f32 to vector<2x32xf32>
    %770 = arith.cmpf ogt, %768, %769 : vector<2x32xf32>
    %771 = arith.select %770, %763, %730 : vector<2x32xi1>, vector<2x32xf32>
    %c0_384 = arith.constant 0 : index
    %c0_385 = arith.constant 0 : index
    %772 = vector.load %arg17[%c0_384, %c0_385] : memref<2x32xf32, #tpu.memory_space<vmem>>, vector<2x32xf32>
    tpu.vector_store %arg17[%c0_384, %c0_385], %771 {strides = array<i32>} : memref<2x32xf32, #tpu.memory_space<vmem>>, vector<2x32xf32>,
    %773 = arith.truncf %771 : vector<2x32xf32> to vector<2x32xbf16>
    %774 = arith.index_cast %c6_i32 : i32 to index
    %c0_386 = arith.constant 0 : index
    %c0_387 = arith.constant 0 : index
    %775 = vector.load %arg11[%774, %c0_386, %c0_387] : memref<8x2x32xbf16, #tpu.memory_space<vmem>>, vector<1x2x32xbf16>
    %776 = vector.shape_cast %775 : vector<1x2x32xbf16> to vector<2x32xbf16>
    %777 = vector.shape_cast %773 : vector<2x32xbf16> to vector<1x2x32xbf16>
    tpu.vector_store %arg11[%774, %c0_386, %c0_387], %777 {strides = array<i32>} : memref<8x2x32xbf16, #tpu.memory_space<vmem>>, vector<1x2x32xbf16>,
    %c7_i32_388 = arith.constant 7 : i32
    %778 = arith.subi %c7_i32_388, %c6_i32 : i32
    %c0_389 = arith.constant 0 : index
    %c0_390 = arith.constant 0 : index
    %779 = vector.load %arg18[%c0_389, %c0_390] : memref<2x32xf32, #tpu.memory_space<vmem>>, vector<2x32xf32>
    %780 = arith.index_cast %778 : i32 to index
    %c0_391 = arith.constant 0 : index
    %c0_392 = arith.constant 0 : index
    %781 = vector.load %arg16[%780, %c0_391, %c0_392] : memref<8x2x96xf32, #tpu.memory_space<vmem>>, vector<1x2x96xf32>
    %782 = vector.shape_cast %781 : vector<1x2x96xf32> to vector<2x96xf32>
    %783 = arith.truncf %779 : vector<2x32xf32> to vector<2x32xbf16>
    %c0_393 = arith.constant 0 : index
    %c0_394 = arith.constant 0 : index
    %784 = vector.load %arg8[%c0_393, %c0_394] : memref<32x96xbf16, #tpu.memory_space<vmem>>, vector<32x96xbf16>
    %cst_395 = arith.constant dense<0.000000e+00> : vector<2x96xf32>
    %785 = tpu.matmul %783, %784, %cst_395 {dimension_numbers = #tpu.dot_dimension_numbers<[1], [0], [0], [1], [0, 0, 1, 1], [], []>} : vector<2x32xbf16>, vector<32x96xbf16>, vector<2x96xf32> -> vector<2x96xf32>
    %786 = vector.extract_strided_slice %782 {offsets = [0, 0], sizes = [2, 32], strides = [1, 1]} : vector<2x96xf32> to vector<2x32xf32>
    %787 = vector.extract_strided_slice %785 {offsets = [0, 0], sizes = [2, 32], strides = [1, 1]} : vector<2x96xf32> to vector<2x32xf32>
    %788 = arith.addf %786, %787 : vector<2x32xf32>
    %789 = arith.negf %788 : vector<2x32xf32>
    %790 = math.exp %789 : vector<2x32xf32>
    %cst_396 = arith.constant 1.000000e+00 : f32
    %791 = vector.broadcast %cst_396 : f32 to vector<2x32xf32>
    %792 = arith.addf %791, %790 : vector<2x32xf32>
    %793 = arith.divf %791, %792 : vector<2x32xf32>
    %794 = vector.extract_strided_slice %782 {offsets = [0, 32], sizes = [2, 32], strides = [1, 1]} : vector<2x96xf32> to vector<2x32xf32>
    %795 = vector.extract_strided_slice %785 {offsets = [0, 32], sizes = [2, 32], strides = [1, 1]} : vector<2x96xf32> to vector<2x32xf32>
    %796 = arith.addf %794, %795 : vector<2x32xf32>
    %797 = arith.negf %796 : vector<2x32xf32>
    %798 = math.exp %797 : vector<2x32xf32>
    %cst_397 = arith.constant 1.000000e+00 : f32
    %799 = vector.broadcast %cst_397 : f32 to vector<2x32xf32>
    %800 = arith.addf %799, %798 : vector<2x32xf32>
    %801 = arith.divf %799, %800 : vector<2x32xf32>
    %802 = vector.extract_strided_slice %782 {offsets = [0, 64], sizes = [2, 32], strides = [1, 1]} : vector<2x96xf32> to vector<2x32xf32>
    %803 = vector.extract_strided_slice %785 {offsets = [0, 64], sizes = [2, 32], strides = [1, 1]} : vector<2x96xf32> to vector<2x32xf32>
    %c0_398 = arith.constant 0 : index
    %c0_399 = arith.constant 0 : index
    %804 = vector.load %arg10[%c0_398, %c0_399] : memref<1x32xf32, #tpu.memory_space<vmem>>, vector<1x32xf32>
    %805 = vector.broadcast %804 : vector<1x32xf32> to vector<2x32xf32>
    %806 = arith.addf %803, %805 : vector<2x32xf32>
    %807 = arith.mulf %793, %806 : vector<2x32xf32>
    %808 = arith.addf %802, %807 : vector<2x32xf32>
    %809 = math.tanh %808 : vector<2x32xf32>
    %810 = arith.subf %779, %809 : vector<2x32xf32>
    %811 = arith.mulf %801, %810 : vector<2x32xf32>
    %812 = arith.addf %809, %811 : vector<2x32xf32>
    %813 = arith.index_cast %778 : i32 to index
    %c0_400 = arith.constant 0 : index
    %c0_401 = arith.constant 0 : index
    %814 = vector.load %arg2[%813, %c0_400, %c0_401] : memref<8x2x1xf32, #tpu.memory_space<vmem>>, vector<1x2x1xf32>
    %815 = vector.shape_cast %814 : vector<1x2x1xf32> to vector<2x1xf32>
    %816 = vector.shape_cast %815 : vector<2x1xf32> to vector<2x1xf32>
    %817 = vector.broadcast %816 : vector<2x1xf32> to vector<2x32xf32>
    %cst_402 = arith.constant 0.000000e+00 : f32
    %818 = vector.broadcast %cst_402 : f32 to vector<2x32xf32>
    %819 = arith.cmpf ogt, %817, %818 : vector<2x32xf32>
    %820 = arith.select %819, %812, %779 : vector<2x32xi1>, vector<2x32xf32>
    %c0_403 = arith.constant 0 : index
    %c0_404 = arith.constant 0 : index
    %821 = vector.load %arg18[%c0_403, %c0_404] : memref<2x32xf32, #tpu.memory_space<vmem>>, vector<2x32xf32>
    tpu.vector_store %arg18[%c0_403, %c0_404], %820 {strides = array<i32>} : memref<2x32xf32, #tpu.memory_space<vmem>>, vector<2x32xf32>,
    %822 = arith.truncf %820 : vector<2x32xf32> to vector<2x32xbf16>
    %823 = arith.index_cast %778 : i32 to index
    %c0_405 = arith.constant 0 : index
    %c0_406 = arith.constant 0 : index
    %824 = vector.load %arg12[%823, %c0_405, %c0_406] : memref<8x2x32xbf16, #tpu.memory_space<vmem>>, vector<1x2x32xbf16>
    %825 = vector.shape_cast %824 : vector<1x2x32xbf16> to vector<2x32xbf16>
    %826 = vector.shape_cast %822 : vector<2x32xbf16> to vector<1x2x32xbf16>
    tpu.vector_store %arg12[%823, %c0_405, %c0_406], %826 {strides = array<i32>} : memref<8x2x32xbf16, #tpu.memory_space<vmem>>, vector<1x2x32xbf16>,
    %c7_i32_407 = arith.constant 7 : i32
    %c0_408 = arith.constant 0 : index
    %c0_409 = arith.constant 0 : index
    %827 = vector.load %arg17[%c0_408, %c0_409] : memref<2x32xf32, #tpu.memory_space<vmem>>, vector<2x32xf32>
    %828 = arith.index_cast %c7_i32_407 : i32 to index
    %c0_410 = arith.constant 0 : index
    %c0_411 = arith.constant 0 : index
    %829 = vector.load %arg15[%828, %c0_410, %c0_411] : memref<8x2x96xf32, #tpu.memory_space<vmem>>, vector<1x2x96xf32>
    %830 = vector.shape_cast %829 : vector<1x2x96xf32> to vector<2x96xf32>
    %831 = arith.truncf %827 : vector<2x32xf32> to vector<2x32xbf16>
    %c0_412 = arith.constant 0 : index
    %c0_413 = arith.constant 0 : index
    %832 = vector.load %arg4[%c0_412, %c0_413] : memref<32x96xbf16, #tpu.memory_space<vmem>>, vector<32x96xbf16>
    %cst_414 = arith.constant dense<0.000000e+00> : vector<2x96xf32>
    %833 = tpu.matmul %831, %832, %cst_414 {dimension_numbers = #tpu.dot_dimension_numbers<[1], [0], [0], [1], [0, 0, 1, 1], [], []>} : vector<2x32xbf16>, vector<32x96xbf16>, vector<2x96xf32> -> vector<2x96xf32>
    %834 = vector.extract_strided_slice %830 {offsets = [0, 0], sizes = [2, 32], strides = [1, 1]} : vector<2x96xf32> to vector<2x32xf32>
    %835 = vector.extract_strided_slice %833 {offsets = [0, 0], sizes = [2, 32], strides = [1, 1]} : vector<2x96xf32> to vector<2x32xf32>
    %836 = arith.addf %834, %835 : vector<2x32xf32>
    %837 = arith.negf %836 : vector<2x32xf32>
    %838 = math.exp %837 : vector<2x32xf32>
    %cst_415 = arith.constant 1.000000e+00 : f32
    %839 = vector.broadcast %cst_415 : f32 to vector<2x32xf32>
    %840 = arith.addf %839, %838 : vector<2x32xf32>
    %841 = arith.divf %839, %840 : vector<2x32xf32>
    %842 = vector.extract_strided_slice %830 {offsets = [0, 32], sizes = [2, 32], strides = [1, 1]} : vector<2x96xf32> to vector<2x32xf32>
    %843 = vector.extract_strided_slice %833 {offsets = [0, 32], sizes = [2, 32], strides = [1, 1]} : vector<2x96xf32> to vector<2x32xf32>
    %844 = arith.addf %842, %843 : vector<2x32xf32>
    %845 = arith.negf %844 : vector<2x32xf32>
    %846 = math.exp %845 : vector<2x32xf32>
    %cst_416 = arith.constant 1.000000e+00 : f32
    %847 = vector.broadcast %cst_416 : f32 to vector<2x32xf32>
    %848 = arith.addf %847, %846 : vector<2x32xf32>
    %849 = arith.divf %847, %848 : vector<2x32xf32>
    %850 = vector.extract_strided_slice %830 {offsets = [0, 64], sizes = [2, 32], strides = [1, 1]} : vector<2x96xf32> to vector<2x32xf32>
    %851 = vector.extract_strided_slice %833 {offsets = [0, 64], sizes = [2, 32], strides = [1, 1]} : vector<2x96xf32> to vector<2x32xf32>
    %c0_417 = arith.constant 0 : index
    %c0_418 = arith.constant 0 : index
    %852 = vector.load %arg6[%c0_417, %c0_418] : memref<1x32xf32, #tpu.memory_space<vmem>>, vector<1x32xf32>
    %853 = vector.broadcast %852 : vector<1x32xf32> to vector<2x32xf32>
    %854 = arith.addf %851, %853 : vector<2x32xf32>
    %855 = arith.mulf %841, %854 : vector<2x32xf32>
    %856 = arith.addf %850, %855 : vector<2x32xf32>
    %857 = math.tanh %856 : vector<2x32xf32>
    %858 = arith.subf %827, %857 : vector<2x32xf32>
    %859 = arith.mulf %849, %858 : vector<2x32xf32>
    %860 = arith.addf %857, %859 : vector<2x32xf32>
    %861 = arith.index_cast %c7_i32_407 : i32 to index
    %c0_419 = arith.constant 0 : index
    %c0_420 = arith.constant 0 : index
    %862 = vector.load %arg2[%861, %c0_419, %c0_420] : memref<8x2x1xf32, #tpu.memory_space<vmem>>, vector<1x2x1xf32>
    %863 = vector.shape_cast %862 : vector<1x2x1xf32> to vector<2x1xf32>
    %864 = vector.shape_cast %863 : vector<2x1xf32> to vector<2x1xf32>
    %865 = vector.broadcast %864 : vector<2x1xf32> to vector<2x32xf32>
    %cst_421 = arith.constant 0.000000e+00 : f32
    %866 = vector.broadcast %cst_421 : f32 to vector<2x32xf32>
    %867 = arith.cmpf ogt, %865, %866 : vector<2x32xf32>
    %868 = arith.select %867, %860, %827 : vector<2x32xi1>, vector<2x32xf32>
    %c0_422 = arith.constant 0 : index
    %c0_423 = arith.constant 0 : index
    %869 = vector.load %arg17[%c0_422, %c0_423] : memref<2x32xf32, #tpu.memory_space<vmem>>, vector<2x32xf32>
    tpu.vector_store %arg17[%c0_422, %c0_423], %868 {strides = array<i32>} : memref<2x32xf32, #tpu.memory_space<vmem>>, vector<2x32xf32>,
    %870 = arith.truncf %868 : vector<2x32xf32> to vector<2x32xbf16>
    %871 = arith.index_cast %c7_i32_407 : i32 to index
    %c0_424 = arith.constant 0 : index
    %c0_425 = arith.constant 0 : index
    %872 = vector.load %arg11[%871, %c0_424, %c0_425] : memref<8x2x32xbf16, #tpu.memory_space<vmem>>, vector<1x2x32xbf16>
    %873 = vector.shape_cast %872 : vector<1x2x32xbf16> to vector<2x32xbf16>
    %874 = vector.shape_cast %870 : vector<2x32xbf16> to vector<1x2x32xbf16>
    tpu.vector_store %arg11[%871, %c0_424, %c0_425], %874 {strides = array<i32>} : memref<8x2x32xbf16, #tpu.memory_space<vmem>>, vector<1x2x32xbf16>,
    %c7_i32_426 = arith.constant 7 : i32
    %875 = arith.subi %c7_i32_426, %c7_i32_407 : i32
    %c0_427 = arith.constant 0 : index
    %c0_428 = arith.constant 0 : index
    %876 = vector.load %arg18[%c0_427, %c0_428] : memref<2x32xf32, #tpu.memory_space<vmem>>, vector<2x32xf32>
    %877 = arith.index_cast %875 : i32 to index
    %c0_429 = arith.constant 0 : index
    %c0_430 = arith.constant 0 : index
    %878 = vector.load %arg16[%877, %c0_429, %c0_430] : memref<8x2x96xf32, #tpu.memory_space<vmem>>, vector<1x2x96xf32>
    %879 = vector.shape_cast %878 : vector<1x2x96xf32> to vector<2x96xf32>
    %880 = arith.truncf %876 : vector<2x32xf32> to vector<2x32xbf16>
    %c0_431 = arith.constant 0 : index
    %c0_432 = arith.constant 0 : index
    %881 = vector.load %arg8[%c0_431, %c0_432] : memref<32x96xbf16, #tpu.memory_space<vmem>>, vector<32x96xbf16>
    %cst_433 = arith.constant dense<0.000000e+00> : vector<2x96xf32>
    %882 = tpu.matmul %880, %881, %cst_433 {dimension_numbers = #tpu.dot_dimension_numbers<[1], [0], [0], [1], [0, 0, 1, 1], [], []>} : vector<2x32xbf16>, vector<32x96xbf16>, vector<2x96xf32> -> vector<2x96xf32>
    %883 = vector.extract_strided_slice %879 {offsets = [0, 0], sizes = [2, 32], strides = [1, 1]} : vector<2x96xf32> to vector<2x32xf32>
    %884 = vector.extract_strided_slice %882 {offsets = [0, 0], sizes = [2, 32], strides = [1, 1]} : vector<2x96xf32> to vector<2x32xf32>
    %885 = arith.addf %883, %884 : vector<2x32xf32>
    %886 = arith.negf %885 : vector<2x32xf32>
    %887 = math.exp %886 : vector<2x32xf32>
    %cst_434 = arith.constant 1.000000e+00 : f32
    %888 = vector.broadcast %cst_434 : f32 to vector<2x32xf32>
    %889 = arith.addf %888, %887 : vector<2x32xf32>
    %890 = arith.divf %888, %889 : vector<2x32xf32>
    %891 = vector.extract_strided_slice %879 {offsets = [0, 32], sizes = [2, 32], strides = [1, 1]} : vector<2x96xf32> to vector<2x32xf32>
    %892 = vector.extract_strided_slice %882 {offsets = [0, 32], sizes = [2, 32], strides = [1, 1]} : vector<2x96xf32> to vector<2x32xf32>
    %893 = arith.addf %891, %892 : vector<2x32xf32>
    %894 = arith.negf %893 : vector<2x32xf32>
    %895 = math.exp %894 : vector<2x32xf32>
    %cst_435 = arith.constant 1.000000e+00 : f32
    %896 = vector.broadcast %cst_435 : f32 to vector<2x32xf32>
    %897 = arith.addf %896, %895 : vector<2x32xf32>
    %898 = arith.divf %896, %897 : vector<2x32xf32>
    %899 = vector.extract_strided_slice %879 {offsets = [0, 64], sizes = [2, 32], strides = [1, 1]} : vector<2x96xf32> to vector<2x32xf32>
    %900 = vector.extract_strided_slice %882 {offsets = [0, 64], sizes = [2, 32], strides = [1, 1]} : vector<2x96xf32> to vector<2x32xf32>
    %c0_436 = arith.constant 0 : index
    %c0_437 = arith.constant 0 : index
    %901 = vector.load %arg10[%c0_436, %c0_437] : memref<1x32xf32, #tpu.memory_space<vmem>>, vector<1x32xf32>
    %902 = vector.broadcast %901 : vector<1x32xf32> to vector<2x32xf32>
    %903 = arith.addf %900, %902 : vector<2x32xf32>
    %904 = arith.mulf %890, %903 : vector<2x32xf32>
    %905 = arith.addf %899, %904 : vector<2x32xf32>
    %906 = math.tanh %905 : vector<2x32xf32>
    %907 = arith.subf %876, %906 : vector<2x32xf32>
    %908 = arith.mulf %898, %907 : vector<2x32xf32>
    %909 = arith.addf %906, %908 : vector<2x32xf32>
    %910 = arith.index_cast %875 : i32 to index
    %c0_438 = arith.constant 0 : index
    %c0_439 = arith.constant 0 : index
    %911 = vector.load %arg2[%910, %c0_438, %c0_439] : memref<8x2x1xf32, #tpu.memory_space<vmem>>, vector<1x2x1xf32>
    %912 = vector.shape_cast %911 : vector<1x2x1xf32> to vector<2x1xf32>
    %913 = vector.shape_cast %912 : vector<2x1xf32> to vector<2x1xf32>
    %914 = vector.broadcast %913 : vector<2x1xf32> to vector<2x32xf32>
    %cst_440 = arith.constant 0.000000e+00 : f32
    %915 = vector.broadcast %cst_440 : f32 to vector<2x32xf32>
    %916 = arith.cmpf ogt, %914, %915 : vector<2x32xf32>
    %917 = arith.select %916, %909, %876 : vector<2x32xi1>, vector<2x32xf32>
    %c0_441 = arith.constant 0 : index
    %c0_442 = arith.constant 0 : index
    %918 = vector.load %arg18[%c0_441, %c0_442] : memref<2x32xf32, #tpu.memory_space<vmem>>, vector<2x32xf32>
    tpu.vector_store %arg18[%c0_441, %c0_442], %917 {strides = array<i32>} : memref<2x32xf32, #tpu.memory_space<vmem>>, vector<2x32xf32>,
    %919 = arith.truncf %917 : vector<2x32xf32> to vector<2x32xbf16>
    %920 = arith.index_cast %875 : i32 to index
    %c0_443 = arith.constant 0 : index
    %c0_444 = arith.constant 0 : index
    %921 = vector.load %arg12[%920, %c0_443, %c0_444] : memref<8x2x32xbf16, #tpu.memory_space<vmem>>, vector<1x2x32xbf16>
    %922 = vector.shape_cast %921 : vector<1x2x32xbf16> to vector<2x32xbf16>
    %923 = vector.shape_cast %919 : vector<2x32xbf16> to vector<1x2x32xbf16>
    tpu.vector_store %arg12[%920, %c0_443, %c0_444], %923 {strides = array<i32>} : memref<8x2x32xbf16, #tpu.memory_space<vmem>>, vector<1x2x32xbf16>,
    %c8_i32 = arith.constant 8 : i32
    %c0_445 = arith.constant 0 : index
    %c0_446 = arith.constant 0 : index
    %924 = vector.load %arg17[%c0_445, %c0_446] : memref<2x32xf32, #tpu.memory_space<vmem>>, vector<2x32xf32>
    %c0_447 = arith.constant 0 : index
    %c0_448 = arith.constant 0 : index
    %925 = vector.load %arg13[%c0_447, %c0_448] : memref<2x32xf32, #tpu.memory_space<vmem>>, vector<2x32xf32>
    tpu.vector_store %arg13[%c0_447, %c0_448], %924 {strides = array<i32>} : memref<2x32xf32, #tpu.memory_space<vmem>>, vector<2x32xf32>,
    %c0_449 = arith.constant 0 : index
    %c0_450 = arith.constant 0 : index
    %926 = vector.load %arg18[%c0_449, %c0_450] : memref<2x32xf32, #tpu.memory_space<vmem>>, vector<2x32xf32>
    %c0_451 = arith.constant 0 : index
    %c0_452 = arith.constant 0 : index
    %927 = vector.load %arg14[%c0_451, %c0_452] : memref<2x32xf32, #tpu.memory_space<vmem>>, vector<2x32xf32>
    tpu.vector_store %arg14[%c0_451, %c0_452], %926 {strides = array<i32>} : memref<2x32xf32, #tpu.memory_space<vmem>>, vector<2x32xf32>,
    return
  }
  func.func @transform_0(%arg0: i32) -> (i32, i32, i32) {
    %c0_i32 = arith.constant 0 : i32
    %c0_i32_0 = arith.constant 0 : i32
    %c0_i32_1 = arith.constant 0 : i32
    return %c0_i32, %arg0, %c0_i32_0 : i32, i32, i32
  }
  func.func @transform_1(%arg0: i32) -> (i32, i32, i32) {
    %c0_i32 = arith.constant 0 : i32
    %c0_i32_0 = arith.constant 0 : i32
    %c0_i32_1 = arith.constant 0 : i32
    return %c0_i32, %arg0, %c0_i32_0 : i32, i32, i32
  }
  func.func @transform_2(%arg0: i32) -> (i32, i32) {
    %c0_i32 = arith.constant 0 : i32
    %c0_i32_0 = arith.constant 0 : i32
    %c0_i32_1 = arith.constant 0 : i32
    return %c0_i32, %c0_i32_0 : i32, i32
  }
  func.func @transform_3(%arg0: i32) -> (i32, i32) {
    %c0_i32 = arith.constant 0 : i32
    %c0_i32_0 = arith.constant 0 : i32
    %c0_i32_1 = arith.constant 0 : i32
    return %c0_i32, %c0_i32_0 : i32, i32
  }
  func.func @transform_4(%arg0: i32) -> (i32, i32) {
    %c0_i32 = arith.constant 0 : i32
    %c0_i32_0 = arith.constant 0 : i32
    %c0_i32_1 = arith.constant 0 : i32
    return %c0_i32, %c0_i32_0 : i32, i32
  }
  func.func @transform_5(%arg0: i32) -> (i32, i32) {
    %c0_i32 = arith.constant 0 : i32
    %c0_i32_0 = arith.constant 0 : i32
    %c0_i32_1 = arith.constant 0 : i32
    return %c0_i32, %c0_i32_0 : i32, i32
  }
  func.func @transform_6(%arg0: i32) -> (i32, i32) {
    %c0_i32 = arith.constant 0 : i32
    %c0_i32_0 = arith.constant 0 : i32
    %c0_i32_1 = arith.constant 0 : i32
    return %c0_i32, %c0_i32_0 : i32, i32
  }
  func.func @transform_7(%arg0: i32) -> (i32, i32) {
    %c0_i32 = arith.constant 0 : i32
    %c0_i32_0 = arith.constant 0 : i32
    %c0_i32_1 = arith.constant 0 : i32
    return %c0_i32, %c0_i32_0 : i32, i32
  }
  func.func @transform_8(%arg0: i32) -> (i32, i32) {
    %c0_i32 = arith.constant 0 : i32
    %c0_i32_0 = arith.constant 0 : i32
    %c0_i32_1 = arith.constant 0 : i32
    return %c0_i32, %c0_i32_0 : i32, i32
  }
  func.func @transform_9(%arg0: i32) -> (i32, i32) {
    %c0_i32 = arith.constant 0 : i32
    %c0_i32_0 = arith.constant 0 : i32
    %c0_i32_1 = arith.constant 0 : i32
    return %c0_i32, %c0_i32_0 : i32, i32
  }
  func.func @transform_10(%arg0: i32) -> (i32, i32, i32) {
    %c0_i32 = arith.constant 0 : i32
    %c0_i32_0 = arith.constant 0 : i32
    %c0_i32_1 = arith.constant 0 : i32
    return %c0_i32, %arg0, %c0_i32_0 : i32, i32, i32
  }
  func.func @transform_11(%arg0: i32) -> (i32, i32, i32) {
    %c0_i32 = arith.constant 0 : i32
    %c0_i32_0 = arith.constant 0 : i32
    %c0_i32_1 = arith.constant 0 : i32
    return %c0_i32, %arg0, %c0_i32_0 : i32, i32, i32
  }
  func.func @transform_12(%arg0: i32) -> (i32, i32) {
    %c0_i32 = arith.constant 0 : i32
    %c0_i32_0 = arith.constant 0 : i32
    return %arg0, %c0_i32 : i32, i32
  }
  func.func @transform_13(%arg0: i32) -> (i32, i32) {
    %c0_i32 = arith.constant 0 : i32
    %c0_i32_0 = arith.constant 0 : i32
    return %arg0, %c0_i32 : i32, i32
  }
}

module attributes {stable_mosaic.version = 11 : i64} {
  func.func @gru_layer_kernel(%arg0: i32, %arg1: memref<8x2x32xbf16, #tpu.memory_space<vmem>>, %arg2: memref<8x2x1xf32, #tpu.memory_space<vmem>>, %arg3: memref<32x96xbf16, #tpu.memory_space<vmem>>, %arg4: memref<32x96xbf16, #tpu.memory_space<vmem>>, %arg5: memref<1x96xf32, #tpu.memory_space<vmem>>, %arg6: memref<1x32xf32, #tpu.memory_space<vmem>>, %arg7: memref<32x96xbf16, #tpu.memory_space<vmem>>, %arg8: memref<32x96xbf16, #tpu.memory_space<vmem>>, %arg9: memref<1x96xf32, #tpu.memory_space<vmem>>, %arg10: memref<1x32xf32, #tpu.memory_space<vmem>>, %arg11: memref<8x2x32xbf16, #tpu.memory_space<vmem>>, %arg12: memref<8x2x32xbf16, #tpu.memory_space<vmem>>, %arg13: memref<2x32xf32, #tpu.memory_space<vmem>>, %arg14: memref<2x32xf32, #tpu.memory_space<vmem>>, %arg15: memref<8x2x96xf32, #tpu.memory_space<vmem>>, %arg16: memref<8x2x96xf32, #tpu.memory_space<vmem>>, %arg17: memref<2x32xf32, #tpu.memory_space<vmem>>, %arg18: memref<2x32xf32, #tpu.memory_space<vmem>>) attributes {dimension_semantics = [#tpu.dimension_semantics<parallel>], iteration_bounds = array<i64: 1>, scalar_prefetch = 0 : i64, scratch_operands = 4 : i64, tpu.core_type = #tpu.core_type<tc>, window_params = [{transform_indices = @transform_0, window_bounds = array<i64: 8, 2, 32>}, {transform_indices = @transform_1, window_bounds = array<i64: 8, 2, 1>}, {pipeline_mode = #tpu.pipeline_mode<synchronous>, transform_indices = @transform_2, window_bounds = array<i64: 32, 96>}, {pipeline_mode = #tpu.pipeline_mode<synchronous>, transform_indices = @transform_3, window_bounds = array<i64: 32, 96>}, {pipeline_mode = #tpu.pipeline_mode<synchronous>, transform_indices = @transform_4, window_bounds = array<i64: 1, 96>}, {pipeline_mode = #tpu.pipeline_mode<synchronous>, transform_indices = @transform_5, window_bounds = array<i64: 1, 32>}, {pipeline_mode = #tpu.pipeline_mode<synchronous>, transform_indices = @transform_6, window_bounds = array<i64: 32, 96>}, {pipeline_mode = #tpu.pipeline_mode<synchronous>, transform_indices = @transform_7, window_bounds = array<i64: 32, 96>}, {pipeline_mode = #tpu.pipeline_mode<synchronous>, transform_indices = @transform_8, window_bounds = array<i64: 1, 96>}, {pipeline_mode = #tpu.pipeline_mode<synchronous>, transform_indices = @transform_9, window_bounds = array<i64: 1, 32>}, {transform_indices = @transform_10, window_bounds = array<i64: 8, 2, 32>}, {transform_indices = @transform_11, window_bounds = array<i64: 8, 2, 32>}, {transform_indices = @transform_12, window_bounds = array<i64: 2, 32>}, {transform_indices = @transform_13, window_bounds = array<i64: 2, 32>}]} {
    %cst = arith.constant 0.000000e+00 : f32
    %0 = vector.broadcast %cst : f32 to vector<2x32xf32>
    %c0 = arith.constant 0 : index
    %c0_0 = arith.constant 0 : index
    %1 = vector.load %arg17[%c0, %c0_0] : memref<2x32xf32, #tpu.memory_space<vmem>>, vector<2x32xf32>
    tpu.vector_store %arg17[%c0, %c0_0], %0 {strides = array<i32>} : memref<2x32xf32, #tpu.memory_space<vmem>>, vector<2x32xf32>,
    %cst_1 = arith.constant 0.000000e+00 : f32
    %2 = vector.broadcast %cst_1 : f32 to vector<2x32xf32>
    %c0_2 = arith.constant 0 : index
    %c0_3 = arith.constant 0 : index
    %3 = vector.load %arg18[%c0_2, %c0_3] : memref<2x32xf32, #tpu.memory_space<vmem>>, vector<2x32xf32>
    tpu.vector_store %arg18[%c0_2, %c0_3], %2 {strides = array<i32>} : memref<2x32xf32, #tpu.memory_space<vmem>>, vector<2x32xf32>,
    %c0_4 = arith.constant 0 : index
    %c0_5 = arith.constant 0 : index
    %c0_6 = arith.constant 0 : index
    %4 = vector.load %arg1[%c0_4, %c0_5, %c0_6] : memref<8x2x32xbf16, #tpu.memory_space<vmem>>, vector<1x2x32xbf16>
    %5 = vector.shape_cast %4 : vector<1x2x32xbf16> to vector<2x32xbf16>
    %c0_7 = arith.constant 0 : index
    %c0_8 = arith.constant 0 : index
    %6 = vector.load %arg3[%c0_7, %c0_8] : memref<32x96xbf16, #tpu.memory_space<vmem>>, vector<32x96xbf16>
    %cst_9 = arith.constant dense<0.000000e+00> : vector<2x96xf32>
    %7 = tpu.matmul %5, %6, %cst_9 {dimension_numbers = #tpu.dot_dimension_numbers<[1], [0], [0], [1], [0, 0, 1, 1], [], []>} : vector<2x32xbf16>, vector<32x96xbf16>, vector<2x96xf32> -> vector<2x96xf32>
    %c0_10 = arith.constant 0 : index
    %c0_11 = arith.constant 0 : index
    %8 = vector.load %arg5[%c0_10, %c0_11] : memref<1x96xf32, #tpu.memory_space<vmem>>, vector<1x96xf32>
    %9 = vector.broadcast %8 : vector<1x96xf32> to vector<2x96xf32>
    %10 = arith.addf %7, %9 : vector<2x96xf32>
    %c0_12 = arith.constant 0 : index
    %c0_13 = arith.constant 0 : index
    %c0_14 = arith.constant 0 : index
    %11 = vector.load %arg15[%c0_12, %c0_13, %c0_14] : memref<8x2x96xf32, #tpu.memory_space<vmem>>, vector<1x2x96xf32>
    %12 = vector.shape_cast %11 : vector<1x2x96xf32> to vector<2x96xf32>
    %13 = vector.shape_cast %10 : vector<2x96xf32> to vector<1x2x96xf32>
    tpu.vector_store %arg15[%c0_12, %c0_13, %c0_14], %13 {strides = array<i32>} : memref<8x2x96xf32, #tpu.memory_space<vmem>>, vector<1x2x96xf32>,
    %c0_15 = arith.constant 0 : index
    %c0_16 = arith.constant 0 : index
    %14 = vector.load %arg7[%c0_15, %c0_16] : memref<32x96xbf16, #tpu.memory_space<vmem>>, vector<32x96xbf16>
    %cst_17 = arith.constant dense<0.000000e+00> : vector<2x96xf32>
    %15 = tpu.matmul %5, %14, %cst_17 {dimension_numbers = #tpu.dot_dimension_numbers<[1], [0], [0], [1], [0, 0, 1, 1], [], []>} : vector<2x32xbf16>, vector<32x96xbf16>, vector<2x96xf32> -> vector<2x96xf32>
    %c0_18 = arith.constant 0 : index
    %c0_19 = arith.constant 0 : index
    %16 = vector.load %arg9[%c0_18, %c0_19] : memref<1x96xf32, #tpu.memory_space<vmem>>, vector<1x96xf32>
    %17 = vector.broadcast %16 : vector<1x96xf32> to vector<2x96xf32>
    %18 = arith.addf %15, %17 : vector<2x96xf32>
    %c0_20 = arith.constant 0 : index
    %c0_21 = arith.constant 0 : index
    %c0_22 = arith.constant 0 : index
    %19 = vector.load %arg16[%c0_20, %c0_21, %c0_22] : memref<8x2x96xf32, #tpu.memory_space<vmem>>, vector<1x2x96xf32>
    %20 = vector.shape_cast %19 : vector<1x2x96xf32> to vector<2x96xf32>
    %21 = vector.shape_cast %18 : vector<2x96xf32> to vector<1x2x96xf32>
    tpu.vector_store %arg16[%c0_20, %c0_21, %c0_22], %21 {strides = array<i32>} : memref<8x2x96xf32, #tpu.memory_space<vmem>>, vector<1x2x96xf32>,
    %c1 = arith.constant 1 : index
    %c0_23 = arith.constant 0 : index
    %c0_24 = arith.constant 0 : index
    %22 = vector.load %arg1[%c1, %c0_23, %c0_24] : memref<8x2x32xbf16, #tpu.memory_space<vmem>>, vector<1x2x32xbf16>
    %23 = vector.shape_cast %22 : vector<1x2x32xbf16> to vector<2x32xbf16>
    %c0_25 = arith.constant 0 : index
    %c0_26 = arith.constant 0 : index
    %24 = vector.load %arg3[%c0_25, %c0_26] : memref<32x96xbf16, #tpu.memory_space<vmem>>, vector<32x96xbf16>
    %cst_27 = arith.constant dense<0.000000e+00> : vector<2x96xf32>
    %25 = tpu.matmul %23, %24, %cst_27 {dimension_numbers = #tpu.dot_dimension_numbers<[1], [0], [0], [1], [0, 0, 1, 1], [], []>} : vector<2x32xbf16>, vector<32x96xbf16>, vector<2x96xf32> -> vector<2x96xf32>
    %c0_28 = arith.constant 0 : index
    %c0_29 = arith.constant 0 : index
    %26 = vector.load %arg5[%c0_28, %c0_29] : memref<1x96xf32, #tpu.memory_space<vmem>>, vector<1x96xf32>
    %27 = vector.broadcast %26 : vector<1x96xf32> to vector<2x96xf32>
    %28 = arith.addf %25, %27 : vector<2x96xf32>
    %c1_30 = arith.constant 1 : index
    %c0_31 = arith.constant 0 : index
    %c0_32 = arith.constant 0 : index
    %29 = vector.load %arg15[%c1_30, %c0_31, %c0_32] : memref<8x2x96xf32, #tpu.memory_space<vmem>>, vector<1x2x96xf32>
    %30 = vector.shape_cast %29 : vector<1x2x96xf32> to vector<2x96xf32>
    %31 = vector.shape_cast %28 : vector<2x96xf32> to vector<1x2x96xf32>
    tpu.vector_store %arg15[%c1_30, %c0_31, %c0_32], %31 {strides = array<i32>} : memref<8x2x96xf32, #tpu.memory_space<vmem>>, vector<1x2x96xf32>,
    %c0_33 = arith.constant 0 : index
    %c0_34 = arith.constant 0 : index
    %32 = vector.load %arg7[%c0_33, %c0_34] : memref<32x96xbf16, #tpu.memory_space<vmem>>, vector<32x96xbf16>
    %cst_35 = arith.constant dense<0.000000e+00> : vector<2x96xf32>
    %33 = tpu.matmul %23, %32, %cst_35 {dimension_numbers = #tpu.dot_dimension_numbers<[1], [0], [0], [1], [0, 0, 1, 1], [], []>} : vector<2x32xbf16>, vector<32x96xbf16>, vector<2x96xf32> -> vector<2x96xf32>
    %c0_36 = arith.constant 0 : index
    %c0_37 = arith.constant 0 : index
    %34 = vector.load %arg9[%c0_36, %c0_37] : memref<1x96xf32, #tpu.memory_space<vmem>>, vector<1x96xf32>
    %35 = vector.broadcast %34 : vector<1x96xf32> to vector<2x96xf32>
    %36 = arith.addf %33, %35 : vector<2x96xf32>
    %c1_38 = arith.constant 1 : index
    %c0_39 = arith.constant 0 : index
    %c0_40 = arith.constant 0 : index
    %37 = vector.load %arg16[%c1_38, %c0_39, %c0_40] : memref<8x2x96xf32, #tpu.memory_space<vmem>>, vector<1x2x96xf32>
    %38 = vector.shape_cast %37 : vector<1x2x96xf32> to vector<2x96xf32>
    %39 = vector.shape_cast %36 : vector<2x96xf32> to vector<1x2x96xf32>
    tpu.vector_store %arg16[%c1_38, %c0_39, %c0_40], %39 {strides = array<i32>} : memref<8x2x96xf32, #tpu.memory_space<vmem>>, vector<1x2x96xf32>,
    %c2 = arith.constant 2 : index
    %c0_41 = arith.constant 0 : index
    %c0_42 = arith.constant 0 : index
    %40 = vector.load %arg1[%c2, %c0_41, %c0_42] : memref<8x2x32xbf16, #tpu.memory_space<vmem>>, vector<1x2x32xbf16>
    %41 = vector.shape_cast %40 : vector<1x2x32xbf16> to vector<2x32xbf16>
    %c0_43 = arith.constant 0 : index
    %c0_44 = arith.constant 0 : index
    %42 = vector.load %arg3[%c0_43, %c0_44] : memref<32x96xbf16, #tpu.memory_space<vmem>>, vector<32x96xbf16>
    %cst_45 = arith.constant dense<0.000000e+00> : vector<2x96xf32>
    %43 = tpu.matmul %41, %42, %cst_45 {dimension_numbers = #tpu.dot_dimension_numbers<[1], [0], [0], [1], [0, 0, 1, 1], [], []>} : vector<2x32xbf16>, vector<32x96xbf16>, vector<2x96xf32> -> vector<2x96xf32>
    %c0_46 = arith.constant 0 : index
    %c0_47 = arith.constant 0 : index
    %44 = vector.load %arg5[%c0_46, %c0_47] : memref<1x96xf32, #tpu.memory_space<vmem>>, vector<1x96xf32>
    %45 = vector.broadcast %44 : vector<1x96xf32> to vector<2x96xf32>
    %46 = arith.addf %43, %45 : vector<2x96xf32>
    %c2_48 = arith.constant 2 : index
    %c0_49 = arith.constant 0 : index
    %c0_50 = arith.constant 0 : index
    %47 = vector.load %arg15[%c2_48, %c0_49, %c0_50] : memref<8x2x96xf32, #tpu.memory_space<vmem>>, vector<1x2x96xf32>
    %48 = vector.shape_cast %47 : vector<1x2x96xf32> to vector<2x96xf32>
    %49 = vector.shape_cast %46 : vector<2x96xf32> to vector<1x2x96xf32>
    tpu.vector_store %arg15[%c2_48, %c0_49, %c0_50], %49 {strides = array<i32>} : memref<8x2x96xf32, #tpu.memory_space<vmem>>, vector<1x2x96xf32>,
    %c0_51 = arith.constant 0 : index
    %c0_52 = arith.constant 0 : index
    %50 = vector.load %arg7[%c0_51, %c0_52] : memref<32x96xbf16, #tpu.memory_space<vmem>>, vector<32x96xbf16>
    %cst_53 = arith.constant dense<0.000000e+00> : vector<2x96xf32>
    %51 = tpu.matmul %41, %50, %cst_53 {dimension_numbers = #tpu.dot_dimension_numbers<[1], [0], [0], [1], [0, 0, 1, 1], [], []>} : vector<2x32xbf16>, vector<32x96xbf16>, vector<2x96xf32> -> vector<2x96xf32>
    %c0_54 = arith.constant 0 : index
    %c0_55 = arith.constant 0 : index
    %52 = vector.load %arg9[%c0_54, %c0_55] : memref<1x96xf32, #tpu.memory_space<vmem>>, vector<1x96xf32>
    %53 = vector.broadcast %52 : vector<1x96xf32> to vector<2x96xf32>
    %54 = arith.addf %51, %53 : vector<2x96xf32>
    %c2_56 = arith.constant 2 : index
    %c0_57 = arith.constant 0 : index
    %c0_58 = arith.constant 0 : index
    %55 = vector.load %arg16[%c2_56, %c0_57, %c0_58] : memref<8x2x96xf32, #tpu.memory_space<vmem>>, vector<1x2x96xf32>
    %56 = vector.shape_cast %55 : vector<1x2x96xf32> to vector<2x96xf32>
    %57 = vector.shape_cast %54 : vector<2x96xf32> to vector<1x2x96xf32>
    tpu.vector_store %arg16[%c2_56, %c0_57, %c0_58], %57 {strides = array<i32>} : memref<8x2x96xf32, #tpu.memory_space<vmem>>, vector<1x2x96xf32>,
    %c3 = arith.constant 3 : index
    %c0_59 = arith.constant 0 : index
    %c0_60 = arith.constant 0 : index
    %58 = vector.load %arg1[%c3, %c0_59, %c0_60] : memref<8x2x32xbf16, #tpu.memory_space<vmem>>, vector<1x2x32xbf16>
    %59 = vector.shape_cast %58 : vector<1x2x32xbf16> to vector<2x32xbf16>
    %c0_61 = arith.constant 0 : index
    %c0_62 = arith.constant 0 : index
    %60 = vector.load %arg3[%c0_61, %c0_62] : memref<32x96xbf16, #tpu.memory_space<vmem>>, vector<32x96xbf16>
    %cst_63 = arith.constant dense<0.000000e+00> : vector<2x96xf32>
    %61 = tpu.matmul %59, %60, %cst_63 {dimension_numbers = #tpu.dot_dimension_numbers<[1], [0], [0], [1], [0, 0, 1, 1], [], []>} : vector<2x32xbf16>, vector<32x96xbf16>, vector<2x96xf32> -> vector<2x96xf32>
    %c0_64 = arith.constant 0 : index
    %c0_65 = arith.constant 0 : index
    %62 = vector.load %arg5[%c0_64, %c0_65] : memref<1x96xf32, #tpu.memory_space<vmem>>, vector<1x96xf32>
    %63 = vector.broadcast %62 : vector<1x96xf32> to vector<2x96xf32>
    %64 = arith.addf %61, %63 : vector<2x96xf32>
    %c3_66 = arith.constant 3 : index
    %c0_67 = arith.constant 0 : index
    %c0_68 = arith.constant 0 : index
    %65 = vector.load %arg15[%c3_66, %c0_67, %c0_68] : memref<8x2x96xf32, #tpu.memory_space<vmem>>, vector<1x2x96xf32>
    %66 = vector.shape_cast %65 : vector<1x2x96xf32> to vector<2x96xf32>
    %67 = vector.shape_cast %64 : vector<2x96xf32> to vector<1x2x96xf32>
    tpu.vector_store %arg15[%c3_66, %c0_67, %c0_68], %67 {strides = array<i32>} : memref<8x2x96xf32, #tpu.memory_space<vmem>>, vector<1x2x96xf32>,
    %c0_69 = arith.constant 0 : index
    %c0_70 = arith.constant 0 : index
    %68 = vector.load %arg7[%c0_69, %c0_70] : memref<32x96xbf16, #tpu.memory_space<vmem>>, vector<32x96xbf16>
    %cst_71 = arith.constant dense<0.000000e+00> : vector<2x96xf32>
    %69 = tpu.matmul %59, %68, %cst_71 {dimension_numbers = #tpu.dot_dimension_numbers<[1], [0], [0], [1], [0, 0, 1, 1], [], []>} : vector<2x32xbf16>, vector<32x96xbf16>, vector<2x96xf32> -> vector<2x96xf32>
    %c0_72 = arith.constant 0 : index
    %c0_73 = arith.constant 0 : index
    %70 = vector.load %arg9[%c0_72, %c0_73] : memref<1x96xf32, #tpu.memory_space<vmem>>, vector<1x96xf32>
    %71 = vector.broadcast %70 : vector<1x96xf32> to vector<2x96xf32>
    %72 = arith.addf %69, %71 : vector<2x96xf32>
    %c3_74 = arith.constant 3 : index
    %c0_75 = arith.constant 0 : index
    %c0_76 = arith.constant 0 : index
    %73 = vector.load %arg16[%c3_74, %c0_75, %c0_76] : memref<8x2x96xf32, #tpu.memory_space<vmem>>, vector<1x2x96xf32>
    %74 = vector.shape_cast %73 : vector<1x2x96xf32> to vector<2x96xf32>
    %75 = vector.shape_cast %72 : vector<2x96xf32> to vector<1x2x96xf32>
    tpu.vector_store %arg16[%c3_74, %c0_75, %c0_76], %75 {strides = array<i32>} : memref<8x2x96xf32, #tpu.memory_space<vmem>>, vector<1x2x96xf32>,
    %c4 = arith.constant 4 : index
    %c0_77 = arith.constant 0 : index
    %c0_78 = arith.constant 0 : index
    %76 = vector.load %arg1[%c4, %c0_77, %c0_78] : memref<8x2x32xbf16, #tpu.memory_space<vmem>>, vector<1x2x32xbf16>
    %77 = vector.shape_cast %76 : vector<1x2x32xbf16> to vector<2x32xbf16>
    %c0_79 = arith.constant 0 : index
    %c0_80 = arith.constant 0 : index
    %78 = vector.load %arg3[%c0_79, %c0_80] : memref<32x96xbf16, #tpu.memory_space<vmem>>, vector<32x96xbf16>
    %cst_81 = arith.constant dense<0.000000e+00> : vector<2x96xf32>
    %79 = tpu.matmul %77, %78, %cst_81 {dimension_numbers = #tpu.dot_dimension_numbers<[1], [0], [0], [1], [0, 0, 1, 1], [], []>} : vector<2x32xbf16>, vector<32x96xbf16>, vector<2x96xf32> -> vector<2x96xf32>
    %c0_82 = arith.constant 0 : index
    %c0_83 = arith.constant 0 : index
    %80 = vector.load %arg5[%c0_82, %c0_83] : memref<1x96xf32, #tpu.memory_space<vmem>>, vector<1x96xf32>
    %81 = vector.broadcast %80 : vector<1x96xf32> to vector<2x96xf32>
    %82 = arith.addf %79, %81 : vector<2x96xf32>
    %c4_84 = arith.constant 4 : index
    %c0_85 = arith.constant 0 : index
    %c0_86 = arith.constant 0 : index
    %83 = vector.load %arg15[%c4_84, %c0_85, %c0_86] : memref<8x2x96xf32, #tpu.memory_space<vmem>>, vector<1x2x96xf32>
    %84 = vector.shape_cast %83 : vector<1x2x96xf32> to vector<2x96xf32>
    %85 = vector.shape_cast %82 : vector<2x96xf32> to vector<1x2x96xf32>
    tpu.vector_store %arg15[%c4_84, %c0_85, %c0_86], %85 {strides = array<i32>} : memref<8x2x96xf32, #tpu.memory_space<vmem>>, vector<1x2x96xf32>,
    %c0_87 = arith.constant 0 : index
    %c0_88 = arith.constant 0 : index
    %86 = vector.load %arg7[%c0_87, %c0_88] : memref<32x96xbf16, #tpu.memory_space<vmem>>, vector<32x96xbf16>
    %cst_89 = arith.constant dense<0.000000e+00> : vector<2x96xf32>
    %87 = tpu.matmul %77, %86, %cst_89 {dimension_numbers = #tpu.dot_dimension_numbers<[1], [0], [0], [1], [0, 0, 1, 1], [], []>} : vector<2x32xbf16>, vector<32x96xbf16>, vector<2x96xf32> -> vector<2x96xf32>
    %c0_90 = arith.constant 0 : index
    %c0_91 = arith.constant 0 : index
    %88 = vector.load %arg9[%c0_90, %c0_91] : memref<1x96xf32, #tpu.memory_space<vmem>>, vector<1x96xf32>
    %89 = vector.broadcast %88 : vector<1x96xf32> to vector<2x96xf32>
    %90 = arith.addf %87, %89 : vector<2x96xf32>
    %c4_92 = arith.constant 4 : index
    %c0_93 = arith.constant 0 : index
    %c0_94 = arith.constant 0 : index
    %91 = vector.load %arg16[%c4_92, %c0_93, %c0_94] : memref<8x2x96xf32, #tpu.memory_space<vmem>>, vector<1x2x96xf32>
    %92 = vector.shape_cast %91 : vector<1x2x96xf32> to vector<2x96xf32>
    %93 = vector.shape_cast %90 : vector<2x96xf32> to vector<1x2x96xf32>
    tpu.vector_store %arg16[%c4_92, %c0_93, %c0_94], %93 {strides = array<i32>} : memref<8x2x96xf32, #tpu.memory_space<vmem>>, vector<1x2x96xf32>,
    %c5 = arith.constant 5 : index
    %c0_95 = arith.constant 0 : index
    %c0_96 = arith.constant 0 : index
    %94 = vector.load %arg1[%c5, %c0_95, %c0_96] : memref<8x2x32xbf16, #tpu.memory_space<vmem>>, vector<1x2x32xbf16>
    %95 = vector.shape_cast %94 : vector<1x2x32xbf16> to vector<2x32xbf16>
    %c0_97 = arith.constant 0 : index
    %c0_98 = arith.constant 0 : index
    %96 = vector.load %arg3[%c0_97, %c0_98] : memref<32x96xbf16, #tpu.memory_space<vmem>>, vector<32x96xbf16>
    %cst_99 = arith.constant dense<0.000000e+00> : vector<2x96xf32>
    %97 = tpu.matmul %95, %96, %cst_99 {dimension_numbers = #tpu.dot_dimension_numbers<[1], [0], [0], [1], [0, 0, 1, 1], [], []>} : vector<2x32xbf16>, vector<32x96xbf16>, vector<2x96xf32> -> vector<2x96xf32>
    %c0_100 = arith.constant 0 : index
    %c0_101 = arith.constant 0 : index
    %98 = vector.load %arg5[%c0_100, %c0_101] : memref<1x96xf32, #tpu.memory_space<vmem>>, vector<1x96xf32>
    %99 = vector.broadcast %98 : vector<1x96xf32> to vector<2x96xf32>
    %100 = arith.addf %97, %99 : vector<2x96xf32>
    %c5_102 = arith.constant 5 : index
    %c0_103 = arith.constant 0 : index
    %c0_104 = arith.constant 0 : index
    %101 = vector.load %arg15[%c5_102, %c0_103, %c0_104] : memref<8x2x96xf32, #tpu.memory_space<vmem>>, vector<1x2x96xf32>
    %102 = vector.shape_cast %101 : vector<1x2x96xf32> to vector<2x96xf32>
    %103 = vector.shape_cast %100 : vector<2x96xf32> to vector<1x2x96xf32>
    tpu.vector_store %arg15[%c5_102, %c0_103, %c0_104], %103 {strides = array<i32>} : memref<8x2x96xf32, #tpu.memory_space<vmem>>, vector<1x2x96xf32>,
    %c0_105 = arith.constant 0 : index
    %c0_106 = arith.constant 0 : index
    %104 = vector.load %arg7[%c0_105, %c0_106] : memref<32x96xbf16, #tpu.memory_space<vmem>>, vector<32x96xbf16>
    %cst_107 = arith.constant dense<0.000000e+00> : vector<2x96xf32>
    %105 = tpu.matmul %95, %104, %cst_107 {dimension_numbers = #tpu.dot_dimension_numbers<[1], [0], [0], [1], [0, 0, 1, 1], [], []>} : vector<2x32xbf16>, vector<32x96xbf16>, vector<2x96xf32> -> vector<2x96xf32>
    %c0_108 = arith.constant 0 : index
    %c0_109 = arith.constant 0 : index
    %106 = vector.load %arg9[%c0_108, %c0_109] : memref<1x96xf32, #tpu.memory_space<vmem>>, vector<1x96xf32>
    %107 = vector.broadcast %106 : vector<1x96xf32> to vector<2x96xf32>
    %108 = arith.addf %105, %107 : vector<2x96xf32>
    %c5_110 = arith.constant 5 : index
    %c0_111 = arith.constant 0 : index
    %c0_112 = arith.constant 0 : index
    %109 = vector.load %arg16[%c5_110, %c0_111, %c0_112] : memref<8x2x96xf32, #tpu.memory_space<vmem>>, vector<1x2x96xf32>
    %110 = vector.shape_cast %109 : vector<1x2x96xf32> to vector<2x96xf32>
    %111 = vector.shape_cast %108 : vector<2x96xf32> to vector<1x2x96xf32>
    tpu.vector_store %arg16[%c5_110, %c0_111, %c0_112], %111 {strides = array<i32>} : memref<8x2x96xf32, #tpu.memory_space<vmem>>, vector<1x2x96xf32>,
    %c6 = arith.constant 6 : index
    %c0_113 = arith.constant 0 : index
    %c0_114 = arith.constant 0 : index
    %112 = vector.load %arg1[%c6, %c0_113, %c0_114] : memref<8x2x32xbf16, #tpu.memory_space<vmem>>, vector<1x2x32xbf16>
    %113 = vector.shape_cast %112 : vector<1x2x32xbf16> to vector<2x32xbf16>
    %c0_115 = arith.constant 0 : index
    %c0_116 = arith.constant 0 : index
    %114 = vector.load %arg3[%c0_115, %c0_116] : memref<32x96xbf16, #tpu.memory_space<vmem>>, vector<32x96xbf16>
    %cst_117 = arith.constant dense<0.000000e+00> : vector<2x96xf32>
    %115 = tpu.matmul %113, %114, %cst_117 {dimension_numbers = #tpu.dot_dimension_numbers<[1], [0], [0], [1], [0, 0, 1, 1], [], []>} : vector<2x32xbf16>, vector<32x96xbf16>, vector<2x96xf32> -> vector<2x96xf32>
    %c0_118 = arith.constant 0 : index
    %c0_119 = arith.constant 0 : index
    %116 = vector.load %arg5[%c0_118, %c0_119] : memref<1x96xf32, #tpu.memory_space<vmem>>, vector<1x96xf32>
    %117 = vector.broadcast %116 : vector<1x96xf32> to vector<2x96xf32>
    %118 = arith.addf %115, %117 : vector<2x96xf32>
    %c6_120 = arith.constant 6 : index
    %c0_121 = arith.constant 0 : index
    %c0_122 = arith.constant 0 : index
    %119 = vector.load %arg15[%c6_120, %c0_121, %c0_122] : memref<8x2x96xf32, #tpu.memory_space<vmem>>, vector<1x2x96xf32>
    %120 = vector.shape_cast %119 : vector<1x2x96xf32> to vector<2x96xf32>
    %121 = vector.shape_cast %118 : vector<2x96xf32> to vector<1x2x96xf32>
    tpu.vector_store %arg15[%c6_120, %c0_121, %c0_122], %121 {strides = array<i32>} : memref<8x2x96xf32, #tpu.memory_space<vmem>>, vector<1x2x96xf32>,
    %c0_123 = arith.constant 0 : index
    %c0_124 = arith.constant 0 : index
    %122 = vector.load %arg7[%c0_123, %c0_124] : memref<32x96xbf16, #tpu.memory_space<vmem>>, vector<32x96xbf16>
    %cst_125 = arith.constant dense<0.000000e+00> : vector<2x96xf32>
    %123 = tpu.matmul %113, %122, %cst_125 {dimension_numbers = #tpu.dot_dimension_numbers<[1], [0], [0], [1], [0, 0, 1, 1], [], []>} : vector<2x32xbf16>, vector<32x96xbf16>, vector<2x96xf32> -> vector<2x96xf32>
    %c0_126 = arith.constant 0 : index
    %c0_127 = arith.constant 0 : index
    %124 = vector.load %arg9[%c0_126, %c0_127] : memref<1x96xf32, #tpu.memory_space<vmem>>, vector<1x96xf32>
    %125 = vector.broadcast %124 : vector<1x96xf32> to vector<2x96xf32>
    %126 = arith.addf %123, %125 : vector<2x96xf32>
    %c6_128 = arith.constant 6 : index
    %c0_129 = arith.constant 0 : index
    %c0_130 = arith.constant 0 : index
    %127 = vector.load %arg16[%c6_128, %c0_129, %c0_130] : memref<8x2x96xf32, #tpu.memory_space<vmem>>, vector<1x2x96xf32>
    %128 = vector.shape_cast %127 : vector<1x2x96xf32> to vector<2x96xf32>
    %129 = vector.shape_cast %126 : vector<2x96xf32> to vector<1x2x96xf32>
    tpu.vector_store %arg16[%c6_128, %c0_129, %c0_130], %129 {strides = array<i32>} : memref<8x2x96xf32, #tpu.memory_space<vmem>>, vector<1x2x96xf32>,
    %c7 = arith.constant 7 : index
    %c0_131 = arith.constant 0 : index
    %c0_132 = arith.constant 0 : index
    %130 = vector.load %arg1[%c7, %c0_131, %c0_132] : memref<8x2x32xbf16, #tpu.memory_space<vmem>>, vector<1x2x32xbf16>
    %131 = vector.shape_cast %130 : vector<1x2x32xbf16> to vector<2x32xbf16>
    %c0_133 = arith.constant 0 : index
    %c0_134 = arith.constant 0 : index
    %132 = vector.load %arg3[%c0_133, %c0_134] : memref<32x96xbf16, #tpu.memory_space<vmem>>, vector<32x96xbf16>
    %cst_135 = arith.constant dense<0.000000e+00> : vector<2x96xf32>
    %133 = tpu.matmul %131, %132, %cst_135 {dimension_numbers = #tpu.dot_dimension_numbers<[1], [0], [0], [1], [0, 0, 1, 1], [], []>} : vector<2x32xbf16>, vector<32x96xbf16>, vector<2x96xf32> -> vector<2x96xf32>
    %c0_136 = arith.constant 0 : index
    %c0_137 = arith.constant 0 : index
    %134 = vector.load %arg5[%c0_136, %c0_137] : memref<1x96xf32, #tpu.memory_space<vmem>>, vector<1x96xf32>
    %135 = vector.broadcast %134 : vector<1x96xf32> to vector<2x96xf32>
    %136 = arith.addf %133, %135 : vector<2x96xf32>
    %c7_138 = arith.constant 7 : index
    %c0_139 = arith.constant 0 : index
    %c0_140 = arith.constant 0 : index
    %137 = vector.load %arg15[%c7_138, %c0_139, %c0_140] : memref<8x2x96xf32, #tpu.memory_space<vmem>>, vector<1x2x96xf32>
    %138 = vector.shape_cast %137 : vector<1x2x96xf32> to vector<2x96xf32>
    %139 = vector.shape_cast %136 : vector<2x96xf32> to vector<1x2x96xf32>
    tpu.vector_store %arg15[%c7_138, %c0_139, %c0_140], %139 {strides = array<i32>} : memref<8x2x96xf32, #tpu.memory_space<vmem>>, vector<1x2x96xf32>,
    %c0_141 = arith.constant 0 : index
    %c0_142 = arith.constant 0 : index
    %140 = vector.load %arg7[%c0_141, %c0_142] : memref<32x96xbf16, #tpu.memory_space<vmem>>, vector<32x96xbf16>
    %cst_143 = arith.constant dense<0.000000e+00> : vector<2x96xf32>
    %141 = tpu.matmul %131, %140, %cst_143 {dimension_numbers = #tpu.dot_dimension_numbers<[1], [0], [0], [1], [0, 0, 1, 1], [], []>} : vector<2x32xbf16>, vector<32x96xbf16>, vector<2x96xf32> -> vector<2x96xf32>
    %c0_144 = arith.constant 0 : index
    %c0_145 = arith.constant 0 : index
    %142 = vector.load %arg9[%c0_144, %c0_145] : memref<1x96xf32, #tpu.memory_space<vmem>>, vector<1x96xf32>
    %143 = vector.broadcast %142 : vector<1x96xf32> to vector<2x96xf32>
    %144 = arith.addf %141, %143 : vector<2x96xf32>
    %c7_146 = arith.constant 7 : index
    %c0_147 = arith.constant 0 : index
    %c0_148 = arith.constant 0 : index
    %145 = vector.load %arg16[%c7_146, %c0_147, %c0_148] : memref<8x2x96xf32, #tpu.memory_space<vmem>>, vector<1x2x96xf32>
    %146 = vector.shape_cast %145 : vector<1x2x96xf32> to vector<2x96xf32>
    %147 = vector.shape_cast %144 : vector<2x96xf32> to vector<1x2x96xf32>
    tpu.vector_store %arg16[%c7_146, %c0_147, %c0_148], %147 {strides = array<i32>} : memref<8x2x96xf32, #tpu.memory_space<vmem>>, vector<1x2x96xf32>,
    %c0_i32 = arith.constant 0 : i32
    %c0_149 = arith.constant 0 : index
    %c0_150 = arith.constant 0 : index
    %148 = vector.load %arg17[%c0_149, %c0_150] : memref<2x32xf32, #tpu.memory_space<vmem>>, vector<2x32xf32>
    %149 = arith.index_cast %c0_i32 : i32 to index
    %c0_151 = arith.constant 0 : index
    %c0_152 = arith.constant 0 : index
    %150 = vector.load %arg15[%149, %c0_151, %c0_152] : memref<8x2x96xf32, #tpu.memory_space<vmem>>, vector<1x2x96xf32>
    %151 = vector.shape_cast %150 : vector<1x2x96xf32> to vector<2x96xf32>
    %152 = arith.truncf %148 : vector<2x32xf32> to vector<2x32xbf16>
    %c0_153 = arith.constant 0 : index
    %c0_154 = arith.constant 0 : index
    %153 = vector.load %arg4[%c0_153, %c0_154] : memref<32x96xbf16, #tpu.memory_space<vmem>>, vector<32x96xbf16>
    %cst_155 = arith.constant dense<0.000000e+00> : vector<2x96xf32>
    %154 = tpu.matmul %152, %153, %cst_155 {dimension_numbers = #tpu.dot_dimension_numbers<[1], [0], [0], [1], [0, 0, 1, 1], [], []>} : vector<2x32xbf16>, vector<32x96xbf16>, vector<2x96xf32> -> vector<2x96xf32>
    %155 = vector.extract_strided_slice %151 {offsets = [0, 0], sizes = [2, 32], strides = [1, 1]} : vector<2x96xf32> to vector<2x32xf32>
    %156 = vector.extract_strided_slice %154 {offsets = [0, 0], sizes = [2, 32], strides = [1, 1]} : vector<2x96xf32> to vector<2x32xf32>
    %157 = arith.addf %155, %156 : vector<2x32xf32>
    %158 = arith.negf %157 : vector<2x32xf32>
    %159 = math.exp %158 : vector<2x32xf32>
    %cst_156 = arith.constant 1.000000e+00 : f32
    %160 = vector.broadcast %cst_156 : f32 to vector<2x32xf32>
    %161 = arith.addf %160, %159 : vector<2x32xf32>
    %162 = arith.divf %160, %161 : vector<2x32xf32>
    %163 = vector.extract_strided_slice %151 {offsets = [0, 32], sizes = [2, 32], strides = [1, 1]} : vector<2x96xf32> to vector<2x32xf32>
    %164 = vector.extract_strided_slice %154 {offsets = [0, 32], sizes = [2, 32], strides = [1, 1]} : vector<2x96xf32> to vector<2x32xf32>
    %165 = arith.addf %163, %164 : vector<2x32xf32>
    %166 = arith.negf %165 : vector<2x32xf32>
    %167 = math.exp %166 : vector<2x32xf32>
    %cst_157 = arith.constant 1.000000e+00 : f32
    %168 = vector.broadcast %cst_157 : f32 to vector<2x32xf32>
    %169 = arith.addf %168, %167 : vector<2x32xf32>
    %170 = arith.divf %168, %169 : vector<2x32xf32>
    %171 = vector.extract_strided_slice %151 {offsets = [0, 64], sizes = [2, 32], strides = [1, 1]} : vector<2x96xf32> to vector<2x32xf32>
    %172 = vector.extract_strided_slice %154 {offsets = [0, 64], sizes = [2, 32], strides = [1, 1]} : vector<2x96xf32> to vector<2x32xf32>
    %c0_158 = arith.constant 0 : index
    %c0_159 = arith.constant 0 : index
    %173 = vector.load %arg6[%c0_158, %c0_159] : memref<1x32xf32, #tpu.memory_space<vmem>>, vector<1x32xf32>
    %174 = vector.broadcast %173 : vector<1x32xf32> to vector<2x32xf32>
    %175 = arith.addf %172, %174 : vector<2x32xf32>
    %176 = arith.mulf %162, %175 : vector<2x32xf32>
    %177 = arith.addf %171, %176 : vector<2x32xf32>
    %178 = math.tanh %177 : vector<2x32xf32>
    %179 = arith.subf %148, %178 : vector<2x32xf32>
    %180 = arith.mulf %170, %179 : vector<2x32xf32>
    %181 = arith.addf %178, %180 : vector<2x32xf32>
    %182 = arith.index_cast %c0_i32 : i32 to index
    %c0_160 = arith.constant 0 : index
    %c0_161 = arith.constant 0 : index
    %183 = vector.load %arg2[%182, %c0_160, %c0_161] : memref<8x2x1xf32, #tpu.memory_space<vmem>>, vector<1x2x1xf32>
    %184 = vector.shape_cast %183 : vector<1x2x1xf32> to vector<2x1xf32>
    %185 = vector.shape_cast %184 : vector<2x1xf32> to vector<2x1xf32>
    %186 = vector.broadcast %185 : vector<2x1xf32> to vector<2x32xf32>
    %cst_162 = arith.constant 0.000000e+00 : f32
    %187 = vector.broadcast %cst_162 : f32 to vector<2x32xf32>
    %188 = arith.cmpf ogt, %186, %187 : vector<2x32xf32>
    %189 = arith.select %188, %181, %148 : vector<2x32xi1>, vector<2x32xf32>
    %c0_163 = arith.constant 0 : index
    %c0_164 = arith.constant 0 : index
    %190 = vector.load %arg17[%c0_163, %c0_164] : memref<2x32xf32, #tpu.memory_space<vmem>>, vector<2x32xf32>
    tpu.vector_store %arg17[%c0_163, %c0_164], %189 {strides = array<i32>} : memref<2x32xf32, #tpu.memory_space<vmem>>, vector<2x32xf32>,
    %191 = arith.truncf %189 : vector<2x32xf32> to vector<2x32xbf16>
    %192 = arith.index_cast %c0_i32 : i32 to index
    %c0_165 = arith.constant 0 : index
    %c0_166 = arith.constant 0 : index
    %193 = vector.load %arg11[%192, %c0_165, %c0_166] : memref<8x2x32xbf16, #tpu.memory_space<vmem>>, vector<1x2x32xbf16>
    %194 = vector.shape_cast %193 : vector<1x2x32xbf16> to vector<2x32xbf16>
    %195 = vector.shape_cast %191 : vector<2x32xbf16> to vector<1x2x32xbf16>
    tpu.vector_store %arg11[%192, %c0_165, %c0_166], %195 {strides = array<i32>} : memref<8x2x32xbf16, #tpu.memory_space<vmem>>, vector<1x2x32xbf16>,
    %c7_i32 = arith.constant 7 : i32
    %196 = arith.subi %c7_i32, %c0_i32 : i32
    %c0_167 = arith.constant 0 : index
    %c0_168 = arith.constant 0 : index
    %197 = vector.load %arg18[%c0_167, %c0_168] : memref<2x32xf32, #tpu.memory_space<vmem>>, vector<2x32xf32>
    %198 = arith.index_cast %196 : i32 to index
    %c0_169 = arith.constant 0 : index
    %c0_170 = arith.constant 0 : index
    %199 = vector.load %arg16[%198, %c0_169, %c0_170] : memref<8x2x96xf32, #tpu.memory_space<vmem>>, vector<1x2x96xf32>
    %200 = vector.shape_cast %199 : vector<1x2x96xf32> to vector<2x96xf32>
    %201 = arith.truncf %197 : vector<2x32xf32> to vector<2x32xbf16>
    %c0_171 = arith.constant 0 : index
    %c0_172 = arith.constant 0 : index
    %202 = vector.load %arg8[%c0_171, %c0_172] : memref<32x96xbf16, #tpu.memory_space<vmem>>, vector<32x96xbf16>
    %cst_173 = arith.constant dense<0.000000e+00> : vector<2x96xf32>
    %203 = tpu.matmul %201, %202, %cst_173 {dimension_numbers = #tpu.dot_dimension_numbers<[1], [0], [0], [1], [0, 0, 1, 1], [], []>} : vector<2x32xbf16>, vector<32x96xbf16>, vector<2x96xf32> -> vector<2x96xf32>
    %204 = vector.extract_strided_slice %200 {offsets = [0, 0], sizes = [2, 32], strides = [1, 1]} : vector<2x96xf32> to vector<2x32xf32>
    %205 = vector.extract_strided_slice %203 {offsets = [0, 0], sizes = [2, 32], strides = [1, 1]} : vector<2x96xf32> to vector<2x32xf32>
    %206 = arith.addf %204, %205 : vector<2x32xf32>
    %207 = arith.negf %206 : vector<2x32xf32>
    %208 = math.exp %207 : vector<2x32xf32>
    %cst_174 = arith.constant 1.000000e+00 : f32
    %209 = vector.broadcast %cst_174 : f32 to vector<2x32xf32>
    %210 = arith.addf %209, %208 : vector<2x32xf32>
    %211 = arith.divf %209, %210 : vector<2x32xf32>
    %212 = vector.extract_strided_slice %200 {offsets = [0, 32], sizes = [2, 32], strides = [1, 1]} : vector<2x96xf32> to vector<2x32xf32>
    %213 = vector.extract_strided_slice %203 {offsets = [0, 32], sizes = [2, 32], strides = [1, 1]} : vector<2x96xf32> to vector<2x32xf32>
    %214 = arith.addf %212, %213 : vector<2x32xf32>
    %215 = arith.negf %214 : vector<2x32xf32>
    %216 = math.exp %215 : vector<2x32xf32>
    %cst_175 = arith.constant 1.000000e+00 : f32
    %217 = vector.broadcast %cst_175 : f32 to vector<2x32xf32>
    %218 = arith.addf %217, %216 : vector<2x32xf32>
    %219 = arith.divf %217, %218 : vector<2x32xf32>
    %220 = vector.extract_strided_slice %200 {offsets = [0, 64], sizes = [2, 32], strides = [1, 1]} : vector<2x96xf32> to vector<2x32xf32>
    %221 = vector.extract_strided_slice %203 {offsets = [0, 64], sizes = [2, 32], strides = [1, 1]} : vector<2x96xf32> to vector<2x32xf32>
    %c0_176 = arith.constant 0 : index
    %c0_177 = arith.constant 0 : index
    %222 = vector.load %arg10[%c0_176, %c0_177] : memref<1x32xf32, #tpu.memory_space<vmem>>, vector<1x32xf32>
    %223 = vector.broadcast %222 : vector<1x32xf32> to vector<2x32xf32>
    %224 = arith.addf %221, %223 : vector<2x32xf32>
    %225 = arith.mulf %211, %224 : vector<2x32xf32>
    %226 = arith.addf %220, %225 : vector<2x32xf32>
    %227 = math.tanh %226 : vector<2x32xf32>
    %228 = arith.subf %197, %227 : vector<2x32xf32>
    %229 = arith.mulf %219, %228 : vector<2x32xf32>
    %230 = arith.addf %227, %229 : vector<2x32xf32>
    %231 = arith.index_cast %196 : i32 to index
    %c0_178 = arith.constant 0 : index
    %c0_179 = arith.constant 0 : index
    %232 = vector.load %arg2[%231, %c0_178, %c0_179] : memref<8x2x1xf32, #tpu.memory_space<vmem>>, vector<1x2x1xf32>
    %233 = vector.shape_cast %232 : vector<1x2x1xf32> to vector<2x1xf32>
    %234 = vector.shape_cast %233 : vector<2x1xf32> to vector<2x1xf32>
    %235 = vector.broadcast %234 : vector<2x1xf32> to vector<2x32xf32>
    %cst_180 = arith.constant 0.000000e+00 : f32
    %236 = vector.broadcast %cst_180 : f32 to vector<2x32xf32>
    %237 = arith.cmpf ogt, %235, %236 : vector<2x32xf32>
    %238 = arith.select %237, %230, %197 : vector<2x32xi1>, vector<2x32xf32>
    %c0_181 = arith.constant 0 : index
    %c0_182 = arith.constant 0 : index
    %239 = vector.load %arg18[%c0_181, %c0_182] : memref<2x32xf32, #tpu.memory_space<vmem>>, vector<2x32xf32>
    tpu.vector_store %arg18[%c0_181, %c0_182], %238 {strides = array<i32>} : memref<2x32xf32, #tpu.memory_space<vmem>>, vector<2x32xf32>,
    %240 = arith.truncf %238 : vector<2x32xf32> to vector<2x32xbf16>
    %241 = arith.index_cast %196 : i32 to index
    %c0_183 = arith.constant 0 : index
    %c0_184 = arith.constant 0 : index
    %242 = vector.load %arg12[%241, %c0_183, %c0_184] : memref<8x2x32xbf16, #tpu.memory_space<vmem>>, vector<1x2x32xbf16>
    %243 = vector.shape_cast %242 : vector<1x2x32xbf16> to vector<2x32xbf16>
    %244 = vector.shape_cast %240 : vector<2x32xbf16> to vector<1x2x32xbf16>
    tpu.vector_store %arg12[%241, %c0_183, %c0_184], %244 {strides = array<i32>} : memref<8x2x32xbf16, #tpu.memory_space<vmem>>, vector<1x2x32xbf16>,
    %c1_i32 = arith.constant 1 : i32
    %c0_185 = arith.constant 0 : index
    %c0_186 = arith.constant 0 : index
    %245 = vector.load %arg17[%c0_185, %c0_186] : memref<2x32xf32, #tpu.memory_space<vmem>>, vector<2x32xf32>
    %246 = arith.index_cast %c1_i32 : i32 to index
    %c0_187 = arith.constant 0 : index
    %c0_188 = arith.constant 0 : index
    %247 = vector.load %arg15[%246, %c0_187, %c0_188] : memref<8x2x96xf32, #tpu.memory_space<vmem>>, vector<1x2x96xf32>
    %248 = vector.shape_cast %247 : vector<1x2x96xf32> to vector<2x96xf32>
    %249 = arith.truncf %245 : vector<2x32xf32> to vector<2x32xbf16>
    %c0_189 = arith.constant 0 : index
    %c0_190 = arith.constant 0 : index
    %250 = vector.load %arg4[%c0_189, %c0_190] : memref<32x96xbf16, #tpu.memory_space<vmem>>, vector<32x96xbf16>
    %cst_191 = arith.constant dense<0.000000e+00> : vector<2x96xf32>
    %251 = tpu.matmul %249, %250, %cst_191 {dimension_numbers = #tpu.dot_dimension_numbers<[1], [0], [0], [1], [0, 0, 1, 1], [], []>} : vector<2x32xbf16>, vector<32x96xbf16>, vector<2x96xf32> -> vector<2x96xf32>
    %252 = vector.extract_strided_slice %248 {offsets = [0, 0], sizes = [2, 32], strides = [1, 1]} : vector<2x96xf32> to vector<2x32xf32>
    %253 = vector.extract_strided_slice %251 {offsets = [0, 0], sizes = [2, 32], strides = [1, 1]} : vector<2x96xf32> to vector<2x32xf32>
    %254 = arith.addf %252, %253 : vector<2x32xf32>
    %255 = arith.negf %254 : vector<2x32xf32>
    %256 = math.exp %255 : vector<2x32xf32>
    %cst_192 = arith.constant 1.000000e+00 : f32
    %257 = vector.broadcast %cst_192 : f32 to vector<2x32xf32>
    %258 = arith.addf %257, %256 : vector<2x32xf32>
    %259 = arith.divf %257, %258 : vector<2x32xf32>
    %260 = vector.extract_strided_slice %248 {offsets = [0, 32], sizes = [2, 32], strides = [1, 1]} : vector<2x96xf32> to vector<2x32xf32>
    %261 = vector.extract_strided_slice %251 {offsets = [0, 32], sizes = [2, 32], strides = [1, 1]} : vector<2x96xf32> to vector<2x32xf32>
    %262 = arith.addf %260, %261 : vector<2x32xf32>
    %263 = arith.negf %262 : vector<2x32xf32>
    %264 = math.exp %263 : vector<2x32xf32>
    %cst_193 = arith.constant 1.000000e+00 : f32
    %265 = vector.broadcast %cst_193 : f32 to vector<2x32xf32>
    %266 = arith.addf %265, %264 : vector<2x32xf32>
    %267 = arith.divf %265, %266 : vector<2x32xf32>
    %268 = vector.extract_strided_slice %248 {offsets = [0, 64], sizes = [2, 32], strides = [1, 1]} : vector<2x96xf32> to vector<2x32xf32>
    %269 = vector.extract_strided_slice %251 {offsets = [0, 64], sizes = [2, 32], strides = [1, 1]} : vector<2x96xf32> to vector<2x32xf32>
    %c0_194 = arith.constant 0 : index
    %c0_195 = arith.constant 0 : index
    %270 = vector.load %arg6[%c0_194, %c0_195] : memref<1x32xf32, #tpu.memory_space<vmem>>, vector<1x32xf32>
    %271 = vector.broadcast %270 : vector<1x32xf32> to vector<2x32xf32>
    %272 = arith.addf %269, %271 : vector<2x32xf32>
    %273 = arith.mulf %259, %272 : vector<2x32xf32>
    %274 = arith.addf %268, %273 : vector<2x32xf32>
    %275 = math.tanh %274 : vector<2x32xf32>
    %276 = arith.subf %245, %275 : vector<2x32xf32>
    %277 = arith.mulf %267, %276 : vector<2x32xf32>
    %278 = arith.addf %275, %277 : vector<2x32xf32>
    %279 = arith.index_cast %c1_i32 : i32 to index
    %c0_196 = arith.constant 0 : index
    %c0_197 = arith.constant 0 : index
    %280 = vector.load %arg2[%279, %c0_196, %c0_197] : memref<8x2x1xf32, #tpu.memory_space<vmem>>, vector<1x2x1xf32>
    %281 = vector.shape_cast %280 : vector<1x2x1xf32> to vector<2x1xf32>
    %282 = vector.shape_cast %281 : vector<2x1xf32> to vector<2x1xf32>
    %283 = vector.broadcast %282 : vector<2x1xf32> to vector<2x32xf32>
    %cst_198 = arith.constant 0.000000e+00 : f32
    %284 = vector.broadcast %cst_198 : f32 to vector<2x32xf32>
    %285 = arith.cmpf ogt, %283, %284 : vector<2x32xf32>
    %286 = arith.select %285, %278, %245 : vector<2x32xi1>, vector<2x32xf32>
    %c0_199 = arith.constant 0 : index
    %c0_200 = arith.constant 0 : index
    %287 = vector.load %arg17[%c0_199, %c0_200] : memref<2x32xf32, #tpu.memory_space<vmem>>, vector<2x32xf32>
    tpu.vector_store %arg17[%c0_199, %c0_200], %286 {strides = array<i32>} : memref<2x32xf32, #tpu.memory_space<vmem>>, vector<2x32xf32>,
    %288 = arith.truncf %286 : vector<2x32xf32> to vector<2x32xbf16>
    %289 = arith.index_cast %c1_i32 : i32 to index
    %c0_201 = arith.constant 0 : index
    %c0_202 = arith.constant 0 : index
    %290 = vector.load %arg11[%289, %c0_201, %c0_202] : memref<8x2x32xbf16, #tpu.memory_space<vmem>>, vector<1x2x32xbf16>
    %291 = vector.shape_cast %290 : vector<1x2x32xbf16> to vector<2x32xbf16>
    %292 = vector.shape_cast %288 : vector<2x32xbf16> to vector<1x2x32xbf16>
    tpu.vector_store %arg11[%289, %c0_201, %c0_202], %292 {strides = array<i32>} : memref<8x2x32xbf16, #tpu.memory_space<vmem>>, vector<1x2x32xbf16>,
    %c7_i32_203 = arith.constant 7 : i32
    %293 = arith.subi %c7_i32_203, %c1_i32 : i32
    %c0_204 = arith.constant 0 : index
    %c0_205 = arith.constant 0 : index
    %294 = vector.load %arg18[%c0_204, %c0_205] : memref<2x32xf32, #tpu.memory_space<vmem>>, vector<2x32xf32>
    %295 = arith.index_cast %293 : i32 to index
    %c0_206 = arith.constant 0 : index
    %c0_207 = arith.constant 0 : index
    %296 = vector.load %arg16[%295, %c0_206, %c0_207] : memref<8x2x96xf32, #tpu.memory_space<vmem>>, vector<1x2x96xf32>
    %297 = vector.shape_cast %296 : vector<1x2x96xf32> to vector<2x96xf32>
    %298 = arith.truncf %294 : vector<2x32xf32> to vector<2x32xbf16>
    %c0_208 = arith.constant 0 : index
    %c0_209 = arith.constant 0 : index
    %299 = vector.load %arg8[%c0_208, %c0_209] : memref<32x96xbf16, #tpu.memory_space<vmem>>, vector<32x96xbf16>
    %cst_210 = arith.constant dense<0.000000e+00> : vector<2x96xf32>
    %300 = tpu.matmul %298, %299, %cst_210 {dimension_numbers = #tpu.dot_dimension_numbers<[1], [0], [0], [1], [0, 0, 1, 1], [], []>} : vector<2x32xbf16>, vector<32x96xbf16>, vector<2x96xf32> -> vector<2x96xf32>
    %301 = vector.extract_strided_slice %297 {offsets = [0, 0], sizes = [2, 32], strides = [1, 1]} : vector<2x96xf32> to vector<2x32xf32>
    %302 = vector.extract_strided_slice %300 {offsets = [0, 0], sizes = [2, 32], strides = [1, 1]} : vector<2x96xf32> to vector<2x32xf32>
    %303 = arith.addf %301, %302 : vector<2x32xf32>
    %304 = arith.negf %303 : vector<2x32xf32>
    %305 = math.exp %304 : vector<2x32xf32>
    %cst_211 = arith.constant 1.000000e+00 : f32
    %306 = vector.broadcast %cst_211 : f32 to vector<2x32xf32>
    %307 = arith.addf %306, %305 : vector<2x32xf32>
    %308 = arith.divf %306, %307 : vector<2x32xf32>
    %309 = vector.extract_strided_slice %297 {offsets = [0, 32], sizes = [2, 32], strides = [1, 1]} : vector<2x96xf32> to vector<2x32xf32>
    %310 = vector.extract_strided_slice %300 {offsets = [0, 32], sizes = [2, 32], strides = [1, 1]} : vector<2x96xf32> to vector<2x32xf32>
    %311 = arith.addf %309, %310 : vector<2x32xf32>
    %312 = arith.negf %311 : vector<2x32xf32>
    %313 = math.exp %312 : vector<2x32xf32>
    %cst_212 = arith.constant 1.000000e+00 : f32
    %314 = vector.broadcast %cst_212 : f32 to vector<2x32xf32>
    %315 = arith.addf %314, %313 : vector<2x32xf32>
    %316 = arith.divf %314, %315 : vector<2x32xf32>
    %317 = vector.extract_strided_slice %297 {offsets = [0, 64], sizes = [2, 32], strides = [1, 1]} : vector<2x96xf32> to vector<2x32xf32>
    %318 = vector.extract_strided_slice %300 {offsets = [0, 64], sizes = [2, 32], strides = [1, 1]} : vector<2x96xf32> to vector<2x32xf32>
    %c0_213 = arith.constant 0 : index
    %c0_214 = arith.constant 0 : index
    %319 = vector.load %arg10[%c0_213, %c0_214] : memref<1x32xf32, #tpu.memory_space<vmem>>, vector<1x32xf32>
    %320 = vector.broadcast %319 : vector<1x32xf32> to vector<2x32xf32>
    %321 = arith.addf %318, %320 : vector<2x32xf32>
    %322 = arith.mulf %308, %321 : vector<2x32xf32>
    %323 = arith.addf %317, %322 : vector<2x32xf32>
    %324 = math.tanh %323 : vector<2x32xf32>
    %325 = arith.subf %294, %324 : vector<2x32xf32>
    %326 = arith.mulf %316, %325 : vector<2x32xf32>
    %327 = arith.addf %324, %326 : vector<2x32xf32>
    %328 = arith.index_cast %293 : i32 to index
    %c0_215 = arith.constant 0 : index
    %c0_216 = arith.constant 0 : index
    %329 = vector.load %arg2[%328, %c0_215, %c0_216] : memref<8x2x1xf32, #tpu.memory_space<vmem>>, vector<1x2x1xf32>
    %330 = vector.shape_cast %329 : vector<1x2x1xf32> to vector<2x1xf32>
    %331 = vector.shape_cast %330 : vector<2x1xf32> to vector<2x1xf32>
    %332 = vector.broadcast %331 : vector<2x1xf32> to vector<2x32xf32>
    %cst_217 = arith.constant 0.000000e+00 : f32
    %333 = vector.broadcast %cst_217 : f32 to vector<2x32xf32>
    %334 = arith.cmpf ogt, %332, %333 : vector<2x32xf32>
    %335 = arith.select %334, %327, %294 : vector<2x32xi1>, vector<2x32xf32>
    %c0_218 = arith.constant 0 : index
    %c0_219 = arith.constant 0 : index
    %336 = vector.load %arg18[%c0_218, %c0_219] : memref<2x32xf32, #tpu.memory_space<vmem>>, vector<2x32xf32>
    tpu.vector_store %arg18[%c0_218, %c0_219], %335 {strides = array<i32>} : memref<2x32xf32, #tpu.memory_space<vmem>>, vector<2x32xf32>,
    %337 = arith.truncf %335 : vector<2x32xf32> to vector<2x32xbf16>
    %338 = arith.index_cast %293 : i32 to index
    %c0_220 = arith.constant 0 : index
    %c0_221 = arith.constant 0 : index
    %339 = vector.load %arg12[%338, %c0_220, %c0_221] : memref<8x2x32xbf16, #tpu.memory_space<vmem>>, vector<1x2x32xbf16>
    %340 = vector.shape_cast %339 : vector<1x2x32xbf16> to vector<2x32xbf16>
    %341 = vector.shape_cast %337 : vector<2x32xbf16> to vector<1x2x32xbf16>
    tpu.vector_store %arg12[%338, %c0_220, %c0_221], %341 {strides = array<i32>} : memref<8x2x32xbf16, #tpu.memory_space<vmem>>, vector<1x2x32xbf16>,
    %c2_i32 = arith.constant 2 : i32
    %c0_222 = arith.constant 0 : index
    %c0_223 = arith.constant 0 : index
    %342 = vector.load %arg17[%c0_222, %c0_223] : memref<2x32xf32, #tpu.memory_space<vmem>>, vector<2x32xf32>
    %343 = arith.index_cast %c2_i32 : i32 to index
    %c0_224 = arith.constant 0 : index
    %c0_225 = arith.constant 0 : index
    %344 = vector.load %arg15[%343, %c0_224, %c0_225] : memref<8x2x96xf32, #tpu.memory_space<vmem>>, vector<1x2x96xf32>
    %345 = vector.shape_cast %344 : vector<1x2x96xf32> to vector<2x96xf32>
    %346 = arith.truncf %342 : vector<2x32xf32> to vector<2x32xbf16>
    %c0_226 = arith.constant 0 : index
    %c0_227 = arith.constant 0 : index
    %347 = vector.load %arg4[%c0_226, %c0_227] : memref<32x96xbf16, #tpu.memory_space<vmem>>, vector<32x96xbf16>
    %cst_228 = arith.constant dense<0.000000e+00> : vector<2x96xf32>
    %348 = tpu.matmul %346, %347, %cst_228 {dimension_numbers = #tpu.dot_dimension_numbers<[1], [0], [0], [1], [0, 0, 1, 1], [], []>} : vector<2x32xbf16>, vector<32x96xbf16>, vector<2x96xf32> -> vector<2x96xf32>
    %349 = vector.extract_strided_slice %345 {offsets = [0, 0], sizes = [2, 32], strides = [1, 1]} : vector<2x96xf32> to vector<2x32xf32>
    %350 = vector.extract_strided_slice %348 {offsets = [0, 0], sizes = [2, 32], strides = [1, 1]} : vector<2x96xf32> to vector<2x32xf32>
    %351 = arith.addf %349, %350 : vector<2x32xf32>
    %352 = arith.negf %351 : vector<2x32xf32>
    %353 = math.exp %352 : vector<2x32xf32>
    %cst_229 = arith.constant 1.000000e+00 : f32
    %354 = vector.broadcast %cst_229 : f32 to vector<2x32xf32>
    %355 = arith.addf %354, %353 : vector<2x32xf32>
    %356 = arith.divf %354, %355 : vector<2x32xf32>
    %357 = vector.extract_strided_slice %345 {offsets = [0, 32], sizes = [2, 32], strides = [1, 1]} : vector<2x96xf32> to vector<2x32xf32>
    %358 = vector.extract_strided_slice %348 {offsets = [0, 32], sizes = [2, 32], strides = [1, 1]} : vector<2x96xf32> to vector<2x32xf32>
    %359 = arith.addf %357, %358 : vector<2x32xf32>
    %360 = arith.negf %359 : vector<2x32xf32>
    %361 = math.exp %360 : vector<2x32xf32>
    %cst_230 = arith.constant 1.000000e+00 : f32
    %362 = vector.broadcast %cst_230 : f32 to vector<2x32xf32>
    %363 = arith.addf %362, %361 : vector<2x32xf32>
    %364 = arith.divf %362, %363 : vector<2x32xf32>
    %365 = vector.extract_strided_slice %345 {offsets = [0, 64], sizes = [2, 32], strides = [1, 1]} : vector<2x96xf32> to vector<2x32xf32>
    %366 = vector.extract_strided_slice %348 {offsets = [0, 64], sizes = [2, 32], strides = [1, 1]} : vector<2x96xf32> to vector<2x32xf32>
    %c0_231 = arith.constant 0 : index
    %c0_232 = arith.constant 0 : index
    %367 = vector.load %arg6[%c0_231, %c0_232] : memref<1x32xf32, #tpu.memory_space<vmem>>, vector<1x32xf32>
    %368 = vector.broadcast %367 : vector<1x32xf32> to vector<2x32xf32>
    %369 = arith.addf %366, %368 : vector<2x32xf32>
    %370 = arith.mulf %356, %369 : vector<2x32xf32>
    %371 = arith.addf %365, %370 : vector<2x32xf32>
    %372 = math.tanh %371 : vector<2x32xf32>
    %373 = arith.subf %342, %372 : vector<2x32xf32>
    %374 = arith.mulf %364, %373 : vector<2x32xf32>
    %375 = arith.addf %372, %374 : vector<2x32xf32>
    %376 = arith.index_cast %c2_i32 : i32 to index
    %c0_233 = arith.constant 0 : index
    %c0_234 = arith.constant 0 : index
    %377 = vector.load %arg2[%376, %c0_233, %c0_234] : memref<8x2x1xf32, #tpu.memory_space<vmem>>, vector<1x2x1xf32>
    %378 = vector.shape_cast %377 : vector<1x2x1xf32> to vector<2x1xf32>
    %379 = vector.shape_cast %378 : vector<2x1xf32> to vector<2x1xf32>
    %380 = vector.broadcast %379 : vector<2x1xf32> to vector<2x32xf32>
    %cst_235 = arith.constant 0.000000e+00 : f32
    %381 = vector.broadcast %cst_235 : f32 to vector<2x32xf32>
    %382 = arith.cmpf ogt, %380, %381 : vector<2x32xf32>
    %383 = arith.select %382, %375, %342 : vector<2x32xi1>, vector<2x32xf32>
    %c0_236 = arith.constant 0 : index
    %c0_237 = arith.constant 0 : index
    %384 = vector.load %arg17[%c0_236, %c0_237] : memref<2x32xf32, #tpu.memory_space<vmem>>, vector<2x32xf32>
    tpu.vector_store %arg17[%c0_236, %c0_237], %383 {strides = array<i32>} : memref<2x32xf32, #tpu.memory_space<vmem>>, vector<2x32xf32>,
    %385 = arith.truncf %383 : vector<2x32xf32> to vector<2x32xbf16>
    %386 = arith.index_cast %c2_i32 : i32 to index
    %c0_238 = arith.constant 0 : index
    %c0_239 = arith.constant 0 : index
    %387 = vector.load %arg11[%386, %c0_238, %c0_239] : memref<8x2x32xbf16, #tpu.memory_space<vmem>>, vector<1x2x32xbf16>
    %388 = vector.shape_cast %387 : vector<1x2x32xbf16> to vector<2x32xbf16>
    %389 = vector.shape_cast %385 : vector<2x32xbf16> to vector<1x2x32xbf16>
    tpu.vector_store %arg11[%386, %c0_238, %c0_239], %389 {strides = array<i32>} : memref<8x2x32xbf16, #tpu.memory_space<vmem>>, vector<1x2x32xbf16>,
    %c7_i32_240 = arith.constant 7 : i32
    %390 = arith.subi %c7_i32_240, %c2_i32 : i32
    %c0_241 = arith.constant 0 : index
    %c0_242 = arith.constant 0 : index
    %391 = vector.load %arg18[%c0_241, %c0_242] : memref<2x32xf32, #tpu.memory_space<vmem>>, vector<2x32xf32>
    %392 = arith.index_cast %390 : i32 to index
    %c0_243 = arith.constant 0 : index
    %c0_244 = arith.constant 0 : index
    %393 = vector.load %arg16[%392, %c0_243, %c0_244] : memref<8x2x96xf32, #tpu.memory_space<vmem>>, vector<1x2x96xf32>
    %394 = vector.shape_cast %393 : vector<1x2x96xf32> to vector<2x96xf32>
    %395 = arith.truncf %391 : vector<2x32xf32> to vector<2x32xbf16>
    %c0_245 = arith.constant 0 : index
    %c0_246 = arith.constant 0 : index
    %396 = vector.load %arg8[%c0_245, %c0_246] : memref<32x96xbf16, #tpu.memory_space<vmem>>, vector<32x96xbf16>
    %cst_247 = arith.constant dense<0.000000e+00> : vector<2x96xf32>
    %397 = tpu.matmul %395, %396, %cst_247 {dimension_numbers = #tpu.dot_dimension_numbers<[1], [0], [0], [1], [0, 0, 1, 1], [], []>} : vector<2x32xbf16>, vector<32x96xbf16>, vector<2x96xf32> -> vector<2x96xf32>
    %398 = vector.extract_strided_slice %394 {offsets = [0, 0], sizes = [2, 32], strides = [1, 1]} : vector<2x96xf32> to vector<2x32xf32>
    %399 = vector.extract_strided_slice %397 {offsets = [0, 0], sizes = [2, 32], strides = [1, 1]} : vector<2x96xf32> to vector<2x32xf32>
    %400 = arith.addf %398, %399 : vector<2x32xf32>
    %401 = arith.negf %400 : vector<2x32xf32>
    %402 = math.exp %401 : vector<2x32xf32>
    %cst_248 = arith.constant 1.000000e+00 : f32
    %403 = vector.broadcast %cst_248 : f32 to vector<2x32xf32>
    %404 = arith.addf %403, %402 : vector<2x32xf32>
    %405 = arith.divf %403, %404 : vector<2x32xf32>
    %406 = vector.extract_strided_slice %394 {offsets = [0, 32], sizes = [2, 32], strides = [1, 1]} : vector<2x96xf32> to vector<2x32xf32>
    %407 = vector.extract_strided_slice %397 {offsets = [0, 32], sizes = [2, 32], strides = [1, 1]} : vector<2x96xf32> to vector<2x32xf32>
    %408 = arith.addf %406, %407 : vector<2x32xf32>
    %409 = arith.negf %408 : vector<2x32xf32>
    %410 = math.exp %409 : vector<2x32xf32>
    %cst_249 = arith.constant 1.000000e+00 : f32
    %411 = vector.broadcast %cst_249 : f32 to vector<2x32xf32>
    %412 = arith.addf %411, %410 : vector<2x32xf32>
    %413 = arith.divf %411, %412 : vector<2x32xf32>
    %414 = vector.extract_strided_slice %394 {offsets = [0, 64], sizes = [2, 32], strides = [1, 1]} : vector<2x96xf32> to vector<2x32xf32>
    %415 = vector.extract_strided_slice %397 {offsets = [0, 64], sizes = [2, 32], strides = [1, 1]} : vector<2x96xf32> to vector<2x32xf32>
    %c0_250 = arith.constant 0 : index
    %c0_251 = arith.constant 0 : index
    %416 = vector.load %arg10[%c0_250, %c0_251] : memref<1x32xf32, #tpu.memory_space<vmem>>, vector<1x32xf32>
    %417 = vector.broadcast %416 : vector<1x32xf32> to vector<2x32xf32>
    %418 = arith.addf %415, %417 : vector<2x32xf32>
    %419 = arith.mulf %405, %418 : vector<2x32xf32>
    %420 = arith.addf %414, %419 : vector<2x32xf32>
    %421 = math.tanh %420 : vector<2x32xf32>
    %422 = arith.subf %391, %421 : vector<2x32xf32>
    %423 = arith.mulf %413, %422 : vector<2x32xf32>
    %424 = arith.addf %421, %423 : vector<2x32xf32>
    %425 = arith.index_cast %390 : i32 to index
    %c0_252 = arith.constant 0 : index
    %c0_253 = arith.constant 0 : index
    %426 = vector.load %arg2[%425, %c0_252, %c0_253] : memref<8x2x1xf32, #tpu.memory_space<vmem>>, vector<1x2x1xf32>
    %427 = vector.shape_cast %426 : vector<1x2x1xf32> to vector<2x1xf32>
    %428 = vector.shape_cast %427 : vector<2x1xf32> to vector<2x1xf32>
    %429 = vector.broadcast %428 : vector<2x1xf32> to vector<2x32xf32>
    %cst_254 = arith.constant 0.000000e+00 : f32
    %430 = vector.broadcast %cst_254 : f32 to vector<2x32xf32>
    %431 = arith.cmpf ogt, %429, %430 : vector<2x32xf32>
    %432 = arith.select %431, %424, %391 : vector<2x32xi1>, vector<2x32xf32>
    %c0_255 = arith.constant 0 : index
    %c0_256 = arith.constant 0 : index
    %433 = vector.load %arg18[%c0_255, %c0_256] : memref<2x32xf32, #tpu.memory_space<vmem>>, vector<2x32xf32>
    tpu.vector_store %arg18[%c0_255, %c0_256], %432 {strides = array<i32>} : memref<2x32xf32, #tpu.memory_space<vmem>>, vector<2x32xf32>,
    %434 = arith.truncf %432 : vector<2x32xf32> to vector<2x32xbf16>
    %435 = arith.index_cast %390 : i32 to index
    %c0_257 = arith.constant 0 : index
    %c0_258 = arith.constant 0 : index
    %436 = vector.load %arg12[%435, %c0_257, %c0_258] : memref<8x2x32xbf16, #tpu.memory_space<vmem>>, vector<1x2x32xbf16>
    %437 = vector.shape_cast %436 : vector<1x2x32xbf16> to vector<2x32xbf16>
    %438 = vector.shape_cast %434 : vector<2x32xbf16> to vector<1x2x32xbf16>
    tpu.vector_store %arg12[%435, %c0_257, %c0_258], %438 {strides = array<i32>} : memref<8x2x32xbf16, #tpu.memory_space<vmem>>, vector<1x2x32xbf16>,
    %c3_i32 = arith.constant 3 : i32
    %c0_259 = arith.constant 0 : index
    %c0_260 = arith.constant 0 : index
    %439 = vector.load %arg17[%c0_259, %c0_260] : memref<2x32xf32, #tpu.memory_space<vmem>>, vector<2x32xf32>
    %440 = arith.index_cast %c3_i32 : i32 to index
    %c0_261 = arith.constant 0 : index
    %c0_262 = arith.constant 0 : index
    %441 = vector.load %arg15[%440, %c0_261, %c0_262] : memref<8x2x96xf32, #tpu.memory_space<vmem>>, vector<1x2x96xf32>
    %442 = vector.shape_cast %441 : vector<1x2x96xf32> to vector<2x96xf32>
    %443 = arith.truncf %439 : vector<2x32xf32> to vector<2x32xbf16>
    %c0_263 = arith.constant 0 : index
    %c0_264 = arith.constant 0 : index
    %444 = vector.load %arg4[%c0_263, %c0_264] : memref<32x96xbf16, #tpu.memory_space<vmem>>, vector<32x96xbf16>
    %cst_265 = arith.constant dense<0.000000e+00> : vector<2x96xf32>
    %445 = tpu.matmul %443, %444, %cst_265 {dimension_numbers = #tpu.dot_dimension_numbers<[1], [0], [0], [1], [0, 0, 1, 1], [], []>} : vector<2x32xbf16>, vector<32x96xbf16>, vector<2x96xf32> -> vector<2x96xf32>
    %446 = vector.extract_strided_slice %442 {offsets = [0, 0], sizes = [2, 32], strides = [1, 1]} : vector<2x96xf32> to vector<2x32xf32>
    %447 = vector.extract_strided_slice %445 {offsets = [0, 0], sizes = [2, 32], strides = [1, 1]} : vector<2x96xf32> to vector<2x32xf32>
    %448 = arith.addf %446, %447 : vector<2x32xf32>
    %449 = arith.negf %448 : vector<2x32xf32>
    %450 = math.exp %449 : vector<2x32xf32>
    %cst_266 = arith.constant 1.000000e+00 : f32
    %451 = vector.broadcast %cst_266 : f32 to vector<2x32xf32>
    %452 = arith.addf %451, %450 : vector<2x32xf32>
    %453 = arith.divf %451, %452 : vector<2x32xf32>
    %454 = vector.extract_strided_slice %442 {offsets = [0, 32], sizes = [2, 32], strides = [1, 1]} : vector<2x96xf32> to vector<2x32xf32>
    %455 = vector.extract_strided_slice %445 {offsets = [0, 32], sizes = [2, 32], strides = [1, 1]} : vector<2x96xf32> to vector<2x32xf32>
    %456 = arith.addf %454, %455 : vector<2x32xf32>
    %457 = arith.negf %456 : vector<2x32xf32>
    %458 = math.exp %457 : vector<2x32xf32>
    %cst_267 = arith.constant 1.000000e+00 : f32
    %459 = vector.broadcast %cst_267 : f32 to vector<2x32xf32>
    %460 = arith.addf %459, %458 : vector<2x32xf32>
    %461 = arith.divf %459, %460 : vector<2x32xf32>
    %462 = vector.extract_strided_slice %442 {offsets = [0, 64], sizes = [2, 32], strides = [1, 1]} : vector<2x96xf32> to vector<2x32xf32>
    %463 = vector.extract_strided_slice %445 {offsets = [0, 64], sizes = [2, 32], strides = [1, 1]} : vector<2x96xf32> to vector<2x32xf32>
    %c0_268 = arith.constant 0 : index
    %c0_269 = arith.constant 0 : index
    %464 = vector.load %arg6[%c0_268, %c0_269] : memref<1x32xf32, #tpu.memory_space<vmem>>, vector<1x32xf32>
    %465 = vector.broadcast %464 : vector<1x32xf32> to vector<2x32xf32>
    %466 = arith.addf %463, %465 : vector<2x32xf32>
    %467 = arith.mulf %453, %466 : vector<2x32xf32>
    %468 = arith.addf %462, %467 : vector<2x32xf32>
    %469 = math.tanh %468 : vector<2x32xf32>
    %470 = arith.subf %439, %469 : vector<2x32xf32>
    %471 = arith.mulf %461, %470 : vector<2x32xf32>
    %472 = arith.addf %469, %471 : vector<2x32xf32>
    %473 = arith.index_cast %c3_i32 : i32 to index
    %c0_270 = arith.constant 0 : index
    %c0_271 = arith.constant 0 : index
    %474 = vector.load %arg2[%473, %c0_270, %c0_271] : memref<8x2x1xf32, #tpu.memory_space<vmem>>, vector<1x2x1xf32>
    %475 = vector.shape_cast %474 : vector<1x2x1xf32> to vector<2x1xf32>
    %476 = vector.shape_cast %475 : vector<2x1xf32> to vector<2x1xf32>
    %477 = vector.broadcast %476 : vector<2x1xf32> to vector<2x32xf32>
    %cst_272 = arith.constant 0.000000e+00 : f32
    %478 = vector.broadcast %cst_272 : f32 to vector<2x32xf32>
    %479 = arith.cmpf ogt, %477, %478 : vector<2x32xf32>
    %480 = arith.select %479, %472, %439 : vector<2x32xi1>, vector<2x32xf32>
    %c0_273 = arith.constant 0 : index
    %c0_274 = arith.constant 0 : index
    %481 = vector.load %arg17[%c0_273, %c0_274] : memref<2x32xf32, #tpu.memory_space<vmem>>, vector<2x32xf32>
    tpu.vector_store %arg17[%c0_273, %c0_274], %480 {strides = array<i32>} : memref<2x32xf32, #tpu.memory_space<vmem>>, vector<2x32xf32>,
    %482 = arith.truncf %480 : vector<2x32xf32> to vector<2x32xbf16>
    %483 = arith.index_cast %c3_i32 : i32 to index
    %c0_275 = arith.constant 0 : index
    %c0_276 = arith.constant 0 : index
    %484 = vector.load %arg11[%483, %c0_275, %c0_276] : memref<8x2x32xbf16, #tpu.memory_space<vmem>>, vector<1x2x32xbf16>
    %485 = vector.shape_cast %484 : vector<1x2x32xbf16> to vector<2x32xbf16>
    %486 = vector.shape_cast %482 : vector<2x32xbf16> to vector<1x2x32xbf16>
    tpu.vector_store %arg11[%483, %c0_275, %c0_276], %486 {strides = array<i32>} : memref<8x2x32xbf16, #tpu.memory_space<vmem>>, vector<1x2x32xbf16>,
    %c7_i32_277 = arith.constant 7 : i32
    %487 = arith.subi %c7_i32_277, %c3_i32 : i32
    %c0_278 = arith.constant 0 : index
    %c0_279 = arith.constant 0 : index
    %488 = vector.load %arg18[%c0_278, %c0_279] : memref<2x32xf32, #tpu.memory_space<vmem>>, vector<2x32xf32>
    %489 = arith.index_cast %487 : i32 to index
    %c0_280 = arith.constant 0 : index
    %c0_281 = arith.constant 0 : index
    %490 = vector.load %arg16[%489, %c0_280, %c0_281] : memref<8x2x96xf32, #tpu.memory_space<vmem>>, vector<1x2x96xf32>
    %491 = vector.shape_cast %490 : vector<1x2x96xf32> to vector<2x96xf32>
    %492 = arith.truncf %488 : vector<2x32xf32> to vector<2x32xbf16>
    %c0_282 = arith.constant 0 : index
    %c0_283 = arith.constant 0 : index
    %493 = vector.load %arg8[%c0_282, %c0_283] : memref<32x96xbf16, #tpu.memory_space<vmem>>, vector<32x96xbf16>
    %cst_284 = arith.constant dense<0.000000e+00> : vector<2x96xf32>
    %494 = tpu.matmul %492, %493, %cst_284 {dimension_numbers = #tpu.dot_dimension_numbers<[1], [0], [0], [1], [0, 0, 1, 1], [], []>} : vector<2x32xbf16>, vector<32x96xbf16>, vector<2x96xf32> -> vector<2x96xf32>
    %495 = vector.extract_strided_slice %491 {offsets = [0, 0], sizes = [2, 32], strides = [1, 1]} : vector<2x96xf32> to vector<2x32xf32>
    %496 = vector.extract_strided_slice %494 {offsets = [0, 0], sizes = [2, 32], strides = [1, 1]} : vector<2x96xf32> to vector<2x32xf32>
    %497 = arith.addf %495, %496 : vector<2x32xf32>
    %498 = arith.negf %497 : vector<2x32xf32>
    %499 = math.exp %498 : vector<2x32xf32>
    %cst_285 = arith.constant 1.000000e+00 : f32
    %500 = vector.broadcast %cst_285 : f32 to vector<2x32xf32>
    %501 = arith.addf %500, %499 : vector<2x32xf32>
    %502 = arith.divf %500, %501 : vector<2x32xf32>
    %503 = vector.extract_strided_slice %491 {offsets = [0, 32], sizes = [2, 32], strides = [1, 1]} : vector<2x96xf32> to vector<2x32xf32>
    %504 = vector.extract_strided_slice %494 {offsets = [0, 32], sizes = [2, 32], strides = [1, 1]} : vector<2x96xf32> to vector<2x32xf32>
    %505 = arith.addf %503, %504 : vector<2x32xf32>
    %506 = arith.negf %505 : vector<2x32xf32>
    %507 = math.exp %506 : vector<2x32xf32>
    %cst_286 = arith.constant 1.000000e+00 : f32
    %508 = vector.broadcast %cst_286 : f32 to vector<2x32xf32>
    %509 = arith.addf %508, %507 : vector<2x32xf32>
    %510 = arith.divf %508, %509 : vector<2x32xf32>
    %511 = vector.extract_strided_slice %491 {offsets = [0, 64], sizes = [2, 32], strides = [1, 1]} : vector<2x96xf32> to vector<2x32xf32>
    %512 = vector.extract_strided_slice %494 {offsets = [0, 64], sizes = [2, 32], strides = [1, 1]} : vector<2x96xf32> to vector<2x32xf32>
    %c0_287 = arith.constant 0 : index
    %c0_288 = arith.constant 0 : index
    %513 = vector.load %arg10[%c0_287, %c0_288] : memref<1x32xf32, #tpu.memory_space<vmem>>, vector<1x32xf32>
    %514 = vector.broadcast %513 : vector<1x32xf32> to vector<2x32xf32>
    %515 = arith.addf %512, %514 : vector<2x32xf32>
    %516 = arith.mulf %502, %515 : vector<2x32xf32>
    %517 = arith.addf %511, %516 : vector<2x32xf32>
    %518 = math.tanh %517 : vector<2x32xf32>
    %519 = arith.subf %488, %518 : vector<2x32xf32>
    %520 = arith.mulf %510, %519 : vector<2x32xf32>
    %521 = arith.addf %518, %520 : vector<2x32xf32>
    %522 = arith.index_cast %487 : i32 to index
    %c0_289 = arith.constant 0 : index
    %c0_290 = arith.constant 0 : index
    %523 = vector.load %arg2[%522, %c0_289, %c0_290] : memref<8x2x1xf32, #tpu.memory_space<vmem>>, vector<1x2x1xf32>
    %524 = vector.shape_cast %523 : vector<1x2x1xf32> to vector<2x1xf32>
    %525 = vector.shape_cast %524 : vector<2x1xf32> to vector<2x1xf32>
    %526 = vector.broadcast %525 : vector<2x1xf32> to vector<2x32xf32>
    %cst_291 = arith.constant 0.000000e+00 : f32
    %527 = vector.broadcast %cst_291 : f32 to vector<2x32xf32>
    %528 = arith.cmpf ogt, %526, %527 : vector<2x32xf32>
    %529 = arith.select %528, %521, %488 : vector<2x32xi1>, vector<2x32xf32>
    %c0_292 = arith.constant 0 : index
    %c0_293 = arith.constant 0 : index
    %530 = vector.load %arg18[%c0_292, %c0_293] : memref<2x32xf32, #tpu.memory_space<vmem>>, vector<2x32xf32>
    tpu.vector_store %arg18[%c0_292, %c0_293], %529 {strides = array<i32>} : memref<2x32xf32, #tpu.memory_space<vmem>>, vector<2x32xf32>,
    %531 = arith.truncf %529 : vector<2x32xf32> to vector<2x32xbf16>
    %532 = arith.index_cast %487 : i32 to index
    %c0_294 = arith.constant 0 : index
    %c0_295 = arith.constant 0 : index
    %533 = vector.load %arg12[%532, %c0_294, %c0_295] : memref<8x2x32xbf16, #tpu.memory_space<vmem>>, vector<1x2x32xbf16>
    %534 = vector.shape_cast %533 : vector<1x2x32xbf16> to vector<2x32xbf16>
    %535 = vector.shape_cast %531 : vector<2x32xbf16> to vector<1x2x32xbf16>
    tpu.vector_store %arg12[%532, %c0_294, %c0_295], %535 {strides = array<i32>} : memref<8x2x32xbf16, #tpu.memory_space<vmem>>, vector<1x2x32xbf16>,
    %c4_i32 = arith.constant 4 : i32
    %c0_296 = arith.constant 0 : index
    %c0_297 = arith.constant 0 : index
    %536 = vector.load %arg17[%c0_296, %c0_297] : memref<2x32xf32, #tpu.memory_space<vmem>>, vector<2x32xf32>
    %537 = arith.index_cast %c4_i32 : i32 to index
    %c0_298 = arith.constant 0 : index
    %c0_299 = arith.constant 0 : index
    %538 = vector.load %arg15[%537, %c0_298, %c0_299] : memref<8x2x96xf32, #tpu.memory_space<vmem>>, vector<1x2x96xf32>
    %539 = vector.shape_cast %538 : vector<1x2x96xf32> to vector<2x96xf32>
    %540 = arith.truncf %536 : vector<2x32xf32> to vector<2x32xbf16>
    %c0_300 = arith.constant 0 : index
    %c0_301 = arith.constant 0 : index
    %541 = vector.load %arg4[%c0_300, %c0_301] : memref<32x96xbf16, #tpu.memory_space<vmem>>, vector<32x96xbf16>
    %cst_302 = arith.constant dense<0.000000e+00> : vector<2x96xf32>
    %542 = tpu.matmul %540, %541, %cst_302 {dimension_numbers = #tpu.dot_dimension_numbers<[1], [0], [0], [1], [0, 0, 1, 1], [], []>} : vector<2x32xbf16>, vector<32x96xbf16>, vector<2x96xf32> -> vector<2x96xf32>
    %543 = vector.extract_strided_slice %539 {offsets = [0, 0], sizes = [2, 32], strides = [1, 1]} : vector<2x96xf32> to vector<2x32xf32>
    %544 = vector.extract_strided_slice %542 {offsets = [0, 0], sizes = [2, 32], strides = [1, 1]} : vector<2x96xf32> to vector<2x32xf32>
    %545 = arith.addf %543, %544 : vector<2x32xf32>
    %546 = arith.negf %545 : vector<2x32xf32>
    %547 = math.exp %546 : vector<2x32xf32>
    %cst_303 = arith.constant 1.000000e+00 : f32
    %548 = vector.broadcast %cst_303 : f32 to vector<2x32xf32>
    %549 = arith.addf %548, %547 : vector<2x32xf32>
    %550 = arith.divf %548, %549 : vector<2x32xf32>
    %551 = vector.extract_strided_slice %539 {offsets = [0, 32], sizes = [2, 32], strides = [1, 1]} : vector<2x96xf32> to vector<2x32xf32>
    %552 = vector.extract_strided_slice %542 {offsets = [0, 32], sizes = [2, 32], strides = [1, 1]} : vector<2x96xf32> to vector<2x32xf32>
    %553 = arith.addf %551, %552 : vector<2x32xf32>
    %554 = arith.negf %553 : vector<2x32xf32>
    %555 = math.exp %554 : vector<2x32xf32>
    %cst_304 = arith.constant 1.000000e+00 : f32
    %556 = vector.broadcast %cst_304 : f32 to vector<2x32xf32>
    %557 = arith.addf %556, %555 : vector<2x32xf32>
    %558 = arith.divf %556, %557 : vector<2x32xf32>
    %559 = vector.extract_strided_slice %539 {offsets = [0, 64], sizes = [2, 32], strides = [1, 1]} : vector<2x96xf32> to vector<2x32xf32>
    %560 = vector.extract_strided_slice %542 {offsets = [0, 64], sizes = [2, 32], strides = [1, 1]} : vector<2x96xf32> to vector<2x32xf32>
    %c0_305 = arith.constant 0 : index
    %c0_306 = arith.constant 0 : index
    %561 = vector.load %arg6[%c0_305, %c0_306] : memref<1x32xf32, #tpu.memory_space<vmem>>, vector<1x32xf32>
    %562 = vector.broadcast %561 : vector<1x32xf32> to vector<2x32xf32>
    %563 = arith.addf %560, %562 : vector<2x32xf32>
    %564 = arith.mulf %550, %563 : vector<2x32xf32>
    %565 = arith.addf %559, %564 : vector<2x32xf32>
    %566 = math.tanh %565 : vector<2x32xf32>
    %567 = arith.subf %536, %566 : vector<2x32xf32>
    %568 = arith.mulf %558, %567 : vector<2x32xf32>
    %569 = arith.addf %566, %568 : vector<2x32xf32>
    %570 = arith.index_cast %c4_i32 : i32 to index
    %c0_307 = arith.constant 0 : index
    %c0_308 = arith.constant 0 : index
    %571 = vector.load %arg2[%570, %c0_307, %c0_308] : memref<8x2x1xf32, #tpu.memory_space<vmem>>, vector<1x2x1xf32>
    %572 = vector.shape_cast %571 : vector<1x2x1xf32> to vector<2x1xf32>
    %573 = vector.shape_cast %572 : vector<2x1xf32> to vector<2x1xf32>
    %574 = vector.broadcast %573 : vector<2x1xf32> to vector<2x32xf32>
    %cst_309 = arith.constant 0.000000e+00 : f32
    %575 = vector.broadcast %cst_309 : f32 to vector<2x32xf32>
    %576 = arith.cmpf ogt, %574, %575 : vector<2x32xf32>
    %577 = arith.select %576, %569, %536 : vector<2x32xi1>, vector<2x32xf32>
    %c0_310 = arith.constant 0 : index
    %c0_311 = arith.constant 0 : index
    %578 = vector.load %arg17[%c0_310, %c0_311] : memref<2x32xf32, #tpu.memory_space<vmem>>, vector<2x32xf32>
    tpu.vector_store %arg17[%c0_310, %c0_311], %577 {strides = array<i32>} : memref<2x32xf32, #tpu.memory_space<vmem>>, vector<2x32xf32>,
    %579 = arith.truncf %577 : vector<2x32xf32> to vector<2x32xbf16>
    %580 = arith.index_cast %c4_i32 : i32 to index
    %c0_312 = arith.constant 0 : index
    %c0_313 = arith.constant 0 : index
    %581 = vector.load %arg11[%580, %c0_312, %c0_313] : memref<8x2x32xbf16, #tpu.memory_space<vmem>>, vector<1x2x32xbf16>
    %582 = vector.shape_cast %581 : vector<1x2x32xbf16> to vector<2x32xbf16>
    %583 = vector.shape_cast %579 : vector<2x32xbf16> to vector<1x2x32xbf16>
    tpu.vector_store %arg11[%580, %c0_312, %c0_313], %583 {strides = array<i32>} : memref<8x2x32xbf16, #tpu.memory_space<vmem>>, vector<1x2x32xbf16>,
    %c7_i32_314 = arith.constant 7 : i32
    %584 = arith.subi %c7_i32_314, %c4_i32 : i32
    %c0_315 = arith.constant 0 : index
    %c0_316 = arith.constant 0 : index
    %585 = vector.load %arg18[%c0_315, %c0_316] : memref<2x32xf32, #tpu.memory_space<vmem>>, vector<2x32xf32>
    %586 = arith.index_cast %584 : i32 to index
    %c0_317 = arith.constant 0 : index
    %c0_318 = arith.constant 0 : index
    %587 = vector.load %arg16[%586, %c0_317, %c0_318] : memref<8x2x96xf32, #tpu.memory_space<vmem>>, vector<1x2x96xf32>
    %588 = vector.shape_cast %587 : vector<1x2x96xf32> to vector<2x96xf32>
    %589 = arith.truncf %585 : vector<2x32xf32> to vector<2x32xbf16>
    %c0_319 = arith.constant 0 : index
    %c0_320 = arith.constant 0 : index
    %590 = vector.load %arg8[%c0_319, %c0_320] : memref<32x96xbf16, #tpu.memory_space<vmem>>, vector<32x96xbf16>
    %cst_321 = arith.constant dense<0.000000e+00> : vector<2x96xf32>
    %591 = tpu.matmul %589, %590, %cst_321 {dimension_numbers = #tpu.dot_dimension_numbers<[1], [0], [0], [1], [0, 0, 1, 1], [], []>} : vector<2x32xbf16>, vector<32x96xbf16>, vector<2x96xf32> -> vector<2x96xf32>
    %592 = vector.extract_strided_slice %588 {offsets = [0, 0], sizes = [2, 32], strides = [1, 1]} : vector<2x96xf32> to vector<2x32xf32>
    %593 = vector.extract_strided_slice %591 {offsets = [0, 0], sizes = [2, 32], strides = [1, 1]} : vector<2x96xf32> to vector<2x32xf32>
    %594 = arith.addf %592, %593 : vector<2x32xf32>
    %595 = arith.negf %594 : vector<2x32xf32>
    %596 = math.exp %595 : vector<2x32xf32>
    %cst_322 = arith.constant 1.000000e+00 : f32
    %597 = vector.broadcast %cst_322 : f32 to vector<2x32xf32>
    %598 = arith.addf %597, %596 : vector<2x32xf32>
    %599 = arith.divf %597, %598 : vector<2x32xf32>
    %600 = vector.extract_strided_slice %588 {offsets = [0, 32], sizes = [2, 32], strides = [1, 1]} : vector<2x96xf32> to vector<2x32xf32>
    %601 = vector.extract_strided_slice %591 {offsets = [0, 32], sizes = [2, 32], strides = [1, 1]} : vector<2x96xf32> to vector<2x32xf32>
    %602 = arith.addf %600, %601 : vector<2x32xf32>
    %603 = arith.negf %602 : vector<2x32xf32>
    %604 = math.exp %603 : vector<2x32xf32>
    %cst_323 = arith.constant 1.000000e+00 : f32
    %605 = vector.broadcast %cst_323 : f32 to vector<2x32xf32>
    %606 = arith.addf %605, %604 : vector<2x32xf32>
    %607 = arith.divf %605, %606 : vector<2x32xf32>
    %608 = vector.extract_strided_slice %588 {offsets = [0, 64], sizes = [2, 32], strides = [1, 1]} : vector<2x96xf32> to vector<2x32xf32>
    %609 = vector.extract_strided_slice %591 {offsets = [0, 64], sizes = [2, 32], strides = [1, 1]} : vector<2x96xf32> to vector<2x32xf32>
    %c0_324 = arith.constant 0 : index
    %c0_325 = arith.constant 0 : index
    %610 = vector.load %arg10[%c0_324, %c0_325] : memref<1x32xf32, #tpu.memory_space<vmem>>, vector<1x32xf32>
    %611 = vector.broadcast %610 : vector<1x32xf32> to vector<2x32xf32>
    %612 = arith.addf %609, %611 : vector<2x32xf32>
    %613 = arith.mulf %599, %612 : vector<2x32xf32>
    %614 = arith.addf %608, %613 : vector<2x32xf32>
    %615 = math.tanh %614 : vector<2x32xf32>
    %616 = arith.subf %585, %615 : vector<2x32xf32>
    %617 = arith.mulf %607, %616 : vector<2x32xf32>
    %618 = arith.addf %615, %617 : vector<2x32xf32>
    %619 = arith.index_cast %584 : i32 to index
    %c0_326 = arith.constant 0 : index
    %c0_327 = arith.constant 0 : index
    %620 = vector.load %arg2[%619, %c0_326, %c0_327] : memref<8x2x1xf32, #tpu.memory_space<vmem>>, vector<1x2x1xf32>
    %621 = vector.shape_cast %620 : vector<1x2x1xf32> to vector<2x1xf32>
    %622 = vector.shape_cast %621 : vector<2x1xf32> to vector<2x1xf32>
    %623 = vector.broadcast %622 : vector<2x1xf32> to vector<2x32xf32>
    %cst_328 = arith.constant 0.000000e+00 : f32
    %624 = vector.broadcast %cst_328 : f32 to vector<2x32xf32>
    %625 = arith.cmpf ogt, %623, %624 : vector<2x32xf32>
    %626 = arith.select %625, %618, %585 : vector<2x32xi1>, vector<2x32xf32>
    %c0_329 = arith.constant 0 : index
    %c0_330 = arith.constant 0 : index
    %627 = vector.load %arg18[%c0_329, %c0_330] : memref<2x32xf32, #tpu.memory_space<vmem>>, vector<2x32xf32>
    tpu.vector_store %arg18[%c0_329, %c0_330], %626 {strides = array<i32>} : memref<2x32xf32, #tpu.memory_space<vmem>>, vector<2x32xf32>,
    %628 = arith.truncf %626 : vector<2x32xf32> to vector<2x32xbf16>
    %629 = arith.index_cast %584 : i32 to index
    %c0_331 = arith.constant 0 : index
    %c0_332 = arith.constant 0 : index
    %630 = vector.load %arg12[%629, %c0_331, %c0_332] : memref<8x2x32xbf16, #tpu.memory_space<vmem>>, vector<1x2x32xbf16>
    %631 = vector.shape_cast %630 : vector<1x2x32xbf16> to vector<2x32xbf16>
    %632 = vector.shape_cast %628 : vector<2x32xbf16> to vector<1x2x32xbf16>
    tpu.vector_store %arg12[%629, %c0_331, %c0_332], %632 {strides = array<i32>} : memref<8x2x32xbf16, #tpu.memory_space<vmem>>, vector<1x2x32xbf16>,
    %c5_i32 = arith.constant 5 : i32
    %c0_333 = arith.constant 0 : index
    %c0_334 = arith.constant 0 : index
    %633 = vector.load %arg17[%c0_333, %c0_334] : memref<2x32xf32, #tpu.memory_space<vmem>>, vector<2x32xf32>
    %634 = arith.index_cast %c5_i32 : i32 to index
    %c0_335 = arith.constant 0 : index
    %c0_336 = arith.constant 0 : index
    %635 = vector.load %arg15[%634, %c0_335, %c0_336] : memref<8x2x96xf32, #tpu.memory_space<vmem>>, vector<1x2x96xf32>
    %636 = vector.shape_cast %635 : vector<1x2x96xf32> to vector<2x96xf32>
    %637 = arith.truncf %633 : vector<2x32xf32> to vector<2x32xbf16>
    %c0_337 = arith.constant 0 : index
    %c0_338 = arith.constant 0 : index
    %638 = vector.load %arg4[%c0_337, %c0_338] : memref<32x96xbf16, #tpu.memory_space<vmem>>, vector<32x96xbf16>
    %cst_339 = arith.constant dense<0.000000e+00> : vector<2x96xf32>
    %639 = tpu.matmul %637, %638, %cst_339 {dimension_numbers = #tpu.dot_dimension_numbers<[1], [0], [0], [1], [0, 0, 1, 1], [], []>} : vector<2x32xbf16>, vector<32x96xbf16>, vector<2x96xf32> -> vector<2x96xf32>
    %640 = vector.extract_strided_slice %636 {offsets = [0, 0], sizes = [2, 32], strides = [1, 1]} : vector<2x96xf32> to vector<2x32xf32>
    %641 = vector.extract_strided_slice %639 {offsets = [0, 0], sizes = [2, 32], strides = [1, 1]} : vector<2x96xf32> to vector<2x32xf32>
    %642 = arith.addf %640, %641 : vector<2x32xf32>
    %643 = arith.negf %642 : vector<2x32xf32>
    %644 = math.exp %643 : vector<2x32xf32>
    %cst_340 = arith.constant 1.000000e+00 : f32
    %645 = vector.broadcast %cst_340 : f32 to vector<2x32xf32>
    %646 = arith.addf %645, %644 : vector<2x32xf32>
    %647 = arith.divf %645, %646 : vector<2x32xf32>
    %648 = vector.extract_strided_slice %636 {offsets = [0, 32], sizes = [2, 32], strides = [1, 1]} : vector<2x96xf32> to vector<2x32xf32>
    %649 = vector.extract_strided_slice %639 {offsets = [0, 32], sizes = [2, 32], strides = [1, 1]} : vector<2x96xf32> to vector<2x32xf32>
    %650 = arith.addf %648, %649 : vector<2x32xf32>
    %651 = arith.negf %650 : vector<2x32xf32>
    %652 = math.exp %651 : vector<2x32xf32>
    %cst_341 = arith.constant 1.000000e+00 : f32
    %653 = vector.broadcast %cst_341 : f32 to vector<2x32xf32>
    %654 = arith.addf %653, %652 : vector<2x32xf32>
    %655 = arith.divf %653, %654 : vector<2x32xf32>
    %656 = vector.extract_strided_slice %636 {offsets = [0, 64], sizes = [2, 32], strides = [1, 1]} : vector<2x96xf32> to vector<2x32xf32>
    %657 = vector.extract_strided_slice %639 {offsets = [0, 64], sizes = [2, 32], strides = [1, 1]} : vector<2x96xf32> to vector<2x32xf32>
    %c0_342 = arith.constant 0 : index
    %c0_343 = arith.constant 0 : index
    %658 = vector.load %arg6[%c0_342, %c0_343] : memref<1x32xf32, #tpu.memory_space<vmem>>, vector<1x32xf32>
    %659 = vector.broadcast %658 : vector<1x32xf32> to vector<2x32xf32>
    %660 = arith.addf %657, %659 : vector<2x32xf32>
    %661 = arith.mulf %647, %660 : vector<2x32xf32>
    %662 = arith.addf %656, %661 : vector<2x32xf32>
    %663 = math.tanh %662 : vector<2x32xf32>
    %664 = arith.subf %633, %663 : vector<2x32xf32>
    %665 = arith.mulf %655, %664 : vector<2x32xf32>
    %666 = arith.addf %663, %665 : vector<2x32xf32>
    %667 = arith.index_cast %c5_i32 : i32 to index
    %c0_344 = arith.constant 0 : index
    %c0_345 = arith.constant 0 : index
    %668 = vector.load %arg2[%667, %c0_344, %c0_345] : memref<8x2x1xf32, #tpu.memory_space<vmem>>, vector<1x2x1xf32>
    %669 = vector.shape_cast %668 : vector<1x2x1xf32> to vector<2x1xf32>
    %670 = vector.shape_cast %669 : vector<2x1xf32> to vector<2x1xf32>
    %671 = vector.broadcast %670 : vector<2x1xf32> to vector<2x32xf32>
    %cst_346 = arith.constant 0.000000e+00 : f32
    %672 = vector.broadcast %cst_346 : f32 to vector<2x32xf32>
    %673 = arith.cmpf ogt, %671, %672 : vector<2x32xf32>
    %674 = arith.select %673, %666, %633 : vector<2x32xi1>, vector<2x32xf32>
    %c0_347 = arith.constant 0 : index
    %c0_348 = arith.constant 0 : index
    %675 = vector.load %arg17[%c0_347, %c0_348] : memref<2x32xf32, #tpu.memory_space<vmem>>, vector<2x32xf32>
    tpu.vector_store %arg17[%c0_347, %c0_348], %674 {strides = array<i32>} : memref<2x32xf32, #tpu.memory_space<vmem>>, vector<2x32xf32>,
    %676 = arith.truncf %674 : vector<2x32xf32> to vector<2x32xbf16>
    %677 = arith.index_cast %c5_i32 : i32 to index
    %c0_349 = arith.constant 0 : index
    %c0_350 = arith.constant 0 : index
    %678 = vector.load %arg11[%677, %c0_349, %c0_350] : memref<8x2x32xbf16, #tpu.memory_space<vmem>>, vector<1x2x32xbf16>
    %679 = vector.shape_cast %678 : vector<1x2x32xbf16> to vector<2x32xbf16>
    %680 = vector.shape_cast %676 : vector<2x32xbf16> to vector<1x2x32xbf16>
    tpu.vector_store %arg11[%677, %c0_349, %c0_350], %680 {strides = array<i32>} : memref<8x2x32xbf16, #tpu.memory_space<vmem>>, vector<1x2x32xbf16>,
    %c7_i32_351 = arith.constant 7 : i32
    %681 = arith.subi %c7_i32_351, %c5_i32 : i32
    %c0_352 = arith.constant 0 : index
    %c0_353 = arith.constant 0 : index
    %682 = vector.load %arg18[%c0_352, %c0_353] : memref<2x32xf32, #tpu.memory_space<vmem>>, vector<2x32xf32>
    %683 = arith.index_cast %681 : i32 to index
    %c0_354 = arith.constant 0 : index
    %c0_355 = arith.constant 0 : index
    %684 = vector.load %arg16[%683, %c0_354, %c0_355] : memref<8x2x96xf32, #tpu.memory_space<vmem>>, vector<1x2x96xf32>
    %685 = vector.shape_cast %684 : vector<1x2x96xf32> to vector<2x96xf32>
    %686 = arith.truncf %682 : vector<2x32xf32> to vector<2x32xbf16>
    %c0_356 = arith.constant 0 : index
    %c0_357 = arith.constant 0 : index
    %687 = vector.load %arg8[%c0_356, %c0_357] : memref<32x96xbf16, #tpu.memory_space<vmem>>, vector<32x96xbf16>
    %cst_358 = arith.constant dense<0.000000e+00> : vector<2x96xf32>
    %688 = tpu.matmul %686, %687, %cst_358 {dimension_numbers = #tpu.dot_dimension_numbers<[1], [0], [0], [1], [0, 0, 1, 1], [], []>} : vector<2x32xbf16>, vector<32x96xbf16>, vector<2x96xf32> -> vector<2x96xf32>
    %689 = vector.extract_strided_slice %685 {offsets = [0, 0], sizes = [2, 32], strides = [1, 1]} : vector<2x96xf32> to vector<2x32xf32>
    %690 = vector.extract_strided_slice %688 {offsets = [0, 0], sizes = [2, 32], strides = [1, 1]} : vector<2x96xf32> to vector<2x32xf32>
    %691 = arith.addf %689, %690 : vector<2x32xf32>
    %692 = arith.negf %691 : vector<2x32xf32>
    %693 = math.exp %692 : vector<2x32xf32>
    %cst_359 = arith.constant 1.000000e+00 : f32
    %694 = vector.broadcast %cst_359 : f32 to vector<2x32xf32>
    %695 = arith.addf %694, %693 : vector<2x32xf32>
    %696 = arith.divf %694, %695 : vector<2x32xf32>
    %697 = vector.extract_strided_slice %685 {offsets = [0, 32], sizes = [2, 32], strides = [1, 1]} : vector<2x96xf32> to vector<2x32xf32>
    %698 = vector.extract_strided_slice %688 {offsets = [0, 32], sizes = [2, 32], strides = [1, 1]} : vector<2x96xf32> to vector<2x32xf32>
    %699 = arith.addf %697, %698 : vector<2x32xf32>
    %700 = arith.negf %699 : vector<2x32xf32>
    %701 = math.exp %700 : vector<2x32xf32>
    %cst_360 = arith.constant 1.000000e+00 : f32
    %702 = vector.broadcast %cst_360 : f32 to vector<2x32xf32>
    %703 = arith.addf %702, %701 : vector<2x32xf32>
    %704 = arith.divf %702, %703 : vector<2x32xf32>
    %705 = vector.extract_strided_slice %685 {offsets = [0, 64], sizes = [2, 32], strides = [1, 1]} : vector<2x96xf32> to vector<2x32xf32>
    %706 = vector.extract_strided_slice %688 {offsets = [0, 64], sizes = [2, 32], strides = [1, 1]} : vector<2x96xf32> to vector<2x32xf32>
    %c0_361 = arith.constant 0 : index
    %c0_362 = arith.constant 0 : index
    %707 = vector.load %arg10[%c0_361, %c0_362] : memref<1x32xf32, #tpu.memory_space<vmem>>, vector<1x32xf32>
    %708 = vector.broadcast %707 : vector<1x32xf32> to vector<2x32xf32>
    %709 = arith.addf %706, %708 : vector<2x32xf32>
    %710 = arith.mulf %696, %709 : vector<2x32xf32>
    %711 = arith.addf %705, %710 : vector<2x32xf32>
    %712 = math.tanh %711 : vector<2x32xf32>
    %713 = arith.subf %682, %712 : vector<2x32xf32>
    %714 = arith.mulf %704, %713 : vector<2x32xf32>
    %715 = arith.addf %712, %714 : vector<2x32xf32>
    %716 = arith.index_cast %681 : i32 to index
    %c0_363 = arith.constant 0 : index
    %c0_364 = arith.constant 0 : index
    %717 = vector.load %arg2[%716, %c0_363, %c0_364] : memref<8x2x1xf32, #tpu.memory_space<vmem>>, vector<1x2x1xf32>
    %718 = vector.shape_cast %717 : vector<1x2x1xf32> to vector<2x1xf32>
    %719 = vector.shape_cast %718 : vector<2x1xf32> to vector<2x1xf32>
    %720 = vector.broadcast %719 : vector<2x1xf32> to vector<2x32xf32>
    %cst_365 = arith.constant 0.000000e+00 : f32
    %721 = vector.broadcast %cst_365 : f32 to vector<2x32xf32>
    %722 = arith.cmpf ogt, %720, %721 : vector<2x32xf32>
    %723 = arith.select %722, %715, %682 : vector<2x32xi1>, vector<2x32xf32>
    %c0_366 = arith.constant 0 : index
    %c0_367 = arith.constant 0 : index
    %724 = vector.load %arg18[%c0_366, %c0_367] : memref<2x32xf32, #tpu.memory_space<vmem>>, vector<2x32xf32>
    tpu.vector_store %arg18[%c0_366, %c0_367], %723 {strides = array<i32>} : memref<2x32xf32, #tpu.memory_space<vmem>>, vector<2x32xf32>,
    %725 = arith.truncf %723 : vector<2x32xf32> to vector<2x32xbf16>
    %726 = arith.index_cast %681 : i32 to index
    %c0_368 = arith.constant 0 : index
    %c0_369 = arith.constant 0 : index
    %727 = vector.load %arg12[%726, %c0_368, %c0_369] : memref<8x2x32xbf16, #tpu.memory_space<vmem>>, vector<1x2x32xbf16>
    %728 = vector.shape_cast %727 : vector<1x2x32xbf16> to vector<2x32xbf16>
    %729 = vector.shape_cast %725 : vector<2x32xbf16> to vector<1x2x32xbf16>
    tpu.vector_store %arg12[%726, %c0_368, %c0_369], %729 {strides = array<i32>} : memref<8x2x32xbf16, #tpu.memory_space<vmem>>, vector<1x2x32xbf16>,
    %c6_i32 = arith.constant 6 : i32
    %c0_370 = arith.constant 0 : index
    %c0_371 = arith.constant 0 : index
    %730 = vector.load %arg17[%c0_370, %c0_371] : memref<2x32xf32, #tpu.memory_space<vmem>>, vector<2x32xf32>
    %731 = arith.index_cast %c6_i32 : i32 to index
    %c0_372 = arith.constant 0 : index
    %c0_373 = arith.constant 0 : index
    %732 = vector.load %arg15[%731, %c0_372, %c0_373] : memref<8x2x96xf32, #tpu.memory_space<vmem>>, vector<1x2x96xf32>
    %733 = vector.shape_cast %732 : vector<1x2x96xf32> to vector<2x96xf32>
    %734 = arith.truncf %730 : vector<2x32xf32> to vector<2x32xbf16>
    %c0_374 = arith.constant 0 : index
    %c0_375 = arith.constant 0 : index
    %735 = vector.load %arg4[%c0_374, %c0_375] : memref<32x96xbf16, #tpu.memory_space<vmem>>, vector<32x96xbf16>
    %cst_376 = arith.constant dense<0.000000e+00> : vector<2x96xf32>
    %736 = tpu.matmul %734, %735, %cst_376 {dimension_numbers = #tpu.dot_dimension_numbers<[1], [0], [0], [1], [0, 0, 1, 1], [], []>} : vector<2x32xbf16>, vector<32x96xbf16>, vector<2x96xf32> -> vector<2x96xf32>
    %737 = vector.extract_strided_slice %733 {offsets = [0, 0], sizes = [2, 32], strides = [1, 1]} : vector<2x96xf32> to vector<2x32xf32>
    %738 = vector.extract_strided_slice %736 {offsets = [0, 0], sizes = [2, 32], strides = [1, 1]} : vector<2x96xf32> to vector<2x32xf32>
    %739 = arith.addf %737, %738 : vector<2x32xf32>
    %740 = arith.negf %739 : vector<2x32xf32>
    %741 = math.exp %740 : vector<2x32xf32>
    %cst_377 = arith.constant 1.000000e+00 : f32
    %742 = vector.broadcast %cst_377 : f32 to vector<2x32xf32>
    %743 = arith.addf %742, %741 : vector<2x32xf32>
    %744 = arith.divf %742, %743 : vector<2x32xf32>
    %745 = vector.extract_strided_slice %733 {offsets = [0, 32], sizes = [2, 32], strides = [1, 1]} : vector<2x96xf32> to vector<2x32xf32>
    %746 = vector.extract_strided_slice %736 {offsets = [0, 32], sizes = [2, 32], strides = [1, 1]} : vector<2x96xf32> to vector<2x32xf32>
    %747 = arith.addf %745, %746 : vector<2x32xf32>
    %748 = arith.negf %747 : vector<2x32xf32>
    %749 = math.exp %748 : vector<2x32xf32>
    %cst_378 = arith.constant 1.000000e+00 : f32
    %750 = vector.broadcast %cst_378 : f32 to vector<2x32xf32>
    %751 = arith.addf %750, %749 : vector<2x32xf32>
    %752 = arith.divf %750, %751 : vector<2x32xf32>
    %753 = vector.extract_strided_slice %733 {offsets = [0, 64], sizes = [2, 32], strides = [1, 1]} : vector<2x96xf32> to vector<2x32xf32>
    %754 = vector.extract_strided_slice %736 {offsets = [0, 64], sizes = [2, 32], strides = [1, 1]} : vector<2x96xf32> to vector<2x32xf32>
    %c0_379 = arith.constant 0 : index
    %c0_380 = arith.constant 0 : index
    %755 = vector.load %arg6[%c0_379, %c0_380] : memref<1x32xf32, #tpu.memory_space<vmem>>, vector<1x32xf32>
    %756 = vector.broadcast %755 : vector<1x32xf32> to vector<2x32xf32>
    %757 = arith.addf %754, %756 : vector<2x32xf32>
    %758 = arith.mulf %744, %757 : vector<2x32xf32>
    %759 = arith.addf %753, %758 : vector<2x32xf32>
    %760 = math.tanh %759 : vector<2x32xf32>
    %761 = arith.subf %730, %760 : vector<2x32xf32>
    %762 = arith.mulf %752, %761 : vector<2x32xf32>
    %763 = arith.addf %760, %762 : vector<2x32xf32>
    %764 = arith.index_cast %c6_i32 : i32 to index
    %c0_381 = arith.constant 0 : index
    %c0_382 = arith.constant 0 : index
    %765 = vector.load %arg2[%764, %c0_381, %c0_382] : memref<8x2x1xf32, #tpu.memory_space<vmem>>, vector<1x2x1xf32>
    %766 = vector.shape_cast %765 : vector<1x2x1xf32> to vector<2x1xf32>
    %767 = vector.shape_cast %766 : vector<2x1xf32> to vector<2x1xf32>
    %768 = vector.broadcast %767 : vector<2x1xf32> to vector<2x32xf32>
    %cst_383 = arith.constant 0.000000e+00 : f32
    %769 = vector.broadcast %cst_383 : f32 to vector<2x32xf32>
    %770 = arith.cmpf ogt, %768, %769 : vector<2x32xf32>
    %771 = arith.select %770, %763, %730 : vector<2x32xi1>, vector<2x32xf32>
    %c0_384 = arith.constant 0 : index
    %c0_385 = arith.constant 0 : index
    %772 = vector.load %arg17[%c0_384, %c0_385] : memref<2x32xf32, #tpu.memory_space<vmem>>, vector<2x32xf32>
    tpu.vector_store %arg17[%c0_384, %c0_385], %771 {strides = array<i32>} : memref<2x32xf32, #tpu.memory_space<vmem>>, vector<2x32xf32>,
    %773 = arith.truncf %771 : vector<2x32xf32> to vector<2x32xbf16>
    %774 = arith.index_cast %c6_i32 : i32 to index
    %c0_386 = arith.constant 0 : index
    %c0_387 = arith.constant 0 : index
    %775 = vector.load %arg11[%774, %c0_386, %c0_387] : memref<8x2x32xbf16, #tpu.memory_space<vmem>>, vector<1x2x32xbf16>
    %776 = vector.shape_cast %775 : vector<1x2x32xbf16> to vector<2x32xbf16>
    %777 = vector.shape_cast %773 : vector<2x32xbf16> to vector<1x2x32xbf16>
    tpu.vector_store %arg11[%774, %c0_386, %c0_387], %777 {strides = array<i32>} : memref<8x2x32xbf16, #tpu.memory_space<vmem>>, vector<1x2x32xbf16>,
    %c7_i32_388 = arith.constant 7 : i32
    %778 = arith.subi %c7_i32_388, %c6_i32 : i32
    %c0_389 = arith.constant 0 : index
    %c0_390 = arith.constant 0 : index
    %779 = vector.load %arg18[%c0_389, %c0_390] : memref<2x32xf32, #tpu.memory_space<vmem>>, vector<2x32xf32>
    %780 = arith.index_cast %778 : i32 to index
    %c0_391 = arith.constant 0 : index
    %c0_392 = arith.constant 0 : index
    %781 = vector.load %arg16[%780, %c0_391, %c0_392] : memref<8x2x96xf32, #tpu.memory_space<vmem>>, vector<1x2x96xf32>
    %782 = vector.shape_cast %781 : vector<1x2x96xf32> to vector<2x96xf32>
    %783 = arith.truncf %779 : vector<2x32xf32> to vector<2x32xbf16>
    %c0_393 = arith.constant 0 : index
    %c0_394 = arith.constant 0 : index
    %784 = vector.load %arg8[%c0_393, %c0_394] : memref<32x96xbf16, #tpu.memory_space<vmem>>, vector<32x96xbf16>
    %cst_395 = arith.constant dense<0.000000e+00> : vector<2x96xf32>
    %785 = tpu.matmul %783, %784, %cst_395 {dimension_numbers = #tpu.dot_dimension_numbers<[1], [0], [0], [1], [0, 0, 1, 1], [], []>} : vector<2x32xbf16>, vector<32x96xbf16>, vector<2x96xf32> -> vector<2x96xf32>
    %786 = vector.extract_strided_slice %782 {offsets = [0, 0], sizes = [2, 32], strides = [1, 1]} : vector<2x96xf32> to vector<2x32xf32>
    %787 = vector.extract_strided_slice %785 {offsets = [0, 0], sizes = [2, 32], strides = [1, 1]} : vector<2x96xf32> to vector<2x32xf32>
    %788 = arith.addf %786, %787 : vector<2x32xf32>
    %789 = arith.negf %788 : vector<2x32xf32>
    %790 = math.exp %789 : vector<2x32xf32>
    %cst_396 = arith.constant 1.000000e+00 : f32
    %791 = vector.broadcast %cst_396 : f32 to vector<2x32xf32>
    %792 = arith.addf %791, %790 : vector<2x32xf32>
    %793 = arith.divf %791, %792 : vector<2x32xf32>
    %794 = vector.extract_strided_slice %782 {offsets = [0, 32], sizes = [2, 32], strides = [1, 1]} : vector<2x96xf32> to vector<2x32xf32>
    %795 = vector.extract_strided_slice %785 {offsets = [0, 32], sizes = [2, 32], strides = [1, 1]} : vector<2x96xf32> to vector<2x32xf32>
    %796 = arith.addf %794, %795 : vector<2x32xf32>
    %797 = arith.negf %796 : vector<2x32xf32>
    %798 = math.exp %797 : vector<2x32xf32>
    %cst_397 = arith.constant 1.000000e+00 : f32
    %799 = vector.broadcast %cst_397 : f32 to vector<2x32xf32>
    %800 = arith.addf %799, %798 : vector<2x32xf32>
    %801 = arith.divf %799, %800 : vector<2x32xf32>
    %802 = vector.extract_strided_slice %782 {offsets = [0, 64], sizes = [2, 32], strides = [1, 1]} : vector<2x96xf32> to vector<2x32xf32>
    %803 = vector.extract_strided_slice %785 {offsets = [0, 64], sizes = [2, 32], strides = [1, 1]} : vector<2x96xf32> to vector<2x32xf32>
    %c0_398 = arith.constant 0 : index
    %c0_399 = arith.constant 0 : index
    %804 = vector.load %arg10[%c0_398, %c0_399] : memref<1x32xf32, #tpu.memory_space<vmem>>, vector<1x32xf32>
    %805 = vector.broadcast %804 : vector<1x32xf32> to vector<2x32xf32>
    %806 = arith.addf %803, %805 : vector<2x32xf32>
    %807 = arith.mulf %793, %806 : vector<2x32xf32>
    %808 = arith.addf %802, %807 : vector<2x32xf32>
    %809 = math.tanh %808 : vector<2x32xf32>
    %810 = arith.subf %779, %809 : vector<2x32xf32>
    %811 = arith.mulf %801, %810 : vector<2x32xf32>
    %812 = arith.addf %809, %811 : vector<2x32xf32>
    %813 = arith.index_cast %778 : i32 to index
    %c0_400 = arith.constant 0 : index
    %c0_401 = arith.constant 0 : index
    %814 = vector.load %arg2[%813, %c0_400, %c0_401] : memref<8x2x1xf32, #tpu.memory_space<vmem>>, vector<1x2x1xf32>
    %815 = vector.shape_cast %814 : vector<1x2x1xf32> to vector<2x1xf32>
    %816 = vector.shape_cast %815 : vector<2x1xf32> to vector<2x1xf32>
    %817 = vector.broadcast %816 : vector<2x1xf32> to vector<2x32xf32>
    %cst_402 = arith.constant 0.000000e+00 : f32
    %818 = vector.broadcast %cst_402 : f32 to vector<2x32xf32>
    %819 = arith.cmpf ogt, %817, %818 : vector<2x32xf32>
    %820 = arith.select %819, %812, %779 : vector<2x32xi1>, vector<2x32xf32>
    %c0_403 = arith.constant 0 : index
    %c0_404 = arith.constant 0 : index
    %821 = vector.load %arg18[%c0_403, %c0_404] : memref<2x32xf32, #tpu.memory_space<vmem>>, vector<2x32xf32>
    tpu.vector_store %arg18[%c0_403, %c0_404], %820 {strides = array<i32>} : memref<2x32xf32, #tpu.memory_space<vmem>>, vector<2x32xf32>,
    %822 = arith.truncf %820 : vector<2x32xf32> to vector<2x32xbf16>
    %823 = arith.index_cast %778 : i32 to index
    %c0_405 = arith.constant 0 : index
    %c0_406 = arith.constant 0 : index
    %824 = vector.load %arg12[%823, %c0_405, %c0_406] : memref<8x2x32xbf16, #tpu.memory_space<vmem>>, vector<1x2x32xbf16>
    %825 = vector.shape_cast %824 : vector<1x2x32xbf16> to vector<2x32xbf16>
    %826 = vector.shape_cast %822 : vector<2x32xbf16> to vector<1x2x32xbf16>
    tpu.vector_store %arg12[%823, %c0_405, %c0_406], %826 {strides = array<i32>} : memref<8x2x32xbf16, #tpu.memory_space<vmem>>, vector<1x2x32xbf16>,
    %c7_i32_407 = arith.constant 7 : i32
    %c0_408 = arith.constant 0 : index
    %c0_409 = arith.constant 0 : index
    %827 = vector.load %arg17[%c0_408, %c0_409] : memref<2x32xf32, #tpu.memory_space<vmem>>, vector<2x32xf32>
    %828 = arith.index_cast %c7_i32_407 : i32 to index
    %c0_410 = arith.constant 0 : index
    %c0_411 = arith.constant 0 : index
    %829 = vector.load %arg15[%828, %c0_410, %c0_411] : memref<8x2x96xf32, #tpu.memory_space<vmem>>, vector<1x2x96xf32>
    %830 = vector.shape_cast %829 : vector<1x2x96xf32> to vector<2x96xf32>
    %831 = arith.truncf %827 : vector<2x32xf32> to vector<2x32xbf16>
    %c0_412 = arith.constant 0 : index
    %c0_413 = arith.constant 0 : index
    %832 = vector.load %arg4[%c0_412, %c0_413] : memref<32x96xbf16, #tpu.memory_space<vmem>>, vector<32x96xbf16>
    %cst_414 = arith.constant dense<0.000000e+00> : vector<2x96xf32>
    %833 = tpu.matmul %831, %832, %cst_414 {dimension_numbers = #tpu.dot_dimension_numbers<[1], [0], [0], [1], [0, 0, 1, 1], [], []>} : vector<2x32xbf16>, vector<32x96xbf16>, vector<2x96xf32> -> vector<2x96xf32>
    %834 = vector.extract_strided_slice %830 {offsets = [0, 0], sizes = [2, 32], strides = [1, 1]} : vector<2x96xf32> to vector<2x32xf32>
    %835 = vector.extract_strided_slice %833 {offsets = [0, 0], sizes = [2, 32], strides = [1, 1]} : vector<2x96xf32> to vector<2x32xf32>
    %836 = arith.addf %834, %835 : vector<2x32xf32>
    %837 = arith.negf %836 : vector<2x32xf32>
    %838 = math.exp %837 : vector<2x32xf32>
    %cst_415 = arith.constant 1.000000e+00 : f32
    %839 = vector.broadcast %cst_415 : f32 to vector<2x32xf32>
    %840 = arith.addf %839, %838 : vector<2x32xf32>
    %841 = arith.divf %839, %840 : vector<2x32xf32>
    %842 = vector.extract_strided_slice %830 {offsets = [0, 32], sizes = [2, 32], strides = [1, 1]} : vector<2x96xf32> to vector<2x32xf32>
    %843 = vector.extract_strided_slice %833 {offsets = [0, 32], sizes = [2, 32], strides = [1, 1]} : vector<2x96xf32> to vector<2x32xf32>
    %844 = arith.addf %842, %843 : vector<2x32xf32>
    %845 = arith.negf %844 : vector<2x32xf32>
    %846 = math.exp %845 : vector<2x32xf32>
    %cst_416 = arith.constant 1.000000e+00 : f32
    %847 = vector.broadcast %cst_416 : f32 to vector<2x32xf32>
    %848 = arith.addf %847, %846 : vector<2x32xf32>
    %849 = arith.divf %847, %848 : vector<2x32xf32>
    %850 = vector.extract_strided_slice %830 {offsets = [0, 64], sizes = [2, 32], strides = [1, 1]} : vector<2x96xf32> to vector<2x32xf32>
    %851 = vector.extract_strided_slice %833 {offsets = [0, 64], sizes = [2, 32], strides = [1, 1]} : vector<2x96xf32> to vector<2x32xf32>
    %c0_417 = arith.constant 0 : index
    %c0_418 = arith.constant 0 : index
    %852 = vector.load %arg6[%c0_417, %c0_418] : memref<1x32xf32, #tpu.memory_space<vmem>>, vector<1x32xf32>
    %853 = vector.broadcast %852 : vector<1x32xf32> to vector<2x32xf32>
    %854 = arith.addf %851, %853 : vector<2x32xf32>
    %855 = arith.mulf %841, %854 : vector<2x32xf32>
    %856 = arith.addf %850, %855 : vector<2x32xf32>
    %857 = math.tanh %856 : vector<2x32xf32>
    %858 = arith.subf %827, %857 : vector<2x32xf32>
    %859 = arith.mulf %849, %858 : vector<2x32xf32>
    %860 = arith.addf %857, %859 : vector<2x32xf32>
    %861 = arith.index_cast %c7_i32_407 : i32 to index
    %c0_419 = arith.constant 0 : index
    %c0_420 = arith.constant 0 : index
    %862 = vector.load %arg2[%861, %c0_419, %c0_420] : memref<8x2x1xf32, #tpu.memory_space<vmem>>, vector<1x2x1xf32>
    %863 = vector.shape_cast %862 : vector<1x2x1xf32> to vector<2x1xf32>
    %864 = vector.shape_cast %863 : vector<2x1xf32> to vector<2x1xf32>
    %865 = vector.broadcast %864 : vector<2x1xf32> to vector<2x32xf32>
    %cst_421 = arith.constant 0.000000e+00 : f32
    %866 = vector.broadcast %cst_421 : f32 to vector<2x32xf32>
    %867 = arith.cmpf ogt, %865, %866 : vector<2x32xf32>
    %868 = arith.select %867, %860, %827 : vector<2x32xi1>, vector<2x32xf32>
    %c0_422 = arith.constant 0 : index
    %c0_423 = arith.constant 0 : index
    %869 = vector.load %arg17[%c0_422, %c0_423] : memref<2x32xf32, #tpu.memory_space<vmem>>, vector<2x32xf32>
    tpu.vector_store %arg17[%c0_422, %c0_423], %868 {strides = array<i32>} : memref<2x32xf32, #tpu.memory_space<vmem>>, vector<2x32xf32>,
    %870 = arith.truncf %868 : vector<2x32xf32> to vector<2x32xbf16>
    %871 = arith.index_cast %c7_i32_407 : i32 to index
    %c0_424 = arith.constant 0 : index
    %c0_425 = arith.constant 0 : index
    %872 = vector.load %arg11[%871, %c0_424, %c0_425] : memref<8x2x32xbf16, #tpu.memory_space<vmem>>, vector<1x2x32xbf16>
    %873 = vector.shape_cast %872 : vector<1x2x32xbf16> to vector<2x32xbf16>
    %874 = vector.shape_cast %870 : vector<2x32xbf16> to vector<1x2x32xbf16>
    tpu.vector_store %arg11[%871, %c0_424, %c0_425], %874 {strides = array<i32>} : memref<8x2x32xbf16, #tpu.memory_space<vmem>>, vector<1x2x32xbf16>,
    %c7_i32_426 = arith.constant 7 : i32
    %875 = arith.subi %c7_i32_426, %c7_i32_407 : i32
    %c0_427 = arith.constant 0 : index
    %c0_428 = arith.constant 0 : index
    %876 = vector.load %arg18[%c0_427, %c0_428] : memref<2x32xf32, #tpu.memory_space<vmem>>, vector<2x32xf32>
    %877 = arith.index_cast %875 : i32 to index
    %c0_429 = arith.constant 0 : index
    %c0_430 = arith.constant 0 : index
    %878 = vector.load %arg16[%877, %c0_429, %c0_430] : memref<8x2x96xf32, #tpu.memory_space<vmem>>, vector<1x2x96xf32>
    %879 = vector.shape_cast %878 : vector<1x2x96xf32> to vector<2x96xf32>
    %880 = arith.truncf %876 : vector<2x32xf32> to vector<2x32xbf16>
    %c0_431 = arith.constant 0 : index
    %c0_432 = arith.constant 0 : index
    %881 = vector.load %arg8[%c0_431, %c0_432] : memref<32x96xbf16, #tpu.memory_space<vmem>>, vector<32x96xbf16>
    %cst_433 = arith.constant dense<0.000000e+00> : vector<2x96xf32>
    %882 = tpu.matmul %880, %881, %cst_433 {dimension_numbers = #tpu.dot_dimension_numbers<[1], [0], [0], [1], [0, 0, 1, 1], [], []>} : vector<2x32xbf16>, vector<32x96xbf16>, vector<2x96xf32> -> vector<2x96xf32>
    %883 = vector.extract_strided_slice %879 {offsets = [0, 0], sizes = [2, 32], strides = [1, 1]} : vector<2x96xf32> to vector<2x32xf32>
    %884 = vector.extract_strided_slice %882 {offsets = [0, 0], sizes = [2, 32], strides = [1, 1]} : vector<2x96xf32> to vector<2x32xf32>
    %885 = arith.addf %883, %884 : vector<2x32xf32>
    %886 = arith.negf %885 : vector<2x32xf32>
    %887 = math.exp %886 : vector<2x32xf32>
    %cst_434 = arith.constant 1.000000e+00 : f32
    %888 = vector.broadcast %cst_434 : f32 to vector<2x32xf32>
    %889 = arith.addf %888, %887 : vector<2x32xf32>
    %890 = arith.divf %888, %889 : vector<2x32xf32>
    %891 = vector.extract_strided_slice %879 {offsets = [0, 32], sizes = [2, 32], strides = [1, 1]} : vector<2x96xf32> to vector<2x32xf32>
    %892 = vector.extract_strided_slice %882 {offsets = [0, 32], sizes = [2, 32], strides = [1, 1]} : vector<2x96xf32> to vector<2x32xf32>
    %893 = arith.addf %891, %892 : vector<2x32xf32>
    %894 = arith.negf %893 : vector<2x32xf32>
    %895 = math.exp %894 : vector<2x32xf32>
    %cst_435 = arith.constant 1.000000e+00 : f32
    %896 = vector.broadcast %cst_435 : f32 to vector<2x32xf32>
    %897 = arith.addf %896, %895 : vector<2x32xf32>
    %898 = arith.divf %896, %897 : vector<2x32xf32>
    %899 = vector.extract_strided_slice %879 {offsets = [0, 64], sizes = [2, 32], strides = [1, 1]} : vector<2x96xf32> to vector<2x32xf32>
    %900 = vector.extract_strided_slice %882 {offsets = [0, 64], sizes = [2, 32], strides = [1, 1]} : vector<2x96xf32> to vector<2x32xf32>
    %c0_436 = arith.constant 0 : index
    %c0_437 = arith.constant 0 : index
    %901 = vector.load %arg10[%c0_436, %c0_437] : memref<1x32xf32, #tpu.memory_space<vmem>>, vector<1x32xf32>
    %902 = vector.broadcast %901 : vector<1x32xf32> to vector<2x32xf32>
    %903 = arith.addf %900, %902 : vector<2x32xf32>
    %904 = arith.mulf %890, %903 : vector<2x32xf32>
    %905 = arith.addf %899, %904 : vector<2x32xf32>
    %906 = math.tanh %905 : vector<2x32xf32>
    %907 = arith.subf %876, %906 : vector<2x32xf32>
    %908 = arith.mulf %898, %907 : vector<2x32xf32>
    %909 = arith.addf %906, %908 : vector<2x32xf32>
    %910 = arith.index_cast %875 : i32 to index
    %c0_438 = arith.constant 0 : index
    %c0_439 = arith.constant 0 : index
    %911 = vector.load %arg2[%910, %c0_438, %c0_439] : memref<8x2x1xf32, #tpu.memory_space<vmem>>, vector<1x2x1xf32>
    %912 = vector.shape_cast %911 : vector<1x2x1xf32> to vector<2x1xf32>
    %913 = vector.shape_cast %912 : vector<2x1xf32> to vector<2x1xf32>
    %914 = vector.broadcast %913 : vector<2x1xf32> to vector<2x32xf32>
    %cst_440 = arith.constant 0.000000e+00 : f32
    %915 = vector.broadcast %cst_440 : f32 to vector<2x32xf32>
    %916 = arith.cmpf ogt, %914, %915 : vector<2x32xf32>
    %917 = arith.select %916, %909, %876 : vector<2x32xi1>, vector<2x32xf32>
    %c0_441 = arith.constant 0 : index
    %c0_442 = arith.constant 0 : index
    %918 = vector.load %arg18[%c0_441, %c0_442] : memref<2x32xf32, #tpu.memory_space<vmem>>, vector<2x32xf32>
    tpu.vector_store %arg18[%c0_441, %c0_442], %917 {strides = array<i32>} : memref<2x32xf32, #tpu.memory_space<vmem>>, vector<2x32xf32>,
    %919 = arith.truncf %917 : vector<2x32xf32> to vector<2x32xbf16>
    %920 = arith.index_cast %875 : i32 to index
    %c0_443 = arith.constant 0 : index
    %c0_444 = arith.constant 0 : index
    %921 = vector.load %arg12[%920, %c0_443, %c0_444] : memref<8x2x32xbf16, #tpu.memory_space<vmem>>, vector<1x2x32xbf16>
    %922 = vector.shape_cast %921 : vector<1x2x32xbf16> to vector<2x32xbf16>
    %923 = vector.shape_cast %919 : vector<2x32xbf16> to vector<1x2x32xbf16>
    tpu.vector_store %arg12[%920, %c0_443, %c0_444], %923 {strides = array<i32>} : memref<8x2x32xbf16, #tpu.memory_space<vmem>>, vector<1x2x32xbf16>,
    %c8_i32 = arith.constant 8 : i32
    %c0_445 = arith.constant 0 : index
    %c0_446 = arith.constant 0 : index
    %924 = vector.load %arg17[%c0_445, %c0_446] : memref<2x32xf32, #tpu.memory_space<vmem>>, vector<2x32xf32>
    %c0_447 = arith.constant 0 : index
    %c0_448 = arith.constant 0 : index
    %925 = vector.load %arg13[%c0_447, %c0_448] : memref<2x32xf32, #tpu.memory_space<vmem>>, vector<2x32xf32>
    tpu.vector_store %arg13[%c0_447, %c0_448], %924 {strides = array<i32>} : memref<2x32xf32, #tpu.memory_space<vmem>>, vector<2x32xf32>,
    %c0_449 = arith.constant 0 : index
    %c0_450 = arith.constant 0 : index
    %926 = vector.load %arg18[%c0_449, %c0_450] : memref<2x32xf32, #tpu.memory_space<vmem>>, vector<2x32xf32>
    %c0_451 = arith.constant 0 : index
    %c0_452 = arith.constant 0 : index
    %927 = vector.load %arg14[%c0_451, %c0_452] : memref<2x32xf32, #tpu.memory_space<vmem>>, vector<2x32xf32>
    tpu.vector_store %arg14[%c0_451, %c0_452], %926 {strides = array<i32>} : memref<2x32xf32, #tpu.memory_space<vmem>>, vector<2x32xf32>,
    return
  }
  func.func @transform_0(%arg0: i32) -> (i32, i32, i32) {
    %c0_i32 = arith.constant 0 : i32
    %c0_i32_0 = arith.constant 0 : i32
    %c0_i32_1 = arith.constant 0 : i32
    return %c0_i32, %arg0, %c0_i32_0 : i32, i32, i32
  }
  func.func @transform_1(%arg0: i32) -> (i32, i32, i32) {
    %c0_i32 = arith.constant 0 : i32
    %c0_i32_0 = arith.constant 0 : i32
    %c0_i32_1 = arith.constant 0 : i32
    return %c0_i32, %arg0, %c0_i32_0 : i32, i32, i32
  }
  func.func @transform_2(%arg0: i32) -> (i32, i32) {
    %c0_i32 = arith.constant 0 : i32
    %c0_i32_0 = arith.constant 0 : i32
    %c0_i32_1 = arith.constant 0 : i32
    return %c0_i32, %c0_i32_0 : i32, i32
  }
  func.func @transform_3(%arg0: i32) -> (i32, i32) {
    %c0_i32 = arith.constant 0 : i32
    %c0_i32_0 = arith.constant 0 : i32
    %c0_i32_1 = arith.constant 0 : i32
    return %c0_i32, %c0_i32_0 : i32, i32
  }
  func.func @transform_4(%arg0: i32) -> (i32, i32) {
    %c0_i32 = arith.constant 0 : i32
    %c0_i32_0 = arith.constant 0 : i32
    %c0_i32_1 = arith.constant 0 : i32
    return %c0_i32, %c0_i32_0 : i32, i32
  }
  func.func @transform_5(%arg0: i32) -> (i32, i32) {
    %c0_i32 = arith.constant 0 : i32
    %c0_i32_0 = arith.constant 0 : i32
    %c0_i32_1 = arith.constant 0 : i32
    return %c0_i32, %c0_i32_0 : i32, i32
  }
  func.func @transform_6(%arg0: i32) -> (i32, i32) {
    %c0_i32 = arith.constant 0 : i32
    %c0_i32_0 = arith.constant 0 : i32
    %c0_i32_1 = arith.constant 0 : i32
    return %c0_i32, %c0_i32_0 : i32, i32
  }
  func.func @transform_7(%arg0: i32) -> (i32, i32) {
    %c0_i32 = arith.constant 0 : i32
    %c0_i32_0 = arith.constant 0 : i32
    %c0_i32_1 = arith.constant 0 : i32
    return %c0_i32, %c0_i32_0 : i32, i32
  }
  func.func @transform_8(%arg0: i32) -> (i32, i32) {
    %c0_i32 = arith.constant 0 : i32
    %c0_i32_0 = arith.constant 0 : i32
    %c0_i32_1 = arith.constant 0 : i32
    return %c0_i32, %c0_i32_0 : i32, i32
  }
  func.func @transform_9(%arg0: i32) -> (i32, i32) {
    %c0_i32 = arith.constant 0 : i32
    %c0_i32_0 = arith.constant 0 : i32
    %c0_i32_1 = arith.constant 0 : i32
    return %c0_i32, %c0_i32_0 : i32, i32
  }
  func.func @transform_10(%arg0: i32) -> (i32, i32, i32) {
    %c0_i32 = arith.constant 0 : i32
    %c0_i32_0 = arith.constant 0 : i32
    %c0_i32_1 = arith.constant 0 : i32
    return %c0_i32, %arg0, %c0_i32_0 : i32, i32, i32
  }
  func.func @transform_11(%arg0: i32) -> (i32, i32, i32) {
    %c0_i32 = arith.constant 0 : i32
    %c0_i32_0 = arith.constant 0 : i32
    %c0_i32_1 = arith.constant 0 : i32
    return %c0_i32, %arg0, %c0_i32_0 : i32, i32, i32
  }
  func.func @transform_12(%arg0: i32) -> (i32, i32) {
    %c0_i32 = arith.constant 0 : i32
    %c0_i32_0 = arith.constant 0 : i32
    return %arg0, %c0_i32 : i32, i32
  }
  func.func @transform_13(%arg0: i32) -> (i32, i32) {
    %c0_i32 = arith.constant 0 : i32
    %c0_i32_0 = arith.constant 0 : i32
    return %arg0, %c0_i32 : i32, i32
  }
}

</mosaic_0001>

<llo_original>
// kernel: rnn_encoder_forward.5
$region0: #{rnn_encoder_forward.5}
  #allocation0 [shape = 'u32[]', space=smem, size = 0x4, offset = 0x4, fixed_abs, tag = 'smem constant byte address 0x4 - core index']
  #allocation1 [shape = 'u32[144,128]{1,0:T(1,128)}', space=vmem, size = 0x12000, scoped, tag = 'internal scratch']
  %s0 = inlined_call_operand.vmem [shape: bf16[2,128], index: 0, kind: input, shape index: {}]
  %s1 = inlined_call_operand.vmem [shape: bf16[128,32], index: 1, kind: input, shape index: {}]
  %s2 = inlined_call_operand.vmem [shape: f32[1,32], index: 2, kind: input, shape index: {}]
  %s3 = inlined_call_operand.vmem [shape: f32[2,32], index: 3, kind: output, shape index: {}]
  %s4 = sld [smem:[#allocation0]]
  $region22: #{rnn_encoder_forward.5} parent=0
    _
  %s6 = ssub.s32 1, %s4
  %s7 = scalar_select 0, %s6, %s4
  // Predicated region
  $region2: #{rnn_encoder_forward.5} parent=0 // pred_check
    _
  $region3: #{rnn_encoder_forward.5} parent=0 // pred_check_branch
    %9 = sbr.rel (0) target = $region5
  $region4: #{rnn_encoder_forward.5} parent=0 // pred_region
    _
  $region5: #{rnn_encoder_forward.5} parent=0 // pred_fallthru
    _
  // Predicated region
  $region6: #{rnn_encoder_forward.5} parent=0 // pred_check
    _
  $region7: #{rnn_encoder_forward.5} parent=0 // pred_check_branch
    %11 = sbr.rel (0) target = $region9
  $region8: #{rnn_encoder_forward.5} parent=0 // pred_region
    _
  $region9: #{rnn_encoder_forward.5} parent=0 // pred_fallthru
    _
  // Predicated region
  $region10: #{rnn_encoder_forward.5} parent=0 // pred_check
    _
  $region11: #{rnn_encoder_forward.5} parent=0 // pred_check_branch
    %13 = sbr.rel (0) target = $region13
  $region12: #{rnn_encoder_forward.5} parent=0 // pred_region
    _
  $region13: #{rnn_encoder_forward.5} parent=0 // pred_fallthru
    _
  %v15 = vld [vmem:[%s0] sm:$0x1]
  %v16 = vld [vmem:[%s1] sm:$0xf]
  %v17 = vld [vmem:[%s1 + $0x4] sm:$0xf]
  %v18 = vld [vmem:[%s1 + $0x8] sm:$0xf]
  %v19 = vld [vmem:[%s1 + $0xc] sm:$0xf]
  %v20 = vld [vmem:[%s1 + $0x10] sm:$0xf]
  %v21 = vld [vmem:[%s1 + $0x14] sm:$0xf]
  %v22 = vld [vmem:[%s1 + $0x18] sm:$0xf]
  %v23 = vld [vmem:[%s1 + $0x1c] sm:$0xf]
  %v24 = vld [vmem:[%s1 + $0x20] sm:$0xf]
  %v25 = vld [vmem:[%s1 + $0x24] sm:$0xf]
  %v26 = vld [vmem:[%s1 + $0x28] sm:$0xf]
  %v27 = vld [vmem:[%s1 + $0x2c] sm:$0xf]
  %v28 = vld [vmem:[%s1 + $0x30] sm:$0xf]
  %v29 = vld [vmem:[%s1 + $0x34] sm:$0xf]
  %v30 = vld [vmem:[%s1 + $0x38] sm:$0xf]
  %v31 = vld [vmem:[%s1 + $0x3c] sm:$0xf]
  %v32 = vld [vmem:[%s2] sm:$0x1]
  %v34 = vlaneseq
  %v35 = vshrl.u32 %v34, 7
  %v36 = vsub.s32 0, %v35
  %v37 = vrot.slane %v32, %v36
  %v55 = vunpack.c.l.b16 %v16
  %v56 = vunpack.c.l.b16 %v17
  %v57 = vunpack.c.l.b16 %v18
  %v58 = vunpack.c.l.b16 %v19
  %v59 = vunpack.c.l.b16 %v20
  %v60 = vunpack.c.l.b16 %v21
  %v61 = vunpack.c.l.b16 %v22
  %v62 = vunpack.c.l.b16 %v23
  %v63 = vunpack.c.l.b16 %v24
  %v64 = vunpack.c.l.b16 %v25
  %v65 = vunpack.c.l.b16 %v26
  %v66 = vunpack.c.l.b16 %v27
  %v67 = vunpack.c.l.b16 %v28
  %v68 = vunpack.c.l.b16 %v29
  %v69 = vunpack.c.l.b16 %v30
  %v70 = vunpack.c.l.b16 %v31
  %v71 = vpack.c.b16 %v56, %v55
  %v72 = vpack.c.b16 %v58, %v57
  %v73 = vpack.c.b16 %v60, %v59
  %v74 = vpack.c.b16 %v62, %v61
  %v75 = vpack.c.b16 %v64, %v63
  %v76 = vpack.c.b16 %v66, %v65
  %v77 = vpack.c.b16 %v68, %v67
  %v78 = vpack.c.b16 %v70, %v69
  %87 = vmatprep.subr.bf16.mxu0 0
  %88 = vmatpush1.bf16.msra.mxu0 %v71
  %89 = vmatprep.subr.bf16.mxu0 0
  %90 = vmatpush1.bf16.msra.mxu0 %v72
  %91 = vmatprep.subr.bf16.mxu0 0
  %92 = vmatpush1.bf16.msra.mxu0 %v73
  %93 = vmatprep.subr.bf16.mxu0 0
  %94 = vmatpush1.bf16.msra.mxu0 %v74
  %95 = vmatprep.subr.bf16.mxu0 0
  %96 = vmatpush1.bf16.msra.mxu0 %v75
  %97 = vmatprep.subr.bf16.mxu0 0
  %98 = vmatpush1.bf16.msra.mxu0 %v76
  %99 = vmatprep.subr.bf16.mxu0 0
  %100 = vmatpush1.bf16.msra.mxu0 %v77
  %101 = vmatprep.subr.bf16.mxu0 0
  %102 = vmatpush1.bf16.msra.mxu0 %v78
  %103 = vmatprep.subr.bf16.mxu0 0
  %104 = vmatpush1.bf16.msra.mxu0 0
  %105 = vmatprep.subr.bf16.mxu0 0
  %106 = vmatpush1.bf16.msra.mxu0 0
  %107 = vmatprep.subr.bf16.mxu0 0
  %108 = vmatpush1.bf16.msra.mxu0 0
  %109 = vmatprep.subr.bf16.mxu0 0
  %110 = vmatpush1.bf16.msra.mxu0 0
  %111 = vmatprep.subr.bf16.mxu0 0
  %112 = vmatpush1.bf16.msra.mxu0 0
  %113 = vmatprep.subr.bf16.mxu0 0
  %114 = vmatpush1.bf16.msra.mxu0 0
  %115 = vmatprep.subr.bf16.mxu0 0
  %116 = vmatpush1.bf16.msra.mxu0 0
  %117 = vmatprep.subr.bf16.mxu0 0
  %118 = vmatpush1.bf16.msra.mxu0 0
  %119 = vmatprep.mubr.bf16.mxu0 0
  %120 = vmatmul.mubr.bf16.gmra.mrb[0].mxu0 %v15
  %v121 = vpop.f32.mrb[0].mxu0
  %v122 = vadd.f32 %v37, %v121
  %v123 = vpop.f32.mrb[0].mxu0
  %v124 = vpop.f32.mrb[0].mxu0
  %v125 = vpop.f32.mrb[0].mxu0
  %126 = vdwg.mxu0
  %vm127 = vcmask 254976
  %128 = vst.msk [vmem:[%s3] sm:$0x3] %vm127, %v122
  // Predicated region
  $region14: #{rnn_encoder_forward.5} parent=0 // pred_check
    _
  $region15: #{rnn_encoder_forward.5} parent=0 // pred_check_branch
    %130 = sbr.rel (0) target = $region17
  $region16: #{rnn_encoder_forward.5} parent=0 // pred_region
    _
  $region17: #{rnn_encoder_forward.5} parent=0 // pred_fallthru
    _
  // Predicated region
  $region18: #{rnn_encoder_forward.5} parent=0 // pred_check
    _
  $region19: #{rnn_encoder_forward.5} parent=0 // pred_check_branch
    %132 = sbr.rel (0) target = $region21
  $region20: #{rnn_encoder_forward.5} parent=0 // pred_region
    _
  $region21: #{rnn_encoder_forward.5} parent=0 // pred_fallthru
    _

// kernel: rnn_encoder_forward.4
$region0: #{rnn_encoder_forward.4}
  #allocation0 [shape = 'u32[]', space=smem, size = 0x4, offset = 0x4, fixed_abs, tag = 'smem constant byte address 0x4 - core index']
  #allocation1 [shape = 'u32[144,128]{1,0:T(1,128)}', space=vmem, size = 0x12000, scoped, tag = 'internal scratch']
  #allocation2 [shape = 'f32[8,2,96]{2,1,0:T(2,128)}', space=vmem, size = 0x2000, scoped, tag = 'scratch operand']
  #allocation3 [shape = 'f32[8,2,96]{2,1,0:T(2,128)}', space=vmem, size = 0x2000, scoped, tag = 'scratch operand']
  #allocation4 [shape = 'f32[2,32]{1,0:T(2,128)}', space=vmem, size = 0x400, scoped, tag = 'scratch operand']
  #allocation5 [shape = 'f32[2,32]{1,0:T(2,128)}', space=vmem, size = 0x400, scoped, tag = 'scratch operand']
  %s0 = inlined_call_operand.vmem [shape: bf16[8,2,64], index: 0, kind: input, shape index: {}]
  %s1 = inlined_call_operand.vmem [shape: f32[8,2,1], index: 1, kind: input, shape index: {}]
  %s2 = inlined_call_operand.vmem [shape: bf16[64,96], index: 2, kind: input, shape index: {}]
  %s3 = inlined_call_operand.vmem [shape: bf16[32,96], index: 3, kind: input, shape index: {}]
  %s4 = inlined_call_operand.vmem [shape: f32[1,96], index: 4, kind: input, shape index: {}]
  %s5 = inlined_call_operand.vmem [shape: f32[1,32], index: 5, kind: input, shape index: {}]
  %s6 = inlined_call_operand.vmem [shape: bf16[64,96], index: 6, kind: input, shape index: {}]
  %s7 = inlined_call_operand.vmem [shape: bf16[32,96], index: 7, kind: input, shape index: {}]
  %s8 = inlined_call_operand.vmem [shape: f32[1,96], index: 8, kind: input, shape index: {}]
  %s9 = inlined_call_operand.vmem [shape: f32[1,32], index: 9, kind: input, shape index: {}]
  %s10 = inlined_call_operand.hbm [shape: bf16[8,2,32], index: 10, kind: output, shape index: {0}]
  %s11 = inlined_call_operand.hbm [shape: bf16[8,2,32], index: 11, kind: output, shape index: {1}]
  %s12 = inlined_call_operand.vmem [shape: f32[2,32], index: 12, kind: output, shape index: {2}]
  %s13 = inlined_call_operand.vmem [shape: f32[2,32], index: 13, kind: output, shape index: {3}]
  %14 = xla_tuple %s10, %s11, %s12, %s13
  %s15 = sld [smem:[#allocation0]]
  $region74: #{rnn_encoder_forward.4} parent=0
    _
  %s17 = ssub.s32 1, %s15
  %s18 = scalar_select 0, %s17, %s15
  $region1: #{rnn_encoder_forward.4} parent=0
    #allocation6 [shape = 'u8[4096]{0}', space=vmem, size = 0x1000, scoped, tag = 'output window, operand 0, single buffered']
    #allocation7 [shape = 's32[1]{0}', space=sflag, size = 0x4, scoped, tag = 'scoped memory for rnn_encoder_forward.4']
    #allocation8 [shape = 'u8[4096]{0}', space=vmem, size = 0x1000, scoped, tag = 'output window, operand 1, single buffered']
    #allocation9 [shape = 's32[1]{0}', space=sflag, size = 0x4, scoped, tag = 'scoped memory for rnn_encoder_forward.4']
    %19 = vsyncpa [#allocation7], 0
    %20 = vsyncpa [#allocation9], 0
    // Predicated region
    $region2: #{rnn_encoder_forward.4} parent=1 // pred_check
      _
    $region3: #{rnn_encoder_forward.4} parent=1 // pred_check_branch
      %22 = sbr.rel (0) target = $region5
    $region4: #{rnn_encoder_forward.4} parent=1 // pred_region
      _
    $region5: #{rnn_encoder_forward.4} parent=1 // pred_fallthru
      _
    // Predicated region
    $region6: #{rnn_encoder_forward.4} parent=1 // pred_check
      _
    $region7: #{rnn_encoder_forward.4} parent=1 // pred_check_branch
      %24 = sbr.rel (0) target = $region9
    $region8: #{rnn_encoder_forward.4} parent=1 // pred_region
      _
    $region9: #{rnn_encoder_forward.4} parent=1 // pred_fallthru
      _
    // Predicated region
    $region10: #{rnn_encoder_forward.4} parent=1 // pred_check
      _
    $region11: #{rnn_encoder_forward.4} parent=1 // pred_check_branch
      %26 = sbr.rel (0) target = $region13
    $region12: #{rnn_encoder_forward.4} parent=1 // pred_region
      _
    $region13: #{rnn_encoder_forward.4} parent=1 // pred_fallthru
      _
    // Predicated region
    $region14: #{rnn_encoder_forward.4} parent=1 // pred_check
      _
    $region15: #{rnn_encoder_forward.4} parent=1 // pred_check_branch
      %28 = sbr.rel (0) target = $region17
    $region16: #{rnn_encoder_forward.4} parent=1 // pred_region
      _
    $region17: #{rnn_encoder_forward.4} parent=1 // pred_fallthru
      _
    // Predicated region
    $region18: #{rnn_encoder_forward.4} parent=1 // pred_check
      _
    $region19: #{rnn_encoder_forward.4} parent=1 // pred_check_branch
      %30 = sbr.rel (0) target = $region21
    $region20: #{rnn_encoder_forward.4} parent=1 // pred_region
      _
    $region21: #{rnn_encoder_forward.4} parent=1 // pred_fallthru
      _
    // Predicated region
    $region22: #{rnn_encoder_forward.4} parent=1 // pred_check
      _
    $region23: #{rnn_encoder_forward.4} parent=1 // pred_check_branch
      %32 = sbr.rel (0) target = $region25
    $region24: #{rnn_encoder_forward.4} parent=1 // pred_region
      _
    $region25: #{rnn_encoder_forward.4} parent=1 // pred_fallthru
      _
    // Predicated region
    $region26: #{rnn_encoder_forward.4} parent=1 // pred_check
      _
    $region27: #{rnn_encoder_forward.4} parent=1 // pred_check_branch
      %34 = sbr.rel (0) target = $region29
    $region28: #{rnn_encoder_forward.4} parent=1 // pred_region
      _
    $region29: #{rnn_encoder_forward.4} parent=1 // pred_fallthru
      _
    // Predicated region
    $region30: #{rnn_encoder_forward.4} parent=1 // pred_check
      _
    $region31: #{rnn_encoder_forward.4} parent=1 // pred_check_branch
      %36 = sbr.rel (0) target = $region33
    $region32: #{rnn_encoder_forward.4} parent=1 // pred_region
      _
    $region33: #{rnn_encoder_forward.4} parent=1 // pred_fallthru
      _
    // Predicated region
    $region34: #{rnn_encoder_forward.4} parent=1 // pred_check
      _
    $region35: #{rnn_encoder_forward.4} parent=1 // pred_check_branch
      %38 = sbr.rel (0) target = $region37
    $region36: #{rnn_encoder_forward.4} parent=1 // pred_region
      _
    $region37: #{rnn_encoder_forward.4} parent=1 // pred_fallthru
      _
    // Predicated region
    $region38: #{rnn_encoder_forward.4} parent=1 // pred_check
      _
    $region39: #{rnn_encoder_forward.4} parent=1 // pred_check_branch
      %40 = sbr.rel (0) target = $region41
    $region40: #{rnn_encoder_forward.4} parent=1 // pred_region
      _
    $region41: #{rnn_encoder_forward.4} parent=1 // pred_fallthru
      _
    %vm42 = vcmask 254976
    %43 = vst.msk [vmem:[#allocation4] sm:$0x3] %vm42, 0.0
    %44 = vst.msk [vmem:[#allocation5] sm:$0x3] %vm42, 0.0
    %v45 = vld [vmem:[%s0] sm:$0x1]
    %v46 = vld [vmem:[%s2] sm:$0xf]
    %v47 = vld [vmem:[%s2 + $0x4] sm:$0xf]
    %v48 = vld [vmem:[%s2 + $0x8] sm:$0xf]
    %v49 = vld [vmem:[%s2 + $0xc] sm:$0xf]
    %v50 = vld [vmem:[%s2 + $0x10] sm:$0xf]
    %v51 = vld [vmem:[%s2 + $0x14] sm:$0xf]
    %v52 = vld [vmem:[%s2 + $0x18] sm:$0xf]
    %v53 = vld [vmem:[%s2 + $0x1c] sm:$0xf]
    %v54 = vld [vmem:[%s4] sm:$0x1]
    %v56 = vlaneseq
    %v57 = vshrl.u32 %v56, 7
    %v58 = vsub.s32 0, %v57
    %v59 = vrot.slane %v54, %v58
    %v69 = vunpack.c.l.b16 %v46
    %v70 = vunpack.c.l.b16 %v47
    %v71 = vunpack.c.l.b16 %v48
    %v72 = vunpack.c.l.b16 %v49
    %v73 = vunpack.c.l.b16 %v50
    %v74 = vunpack.c.l.b16 %v51
    %v75 = vunpack.c.l.b16 %v52
    %v76 = vunpack.c.l.b16 %v53
    %v77 = vpack.c.b16 %v70, %v69
    %v78 = vpack.c.b16 %v72, %v71
    %v79 = vpack.c.b16 %v74, %v73
    %v80 = vpack.c.b16 %v76, %v75
    %vm85 = vcmask 523264
    %v87 = vsel %vm85, %v45, 0
    %89 = vmatprep.subr.bf16.mxu0 0
    %90 = vmatpush1.bf16.msra.mxu0 %v77
    %91 = vmatprep.subr.bf16.mxu0 0
    %92 = vmatpush1.bf16.msra.mxu0 %v78
    %93 = vmatprep.subr.bf16.mxu0 0
    %94 = vmatpush1.bf16.msra.mxu0 %v79
    %95 = vmatprep.subr.bf16.mxu0 0
    %96 = vmatpush1.bf16.msra.mxu0 %v80
    %97 = vmatprep.subr.bf16.mxu0 0
    %98 = vmatpush1.bf16.msra.mxu0 0
    %99 = vmatprep.subr.bf16.mxu0 0
    %100 = vmatpush1.bf16.msra.mxu0 0
    %101 = vmatprep.subr.bf16.mxu0 0
    %102 = vmatpush1.bf16.msra.mxu0 0
    %103 = vmatprep.subr.bf16.mxu0 0
    %104 = vmatpush1.bf16.msra.mxu0 0
    %105 = vmatprep.subr.bf16.mxu0 0
    %106 = vmatpush1.bf16.msra.mxu0 0
    %107 = vmatprep.subr.bf16.mxu0 0
    %108 = vmatpush1.bf16.msra.mxu0 0
    %109 = vmatprep.subr.bf16.mxu0 0
    %110 = vmatpush1.bf16.msra.mxu0 0
    %111 = vmatprep.subr.bf16.mxu0 0
    %112 = vmatpush1.bf16.msra.mxu0 0
    %113 = vmatprep.subr.bf16.mxu0 0
    %114 = vmatpush1.bf16.msra.mxu0 0
    %115 = vmatprep.subr.bf16.mxu0 0
    %116 = vmatpush1.bf16.msra.mxu0 0
    %117 = vmatprep.subr.bf16.mxu0 0
    %118 = vmatpush1.bf16.msra.mxu0 0
    %119 = vmatprep.subr.bf16.mxu0 0
    %120 = vmatpush1.bf16.msra.mxu0 0
    %121 = vmatprep.mubr.bf16.mxu0 0
    %122 = vmatmul.mubr.bf16.gmra.mrb[0].mxu0 %v87
    %v123 = vpop.f32.mrb[0].mxu0
    %v124 = vadd.f32 %v59, %v123
    %v125 = vpop.f32.mrb[0].mxu0
    %v126 = vpop.f32.mrb[0].mxu0
    %v127 = vpop.f32.mrb[0].mxu0
    %128 = vdwg.mxu0
    %vm129 = vcmask 779264
    %130 = vst.msk [vmem:[#allocation2] sm:$0x3] %vm129, %v124
    %v131 = vld [vmem:[%s6] sm:$0xf]
    %v132 = vld [vmem:[%s6 + $0x4] sm:$0xf]
    %v133 = vld [vmem:[%s6 + $0x8] sm:$0xf]
    %v134 = vld [vmem:[%s6 + $0xc] sm:$0xf]
    %v135 = vld [vmem:[%s6 + $0x10] sm:$0xf]
    %v136 = vld [vmem:[%s6 + $0x14] sm:$0xf]
    %v137 = vld [vmem:[%s6 + $0x18] sm:$0xf]
    %v138 = vld [vmem:[%s6 + $0x1c] sm:$0xf]
    %v139 = vld [vmem:[%s8] sm:$0x1]
    %v141 = vlaneseq
    %v142 = vshrl.u32 %v141, 7
    %v143 = vsub.s32 0, %v142
    %v144 = vrot.slane %v139, %v143
    %v154 = vunpack.c.l.b16 %v131
    %v155 = vunpack.c.l.b16 %v132
    %v156 = vunpack.c.l.b16 %v133
    %v157 = vunpack.c.l.b16 %v134
    %v158 = vunpack.c.l.b16 %v135
    %v159 = vunpack.c.l.b16 %v136
    %v160 = vunpack.c.l.b16 %v137
    %v161 = vunpack.c.l.b16 %v138
    %v162 = vpack.c.b16 %v155, %v154
    %v163 = vpack.c.b16 %v157, %v156
    %v164 = vpack.c.b16 %v159, %v158
    %v165 = vpack.c.b16 %v161, %v160
    %170 = vmatprep.subr.bf16.mxu0 0
    %171 = vmatpush1.bf16.msra.mxu0 %v162
    %172 = vmatprep.subr.bf16.mxu0 0
    %173 = vmatpush1.bf16.msra.mxu0 %v163
    %174 = vmatprep.subr.bf16.mxu0 0
    %175 = vmatpush1.bf16.msra.mxu0 %v164
    %176 = vmatprep.subr.bf16.mxu0 0
    %177 = vmatpush1.bf16.msra.mxu0 %v165
    %178 = vmatprep.subr.bf16.mxu0 0
    %179 = vmatpush1.bf16.msra.mxu0 0
    %180 = vmatprep.subr.bf16.mxu0 0
    %181 = vmatpush1.bf16.msra.mxu0 0
    %182 = vmatprep.subr.bf16.mxu0 0
    %183 = vmatpush1.bf16.msra.mxu0 0
    %184 = vmatprep.subr.bf16.mxu0 0
    %185 = vmatpush1.bf16.msra.mxu0 0
    %186 = vmatprep.subr.bf16.mxu0 0
    %187 = vmatpush1.bf16.msra.mxu0 0
    %188 = vmatprep.subr.bf16.mxu0 0
    %189 = vmatpush1.bf16.msra.mxu0 0
    %190 = vmatprep.subr.bf16.mxu0 0
    %191 = vmatpush1.bf16.msra.mxu0 0
    %192 = vmatprep.subr.bf16.mxu0 0
    %193 = vmatpush1.bf16.msra.mxu0 0
    %194 = vmatprep.subr.bf16.mxu0 0
    %195 = vmatpush1.bf16.msra.mxu0 0
    %196 = vmatprep.subr.bf16.mxu0 0
    %197 = vmatpush1.bf16.msra.mxu0 0
    %198 = vmatprep.subr.bf16.mxu0 0
    %199 = vmatpush1.bf16.msra.mxu0 0
    %200 = vmatprep.subr.bf16.mxu0 0
    %201 = vmatpush1.bf16.msra.mxu0 0
    %202 = vmatprep.mubr.bf16.mxu0 0
    %203 = vmatmul.mubr.bf16.gmra.mrb[0].mxu0 %v87
    %v204 = vpop.f32.mrb[0].mxu0
    %v205 = vadd.f32 %v144, %v204
    %v206 = vpop.f32.mrb[0].mxu0
    %v207 = vpop.f32.mrb[0].mxu0
    %v208 = vpop.f32.mrb[0].mxu0
    %209 = vdwg.mxu0
    %210 = vst.msk [vmem:[#allocation3] sm:$0x3] %vm129, %v205
    %s211 = scalar_lea.vmem %s0, 1
    %v212 = vld [vmem:[%s211] sm:$0x1]
    %v213 = vld [vmem:[%s2] sm:$0xf]
    %v214 = vld [vmem:[%s2 + $0x4] sm:$0xf]
    %v215 = vld [vmem:[%s2 + $0x8] sm:$0xf]
    %v216 = vld [vmem:[%s2 + $0xc] sm:$0xf]
    %v217 = vld [vmem:[%s2 + $0x10] sm:$0xf]
    %v218 = vld [vmem:[%s2 + $0x14] sm:$0xf]
    %v219 = vld [vmem:[%s2 + $0x18] sm:$0xf]
    %v220 = vld [vmem:[%s2 + $0x1c] sm:$0xf]
    %v221 = vld [vmem:[%s4] sm:$0x1]
    %v223 = vlaneseq
    %v224 = vshrl.u32 %v223, 7
    %v225 = vsub.s32 0, %v224
    %v226 = vrot.slane %v221, %v225
    %v236 = vunpack.c.l.b16 %v213
    %v237 = vunpack.c.l.b16 %v214
    %v238 = vunpack.c.l.b16 %v215
    %v239 = vunpack.c.l.b16 %v216
    %v240 = vunpack.c.l.b16 %v217
    %v241 = vunpack.c.l.b16 %v218
    %v242 = vunpack.c.l.b16 %v219
    %v243 = vunpack.c.l.b16 %v220
    %v244 = vpack.c.b16 %v237, %v236
    %v245 = vpack.c.b16 %v239, %v238
    %v246 = vpack.c.b16 %v241, %v240
    %v247 = vpack.c.b16 %v243, %v242
    %v253 = vsel %vm85, %v212, 0
    %255 = vmatprep.subr.bf16.mxu0 0
    %256 = vmatpush1.bf16.msra.mxu0 %v244
    %257 = vmatprep.subr.bf16.mxu0 0
    %258 = vmatpush1.bf16.msra.mxu0 %v245
    %259 = vmatprep.subr.bf16.mxu0 0
    %260 = vmatpush1.bf16.msra.mxu0 %v246
    %261 = vmatprep.subr.bf16.mxu0 0
    %262 = vmatpush1.bf16.msra.mxu0 %v247
    %263 = vmatprep.subr.bf16.mxu0 0
    %264 = vmatpush1.bf16.msra.mxu0 0
    %265 = vmatprep.subr.bf16.mxu0 0
    %266 = vmatpush1.bf16.msra.mxu0 0
    %267 = vmatprep.subr.bf16.mxu0 0
    %268 = vmatpush1.bf16.msra.mxu0 0
    %269 = vmatprep.subr.bf16.mxu0 0
    %270 = vmatpush1.bf16.msra.mxu0 0
    %271 = vmatprep.subr.bf16.mxu0 0
    %272 = vmatpush1.bf16.msra.mxu0 0
    %273 = vmatprep.subr.bf16.mxu0 0
    %274 = vmatpush1.bf16.msra.mxu0 0
    %275 = vmatprep.subr.bf16.mxu0 0
    %276 = vmatpush1.bf16.msra.mxu0 0
    %277 = vmatprep.subr.bf16.mxu0 0
    %278 = vmatpush1.bf16.msra.mxu0 0
    %279 = vmatprep.subr.bf16.mxu0 0
    %280 = vmatpush1.bf16.msra.mxu0 0
    %281 = vmatprep.subr.bf16.mxu0 0
    %282 = vmatpush1.bf16.msra.mxu0 0
    %283 = vmatprep.subr.bf16.mxu0 0
    %284 = vmatpush1.bf16.msra.mxu0 0
    %285 = vmatprep.subr.bf16.mxu0 0
    %286 = vmatpush1.bf16.msra.mxu0 0
    %287 = vmatprep.mubr.bf16.mxu0 0
    %288 = vmatmul.mubr.bf16.gmra.mrb[0].mxu0 %v253
    %v289 = vpop.f32.mrb[0].mxu0
    %v290 = vadd.f32 %v226, %v289
    %v291 = vpop.f32.mrb[0].mxu0
    %v292 = vpop.f32.mrb[0].mxu0
    %v293 = vpop.f32.mrb[0].mxu0
    %294 = vdwg.mxu0
    %s295 = scalar_lea.vmem [#allocation2], 2
    %296 = vst.msk [vmem:[%s295] sm:$0x3] %vm129, %v290
    %v297 = vld [vmem:[%s6] sm:$0xf]
    %v298 = vld [vmem:[%s6 + $0x4] sm:$0xf]
    %v299 = vld [vmem:[%s6 + $0x8] sm:$0xf]
    %v300 = vld [vmem:[%s6 + $0xc] sm:$0xf]
    %v301 = vld [vmem:[%s6 + $0x10] sm:$0xf]
    %v302 = vld [vmem:[%s6 + $0x14] sm:$0xf]
    %v303 = vld [vmem:[%s6 + $0x18] sm:$0xf]
    %v304 = vld [vmem:[%s6 + $0x1c] sm:$0xf]
    %v305 = vld [vmem:[%s8] sm:$0x1]
    %v307 = vlaneseq
    %v308 = vshrl.u32 %v307, 7
    %v309 = vsub.s32 0, %v308
    %v310 = vrot.slane %v305, %v309
    %v320 = vunpack.c.l.b16 %v297
    %v321 = vunpack.c.l.b16 %v298
    %v322 = vunpack.c.l.b16 %v299
    %v323 = vunpack.c.l.b16 %v300
    %v324 = vunpack.c.l.b16 %v301
    %v325 = vunpack.c.l.b16 %v302
    %v326 = vunpack.c.l.b16 %v303
    %v327 = vunpack.c.l.b16 %v304
    %v328 = vpack.c.b16 %v321, %v320
    %v329 = vpack.c.b16 %v323, %v322
    %v330 = vpack.c.b16 %v325, %v324
    %v331 = vpack.c.b16 %v327, %v326
    %336 = vmatprep.subr.bf16.mxu0 0
    %337 = vmatpush1.bf16.msra.mxu0 %v328
    %338 = vmatprep.subr.bf16.mxu0 0
    %339 = vmatpush1.bf16.msra.mxu0 %v329
    %340 = vmatprep.subr.bf16.mxu0 0
    %341 = vmatpush1.bf16.msra.mxu0 %v330
    %342 = vmatprep.subr.bf16.mxu0 0
    %343 = vmatpush1.bf16.msra.mxu0 %v331
    %344 = vmatprep.subr.bf16.mxu0 0
    %345 = vmatpush1.bf16.msra.mxu0 0
    %346 = vmatprep.subr.bf16.mxu0 0
    %347 = vmatpush1.bf16.msra.mxu0 0
    %348 = vmatprep.subr.bf16.mxu0 0
    %349 = vmatpush1.bf16.msra.mxu0 0
    %350 = vmatprep.subr.bf16.mxu0 0
    %351 = vmatpush1.bf16.msra.mxu0 0
    %352 = vmatprep.subr.bf16.mxu0 0
    %353 = vmatpush1.bf16.msra.mxu0 0
    %354 = vmatprep.subr.bf16.mxu0 0
    %355 = vmatpush1.bf16.msra.mxu0 0
    %356 = vmatprep.subr.bf16.mxu0 0
    %357 = vmatpush1.bf16.msra.mxu0 0
    %358 = vmatprep.subr.bf16.mxu0 0
    %359 = vmatpush1.bf16.msra.mxu0 0
    %360 = vmatprep.subr.bf16.mxu0 0
    %361 = vmatpush1.bf16.msra.mxu0 0
    %362 = vmatprep.subr.bf16.mxu0 0
    %363 = vmatpush1.bf16.msra.mxu0 0
    %364 = vmatprep.subr.bf16.mxu0 0
    %365 = vmatpush1.bf16.msra.mxu0 0
    %366 = vmatprep.subr.bf16.mxu0 0
    %367 = vmatpush1.bf16.msra.mxu0 0
    %368 = vmatprep.mubr.bf16.mxu0 0
    %369 = vmatmul.mubr.bf16.gmra.mrb[0].mxu0 %v253
    %v370 = vpop.f32.mrb[0].mxu0
    %v371 = vadd.f32 %v310, %v370
    %v372 = vpop.f32.mrb[0].mxu0
    %v373 = vpop.f32.mrb[0].mxu0
    %v374 = vpop.f32.mrb[0].mxu0
    %375 = vdwg.mxu0
    %s376 = scalar_lea.vmem [#allocation3], 2
    %377 = vst.msk [vmem:[%s376] sm:$0x3] %vm129, %v371
    %s378 = scalar_lea.vmem %s0, 2
    %v379 = vld [vmem:[%s378] sm:$0x1]
    %v380 = vld [vmem:[%s2] sm:$0xf]
    %v381 = vld [vmem:[%s2 + $0x4] sm:$0xf]
    %v382 = vld [vmem:[%s2 + $0x8] sm:$0xf]
    %v383 = vld [vmem:[%s2 + $0xc] sm:$0xf]
    %v384 = vld [vmem:[%s2 + $0x10] sm:$0xf]
    %v385 = vld [vmem:[%s2 + $0x14] sm:$0xf]
    %v386 = vld [vmem:[%s2 + $0x18] sm:$0xf]
    %v387 = vld [vmem:[%s2 + $0x1c] sm:$0xf]
    %v388 = vld [vmem:[%s4] sm:$0x1]
    %v390 = vlaneseq
    %v391 = vshrl.u32 %v390, 7
    %v392 = vsub.s32 0, %v391
    %v393 = vrot.slane %v388, %v392
    %v403 = vunpack.c.l.b16 %v380
    %v404 = vunpack.c.l.b16 %v381
    %v405 = vunpack.c.l.b16 %v382
    %v406 = vunpack.c.l.b16 %v383
    %v407 = vunpack.c.l.b16 %v384
    %v408 = vunpack.c.l.b16 %v385
    %v409 = vunpack.c.l.b16 %v386
    %v410 = vunpack.c.l.b16 %v387
    %v411 = vpack.c.b16 %v404, %v403
    %v412 = vpack.c.b16 %v406, %v405
    %v413 = vpack.c.b16 %v408, %v407
    %v414 = vpack.c.b16 %v410, %v409
    %v420 = vsel %vm85, %v379, 0
    %422 = vmatprep.subr.bf16.mxu0 0
    %423 = vmatpush1.bf16.msra.mxu0 %v411
    %424 = vmatprep.subr.bf16.mxu0 0
    %425 = vmatpush1.bf16.msra.mxu0 %v412
    %426 = vmatprep.subr.bf16.mxu0 0
    %427 = vmatpush1.bf16.msra.mxu0 %v413
    %428 = vmatprep.subr.bf16.mxu0 0
    %429 = vmatpush1.bf16.msra.mxu0 %v414
    %430 = vmatprep.subr.bf16.mxu0 0
    %431 = vmatpush1.bf16.msra.mxu0 0
    %432 = vmatprep.subr.bf16.mxu0 0
    %433 = vmatpush1.bf16.msra.mxu0 0
    %434 = vmatprep.subr.bf16.mxu0 0
    %435 = vmatpush1.bf16.msra.mxu0 0
    %436 = vmatprep.subr.bf16.mxu0 0
    %437 = vmatpush1.bf16.msra.mxu0 0
    %438 = vmatprep.subr.bf16.mxu0 0
    %439 = vmatpush1.bf16.msra.mxu0 0
    %440 = vmatprep.subr.bf16.mxu0 0
    %441 = vmatpush1.bf16.msra.mxu0 0
    %442 = vmatprep.subr.bf16.mxu0 0
    %443 = vmatpush1.bf16.msra.mxu0 0
    %444 = vmatprep.subr.bf16.mxu0 0
    %445 = vmatpush1.bf16.msra.mxu0 0
    %446 = vmatprep.subr.bf16.mxu0 0
    %447 = vmatpush1.bf16.msra.mxu0 0
    %448 = vmatprep.subr.bf16.mxu0 0
    %449 = vmatpush1.bf16.msra.mxu0 0
    %450 = vmatprep.subr.bf16.mxu0 0
    %451 = vmatpush1.bf16.msra.mxu0 0
    %452 = vmatprep.subr.bf16.mxu0 0
    %453 = vmatpush1.bf16.msra.mxu0 0
    %454 = vmatprep.mubr.bf16.mxu0 0
    %455 = vmatmul.mubr.bf16.gmra.mrb[0].mxu0 %v420
    %v456 = vpop.f32.mrb[0].mxu0
    %v457 = vadd.f32 %v393, %v456
    %v458 = vpop.f32.mrb[0].mxu0
    %v459 = vpop.f32.mrb[0].mxu0
    %v460 = vpop.f32.mrb[0].mxu0
    %461 = vdwg.mxu0
    %s462 = scalar_lea.vmem [#allocation2], 4
    %463 = vst.msk [vmem:[%s462] sm:$0x3] %vm129, %v457
    %v464 = vld [vmem:[%s6] sm:$0xf]
    %v465 = vld [vmem:[%s6 + $0x4] sm:$0xf]
    %v466 = vld [vmem:[%s6 + $0x8] sm:$0xf]
    %v467 = vld [vmem:[%s6 + $0xc] sm:$0xf]
    %v468 = vld [vmem:[%s6 + $0x10] sm:$0xf]
    %v469 = vld [vmem:[%s6 + $0x14] sm:$0xf]
    %v470 = vld [vmem:[%s6 + $0x18] sm:$0xf]
    %v471 = vld [vmem:[%s6 + $0x1c] sm:$0xf]
    %v472 = vld [vmem:[%s8] sm:$0x1]
    %v474 = vlaneseq
    %v475 = vshrl.u32 %v474, 7
    %v476 = vsub.s32 0, %v475
    %v477 = vrot.slane %v472, %v476
    %v487 = vunpack.c.l.b16 %v464
    %v488 = vunpack.c.l.b16 %v465
    %v489 = vunpack.c.l.b16 %v466
    %v490 = vunpack.c.l.b16 %v467
    %v491 = vunpack.c.l.b16 %v468
    %v492 = vunpack.c.l.b16 %v469
    %v493 = vunpack.c.l.b16 %v470
    %v494 = vunpack.c.l.b16 %v471
    %v495 = vpack.c.b16 %v488, %v487
    %v496 = vpack.c.b16 %v490, %v489
    %v497 = vpack.c.b16 %v492, %v491
    %v498 = vpack.c.b16 %v494, %v493
    %503 = vmatprep.subr.bf16.mxu0 0
    %504 = vmatpush1.bf16.msra.mxu0 %v495
    %505 = vmatprep.subr.bf16.mxu0 0
    %506 = vmatpush1.bf16.msra.mxu0 %v496
    %507 = vmatprep.subr.bf16.mxu0 0
    %508 = vmatpush1.bf16.msra.mxu0 %v497
    %509 = vmatprep.subr.bf16.mxu0 0
    %510 = vmatpush1.bf16.msra.mxu0 %v498
    %511 = vmatprep.subr.bf16.mxu0 0
    %512 = vmatpush1.bf16.msra.mxu0 0
    %513 = vmatprep.subr.bf16.mxu0 0
    %514 = vmatpush1.bf16.msra.mxu0 0
    %515 = vmatprep.subr.bf16.mxu0 0
    %516 = vmatpush1.bf16.msra.mxu0 0
    %517 = vmatprep.subr.bf16.mxu0 0
    %518 = vmatpush1.bf16.msra.mxu0 0
    %519 = vmatprep.subr.bf16.mxu0 0
    %520 = vmatpush1.bf16.msra.mxu0 0
    %521 = vmatprep.subr.bf16.mxu0 0
    %522 = vmatpush1.bf16.msra.mxu0 0
    %523 = vmatprep.subr.bf16.mxu0 0
    %524 = vmatpush1.bf16.msra.mxu0 0
    %525 = vmatprep.subr.bf16.mxu0 0
    %526 = vmatpush1.bf16.msra.mxu0 0
    %527 = vmatprep.subr.bf16.mxu0 0
    %528 = vmatpush1.bf16.msra.mxu0 0
    %529 = vmatprep.subr.bf16.mxu0 0
    %530 = vmatpush1.bf16.msra.mxu0 0
    %531 = vmatprep.subr.bf16.mxu0 0
    %532 = vmatpush1.bf16.msra.mxu0 0
    %533 = vmatprep.subr.bf16.mxu0 0
    %534 = vmatpush1.bf16.msra.mxu0 0
    %535 = vmatprep.mubr.bf16.mxu0 0
    %536 = vmatmul.mubr.bf16.gmra.mrb[0].mxu0 %v420
    %v537 = vpop.f32.mrb[0].mxu0
    %v538 = vadd.f32 %v477, %v537
    %v539 = vpop.f32.mrb[0].mxu0
    %v540 = vpop.f32.mrb[0].mxu0
    %v541 = vpop.f32.mrb[0].mxu0
    %542 = vdwg.mxu0
    %s543 = scalar_lea.vmem [#allocation3], 4
    %544 = vst.msk [vmem:[%s543] sm:$0x3] %vm129, %v538
    %s545 = scalar_lea.vmem %s0, 3
    %v546 = vld [vmem:[%s545] sm:$0x1]
    %v547 = vld [vmem:[%s2] sm:$0xf]
    %v548 = vld [vmem:[%s2 + $0x4] sm:$0xf]
    %v549 = vld [vmem:[%s2 + $0x8] sm:$0xf]
    %v550 = vld [vmem:[%s2 + $0xc] sm:$0xf]
    %v551 = vld [vmem:[%s2 + $0x10] sm:$0xf]
    %v552 = vld [vmem:[%s2 + $0x14] sm:$0xf]
    %v553 = vld [vmem:[%s2 + $0x18] sm:$0xf]
    %v554 = vld [vmem:[%s2 + $0x1c] sm:$0xf]
    %v555 = vld [vmem:[%s4] sm:$0x1]
    %v557 = vlaneseq
    %v558 = vshrl.u32 %v557, 7
    %v559 = vsub.s32 0, %v558
    %v560 = vrot.slane %v555, %v559
    %v570 = vunpack.c.l.b16 %v547
    %v571 = vunpack.c.l.b16 %v548
    %v572 = vunpack.c.l.b16 %v549
    %v573 = vunpack.c.l.b16 %v550
    %v574 = vunpack.c.l.b16 %v551
    %v575 = vunpack.c.l.b16 %v552
    %v576 = vunpack.c.l.b16 %v553
    %v577 = vunpack.c.l.b16 %v554
    %v578 = vpack.c.b16 %v571, %v570
    %v579 = vpack.c.b16 %v573, %v572
    %v580 = vpack.c.b16 %v575, %v574
    %v581 = vpack.c.b16 %v577, %v576
    %v587 = vsel %vm85, %v546, 0
    %589 = vmatprep.subr.bf16.mxu0 0
    %590 = vmatpush1.bf16.msra.mxu0 %v578
    %591 = vmatprep.subr.bf16.mxu0 0
    %592 = vmatpush1.bf16.msra.mxu0 %v579
    %593 = vmatprep.subr.bf16.mxu0 0
    %594 = vmatpush1.bf16.msra.mxu0 %v580
    %595 = vmatprep.subr.bf16.mxu0 0
    %596 = vmatpush1.bf16.msra.mxu0 %v581
    %597 = vmatprep.subr.bf16.mxu0 0
    %598 = vmatpush1.bf16.msra.mxu0 0
    %599 = vmatprep.subr.bf16.mxu0 0
    %600 = vmatpush1.bf16.msra.mxu0 0
    %601 = vmatprep.subr.bf16.mxu0 0
    %602 = vmatpush1.bf16.msra.mxu0 0
    %603 = vmatprep.subr.bf16.mxu0 0
    %604 = vmatpush1.bf16.msra.mxu0 0
    %605 = vmatprep.subr.bf16.mxu0 0
    %606 = vmatpush1.bf16.msra.mxu0 0
    %607 = vmatprep.subr.bf16.mxu0 0
    %608 = vmatpush1.bf16.msra.mxu0 0
    %609 = vmatprep.subr.bf16.mxu0 0
    %610 = vmatpush1.bf16.msra.mxu0 0
    %611 = vmatprep.subr.bf16.mxu0 0
    %612 = vmatpush1.bf16.msra.mxu0 0
    %613 = vmatprep.subr.bf16.mxu0 0
    %614 = vmatpush1.bf16.msra.mxu0 0
    %615 = vmatprep.subr.bf16.mxu0 0
    %616 = vmatpush1.bf16.msra.mxu0 0
    %617 = vmatprep.subr.bf16.mxu0 0
    %618 = vmatpush1.bf16.msra.mxu0 0
    %619 = vmatprep.subr.bf16.mxu0 0
    %620 = vmatpush1.bf16.msra.mxu0 0
    %621 = vmatprep.mubr.bf16.mxu0 0
    %622 = vmatmul.mubr.bf16.gmra.mrb[0].mxu0 %v587
    %v623 = vpop.f32.mrb[0].mxu0
    %v624 = vadd.f32 %v560, %v623
    %v625 = vpop.f32.mrb[0].mxu0
    %v626 = vpop.f32.mrb[0].mxu0
    %v627 = vpop.f32.mrb[0].mxu0
    %628 = vdwg.mxu0
    %s629 = scalar_lea.vmem [#allocation2], 6
    %630 = vst.msk [vmem:[%s629] sm:$0x3] %vm129, %v624
    %v631 = vld [vmem:[%s6] sm:$0xf]
    %v632 = vld [vmem:[%s6 + $0x4] sm:$0xf]
    %v633 = vld [vmem:[%s6 + $0x8] sm:$0xf]
    %v634 = vld [vmem:[%s6 + $0xc] sm:$0xf]
    %v635 = vld [vmem:[%s6 + $0x10] sm:$0xf]
    %v636 = vld [vmem:[%s6 + $0x14] sm:$0xf]
    %v637 = vld [vmem:[%s6 + $0x18] sm:$0xf]
    %v638 = vld [vmem:[%s6 + $0x1c] sm:$0xf]
    %v639 = vld [vmem:[%s8] sm:$0x1]
    %v641 = vlaneseq
    %v642 = vshrl.u32 %v641, 7
    %v643 = vsub.s32 0, %v642
    %v644 = vrot.slane %v639, %v643
    %v654 = vunpack.c.l.b16 %v631
    %v655 = vunpack.c.l.b16 %v632
    %v656 = vunpack.c.l.b16 %v633
    %v657 = vunpack.c.l.b16 %v634
    %v658 = vunpack.c.l.b16 %v635
    %v659 = vunpack.c.l.b16 %v636
    %v660 = vunpack.c.l.b16 %v637
    %v661 = vunpack.c.l.b16 %v638
    %v662 = vpack.c.b16 %v655, %v654
    %v663 = vpack.c.b16 %v657, %v656
    %v664 = vpack.c.b16 %v659, %v658
    %v665 = vpack.c.b16 %v661, %v660
    %670 = vmatprep.subr.bf16.mxu0 0
    %671 = vmatpush1.bf16.msra.mxu0 %v662
    %672 = vmatprep.subr.bf16.mxu0 0
    %673 = vmatpush1.bf16.msra.mxu0 %v663
    %674 = vmatprep.subr.bf16.mxu0 0
    %675 = vmatpush1.bf16.msra.mxu0 %v664
    %676 = vmatprep.subr.bf16.mxu0 0
    %677 = vmatpush1.bf16.msra.mxu0 %v665
    %678 = vmatprep.subr.bf16.mxu0 0
    %679 = vmatpush1.bf16.msra.mxu0 0
    %680 = vmatprep.subr.bf16.mxu0 0
    %681 = vmatpush1.bf16.msra.mxu0 0
    %682 = vmatprep.subr.bf16.mxu0 0
    %683 = vmatpush1.bf16.msra.mxu0 0
    %684 = vmatprep.subr.bf16.mxu0 0
    %685 = vmatpush1.bf16.msra.mxu0 0
    %686 = vmatprep.subr.bf16.mxu0 0
    %687 = vmatpush1.bf16.msra.mxu0 0
    %688 = vmatprep.subr.bf16.mxu0 0
    %689 = vmatpush1.bf16.msra.mxu0 0
    %690 = vmatprep.subr.bf16.mxu0 0
    %691 = vmatpush1.bf16.msra.mxu0 0
    %692 = vmatprep.subr.bf16.mxu0 0
    %693 = vmatpush1.bf16.msra.mxu0 0
    %694 = vmatprep.subr.bf16.mxu0 0
    %695 = vmatpush1.bf16.msra.mxu0 0
    %696 = vmatprep.subr.bf16.mxu0 0
    %697 = vmatpush1.bf16.msra.mxu0 0
    %698 = vmatprep.subr.bf16.mxu0 0
    %699 = vmatpush1.bf16.msra.mxu0 0
    %700 = vmatprep.subr.bf16.mxu0 0
    %701 = vmatpush1.bf16.msra.mxu0 0
    %702 = vmatprep.mubr.bf16.mxu0 0
    %703 = vmatmul.mubr.bf16.gmra.mrb[0].mxu0 %v587
    %v704 = vpop.f32.mrb[0].mxu0
    %v705 = vadd.f32 %v644, %v704
    %v706 = vpop.f32.mrb[0].mxu0
    %v707 = vpop.f32.mrb[0].mxu0
    %v708 = vpop.f32.mrb[0].mxu0
    %709 = vdwg.mxu0
    %s710 = scalar_lea.vmem [#allocation3], 6
    %711 = vst.msk [vmem:[%s710] sm:$0x3] %vm129, %v705
    %s712 = scalar_lea.vmem %s0, 4
    %v713 = vld [vmem:[%s712] sm:$0x1]
    %v714 = vld [vmem:[%s2] sm:$0xf]
    %v715 = vld [vmem:[%s2 + $0x4] sm:$0xf]
    %v716 = vld [vmem:[%s2 + $0x8] sm:$0xf]
    %v717 = vld [vmem:[%s2 + $0xc] sm:$0xf]
    %v718 = vld [vmem:[%s2 + $0x10] sm:$0xf]
    %v719 = vld [vmem:[%s2 + $0x14] sm:$0xf]
    %v720 = vld [vmem:[%s2 + $0x18] sm:$0xf]
    %v721 = vld [vmem:[%s2 + $0x1c] sm:$0xf]
    %v722 = vld [vmem:[%s4] sm:$0x1]
    %v724 = vlaneseq
    %v725 = vshrl.u32 %v724, 7
    %v726 = vsub.s32 0, %v725
    %v727 = vrot.slane %v722, %v726
    %v737 = vunpack.c.l.b16 %v714
    %v738 = vunpack.c.l.b16 %v715
    %v739 = vunpack.c.l.b16 %v716
    %v740 = vunpack.c.l.b16 %v717
    %v741 = vunpack.c.l.b16 %v718
    %v742 = vunpack.c.l.b16 %v719
    %v743 = vunpack.c.l.b16 %v720
    %v744 = vunpack.c.l.b16 %v721
    %v745 = vpack.c.b16 %v738, %v737
    %v746 = vpack.c.b16 %v740, %v739
    %v747 = vpack.c.b16 %v742, %v741
    %v748 = vpack.c.b16 %v744, %v743
    %v754 = vsel %vm85, %v713, 0
    %756 = vmatprep.subr.bf16.mxu0 0
    %757 = vmatpush1.bf16.msra.mxu0 %v745
    %758 = vmatprep.subr.bf16.mxu0 0
    %759 = vmatpush1.bf16.msra.mxu0 %v746
    %760 = vmatprep.subr.bf16.mxu0 0
    %761 = vmatpush1.bf16.msra.mxu0 %v747
    %762 = vmatprep.subr.bf16.mxu0 0
    %763 = vmatpush1.bf16.msra.mxu0 %v748
    %764 = vmatprep.subr.bf16.mxu0 0
    %765 = vmatpush1.bf16.msra.mxu0 0
    %766 = vmatprep.subr.bf16.mxu0 0
    %767 = vmatpush1.bf16.msra.mxu0 0
    %768 = vmatprep.subr.bf16.mxu0 0
    %769 = vmatpush1.bf16.msra.mxu0 0
    %770 = vmatprep.subr.bf16.mxu0 0
    %771 = vmatpush1.bf16.msra.mxu0 0
    %772 = vmatprep.subr.bf16.mxu0 0
    %773 = vmatpush1.bf16.msra.mxu0 0
    %774 = vmatprep.subr.bf16.mxu0 0
    %775 = vmatpush1.bf16.msra.mxu0 0
    %776 = vmatprep.subr.bf16.mxu0 0
    %777 = vmatpush1.bf16.msra.mxu0 0
    %778 = vmatprep.subr.bf16.mxu0 0
    %779 = vmatpush1.bf16.msra.mxu0 0
    %780 = vmatprep.subr.bf16.mxu0 0
    %781 = vmatpush1.bf16.msra.mxu0 0
    %782 = vmatprep.subr.bf16.mxu0 0
    %783 = vmatpush1.bf16.msra.mxu0 0
    %784 = vmatprep.subr.bf16.mxu0 0
    %785 = vmatpush1.bf16.msra.mxu0 0
    %786 = vmatprep.subr.bf16.mxu0 0
    %787 = vmatpush1.bf16.msra.mxu0 0
    %788 = vmatprep.mubr.bf16.mxu0 0
    %789 = vmatmul.mubr.bf16.gmra.mrb[0].mxu0 %v754
    %v790 = vpop.f32.mrb[0].mxu0
    %v791 = vadd.f32 %v727, %v790
    %v792 = vpop.f32.mrb[0].mxu0
    %v793 = vpop.f32.mrb[0].mxu0
    %v794 = vpop.f32.mrb[0].mxu0
    %795 = vdwg.mxu0
    %s796 = scalar_lea.vmem [#allocation2], 8
    %797 = vst.msk [vmem:[%s796] sm:$0x3] %vm129, %v791
    %v798 = vld [vmem:[%s6] sm:$0xf]
    %v799 = vld [vmem:[%s6 + $0x4] sm:$0xf]
    %v800 = vld [vmem:[%s6 + $0x8] sm:$0xf]
    %v801 = vld [vmem:[%s6 + $0xc] sm:$0xf]
    %v802 = vld [vmem:[%s6 + $0x10] sm:$0xf]
    %v803 = vld [vmem:[%s6 + $0x14] sm:$0xf]
    %v804 = vld [vmem:[%s6 + $0x18] sm:$0xf]
    %v805 = vld [vmem:[%s6 + $0x1c] sm:$0xf]
    %v806 = vld [vmem:[%s8] sm:$0x1]
    %v808 = vlaneseq
    %v809 = vshrl.u32 %v808, 7
    %v810 = vsub.s32 0, %v809
    %v811 = vrot.slane %v806, %v810
    %v821 = vunpack.c.l.b16 %v798
    %v822 = vunpack.c.l.b16 %v799
    %v823 = vunpack.c.l.b16 %v800
    %v824 = vunpack.c.l.b16 %v801
    %v825 = vunpack.c.l.b16 %v802
    %v826 = vunpack.c.l.b16 %v803
    %v827 = vunpack.c.l.b16 %v804
    %v828 = vunpack.c.l.b16 %v805
    %v829 = vpack.c.b16 %v822, %v821
    %v830 = vpack.c.b16 %v824, %v823
    %v831 = vpack.c.b16 %v826, %v825
    %v832 = vpack.c.b16 %v828, %v827
    %837 = vmatprep.subr.bf16.mxu0 0
    %838 = vmatpush1.bf16.msra.mxu0 %v829
    %839 = vmatprep.subr.bf16.mxu0 0
    %840 = vmatpush1.bf16.msra.mxu0 %v830
    %841 = vmatprep.subr.bf16.mxu0 0
    %842 = vmatpush1.bf16.msra.mxu0 %v831
    %843 = vmatprep.subr.bf16.mxu0 0
    %844 = vmatpush1.bf16.msra.mxu0 %v832
    %845 = vmatprep.subr.bf16.mxu0 0
    %846 = vmatpush1.bf16.msra.mxu0 0
    %847 = vmatprep.subr.bf16.mxu0 0
    %848 = vmatpush1.bf16.msra.mxu0 0
    %849 = vmatprep.subr.bf16.mxu0 0
    %850 = vmatpush1.bf16.msra.mxu0 0
    %851 = vmatprep.subr.bf16.mxu0 0
    %852 = vmatpush1.bf16.msra.mxu0 0
    %853 = vmatprep.subr.bf16.mxu0 0
    %854 = vmatpush1.bf16.msra.mxu0 0
    %855 = vmatprep.subr.bf16.mxu0 0
    %856 = vmatpush1.bf16.msra.mxu0 0
    %857 = vmatprep.subr.bf16.mxu0 0
    %858 = vmatpush1.bf16.msra.mxu0 0
    %859 = vmatprep.subr.bf16.mxu0 0
    %860 = vmatpush1.bf16.msra.mxu0 0
    %861 = vmatprep.subr.bf16.mxu0 0
    %862 = vmatpush1.bf16.msra.mxu0 0
    %863 = vmatprep.subr.bf16.mxu0 0
    %864 = vmatpush1.bf16.msra.mxu0 0
    %865 = vmatprep.subr.bf16.mxu0 0
    %866 = vmatpush1.bf16.msra.mxu0 0
    %867 = vmatprep.subr.bf16.mxu0 0
    %868 = vmatpush1.bf16.msra.mxu0 0
    %869 = vmatprep.mubr.bf16.mxu0 0
    %870 = vmatmul.mubr.bf16.gmra.mrb[0].mxu0 %v754
    %v871 = vpop.f32.mrb[0].mxu0
    %v872 = vadd.f32 %v811, %v871
    %v873 = vpop.f32.mrb[0].mxu0
    %v874 = vpop.f32.mrb[0].mxu0
    %v875 = vpop.f32.mrb[0].mxu0
    %876 = vdwg.mxu0
    %s877 = scalar_lea.vmem [#allocation3], 8
    %878 = vst.msk [vmem:[%s877] sm:$0x3] %vm129, %v872
    %s879 = scalar_lea.vmem %s0, 5
    %v880 = vld [vmem:[%s879] sm:$0x1]
    %v881 = vld [vmem:[%s2] sm:$0xf]
    %v882 = vld [vmem:[%s2 + $0x4] sm:$0xf]
    %v883 = vld [vmem:[%s2 + $0x8] sm:$0xf]
    %v884 = vld [vmem:[%s2 + $0xc] sm:$0xf]
    %v885 = vld [vmem:[%s2 + $0x10] sm:$0xf]
    %v886 = vld [vmem:[%s2 + $0x14] sm:$0xf]
    %v887 = vld [vmem:[%s2 + $0x18] sm:$0xf]
    %v888 = vld [vmem:[%s2 + $0x1c] sm:$0xf]
    %v889 = vld [vmem:[%s4] sm:$0x1]
    %v891 = vlaneseq
    %v892 = vshrl.u32 %v891, 7
    %v893 = vsub.s32 0, %v892
    %v894 = vrot.slane %v889, %v893
    %v904 = vunpack.c.l.b16 %v881
    %v905 = vunpack.c.l.b16 %v882
    %v906 = vunpack.c.l.b16 %v883
    %v907 = vunpack.c.l.b16 %v884
    %v908 = vunpack.c.l.b16 %v885
    %v909 = vunpack.c.l.b16 %v886
    %v910 = vunpack.c.l.b16 %v887
    %v911 = vunpack.c.l.b16 %v888
    %v912 = vpack.c.b16 %v905, %v904
    %v913 = vpack.c.b16 %v907, %v906
    %v914 = vpack.c.b16 %v909, %v908
    %v915 = vpack.c.b16 %v911, %v910
    %v921 = vsel %vm85, %v880, 0
    %923 = vmatprep.subr.bf16.mxu0 0
    %924 = vmatpush1.bf16.msra.mxu0 %v912
    %925 = vmatprep.subr.bf16.mxu0 0
    %926 = vmatpush1.bf16.msra.mxu0 %v913
    %927 = vmatprep.subr.bf16.mxu0 0
    %928 = vmatpush1.bf16.msra.mxu0 %v914
    %929 = vmatprep.subr.bf16.mxu0 0
    %930 = vmatpush1.bf16.msra.mxu0 %v915
    %931 = vmatprep.subr.bf16.mxu0 0
    %932 = vmatpush1.bf16.msra.mxu0 0
    %933 = vmatprep.subr.bf16.mxu0 0
    %934 = vmatpush1.bf16.msra.mxu0 0
    %935 = vmatprep.subr.bf16.mxu0 0
    %936 = vmatpush1.bf16.msra.mxu0 0
    %937 = vmatprep.subr.bf16.mxu0 0
    %938 = vmatpush1.bf16.msra.mxu0 0
    %939 = vmatprep.subr.bf16.mxu0 0
    %940 = vmatpush1.bf16.msra.mxu0 0
    %941 = vmatprep.subr.bf16.mxu0 0
    %942 = vmatpush1.bf16.msra.mxu0 0
    %943 = vmatprep.subr.bf16.mxu0 0
    %944 = vmatpush1.bf16.msra.mxu0 0
    %945 = vmatprep.subr.bf16.mxu0 0
    %946 = vmatpush1.bf16.msra.mxu0 0
    %947 = vmatprep.subr.bf16.mxu0 0
    %948 = vmatpush1.bf16.msra.mxu0 0
    %949 = vmatprep.subr.bf16.mxu0 0
    %950 = vmatpush1.bf16.msra.mxu0 0
    %951 = vmatprep.subr.bf16.mxu0 0
    %952 = vmatpush1.bf16.msra.mxu0 0
    %953 = vmatprep.subr.bf16.mxu0 0
    %954 = vmatpush1.bf16.msra.mxu0 0
    %955 = vmatprep.mubr.bf16.mxu0 0
    %956 = vmatmul.mubr.bf16.gmra.mrb[0].mxu0 %v921
    %v957 = vpop.f32.mrb[0].mxu0
    %v958 = vadd.f32 %v894, %v957
    %v959 = vpop.f32.mrb[0].mxu0
    %v960 = vpop.f32.mrb[0].mxu0
    %v961 = vpop.f32.mrb[0].mxu0
    %962 = vdwg.mxu0
    %s963 = scalar_lea.vmem [#allocation2], 10
    %964 = vst.msk [vmem:[%s963] sm:$0x3] %vm129, %v958
    %v965 = vld [vmem:[%s6] sm:$0xf]
    %v966 = vld [vmem:[%s6 + $0x4] sm:$0xf]
    %v967 = vld [vmem:[%s6 + $0x8] sm:$0xf]
    %v968 = vld [vmem:[%s6 + $0xc] sm:$0xf]
    %v969 = vld [vmem:[%s6 + $0x10] sm:$0xf]
    %v970 = vld [vmem:[%s6 + $0x14] sm:$0xf]
    %v971 = vld [vmem:[%s6 + $0x18] sm:$0xf]
    %v972 = vld [vmem:[%s6 + $0x1c] sm:$0xf]
    %v973 = vld [vmem:[%s8] sm:$0x1]
    %v975 = vlaneseq
    %v976 = vshrl.u32 %v975, 7
    %v977 = vsub.s32 0, %v976
    %v978 = vrot.slane %v973, %v977
    %v988 = vunpack.c.l.b16 %v965
    %v989 = vunpack.c.l.b16 %v966
    %v990 = vunpack.c.l.b16 %v967
    %v991 = vunpack.c.l.b16 %v968
    %v992 = vunpack.c.l.b16 %v969
    %v993 = vunpack.c.l.b16 %v970
    %v994 = vunpack.c.l.b16 %v971
    %v995 = vunpack.c.l.b16 %v972
    %v996 = vpack.c.b16 %v989, %v988
    %v997 = vpack.c.b16 %v991, %v990
    %v998 = vpack.c.b16 %v993, %v992
    %v999 = vpack.c.b16 %v995, %v994
    %1004 = vmatprep.subr.bf16.mxu0 0
    %1005 = vmatpush1.bf16.msra.mxu0 %v996
    %1006 = vmatprep.subr.bf16.mxu0 0
    %1007 = vmatpush1.bf16.msra.mxu0 %v997
    %1008 = vmatprep.subr.bf16.mxu0 0
    %1009 = vmatpush1.bf16.msra.mxu0 %v998
    %1010 = vmatprep.subr.bf16.mxu0 0
    %1011 = vmatpush1.bf16.msra.mxu0 %v999
    %1012 = vmatprep.subr.bf16.mxu0 0
    %1013 = vmatpush1.bf16.msra.mxu0 0
    %1014 = vmatprep.subr.bf16.mxu0 0
    %1015 = vmatpush1.bf16.msra.mxu0 0
    %1016 = vmatprep.subr.bf16.mxu0 0
    %1017 = vmatpush1.bf16.msra.mxu0 0
    %1018 = vmatprep.subr.bf16.mxu0 0
    %1019 = vmatpush1.bf16.msra.mxu0 0
    %1020 = vmatprep.subr.bf16.mxu0 0
    %1021 = vmatpush1.bf16.msra.mxu0 0
    %1022 = vmatprep.subr.bf16.mxu0 0
    %1023 = vmatpush1.bf16.msra.mxu0 0
    %1024 = vmatprep.subr.bf16.mxu0 0
    %1025 = vmatpush1.bf16.msra.mxu0 0
    %1026 = vmatprep.subr.bf16.mxu0 0
    %1027 = vmatpush1.bf16.msra.mxu0 0
    %1028 = vmatprep.subr.bf16.mxu0 0
    %1029 = vmatpush1.bf16.msra.mxu0 0
    %1030 = vmatprep.subr.bf16.mxu0 0
    %1031 = vmatpush1.bf16.msra.mxu0 0
    %1032 = vmatprep.subr.bf16.mxu0 0
    %1033 = vmatpush1.bf16.msra.mxu0 0
    %1034 = vmatprep.subr.bf16.mxu0 0
    %1035 = vmatpush1.bf16.msra.mxu0 0
    %1036 = vmatprep.mubr.bf16.mxu0 0
    %1037 = vmatmul.mubr.bf16.gmra.mrb[0].mxu0 %v921
    %v1038 = vpop.f32.mrb[0].mxu0
    %v1039 = vadd.f32 %v978, %v1038
    %v1040 = vpop.f32.mrb[0].mxu0
    %v1041 = vpop.f32.mrb[0].mxu0
    %v1042 = vpop.f32.mrb[0].mxu0
    %1043 = vdwg.mxu0
    %s1044 = scalar_lea.vmem [#allocation3], 10
    %1045 = vst.msk [vmem:[%s1044] sm:$0x3] %vm129, %v1039
    %s1046 = scalar_lea.vmem %s0, 6
    %v1047 = vld [vmem:[%s1046] sm:$0x1]
    %v1048 = vld [vmem:[%s2] sm:$0xf]
    %v1049 = vld [vmem:[%s2 + $0x4] sm:$0xf]
    %v1050 = vld [vmem:[%s2 + $0x8] sm:$0xf]
    %v1051 = vld [vmem:[%s2 + $0xc] sm:$0xf]
    %v1052 = vld [vmem:[%s2 + $0x10] sm:$0xf]
    %v1053 = vld [vmem:[%s2 + $0x14] sm:$0xf]
    %v1054 = vld [vmem:[%s2 + $0x18] sm:$0xf]
    %v1055 = vld [vmem:[%s2 + $0x1c] sm:$0xf]
    %v1056 = vld [vmem:[%s4] sm:$0x1]
    %v1058 = vlaneseq
    %v1059 = vshrl.u32 %v1058, 7
    %v1060 = vsub.s32 0, %v1059
    %v1061 = vrot.slane %v1056, %v1060
    %v1071 = vunpack.c.l.b16 %v1048
    %v1072 = vunpack.c.l.b16 %v1049
    %v1073 = vunpack.c.l.b16 %v1050
    %v1074 = vunpack.c.l.b16 %v1051
    %v1075 = vunpack.c.l.b16 %v1052
    %v1076 = vunpack.c.l.b16 %v1053
    %v1077 = vunpack.c.l.b16 %v1054
    %v1078 = vunpack.c.l.b16 %v1055
    %v1079 = vpack.c.b16 %v1072, %v1071
    %v1080 = vpack.c.b16 %v1074, %v1073
    %v1081 = vpack.c.b16 %v1076, %v1075
    %v1082 = vpack.c.b16 %v1078, %v1077
    %v1088 = vsel %vm85, %v1047, 0
    %1090 = vmatprep.subr.bf16.mxu0 0
    %1091 = vmatpush1.bf16.msra.mxu0 %v1079
    %1092 = vmatprep.subr.bf16.mxu0 0
    %1093 = vmatpush1.bf16.msra.mxu0 %v1080
    %1094 = vmatprep.subr.bf16.mxu0 0
    %1095 = vmatpush1.bf16.msra.mxu0 %v1081
    %1096 = vmatprep.subr.bf16.mxu0 0
    %1097 = vmatpush1.bf16.msra.mxu0 %v1082
    %1098 = vmatprep.subr.bf16.mxu0 0
    %1099 = vmatpush1.bf16.msra.mxu0 0
    %1100 = vmatprep.subr.bf16.mxu0 0
    %1101 = vmatpush1.bf16.msra.mxu0 0
    %1102 = vmatprep.subr.bf16.mxu0 0
    %1103 = vmatpush1.bf16.msra.mxu0 0
    %1104 = vmatprep.subr.bf16.mxu0 0
    %1105 = vmatpush1.bf16.msra.mxu0 0
    %1106 = vmatprep.subr.bf16.mxu0 0
    %1107 = vmatpush1.bf16.msra.mxu0 0
    %1108 = vmatprep.subr.bf16.mxu0 0
    %1109 = vmatpush1.bf16.msra.mxu0 0
    %1110 = vmatprep.subr.bf16.mxu0 0
    %1111 = vmatpush1.bf16.msra.mxu0 0
    %1112 = vmatprep.subr.bf16.mxu0 0
    %1113 = vmatpush1.bf16.msra.mxu0 0
    %1114 = vmatprep.subr.bf16.mxu0 0
    %1115 = vmatpush1.bf16.msra.mxu0 0
    %1116 = vmatprep.subr.bf16.mxu0 0
    %1117 = vmatpush1.bf16.msra.mxu0 0
    %1118 = vmatprep.subr.bf16.mxu0 0
    %1119 = vmatpush1.bf16.msra.mxu0 0
    %1120 = vmatprep.subr.bf16.mxu0 0
    %1121 = vmatpush1.bf16.msra.mxu0 0
    %1122 = vmatprep.mubr.bf16.mxu0 0
    %1123 = vmatmul.mubr.bf16.gmra.mrb[0].mxu0 %v1088
    %v1124 = vpop.f32.mrb[0].mxu0
    %v1125 = vadd.f32 %v1061, %v1124
    %v1126 = vpop.f32.mrb[0].mxu0
    %v1127 = vpop.f32.mrb[0].mxu0
    %v1128 = vpop.f32.mrb[0].mxu0
    %1129 = vdwg.mxu0
    %s1130 = scalar_lea.vmem [#allocation2], 12
    %1131 = vst.msk [vmem:[%s1130] sm:$0x3] %vm129, %v1125
    %v1132 = vld [vmem:[%s6] sm:$0xf]
    %v1133 = vld [vmem:[%s6 + $0x4] sm:$0xf]
    %v1134 = vld [vmem:[%s6 + $0x8] sm:$0xf]
    %v1135 = vld [vmem:[%s6 + $0xc] sm:$0xf]
    %v1136 = vld [vmem:[%s6 + $0x10] sm:$0xf]
    %v1137 = vld [vmem:[%s6 + $0x14] sm:$0xf]
    %v1138 = vld [vmem:[%s6 + $0x18] sm:$0xf]
    %v1139 = vld [vmem:[%s6 + $0x1c] sm:$0xf]
    %v1140 = vld [vmem:[%s8] sm:$0x1]
    %v1142 = vlaneseq
    %v1143 = vshrl.u32 %v1142, 7
    %v1144 = vsub.s32 0, %v1143
    %v1145 = vrot.slane %v1140, %v1144
    %v1155 = vunpack.c.l.b16 %v1132
    %v1156 = vunpack.c.l.b16 %v1133
    %v1157 = vunpack.c.l.b16 %v1134
    %v1158 = vunpack.c.l.b16 %v1135
    %v1159 = vunpack.c.l.b16 %v1136
    %v1160 = vunpack.c.l.b16 %v1137
    %v1161 = vunpack.c.l.b16 %v1138
    %v1162 = vunpack.c.l.b16 %v1139
    %v1163 = vpack.c.b16 %v1156, %v1155
    %v1164 = vpack.c.b16 %v1158, %v1157
    %v1165 = vpack.c.b16 %v1160, %v1159
    %v1166 = vpack.c.b16 %v1162, %v1161
    %1171 = vmatprep.subr.bf16.mxu0 0
    %1172 = vmatpush1.bf16.msra.mxu0 %v1163
    %1173 = vmatprep.subr.bf16.mxu0 0
    %1174 = vmatpush1.bf16.msra.mxu0 %v1164
    %1175 = vmatprep.subr.bf16.mxu0 0
    %1176 = vmatpush1.bf16.msra.mxu0 %v1165
    %1177 = vmatprep.subr.bf16.mxu0 0
    %1178 = vmatpush1.bf16.msra.mxu0 %v1166
    %1179 = vmatprep.subr.bf16.mxu0 0
    %1180 = vmatpush1.bf16.msra.mxu0 0
    %1181 = vmatprep.subr.bf16.mxu0 0
    %1182 = vmatpush1.bf16.msra.mxu0 0
    %1183 = vmatprep.subr.bf16.mxu0 0
    %1184 = vmatpush1.bf16.msra.mxu0 0
    %1185 = vmatprep.subr.bf16.mxu0 0
    %1186 = vmatpush1.bf16.msra.mxu0 0
    %1187 = vmatprep.subr.bf16.mxu0 0
    %1188 = vmatpush1.bf16.msra.mxu0 0
    %1189 = vmatprep.subr.bf16.mxu0 0
    %1190 = vmatpush1.bf16.msra.mxu0 0
    %1191 = vmatprep.subr.bf16.mxu0 0
    %1192 = vmatpush1.bf16.msra.mxu0 0
    %1193 = vmatprep.subr.bf16.mxu0 0
    %1194 = vmatpush1.bf16.msra.mxu0 0
    %1195 = vmatprep.subr.bf16.mxu0 0
    %1196 = vmatpush1.bf16.msra.mxu0 0
    %1197 = vmatprep.subr.bf16.mxu0 0
    %1198 = vmatpush1.bf16.msra.mxu0 0
    %1199 = vmatprep.subr.bf16.mxu0 0
    %1200 = vmatpush1.bf16.msra.mxu0 0
    %1201 = vmatprep.subr.bf16.mxu0 0
    %1202 = vmatpush1.bf16.msra.mxu0 0
    %1203 = vmatprep.mubr.bf16.mxu0 0
    %1204 = vmatmul.mubr.bf16.gmra.mrb[0].mxu0 %v1088
    %v1205 = vpop.f32.mrb[0].mxu0
    %v1206 = vadd.f32 %v1145, %v1205
    %v1207 = vpop.f32.mrb[0].mxu0
    %v1208 = vpop.f32.mrb[0].mxu0
    %v1209 = vpop.f32.mrb[0].mxu0
    %1210 = vdwg.mxu0
    %s1211 = scalar_lea.vmem [#allocation3], 12
    %1212 = vst.msk [vmem:[%s1211] sm:$0x3] %vm129, %v1206
    %s1213 = scalar_lea.vmem %s0, 7
    %v1214 = vld [vmem:[%s1213] sm:$0x1]
    %v1215 = vld [vmem:[%s2] sm:$0xf]
    %v1216 = vld [vmem:[%s2 + $0x4] sm:$0xf]
    %v1217 = vld [vmem:[%s2 + $0x8] sm:$0xf]
    %v1218 = vld [vmem:[%s2 + $0xc] sm:$0xf]
    %v1219 = vld [vmem:[%s2 + $0x10] sm:$0xf]
    %v1220 = vld [vmem:[%s2 + $0x14] sm:$0xf]
    %v1221 = vld [vmem:[%s2 + $0x18] sm:$0xf]
    %v1222 = vld [vmem:[%s2 + $0x1c] sm:$0xf]
    %v1223 = vld [vmem:[%s4] sm:$0x1]
    %v1225 = vlaneseq
    %v1226 = vshrl.u32 %v1225, 7
    %v1227 = vsub.s32 0, %v1226
    %v1228 = vrot.slane %v1223, %v1227
    %v1238 = vunpack.c.l.b16 %v1215
    %v1239 = vunpack.c.l.b16 %v1216
    %v1240 = vunpack.c.l.b16 %v1217
    %v1241 = vunpack.c.l.b16 %v1218
    %v1242 = vunpack.c.l.b16 %v1219
    %v1243 = vunpack.c.l.b16 %v1220
    %v1244 = vunpack.c.l.b16 %v1221
    %v1245 = vunpack.c.l.b16 %v1222
    %v1246 = vpack.c.b16 %v1239, %v1238
    %v1247 = vpack.c.b16 %v1241, %v1240
    %v1248 = vpack.c.b16 %v1243, %v1242
    %v1249 = vpack.c.b16 %v1245, %v1244
    %v1255 = vsel %vm85, %v1214, 0
    %1257 = vmatprep.subr.bf16.mxu0 0
    %1258 = vmatpush1.bf16.msra.mxu0 %v1246
    %1259 = vmatprep.subr.bf16.mxu0 0
    %1260 = vmatpush1.bf16.msra.mxu0 %v1247
    %1261 = vmatprep.subr.bf16.mxu0 0
    %1262 = vmatpush1.bf16.msra.mxu0 %v1248
    %1263 = vmatprep.subr.bf16.mxu0 0
    %1264 = vmatpush1.bf16.msra.mxu0 %v1249
    %1265 = vmatprep.subr.bf16.mxu0 0
    %1266 = vmatpush1.bf16.msra.mxu0 0
    %1267 = vmatprep.subr.bf16.mxu0 0
    %1268 = vmatpush1.bf16.msra.mxu0 0
    %1269 = vmatprep.subr.bf16.mxu0 0
    %1270 = vmatpush1.bf16.msra.mxu0 0
    %1271 = vmatprep.subr.bf16.mxu0 0
    %1272 = vmatpush1.bf16.msra.mxu0 0
    %1273 = vmatprep.subr.bf16.mxu0 0
    %1274 = vmatpush1.bf16.msra.mxu0 0
    %1275 = vmatprep.subr.bf16.mxu0 0
    %1276 = vmatpush1.bf16.msra.mxu0 0
    %1277 = vmatprep.subr.bf16.mxu0 0
    %1278 = vmatpush1.bf16.msra.mxu0 0
    %1279 = vmatprep.subr.bf16.mxu0 0
    %1280 = vmatpush1.bf16.msra.mxu0 0
    %1281 = vmatprep.subr.bf16.mxu0 0
    %1282 = vmatpush1.bf16.msra.mxu0 0
    %1283 = vmatprep.subr.bf16.mxu0 0
    %1284 = vmatpush1.bf16.msra.mxu0 0
    %1285 = vmatprep.subr.bf16.mxu0 0
    %1286 = vmatpush1.bf16.msra.mxu0 0
    %1287 = vmatprep.subr.bf16.mxu0 0
    %1288 = vmatpush1.bf16.msra.mxu0 0
    %1289 = vmatprep.mubr.bf16.mxu0 0
    %1290 = vmatmul.mubr.bf16.gmra.mrb[0].mxu0 %v1255
    %v1291 = vpop.f32.mrb[0].mxu0
    %v1292 = vadd.f32 %v1228, %v1291
    %v1293 = vpop.f32.mrb[0].mxu0
    %v1294 = vpop.f32.mrb[0].mxu0
    %v1295 = vpop.f32.mrb[0].mxu0
    %1296 = vdwg.mxu0
    %s1297 = scalar_lea.vmem [#allocation2], 14
    %1298 = vst.msk [vmem:[%s1297] sm:$0x3] %vm129, %v1292
    %v1299 = vld [vmem:[%s6] sm:$0xf]
    %v1300 = vld [vmem:[%s6 + $0x4] sm:$0xf]
    %v1301 = vld [vmem:[%s6 + $0x8] sm:$0xf]
    %v1302 = vld [vmem:[%s6 + $0xc] sm:$0xf]
    %v1303 = vld [vmem:[%s6 + $0x10] sm:$0xf]
    %v1304 = vld [vmem:[%s6 + $0x14] sm:$0xf]
    %v1305 = vld [vmem:[%s6 + $0x18] sm:$0xf]
    %v1306 = vld [vmem:[%s6 + $0x1c] sm:$0xf]
    %v1307 = vld [vmem:[%s8] sm:$0x1]
    %v1309 = vlaneseq
    %v1310 = vshrl.u32 %v1309, 7
    %v1311 = vsub.s32 0, %v1310
    %v1312 = vrot.slane %v1307, %v1311
    %v1322 = vunpack.c.l.b16 %v1299
    %v1323 = vunpack.c.l.b16 %v1300
    %v1324 = vunpack.c.l.b16 %v1301
    %v1325 = vunpack.c.l.b16 %v1302
    %v1326 = vunpack.c.l.b16 %v1303
    %v1327 = vunpack.c.l.b16 %v1304
    %v1328 = vunpack.c.l.b16 %v1305
    %v1329 = vunpack.c.l.b16 %v1306
    %v1330 = vpack.c.b16 %v1323, %v1322
    %v1331 = vpack.c.b16 %v1325, %v1324
    %v1332 = vpack.c.b16 %v1327, %v1326
    %v1333 = vpack.c.b16 %v1329, %v1328
    %1338 = vmatprep.subr.bf16.mxu0 0
    %1339 = vmatpush1.bf16.msra.mxu0 %v1330
    %1340 = vmatprep.subr.bf16.mxu0 0
    %1341 = vmatpush1.bf16.msra.mxu0 %v1331
    %1342 = vmatprep.subr.bf16.mxu0 0
    %1343 = vmatpush1.bf16.msra.mxu0 %v1332
    %1344 = vmatprep.subr.bf16.mxu0 0
    %1345 = vmatpush1.bf16.msra.mxu0 %v1333
    %1346 = vmatprep.subr.bf16.mxu0 0
    %1347 = vmatpush1.bf16.msra.mxu0 0
    %1348 = vmatprep.subr.bf16.mxu0 0
    %1349 = vmatpush1.bf16.msra.mxu0 0
    %1350 = vmatprep.subr.bf16.mxu0 0
    %1351 = vmatpush1.bf16.msra.mxu0 0
    %1352 = vmatprep.subr.bf16.mxu0 0
    %1353 = vmatpush1.bf16.msra.mxu0 0
    %1354 = vmatprep.subr.bf16.mxu0 0
    %1355 = vmatpush1.bf16.msra.mxu0 0
    %1356 = vmatprep.subr.bf16.mxu0 0
    %1357 = vmatpush1.bf16.msra.mxu0 0
    %1358 = vmatprep.subr.bf16.mxu0 0
    %1359 = vmatpush1.bf16.msra.mxu0 0
    %1360 = vmatprep.subr.bf16.mxu0 0
    %1361 = vmatpush1.bf16.msra.mxu0 0
    %1362 = vmatprep.subr.bf16.mxu0 0
    %1363 = vmatpush1.bf16.msra.mxu0 0
    %1364 = vmatprep.subr.bf16.mxu0 0
    %1365 = vmatpush1.bf16.msra.mxu0 0
    %1366 = vmatprep.subr.bf16.mxu0 0
    %1367 = vmatpush1.bf16.msra.mxu0 0
    %1368 = vmatprep.subr.bf16.mxu0 0
    %1369 = vmatpush1.bf16.msra.mxu0 0
    %1370 = vmatprep.mubr.bf16.mxu0 0
    %1371 = vmatmul.mubr.bf16.gmra.mrb[0].mxu0 %v1255
    %v1372 = vpop.f32.mrb[0].mxu0
    %v1373 = vadd.f32 %v1312, %v1372
    %v1374 = vpop.f32.mrb[0].mxu0
    %v1375 = vpop.f32.mrb[0].mxu0
    %v1376 = vpop.f32.mrb[0].mxu0
    %1377 = vdwg.mxu0
    %s1378 = scalar_lea.vmem [#allocation3], 14
    %1379 = vst.msk [vmem:[%s1378] sm:$0x3] %vm129, %v1373
    %v1380 = vld [vmem:[#allocation4] sm:$0x3]
    %v1381 = vld [vmem:[#allocation2] sm:$0x3]
    %v1382 = vpack.c.bf16 %v1380, %v1380
    %v1383 = vld [vmem:[%s3] sm:$0xf]
    %v1384 = vld [vmem:[%s3 + $0x4] sm:$0xf]
    %v1385 = vld [vmem:[%s3 + $0x8] sm:$0xf]
    %v1386 = vld [vmem:[%s3 + $0xc] sm:$0xf]
    %v1391 = vunpack.c.l.b16 %v1383
    %v1392 = vunpack.c.l.b16 %v1384
    %v1393 = vunpack.c.l.b16 %v1385
    %v1394 = vunpack.c.l.b16 %v1386
    %v1395 = vpack.c.b16 %v1392, %v1391
    %v1396 = vpack.c.b16 %v1394, %v1393
    %vm1399 = vcmask 261120
    %v1401 = vsel %vm1399, %v1382, 0
    %1403 = vmatprep.subr.bf16.mxu0 0
    %1404 = vmatpush1.bf16.msra.mxu0 %v1395
    %1405 = vmatprep.subr.bf16.mxu0 0
    %1406 = vmatpush1.bf16.msra.mxu0 %v1396
    %1407 = vmatprep.subr.bf16.mxu0 0
    %1408 = vmatpush1.bf16.msra.mxu0 0
    %1409 = vmatprep.subr.bf16.mxu0 0
    %1410 = vmatpush1.bf16.msra.mxu0 0
    %1411 = vmatprep.subr.bf16.mxu0 0
    %1412 = vmatpush1.bf16.msra.mxu0 0
    %1413 = vmatprep.subr.bf16.mxu0 0
    %1414 = vmatpush1.bf16.msra.mxu0 0
    %1415 = vmatprep.subr.bf16.mxu0 0
    %1416 = vmatpush1.bf16.msra.mxu0 0
    %1417 = vmatprep.subr.bf16.mxu0 0
    %1418 = vmatpush1.bf16.msra.mxu0 0
    %1419 = vmatprep.subr.bf16.mxu0 0
    %1420 = vmatpush1.bf16.msra.mxu0 0
    %1421 = vmatprep.subr.bf16.mxu0 0
    %1422 = vmatpush1.bf16.msra.mxu0 0
    %1423 = vmatprep.subr.bf16.mxu0 0
    %1424 = vmatpush1.bf16.msra.mxu0 0
    %1425 = vmatprep.subr.bf16.mxu0 0
    %1426 = vmatpush1.bf16.msra.mxu0 0
    %1427 = vmatprep.subr.bf16.mxu0 0
    %1428 = vmatpush1.bf16.msra.mxu0 0
    %1429 = vmatprep.subr.bf16.mxu0 0
    %1430 = vmatpush1.bf16.msra.mxu0 0
    %1431 = vmatprep.subr.bf16.mxu0 0
    %1432 = vmatpush1.bf16.msra.mxu0 0
    %1433 = vmatprep.subr.bf16.mxu0 0
    %1434 = vmatpush1.bf16.msra.mxu0 0
    %1435 = vmatprep.mubr.bf16.mxu0 0
    %1436 = vmatmul.mubr.bf16.gmra.mrb[0].mxu0 %v1401
    %v1437 = vpop.f32.mrb[0].mxu0
    %v1438 = vadd.f32 0.0, %v1437
    %v1439 = vpop.f32.mrb[0].mxu0
    %v1440 = vpop.f32.mrb[0].mxu0
    %v1441 = vpop.f32.mrb[0].mxu0
    %1442 = vdwg.mxu0
    %v1443 = vadd.f32 %v1381, %v1438
    %v1444 = vxor.u32 %v1443, 2147483648
    %v1445 = vmul.f32 %v1444, 1.442695
    %v1446 = vpow.pop %v1445
    %v1447 = vadd.f32 %v1446, 1.0
    %v1448 = vrcp.pop %v1447
    %v1449 = vmul.f32 1.0, %v1448
    %v1450 = vld [vmem:[%s5] sm:$0x1]
    %v1452 = vlaneseq
    %v1453 = vshrl.u32 %v1452, 7
    %v1454 = vsub.s32 0, %v1453
    %v1455 = vrot.slane %v1450, %v1454
    %1456 = vrot.lane.b32.xlu0 %v1455, 64
    %v1457 = vpop.permute.xlu0 %1456
    %v1459 = vadd.f32 %v1438, %v1457
    %1461 = vrot.lane.b32.xlu0 %v1459, 64
    %v1462 = vpop.permute.xlu0 %1461
    %v1464 = vmul.f32 %v1449, %v1462
    %1466 = vrot.lane.b32.xlu0 %v1464, 64
    %v1467 = vpop.permute.xlu0 %1466
    %v1469 = vadd.f32 %v1381, %v1467
    %v1470 = vtanh.pop %v1469
    %1472 = vrot.lane.b32.xlu0 %v1470, 64
    %v1473 = vpop.permute.xlu0 %1472
    %v1475 = vsub.f32 %v1380, %v1473
    %1477 = vrot.lane.b32.xlu0 %v1475, 32
    %v1478 = vpop.permute.xlu0 %1477
    %v1480 = vmul.f32 %v1449, %v1478
    %1482 = vrot.lane.b32.xlu0 %v1480, 32
    %v1483 = vpop.permute.xlu0 %1482
    %v1485 = vadd.f32 %v1470, %v1483
    %v1486 = vld [vmem:[%s1] sm:$0x3]
    %1488 = vset.pattern.permute.xlu0 0
    %1489 = vperm.xlu0 %1488, %v1486
    %v1490 = vpop.permute.xlu0 %1489
    %vm1492 = vcmp.gt.f32.partialorder %v1490, 0.0
    %1494 = vrot.lane.b32.xlu0 %v1380, 64
    %v1495 = vpop.permute.xlu0 %1494
    %v1497 = vsel %vm1492, %v1485, %v1495
    %1499 = vrot.lane.b32.xlu0 %v1497, 64
    %v1500 = vpop.permute.xlu0 %1499
    %1502 = vst.msk [vmem:[#allocation4] sm:$0x3] %vm42, %v1500
    %v1503 = vpack.c.bf16 %v1497, %v1497
    %v1506 = vunpack.c.l.s4 1966171168
    %v1507 = vunpack.c.0.s8 %v1506
    %v1508 = vlaneseq
    %v1509 = vshrl.u32 %v1508, 7
    %v1510 = vsub.s32 %v1507, %v1509
    %v1511 = vrot.slane %v1503, %v1510
    %v1513 = vunpack.c.l.s4 1966171168
    %v1514 = vunpack.c.0.s8 %v1513
    %v1515 = vlaneseq
    %v1516 = vshrl.u32 %v1515, 7
    %v1517 = vsub.s32 %v1514, %v1516
    %v1518 = vrot.slane %v1511, %v1517
    %1519 = vrot.lane.b32.xlu0 %v1518, 64
    %v1520 = vpop.permute.xlu0 %1519
    %vm1522 = vcmask 253952
    %1523 = vst.msk [vmem:[#allocation6] sm:$0x1] %vm1522, %v1520
    %v1524 = vld [vmem:[#allocation5] sm:$0x3]
    %v1525 = vld [vmem:[%s1378] sm:$0x3]
    %v1526 = vpack.c.bf16 %v1524, %v1524
    %v1527 = vld [vmem:[%s7] sm:$0xf]
    %v1528 = vld [vmem:[%s7 + $0x4] sm:$0xf]
    %v1529 = vld [vmem:[%s7 + $0x8] sm:$0xf]
    %v1530 = vld [vmem:[%s7 + $0xc] sm:$0xf]
    %v1535 = vunpack.c.l.b16 %v1527
    %v1536 = vunpack.c.l.b16 %v1528
    %v1537 = vunpack.c.l.b16 %v1529
    %v1538 = vunpack.c.l.b16 %v1530
    %v1539 = vpack.c.b16 %v1536, %v1535
    %v1540 = vpack.c.b16 %v1538, %v1537
    %v1544 = vsel %vm1399, %v1526, 0
    %1546 = vmatprep.subr.bf16.mxu0 0
    %1547 = vmatpush1.bf16.msra.mxu0 %v1539
    %1548 = vmatprep.subr.bf16.mxu0 0
    %1549 = vmatpush1.bf16.msra.mxu0 %v1540
    %1550 = vmatprep.subr.bf16.mxu0 0
    %1551 = vmatpush1.bf16.msra.mxu0 0
    %1552 = vmatprep.subr.bf16.mxu0 0
    %1553 = vmatpush1.bf16.msra.mxu0 0
    %1554 = vmatprep.subr.bf16.mxu0 0
    %1555 = vmatpush1.bf16.msra.mxu0 0
    %1556 = vmatprep.subr.bf16.mxu0 0
    %1557 = vmatpush1.bf16.msra.mxu0 0
    %1558 = vmatprep.subr.bf16.mxu0 0
    %1559 = vmatpush1.bf16.msra.mxu0 0
    %1560 = vmatprep.subr.bf16.mxu0 0
    %1561 = vmatpush1.bf16.msra.mxu0 0
    %1562 = vmatprep.subr.bf16.mxu0 0
    %1563 = vmatpush1.bf16.msra.mxu0 0
    %1564 = vmatprep.subr.bf16.mxu0 0
    %1565 = vmatpush1.bf16.msra.mxu0 0
    %1566 = vmatprep.subr.bf16.mxu0 0
    %1567 = vmatpush1.bf16.msra.mxu0 0
    %1568 = vmatprep.subr.bf16.mxu0 0
    %1569 = vmatpush1.bf16.msra.mxu0 0
    %1570 = vmatprep.subr.bf16.mxu0 0
    %1571 = vmatpush1.bf16.msra.mxu0 0
    %1572 = vmatprep.subr.bf16.mxu0 0
    %1573 = vmatpush1.bf16.msra.mxu0 0
    %1574 = vmatprep.subr.bf16.mxu0 0
    %1575 = vmatpush1.bf16.msra.mxu0 0
    %1576 = vmatprep.subr.bf16.mxu0 0
    %1577 = vmatpush1.bf16.msra.mxu0 0
    %1578 = vmatprep.mubr.bf16.mxu0 0
    %1579 = vmatmul.mubr.bf16.gmra.mrb[0].mxu0 %v1544
    %v1580 = vpop.f32.mrb[0].mxu0
    %v1581 = vadd.f32 0.0, %v1580
    %v1582 = vpop.f32.mrb[0].mxu0
    %v1583 = vpop.f32.mrb[0].mxu0
    %v1584 = vpop.f32.mrb[0].mxu0
    %1585 = vdwg.mxu0
    %v1586 = vadd.f32 %v1525, %v1581
    %v1587 = vxor.u32 %v1586, 2147483648
    %v1588 = vmul.f32 %v1587, 1.442695
    %v1589 = vpow.pop %v1588
    %v1590 = vadd.f32 %v1589, 1.0
    %v1591 = vrcp.pop %v1590
    %v1592 = vmul.f32 1.0, %v1591
    %v1593 = vld [vmem:[%s9] sm:$0x1]
    %v1595 = vlaneseq
    %v1596 = vshrl.u32 %v1595, 7
    %v1597 = vsub.s32 0, %v1596
    %v1598 = vrot.slane %v1593, %v1597
    %1599 = vrot.lane.b32.xlu0 %v1598, 64
    %v1600 = vpop.permute.xlu0 %1599
    %v1602 = vadd.f32 %v1581, %v1600
    %1604 = vrot.lane.b32.xlu0 %v1602, 64
    %v1605 = vpop.permute.xlu0 %1604
    %v1607 = vmul.f32 %v1592, %v1605
    %1609 = vrot.lane.b32.xlu0 %v1607, 64
    %v1610 = vpop.permute.xlu0 %1609
    %v1612 = vadd.f32 %v1525, %v1610
    %v1613 = vtanh.pop %v1612
    %1615 = vrot.lane.b32.xlu0 %v1613, 64
    %v1616 = vpop.permute.xlu0 %1615
    %v1618 = vsub.f32 %v1524, %v1616
    %1620 = vrot.lane.b32.xlu0 %v1618, 32
    %v1621 = vpop.permute.xlu0 %1620
    %v1623 = vmul.f32 %v1592, %v1621
    %1625 = vrot.lane.b32.xlu0 %v1623, 32
    %v1626 = vpop.permute.xlu0 %1625
    %v1628 = vadd.f32 %v1613, %v1626
    %s1629 = scalar_lea.vmem %s1, 14
    %v1630 = vld [vmem:[%s1629] sm:$0x3]
    %1632 = vset.pattern.permute.xlu0 0
    %1633 = vperm.xlu0 %1632, %v1630
    %v1634 = vpop.permute.xlu0 %1633
    %vm1636 = vcmp.gt.f32.partialorder %v1634, 0.0
    %1638 = vrot.lane.b32.xlu0 %v1524, 64
    %v1639 = vpop.permute.xlu0 %1638
    %v1641 = vsel %vm1636, %v1628, %v1639
    %1643 = vrot.lane.b32.xlu0 %v1641, 64
    %v1644 = vpop.permute.xlu0 %1643
    %1646 = vst.msk [vmem:[#allocation5] sm:$0x3] %vm42, %v1644
    %v1647 = vpack.c.bf16 %v1641, %v1641
    %v1650 = vunpack.c.l.s4 1966171168
    %v1651 = vunpack.c.0.s8 %v1650
    %v1652 = vlaneseq
    %v1653 = vshrl.u32 %v1652, 7
    %v1654 = vsub.s32 %v1651, %v1653
    %v1655 = vrot.slane %v1647, %v1654
    %v1657 = vunpack.c.l.s4 1966171168
    %v1658 = vunpack.c.0.s8 %v1657
    %v1659 = vlaneseq
    %v1660 = vshrl.u32 %v1659, 7
    %v1661 = vsub.s32 %v1658, %v1660
    %v1662 = vrot.slane %v1655, %v1661
    %1663 = vrot.lane.b32.xlu0 %v1662, 64
    %v1664 = vpop.permute.xlu0 %1663
    %s1666 = scalar_lea.vmem [#allocation8], 7
    %1667 = vst.msk [vmem:[%s1666] sm:$0x1] %vm1522, %v1664
    %v1668 = vld [vmem:[#allocation4] sm:$0x3]
    %v1669 = vld [vmem:[%s295] sm:$0x3]
    %v1670 = vpack.c.bf16 %v1668, %v1668
    %v1671 = vld [vmem:[%s3] sm:$0xf]
    %v1672 = vld [vmem:[%s3 + $0x4] sm:$0xf]
    %v1673 = vld [vmem:[%s3 + $0x8] sm:$0xf]
    %v1674 = vld [vmem:[%s3 + $0xc] sm:$0xf]
    %v1679 = vunpack.c.l.b16 %v1671
    %v1680 = vunpack.c.l.b16 %v1672
    %v1681 = vunpack.c.l.b16 %v1673
    %v1682 = vunpack.c.l.b16 %v1674
    %v1683 = vpack.c.b16 %v1680, %v1679
    %v1684 = vpack.c.b16 %v1682, %v1681
    %v1688 = vsel %vm1399, %v1670, 0
    %1690 = vmatprep.subr.bf16.mxu0 0
    %1691 = vmatpush1.bf16.msra.mxu0 %v1683
    %1692 = vmatprep.subr.bf16.mxu0 0
    %1693 = vmatpush1.bf16.msra.mxu0 %v1684
    %1694 = vmatprep.subr.bf16.mxu0 0
    %1695 = vmatpush1.bf16.msra.mxu0 0
    %1696 = vmatprep.subr.bf16.mxu0 0
    %1697 = vmatpush1.bf16.msra.mxu0 0
    %1698 = vmatprep.subr.bf16.mxu0 0
    %1699 = vmatpush1.bf16.msra.mxu0 0
    %1700 = vmatprep.subr.bf16.mxu0 0
    %1701 = vmatpush1.bf16.msra.mxu0 0
    %1702 = vmatprep.subr.bf16.mxu0 0
    %1703 = vmatpush1.bf16.msra.mxu0 0
    %1704 = vmatprep.subr.bf16.mxu0 0
    %1705 = vmatpush1.bf16.msra.mxu0 0
    %1706 = vmatprep.subr.bf16.mxu0 0
    %1707 = vmatpush1.bf16.msra.mxu0 0
    %1708 = vmatprep.subr.bf16.mxu0 0
    %1709 = vmatpush1.bf16.msra.mxu0 0
    %1710 = vmatprep.subr.bf16.mxu0 0
    %1711 = vmatpush1.bf16.msra.mxu0 0
    %1712 = vmatprep.subr.bf16.mxu0 0
    %1713 = vmatpush1.bf16.msra.mxu0 0
    %1714 = vmatprep.subr.bf16.mxu0 0
    %1715 = vmatpush1.bf16.msra.mxu0 0
    %1716 = vmatprep.subr.bf16.mxu0 0
    %1717 = vmatpush1.bf16.msra.mxu0 0
    %1718 = vmatprep.subr.bf16.mxu0 0
    %1719 = vmatpush1.bf16.msra.mxu0 0
    %1720 = vmatprep.subr.bf16.mxu0 0
    %1721 = vmatpush1.bf16.msra.mxu0 0
    %1722 = vmatprep.mubr.bf16.mxu0 0
    %1723 = vmatmul.mubr.bf16.gmra.mrb[0].mxu0 %v1688
    %v1724 = vpop.f32.mrb[0].mxu0
    %v1725 = vadd.f32 0.0, %v1724
    %v1726 = vpop.f32.mrb[0].mxu0
    %v1727 = vpop.f32.mrb[0].mxu0
    %v1728 = vpop.f32.mrb[0].mxu0
    %1729 = vdwg.mxu0
    %v1730 = vadd.f32 %v1669, %v1725
    %v1731 = vxor.u32 %v1730, 2147483648
    %v1732 = vmul.f32 %v1731, 1.442695
    %v1733 = vpow.pop %v1732
    %v1734 = vadd.f32 %v1733, 1.0
    %v1735 = vrcp.pop %v1734
    %v1736 = vmul.f32 1.0, %v1735
    %v1737 = vld [vmem:[%s5] sm:$0x1]
    %v1739 = vlaneseq
    %v1740 = vshrl.u32 %v1739, 7
    %v1741 = vsub.s32 0, %v1740
    %v1742 = vrot.slane %v1737, %v1741
    %1743 = vrot.lane.b32.xlu0 %v1742, 64
    %v1744 = vpop.permute.xlu0 %1743
    %v1746 = vadd.f32 %v1725, %v1744
    %1748 = vrot.lane.b32.xlu0 %v1746, 64
    %v1749 = vpop.permute.xlu0 %1748
    %v1751 = vmul.f32 %v1736, %v1749
    %1753 = vrot.lane.b32.xlu0 %v1751, 64
    %v1754 = vpop.permute.xlu0 %1753
    %v1756 = vadd.f32 %v1669, %v1754
    %v1757 = vtanh.pop %v1756
    %1759 = vrot.lane.b32.xlu0 %v1757, 64
    %v1760 = vpop.permute.xlu0 %1759
    %v1762 = vsub.f32 %v1668, %v1760
    %1764 = vrot.lane.b32.xlu0 %v1762, 32
    %v1765 = vpop.permute.xlu0 %1764
    %v1767 = vmul.f32 %v1736, %v1765
    %1769 = vrot.lane.b32.xlu0 %v1767, 32
    %v1770 = vpop.permute.xlu0 %1769
    %v1772 = vadd.f32 %v1757, %v1770
    %s1773 = scalar_lea.vmem %s1, 2
    %v1774 = vld [vmem:[%s1773] sm:$0x3]
    %1776 = vset.pattern.permute.xlu0 0
    %1777 = vperm.xlu0 %1776, %v1774
    %v1778 = vpop.permute.xlu0 %1777
    %vm1780 = vcmp.gt.f32.partialorder %v1778, 0.0
    %1782 = vrot.lane.b32.xlu0 %v1668, 64
    %v1783 = vpop.permute.xlu0 %1782
    %v1785 = vsel %vm1780, %v1772, %v1783
    %1787 = vrot.lane.b32.xlu0 %v1785, 64
    %v1788 = vpop.permute.xlu0 %1787
    %1790 = vst.msk [vmem:[#allocation4] sm:$0x3] %vm42, %v1788
    %v1791 = vpack.c.bf16 %v1785, %v1785
    %v1794 = vunpack.c.l.s4 1966171168
    %v1795 = vunpack.c.0.s8 %v1794
    %v1796 = vlaneseq
    %v1797 = vshrl.u32 %v1796, 7
    %v1798 = vsub.s32 %v1795, %v1797
    %v1799 = vrot.slane %v1791, %v1798
    %v1801 = vunpack.c.l.s4 1966171168
    %v1802 = vunpack.c.0.s8 %v1801
    %v1803 = vlaneseq
    %v1804 = vshrl.u32 %v1803, 7
    %v1805 = vsub.s32 %v1802, %v1804
    %v1806 = vrot.slane %v1799, %v1805
    %1807 = vrot.lane.b32.xlu0 %v1806, 64
    %v1808 = vpop.permute.xlu0 %1807
    %s1810 = scalar_lea.vmem [#allocation6], 1
    %1811 = vst.msk [vmem:[%s1810] sm:$0x1] %vm1522, %v1808
    %v1812 = vld [vmem:[#allocation5] sm:$0x3]
    %v1813 = vld [vmem:[%s1211] sm:$0x3]
    %v1814 = vpack.c.bf16 %v1812, %v1812
    %v1815 = vld [vmem:[%s7] sm:$0xf]
    %v1816 = vld [vmem:[%s7 + $0x4] sm:$0xf]
    %v1817 = vld [vmem:[%s7 + $0x8] sm:$0xf]
    %v1818 = vld [vmem:[%s7 + $0xc] sm:$0xf]
    %v1823 = vunpack.c.l.b16 %v1815
    %v1824 = vunpack.c.l.b16 %v1816
    %v1825 = vunpack.c.l.b16 %v1817
    %v1826 = vunpack.c.l.b16 %v1818
    %v1827 = vpack.c.b16 %v1824, %v1823
    %v1828 = vpack.c.b16 %v1826, %v1825
    %v1832 = vsel %vm1399, %v1814, 0
    %1834 = vmatprep.subr.bf16.mxu0 0
    %1835 = vmatpush1.bf16.msra.mxu0 %v1827
    %1836 = vmatprep.subr.bf16.mxu0 0
    %1837 = vmatpush1.bf16.msra.mxu0 %v1828
    %1838 = vmatprep.subr.bf16.mxu0 0
    %1839 = vmatpush1.bf16.msra.mxu0 0
    %1840 = vmatprep.subr.bf16.mxu0 0
    %1841 = vmatpush1.bf16.msra.mxu0 0
    %1842 = vmatprep.subr.bf16.mxu0 0
    %1843 = vmatpush1.bf16.msra.mxu0 0
    %1844 = vmatprep.subr.bf16.mxu0 0
    %1845 = vmatpush1.bf16.msra.mxu0 0
    %1846 = vmatprep.subr.bf16.mxu0 0
    %1847 = vmatpush1.bf16.msra.mxu0 0
    %1848 = vmatprep.subr.bf16.mxu0 0
    %1849 = vmatpush1.bf16.msra.mxu0 0
    %1850 = vmatprep.subr.bf16.mxu0 0
    %1851 = vmatpush1.bf16.msra.mxu0 0
    %1852 = vmatprep.subr.bf16.mxu0 0
    %1853 = vmatpush1.bf16.msra.mxu0 0
    %1854 = vmatprep.subr.bf16.mxu0 0
    %1855 = vmatpush1.bf16.msra.mxu0 0
    %1856 = vmatprep.subr.bf16.mxu0 0
    %1857 = vmatpush1.bf16.msra.mxu0 0
    %1858 = vmatprep.subr.bf16.mxu0 0
    %1859 = vmatpush1.bf16.msra.mxu0 0
    %1860 = vmatprep.subr.bf16.mxu0 0
    %1861 = vmatpush1.bf16.msra.mxu0 0
    %1862 = vmatprep.subr.bf16.mxu0 0
    %1863 = vmatpush1.bf16.msra.mxu0 0
    %1864 = vmatprep.subr.bf16.mxu0 0
    %1865 = vmatpush1.bf16.msra.mxu0 0
    %1866 = vmatprep.mubr.bf16.mxu0 0
    %1867 = vmatmul.mubr.bf16.gmra.mrb[0].mxu0 %v1832
    %v1868 = vpop.f32.mrb[0].mxu0
    %v1869 = vadd.f32 0.0, %v1868
    %v1870 = vpop.f32.mrb[0].mxu0
    %v1871 = vpop.f32.mrb[0].mxu0
    %v1872 = vpop.f32.mrb[0].mxu0
    %1873 = vdwg.mxu0
    %v1874 = vadd.f32 %v1813, %v1869
    %v1875 = vxor.u32 %v1874, 2147483648
    %v1876 = vmul.f32 %v1875, 1.442695
    %v1877 = vpow.pop %v1876
    %v1878 = vadd.f32 %v1877, 1.0
    %v1879 = vrcp.pop %v1878
    %v1880 = vmul.f32 1.0, %v1879
    %v1881 = vld [vmem:[%s9] sm:$0x1]
    %v1883 = vlaneseq
    %v1884 = vshrl.u32 %v1883, 7
    %v1885 = vsub.s32 0, %v1884
    %v1886 = vrot.slane %v1881, %v1885
    %1887 = vrot.lane.b32.xlu0 %v1886, 64
    %v1888 = vpop.permute.xlu0 %1887
    %v1890 = vadd.f32 %v1869, %v1888
    %1892 = vrot.lane.b32.xlu0 %v1890, 64
    %v1893 = vpop.permute.xlu0 %1892
    %v1895 = vmul.f32 %v1880, %v1893
    %1897 = vrot.lane.b32.xlu0 %v1895, 64
    %v1898 = vpop.permute.xlu0 %1897
    %v1900 = vadd.f32 %v1813, %v1898
    %v1901 = vtanh.pop %v1900
    %1903 = vrot.lane.b32.xlu0 %v1901, 64
    %v1904 = vpop.permute.xlu0 %1903
    %v1906 = vsub.f32 %v1812, %v1904
    %1908 = vrot.lane.b32.xlu0 %v1906, 32
    %v1909 = vpop.permute.xlu0 %1908
    %v1911 = vmul.f32 %v1880, %v1909
    %1913 = vrot.lane.b32.xlu0 %v1911, 32
    %v1914 = vpop.permute.xlu0 %1913
    %v1916 = vadd.f32 %v1901, %v1914
    %s1917 = scalar_lea.vmem %s1, 12
    %v1918 = vld [vmem:[%s1917] sm:$0x3]
    %1920 = vset.pattern.permute.xlu0 0
    %1921 = vperm.xlu0 %1920, %v1918
    %v1922 = vpop.permute.xlu0 %1921
    %vm1924 = vcmp.gt.f32.partialorder %v1922, 0.0
    %1926 = vrot.lane.b32.xlu0 %v1812, 64
    %v1927 = vpop.permute.xlu0 %1926
    %v1929 = vsel %vm1924, %v1916, %v1927
    %1931 = vrot.lane.b32.xlu0 %v1929, 64
    %v1932 = vpop.permute.xlu0 %1931
    %1934 = vst.msk [vmem:[#allocation5] sm:$0x3] %vm42, %v1932
    %v1935 = vpack.c.bf16 %v1929, %v1929
    %v1938 = vunpack.c.l.s4 1966171168
    %v1939 = vunpack.c.0.s8 %v1938
    %v1940 = vlaneseq
    %v1941 = vshrl.u32 %v1940, 7
    %v1942 = vsub.s32 %v1939, %v1941
    %v1943 = vrot.slane %v1935, %v1942
    %v1945 = vunpack.c.l.s4 1966171168
    %v1946 = vunpack.c.0.s8 %v1945
    %v1947 = vlaneseq
    %v1948 = vshrl.u32 %v1947, 7
    %v1949 = vsub.s32 %v1946, %v1948
    %v1950 = vrot.slane %v1943, %v1949
    %1951 = vrot.lane.b32.xlu0 %v1950, 64
    %v1952 = vpop.permute.xlu0 %1951
    %s1954 = scalar_lea.vmem [#allocation8], 6
    %1955 = vst.msk [vmem:[%s1954] sm:$0x1] %vm1522, %v1952
    %v1956 = vld [vmem:[#allocation4] sm:$0x3]
    %v1957 = vld [vmem:[%s462] sm:$0x3]
    %v1958 = vpack.c.bf16 %v1956, %v1956
    %v1959 = vld [vmem:[%s3] sm:$0xf]
    %v1960 = vld [vmem:[%s3 + $0x4] sm:$0xf]
    %v1961 = vld [vmem:[%s3 + $0x8] sm:$0xf]
    %v1962 = vld [vmem:[%s3 + $0xc] sm:$0xf]
    %v1967 = vunpack.c.l.b16 %v1959
    %v1968 = vunpack.c.l.b16 %v1960
    %v1969 = vunpack.c.l.b16 %v1961
    %v1970 = vunpack.c.l.b16 %v1962
    %v1971 = vpack.c.b16 %v1968, %v1967
    %v1972 = vpack.c.b16 %v1970, %v1969
    %v1976 = vsel %vm1399, %v1958, 0
    %1978 = vmatprep.subr.bf16.mxu0 0
    %1979 = vmatpush1.bf16.msra.mxu0 %v1971
    %1980 = vmatprep.subr.bf16.mxu0 0
    %1981 = vmatpush1.bf16.msra.mxu0 %v1972
    %1982 = vmatprep.subr.bf16.mxu0 0
    %1983 = vmatpush1.bf16.msra.mxu0 0
    %1984 = vmatprep.subr.bf16.mxu0 0
    %1985 = vmatpush1.bf16.msra.mxu0 0
    %1986 = vmatprep.subr.bf16.mxu0 0
    %1987 = vmatpush1.bf16.msra.mxu0 0
    %1988 = vmatprep.subr.bf16.mxu0 0
    %1989 = vmatpush1.bf16.msra.mxu0 0
    %1990 = vmatprep.subr.bf16.mxu0 0
    %1991 = vmatpush1.bf16.msra.mxu0 0
    %1992 = vmatprep.subr.bf16.mxu0 0
    %1993 = vmatpush1.bf16.msra.mxu0 0
    %1994 = vmatprep.subr.bf16.mxu0 0
    %1995 = vmatpush1.bf16.msra.mxu0 0
    %1996 = vmatprep.subr.bf16.mxu0 0
    %1997 = vmatpush1.bf16.msra.mxu0 0
    %1998 = vmatprep.subr.bf16.mxu0 0
    %1999 = vmatpush1.bf16.msra.mxu0 0
    %2000 = vmatprep.subr.bf16.mxu0 0
    %2001 = vmatpush1.bf16.msra.mxu0 0
    %2002 = vmatprep.subr.bf16.mxu0 0
    %2003 = vmatpush1.bf16.msra.mxu0 0
    %2004 = vmatprep.subr.bf16.mxu0 0
    %2005 = vmatpush1.bf16.msra.mxu0 0
    %2006 = vmatprep.subr.bf16.mxu0 0
    %2007 = vmatpush1.bf16.msra.mxu0 0
    %2008 = vmatprep.subr.bf16.mxu0 0
    %2009 = vmatpush1.bf16.msra.mxu0 0
    %2010 = vmatprep.mubr.bf16.mxu0 0
    %2011 = vmatmul.mubr.bf16.gmra.mrb[0].mxu0 %v1976
    %v2012 = vpop.f32.mrb[0].mxu0
    %v2013 = vadd.f32 0.0, %v2012
    %v2014 = vpop.f32.mrb[0].mxu0
    %v2015 = vpop.f32.mrb[0].mxu0
    %v2016 = vpop.f32.mrb[0].mxu0
    %2017 = vdwg.mxu0
    %v2018 = vadd.f32 %v1957, %v2013
    %v2019 = vxor.u32 %v2018, 2147483648
    %v2020 = vmul.f32 %v2019, 1.442695
    %v2021 = vpow.pop %v2020
    %v2022 = vadd.f32 %v2021, 1.0
    %v2023 = vrcp.pop %v2022
    %v2024 = vmul.f32 1.0, %v2023
    %v2025 = vld [vmem:[%s5] sm:$0x1]
    %v2027 = vlaneseq
    %v2028 = vshrl.u32 %v2027, 7
    %v2029 = vsub.s32 0, %v2028
    %v2030 = vrot.slane %v2025, %v2029
    %2031 = vrot.lane.b32.xlu0 %v2030, 64
    %v2032 = vpop.permute.xlu0 %2031
    %v2034 = vadd.f32 %v2013, %v2032
    %2036 = vrot.lane.b32.xlu0 %v2034, 64
    %v2037 = vpop.permute.xlu0 %2036
    %v2039 = vmul.f32 %v2024, %v2037
    %2041 = vrot.lane.b32.xlu0 %v2039, 64
    %v2042 = vpop.permute.xlu0 %2041
    %v2044 = vadd.f32 %v1957, %v2042
    %v2045 = vtanh.pop %v2044
    %2047 = vrot.lane.b32.xlu0 %v2045, 64
    %v2048 = vpop.permute.xlu0 %2047
    %v2050 = vsub.f32 %v1956, %v2048
    %2052 = vrot.lane.b32.xlu0 %v2050, 32
    %v2053 = vpop.permute.xlu0 %2052
    %v2055 = vmul.f32 %v2024, %v2053
    %2057 = vrot.lane.b32.xlu0 %v2055, 32
    %v2058 = vpop.permute.xlu0 %2057
    %v2060 = vadd.f32 %v2045, %v2058
    %s2061 = scalar_lea.vmem %s1, 4
    %v2062 = vld [vmem:[%s2061] sm:$0x3]
    %2064 = vset.pattern.permute.xlu0 0
    %2065 = vperm.xlu0 %2064, %v2062
    %v2066 = vpop.permute.xlu0 %2065
    %vm2068 = vcmp.gt.f32.partialorder %v2066, 0.0
    %2070 = vrot.lane.b32.xlu0 %v1956, 64
    %v2071 = vpop.permute.xlu0 %2070
    %v2073 = vsel %vm2068, %v2060, %v2071
    %2075 = vrot.lane.b32.xlu0 %v2073, 64
    %v2076 = vpop.permute.xlu0 %2075
    %2078 = vst.msk [vmem:[#allocation4] sm:$0x3] %vm42, %v2076
    %v2079 = vpack.c.bf16 %v2073, %v2073
    %v2082 = vunpack.c.l.s4 1966171168
    %v2083 = vunpack.c.0.s8 %v2082
    %v2084 = vlaneseq
    %v2085 = vshrl.u32 %v2084, 7
    %v2086 = vsub.s32 %v2083, %v2085
    %v2087 = vrot.slane %v2079, %v2086
    %v2089 = vunpack.c.l.s4 1966171168
    %v2090 = vunpack.c.0.s8 %v2089
    %v2091 = vlaneseq
    %v2092 = vshrl.u32 %v2091, 7
    %v2093 = vsub.s32 %v2090, %v2092
    %v2094 = vrot.slane %v2087, %v2093
    %2095 = vrot.lane.b32.xlu0 %v2094, 64
    %v2096 = vpop.permute.xlu0 %2095
    %s2098 = scalar_lea.vmem [#allocation6], 2
    %2099 = vst.msk [vmem:[%s2098] sm:$0x1] %vm1522, %v2096
    %v2100 = vld [vmem:[#allocation5] sm:$0x3]
    %v2101 = vld [vmem:[%s1044] sm:$0x3]
    %v2102 = vpack.c.bf16 %v2100, %v2100
    %v2103 = vld [vmem:[%s7] sm:$0xf]
    %v2104 = vld [vmem:[%s7 + $0x4] sm:$0xf]
    %v2105 = vld [vmem:[%s7 + $0x8] sm:$0xf]
    %v2106 = vld [vmem:[%s7 + $0xc] sm:$0xf]
    %v2111 = vunpack.c.l.b16 %v2103
    %v2112 = vunpack.c.l.b16 %v2104
    %v2113 = vunpack.c.l.b16 %v2105
    %v2114 = vunpack.c.l.b16 %v2106
    %v2115 = vpack.c.b16 %v2112, %v2111
    %v2116 = vpack.c.b16 %v2114, %v2113
    %v2120 = vsel %vm1399, %v2102, 0
    %2122 = vmatprep.subr.bf16.mxu0 0
    %2123 = vmatpush1.bf16.msra.mxu0 %v2115
    %2124 = vmatprep.subr.bf16.mxu0 0
    %2125 = vmatpush1.bf16.msra.mxu0 %v2116
    %2126 = vmatprep.subr.bf16.mxu0 0
    %2127 = vmatpush1.bf16.msra.mxu0 0
    %2128 = vmatprep.subr.bf16.mxu0 0
    %2129 = vmatpush1.bf16.msra.mxu0 0
    %2130 = vmatprep.subr.bf16.mxu0 0
    %2131 = vmatpush1.bf16.msra.mxu0 0
    %2132 = vmatprep.subr.bf16.mxu0 0
    %2133 = vmatpush1.bf16.msra.mxu0 0
    %2134 = vmatprep.subr.bf16.mxu0 0
    %2135 = vmatpush1.bf16.msra.mxu0 0
    %2136 = vmatprep.subr.bf16.mxu0 0
    %2137 = vmatpush1.bf16.msra.mxu0 0
    %2138 = vmatprep.subr.bf16.mxu0 0
    %2139 = vmatpush1.bf16.msra.mxu0 0
    %2140 = vmatprep.subr.bf16.mxu0 0
    %2141 = vmatpush1.bf16.msra.mxu0 0
    %2142 = vmatprep.subr.bf16.mxu0 0
    %2143 = vmatpush1.bf16.msra.mxu0 0
    %2144 = vmatprep.subr.bf16.mxu0 0
    %2145 = vmatpush1.bf16.msra.mxu0 0
    %2146 = vmatprep.subr.bf16.mxu0 0
    %2147 = vmatpush1.bf16.msra.mxu0 0
    %2148 = vmatprep.subr.bf16.mxu0 0
    %2149 = vmatpush1.bf16.msra.mxu0 0
    %2150 = vmatprep.subr.bf16.mxu0 0
    %2151 = vmatpush1.bf16.msra.mxu0 0
    %2152 = vmatprep.subr.bf16.mxu0 0
    %2153 = vmatpush1.bf16.msra.mxu0 0
    %2154 = vmatprep.mubr.bf16.mxu0 0
    %2155 = vmatmul.mubr.bf16.gmra.mrb[0].mxu0 %v2120
    %v2156 = vpop.f32.mrb[0].mxu0
    %v2157 = vadd.f32 0.0, %v2156
    %v2158 = vpop.f32.mrb[0].mxu0
    %v2159 = vpop.f32.mrb[0].mxu0
    %v2160 = vpop.f32.mrb[0].mxu0
    %2161 = vdwg.mxu0
    %v2162 = vadd.f32 %v2101, %v2157
    %v2163 = vxor.u32 %v2162, 2147483648
    %v2164 = vmul.f32 %v2163, 1.442695
    %v2165 = vpow.pop %v2164
    %v2166 = vadd.f32 %v2165, 1.0
    %v2167 = vrcp.pop %v2166
    %v2168 = vmul.f32 1.0, %v2167
    %v2169 = vld [vmem:[%s9] sm:$0x1]
    %v2171 = vlaneseq
    %v2172 = vshrl.u32 %v2171, 7
    %v2173 = vsub.s32 0, %v2172
    %v2174 = vrot.slane %v2169, %v2173
    %2175 = vrot.lane.b32.xlu0 %v2174, 64
    %v2176 = vpop.permute.xlu0 %2175
    %v2178 = vadd.f32 %v2157, %v2176
    %2180 = vrot.lane.b32.xlu0 %v2178, 64
    %v2181 = vpop.permute.xlu0 %2180
    %v2183 = vmul.f32 %v2168, %v2181
    %2185 = vrot.lane.b32.xlu0 %v2183, 64
    %v2186 = vpop.permute.xlu0 %2185
    %v2188 = vadd.f32 %v2101, %v2186
    %v2189 = vtanh.pop %v2188
    %2191 = vrot.lane.b32.xlu0 %v2189, 64
    %v2192 = vpop.permute.xlu0 %2191
    %v2194 = vsub.f32 %v2100, %v2192
    %2196 = vrot.lane.b32.xlu0 %v2194, 32
    %v2197 = vpop.permute.xlu0 %2196
    %v2199 = vmul.f32 %v2168, %v2197
    %2201 = vrot.lane.b32.xlu0 %v2199, 32
    %v2202 = vpop.permute.xlu0 %2201
    %v2204 = vadd.f32 %v2189, %v2202
    %s2205 = scalar_lea.vmem %s1, 10
    %v2206 = vld [vmem:[%s2205] sm:$0x3]
    %2208 = vset.pattern.permute.xlu0 0
    %2209 = vperm.xlu0 %2208, %v2206
    %v2210 = vpop.permute.xlu0 %2209
    %vm2212 = vcmp.gt.f32.partialorder %v2210, 0.0
    %2214 = vrot.lane.b32.xlu0 %v2100, 64
    %v2215 = vpop.permute.xlu0 %2214
    %v2217 = vsel %vm2212, %v2204, %v2215
    %2219 = vrot.lane.b32.xlu0 %v2217, 64
    %v2220 = vpop.permute.xlu0 %2219
    %2222 = vst.msk [vmem:[#allocation5] sm:$0x3] %vm42, %v2220
    %v2223 = vpack.c.bf16 %v2217, %v2217
    %v2226 = vunpack.c.l.s4 1966171168
    %v2227 = vunpack.c.0.s8 %v2226
    %v2228 = vlaneseq
    %v2229 = vshrl.u32 %v2228, 7
    %v2230 = vsub.s32 %v2227, %v2229
    %v2231 = vrot.slane %v2223, %v2230
    %v2233 = vunpack.c.l.s4 1966171168
    %v2234 = vunpack.c.0.s8 %v2233
    %v2235 = vlaneseq
    %v2236 = vshrl.u32 %v2235, 7
    %v2237 = vsub.s32 %v2234, %v2236
    %v2238 = vrot.slane %v2231, %v2237
    %2239 = vrot.lane.b32.xlu0 %v2238, 64
    %v2240 = vpop.permute.xlu0 %2239
    %s2242 = scalar_lea.vmem [#allocation8], 5
    %2243 = vst.msk [vmem:[%s2242] sm:$0x1] %vm1522, %v2240
    %v2244 = vld [vmem:[#allocation4] sm:$0x3]
    %v2245 = vld [vmem:[%s629] sm:$0x3]
    %v2246 = vpack.c.bf16 %v2244, %v2244
    %v2247 = vld [vmem:[%s3] sm:$0xf]
    %v2248 = vld [vmem:[%s3 + $0x4] sm:$0xf]
    %v2249 = vld [vmem:[%s3 + $0x8] sm:$0xf]
    %v2250 = vld [vmem:[%s3 + $0xc] sm:$0xf]
    %v2255 = vunpack.c.l.b16 %v2247
    %v2256 = vunpack.c.l.b16 %v2248
    %v2257 = vunpack.c.l.b16 %v2249
    %v2258 = vunpack.c.l.b16 %v2250
    %v2259 = vpack.c.b16 %v2256, %v2255
    %v2260 = vpack.c.b16 %v2258, %v2257
    %v2264 = vsel %vm1399, %v2246, 0
    %2266 = vmatprep.subr.bf16.mxu0 0
    %2267 = vmatpush1.bf16.msra.mxu0 %v2259
    %2268 = vmatprep.subr.bf16.mxu0 0
    %2269 = vmatpush1.bf16.msra.mxu0 %v2260
    %2270 = vmatprep.subr.bf16.mxu0 0
    %2271 = vmatpush1.bf16.msra.mxu0 0
    %2272 = vmatprep.subr.bf16.mxu0 0
    %2273 = vmatpush1.bf16.msra.mxu0 0
    %2274 = vmatprep.subr.bf16.mxu0 0
    %2275 = vmatpush1.bf16.msra.mxu0 0
    %2276 = vmatprep.subr.bf16.mxu0 0
    %2277 = vmatpush1.bf16.msra.mxu0 0
    %2278 = vmatprep.subr.bf16.mxu0 0
    %2279 = vmatpush1.bf16.msra.mxu0 0
    %2280 = vmatprep.subr.bf16.mxu0 0
    %2281 = vmatpush1.bf16.msra.mxu0 0
    %2282 = vmatprep.subr.bf16.mxu0 0
    %2283 = vmatpush1.bf16.msra.mxu0 0
    %2284 = vmatprep.subr.bf16.mxu0 0
    %2285 = vmatpush1.bf16.msra.mxu0 0
    %2286 = vmatprep.subr.bf16.mxu0 0
    %2287 = vmatpush1.bf16.msra.mxu0 0
    %2288 = vmatprep.subr.bf16.mxu0 0
    %2289 = vmatpush1.bf16.msra.mxu0 0
    %2290 = vmatprep.subr.bf16.mxu0 0
    %2291 = vmatpush1.bf16.msra.mxu0 0
    %2292 = vmatprep.subr.bf16.mxu0 0
    %2293 = vmatpush1.bf16.msra.mxu0 0
    %2294 = vmatprep.subr.bf16.mxu0 0
    %2295 = vmatpush1.bf16.msra.mxu0 0
    %2296 = vmatprep.subr.bf16.mxu0 0
    %2297 = vmatpush1.bf16.msra.mxu0 0
    %2298 = vmatprep.mubr.bf16.mxu0 0
    %2299 = vmatmul.mubr.bf16.gmra.mrb[0].mxu0 %v2264
    %v2300 = vpop.f32.mrb[0].mxu0
    %v2301 = vadd.f32 0.0, %v2300
    %v2302 = vpop.f32.mrb[0].mxu0
    %v2303 = vpop.f32.mrb[0].mxu0
    %v2304 = vpop.f32.mrb[0].mxu0
    %2305 = vdwg.mxu0
    %v2306 = vadd.f32 %v2245, %v2301
    %v2307 = vxor.u32 %v2306, 2147483648
    %v2308 = vmul.f32 %v2307, 1.442695
    %v2309 = vpow.pop %v2308
    %v2310 = vadd.f32 %v2309, 1.0
    %v2311 = vrcp.pop %v2310
    %v2312 = vmul.f32 1.0, %v2311
    %v2313 = vld [vmem:[%s5] sm:$0x1]
    %v2315 = vlaneseq
    %v2316 = vshrl.u32 %v2315, 7
    %v2317 = vsub.s32 0, %v2316
    %v2318 = vrot.slane %v2313, %v2317
    %2319 = vrot.lane.b32.xlu0 %v2318, 64
    %v2320 = vpop.permute.xlu0 %2319
    %v2322 = vadd.f32 %v2301, %v2320
    %2324 = vrot.lane.b32.xlu0 %v2322, 64
    %v2325 = vpop.permute.xlu0 %2324
    %v2327 = vmul.f32 %v2312, %v2325
    %2329 = vrot.lane.b32.xlu0 %v2327, 64
    %v2330 = vpop.permute.xlu0 %2329
    %v2332 = vadd.f32 %v2245, %v2330
    %v2333 = vtanh.pop %v2332
    %2335 = vrot.lane.b32.xlu0 %v2333, 64
    %v2336 = vpop.permute.xlu0 %2335
    %v2338 = vsub.f32 %v2244, %v2336
    %2340 = vrot.lane.b32.xlu0 %v2338, 32
    %v2341 = vpop.permute.xlu0 %2340
    %v2343 = vmul.f32 %v2312, %v2341
    %2345 = vrot.lane.b32.xlu0 %v2343, 32
    %v2346 = vpop.permute.xlu0 %2345
    %v2348 = vadd.f32 %v2333, %v2346
    %s2349 = scalar_lea.vmem %s1, 6
    %v2350 = vld [vmem:[%s2349] sm:$0x3]
    %2352 = vset.pattern.permute.xlu0 0
    %2353 = vperm.xlu0 %2352, %v2350
    %v2354 = vpop.permute.xlu0 %2353
    %vm2356 = vcmp.gt.f32.partialorder %v2354, 0.0
    %2358 = vrot.lane.b32.xlu0 %v2244, 64
    %v2359 = vpop.permute.xlu0 %2358
    %v2361 = vsel %vm2356, %v2348, %v2359
    %2363 = vrot.lane.b32.xlu0 %v2361, 64
    %v2364 = vpop.permute.xlu0 %2363
    %2366 = vst.msk [vmem:[#allocation4] sm:$0x3] %vm42, %v2364
    %v2367 = vpack.c.bf16 %v2361, %v2361
    %v2370 = vunpack.c.l.s4 1966171168
    %v2371 = vunpack.c.0.s8 %v2370
    %v2372 = vlaneseq
    %v2373 = vshrl.u32 %v2372, 7
    %v2374 = vsub.s32 %v2371, %v2373
    %v2375 = vrot.slane %v2367, %v2374
    %v2377 = vunpack.c.l.s4 1966171168
    %v2378 = vunpack.c.0.s8 %v2377
    %v2379 = vlaneseq
    %v2380 = vshrl.u32 %v2379, 7
    %v2381 = vsub.s32 %v2378, %v2380
    %v2382 = vrot.slane %v2375, %v2381
    %2383 = vrot.lane.b32.xlu0 %v2382, 64
    %v2384 = vpop.permute.xlu0 %2383
    %s2386 = scalar_lea.vmem [#allocation6], 3
    %2387 = vst.msk [vmem:[%s2386] sm:$0x1] %vm1522, %v2384
    %v2388 = vld [vmem:[#allocation5] sm:$0x3]
    %v2389 = vld [vmem:[%s877] sm:$0x3]
    %v2390 = vpack.c.bf16 %v2388, %v2388
    %v2391 = vld [vmem:[%s7] sm:$0xf]
    %v2392 = vld [vmem:[%s7 + $0x4] sm:$0xf]
    %v2393 = vld [vmem:[%s7 + $0x8] sm:$0xf]
    %v2394 = vld [vmem:[%s7 + $0xc] sm:$0xf]
    %v2399 = vunpack.c.l.b16 %v2391
    %v2400 = vunpack.c.l.b16 %v2392
    %v2401 = vunpack.c.l.b16 %v2393
    %v2402 = vunpack.c.l.b16 %v2394
    %v2403 = vpack.c.b16 %v2400, %v2399
    %v2404 = vpack.c.b16 %v2402, %v2401
    %v2408 = vsel %vm1399, %v2390, 0
    %2410 = vmatprep.subr.bf16.mxu0 0
    %2411 = vmatpush1.bf16.msra.mxu0 %v2403
    %2412 = vmatprep.subr.bf16.mxu0 0
    %2413 = vmatpush1.bf16.msra.mxu0 %v2404
    %2414 = vmatprep.subr.bf16.mxu0 0
    %2415 = vmatpush1.bf16.msra.mxu0 0
    %2416 = vmatprep.subr.bf16.mxu0 0
    %2417 = vmatpush1.bf16.msra.mxu0 0
    %2418 = vmatprep.subr.bf16.mxu0 0
    %2419 = vmatpush1.bf16.msra.mxu0 0
    %2420 = vmatprep.subr.bf16.mxu0 0
    %2421 = vmatpush1.bf16.msra.mxu0 0
    %2422 = vmatprep.subr.bf16.mxu0 0
    %2423 = vmatpush1.bf16.msra.mxu0 0
    %2424 = vmatprep.subr.bf16.mxu0 0
    %2425 = vmatpush1.bf16.msra.mxu0 0
    %2426 = vmatprep.subr.bf16.mxu0 0
    %2427 = vmatpush1.bf16.msra.mxu0 0
    %2428 = vmatprep.subr.bf16.mxu0 0
    %2429 = vmatpush1.bf16.msra.mxu0 0
    %2430 = vmatprep.subr.bf16.mxu0 0
    %2431 = vmatpush1.bf16.msra.mxu0 0
    %2432 = vmatprep.subr.bf16.mxu0 0
    %2433 = vmatpush1.bf16.msra.mxu0 0
    %2434 = vmatprep.subr.bf16.mxu0 0
    %2435 = vmatpush1.bf16.msra.mxu0 0
    %2436 = vmatprep.subr.bf16.mxu0 0
    %2437 = vmatpush1.bf16.msra.mxu0 0
    %2438 = vmatprep.subr.bf16.mxu0 0
    %2439 = vmatpush1.bf16.msra.mxu0 0
    %2440 = vmatprep.subr.bf16.mxu0 0
    %2441 = vmatpush1.bf16.msra.mxu0 0
    %2442 = vmatprep.mubr.bf16.mxu0 0
    %2443 = vmatmul.mubr.bf16.gmra.mrb[0].mxu0 %v2408
    %v2444 = vpop.f32.mrb[0].mxu0
    %v2445 = vadd.f32 0.0, %v2444
    %v2446 = vpop.f32.mrb[0].mxu0
    %v2447 = vpop.f32.mrb[0].mxu0
    %v2448 = vpop.f32.mrb[0].mxu0
    %2449 = vdwg.mxu0
    %v2450 = vadd.f32 %v2389, %v2445
    %v2451 = vxor.u32 %v2450, 2147483648
    %v2452 = vmul.f32 %v2451, 1.442695
    %v2453 = vpow.pop %v2452
    %v2454 = vadd.f32 %v2453, 1.0
    %v2455 = vrcp.pop %v2454
    %v2456 = vmul.f32 1.0, %v2455
    %v2457 = vld [vmem:[%s9] sm:$0x1]
    %v2459 = vlaneseq
    %v2460 = vshrl.u32 %v2459, 7
    %v2461 = vsub.s32 0, %v2460
    %v2462 = vrot.slane %v2457, %v2461
    %2463 = vrot.lane.b32.xlu0 %v2462, 64
    %v2464 = vpop.permute.xlu0 %2463
    %v2466 = vadd.f32 %v2445, %v2464
    %2468 = vrot.lane.b32.xlu0 %v2466, 64
    %v2469 = vpop.permute.xlu0 %2468
    %v2471 = vmul.f32 %v2456, %v2469
    %2473 = vrot.lane.b32.xlu0 %v2471, 64
    %v2474 = vpop.permute.xlu0 %2473
    %v2476 = vadd.f32 %v2389, %v2474
    %v2477 = vtanh.pop %v2476
    %2479 = vrot.lane.b32.xlu0 %v2477, 64
    %v2480 = vpop.permute.xlu0 %2479
    %v2482 = vsub.f32 %v2388, %v2480
    %2484 = vrot.lane.b32.xlu0 %v2482, 32
    %v2485 = vpop.permute.xlu0 %2484
    %v2487 = vmul.f32 %v2456, %v2485
    %2489 = vrot.lane.b32.xlu0 %v2487, 32
    %v2490 = vpop.permute.xlu0 %2489
    %v2492 = vadd.f32 %v2477, %v2490
    %s2493 = scalar_lea.vmem %s1, 8
    %v2494 = vld [vmem:[%s2493] sm:$0x3]
    %2496 = vset.pattern.permute.xlu0 0
    %2497 = vperm.xlu0 %2496, %v2494
    %v2498 = vpop.permute.xlu0 %2497
    %vm2500 = vcmp.gt.f32.partialorder %v2498, 0.0
    %2502 = vrot.lane.b32.xlu0 %v2388, 64
    %v2503 = vpop.permute.xlu0 %2502
    %v2505 = vsel %vm2500, %v2492, %v2503
    %2507 = vrot.lane.b32.xlu0 %v2505, 64
    %v2508 = vpop.permute.xlu0 %2507
    %2510 = vst.msk [vmem:[#allocation5] sm:$0x3] %vm42, %v2508
    %v2511 = vpack.c.bf16 %v2505, %v2505
    %v2514 = vunpack.c.l.s4 1966171168
    %v2515 = vunpack.c.0.s8 %v2514
    %v2516 = vlaneseq
    %v2517 = vshrl.u32 %v2516, 7
    %v2518 = vsub.s32 %v2515, %v2517
    %v2519 = vrot.slane %v2511, %v2518
    %v2521 = vunpack.c.l.s4 1966171168
    %v2522 = vunpack.c.0.s8 %v2521
    %v2523 = vlaneseq
    %v2524 = vshrl.u32 %v2523, 7
    %v2525 = vsub.s32 %v2522, %v2524
    %v2526 = vrot.slane %v2519, %v2525
    %2527 = vrot.lane.b32.xlu0 %v2526, 64
    %v2528 = vpop.permute.xlu0 %2527
    %s2530 = scalar_lea.vmem [#allocation8], 4
    %2531 = vst.msk [vmem:[%s2530] sm:$0x1] %vm1522, %v2528
    %v2532 = vld [vmem:[#allocation4] sm:$0x3]
    %v2533 = vld [vmem:[%s796] sm:$0x3]
    %v2534 = vpack.c.bf16 %v2532, %v2532
    %v2535 = vld [vmem:[%s3] sm:$0xf]
    %v2536 = vld [vmem:[%s3 + $0x4] sm:$0xf]
    %v2537 = vld [vmem:[%s3 + $0x8] sm:$0xf]
    %v2538 = vld [vmem:[%s3 + $0xc] sm:$0xf]
    %v2543 = vunpack.c.l.b16 %v2535
    %v2544 = vunpack.c.l.b16 %v2536
    %v2545 = vunpack.c.l.b16 %v2537
    %v2546 = vunpack.c.l.b16 %v2538
    %v2547 = vpack.c.b16 %v2544, %v2543
    %v2548 = vpack.c.b16 %v2546, %v2545
    %v2552 = vsel %vm1399, %v2534, 0
    %2554 = vmatprep.subr.bf16.mxu0 0
    %2555 = vmatpush1.bf16.msra.mxu0 %v2547
    %2556 = vmatprep.subr.bf16.mxu0 0
    %2557 = vmatpush1.bf16.msra.mxu0 %v2548
    %2558 = vmatprep.subr.bf16.mxu0 0
    %2559 = vmatpush1.bf16.msra.mxu0 0
    %2560 = vmatprep.subr.bf16.mxu0 0
    %2561 = vmatpush1.bf16.msra.mxu0 0
    %2562 = vmatprep.subr.bf16.mxu0 0
    %2563 = vmatpush1.bf16.msra.mxu0 0
    %2564 = vmatprep.subr.bf16.mxu0 0
    %2565 = vmatpush1.bf16.msra.mxu0 0
    %2566 = vmatprep.subr.bf16.mxu0 0
    %2567 = vmatpush1.bf16.msra.mxu0 0
    %2568 = vmatprep.subr.bf16.mxu0 0
    %2569 = vmatpush1.bf16.msra.mxu0 0
    %2570 = vmatprep.subr.bf16.mxu0 0
    %2571 = vmatpush1.bf16.msra.mxu0 0
    %2572 = vmatprep.subr.bf16.mxu0 0
    %2573 = vmatpush1.bf16.msra.mxu0 0
    %2574 = vmatprep.subr.bf16.mxu0 0
    %2575 = vmatpush1.bf16.msra.mxu0 0
    %2576 = vmatprep.subr.bf16.mxu0 0
    %2577 = vmatpush1.bf16.msra.mxu0 0
    %2578 = vmatprep.subr.bf16.mxu0 0
    %2579 = vmatpush1.bf16.msra.mxu0 0
    %2580 = vmatprep.subr.bf16.mxu0 0
    %2581 = vmatpush1.bf16.msra.mxu0 0
    %2582 = vmatprep.subr.bf16.mxu0 0
    %2583 = vmatpush1.bf16.msra.mxu0 0
    %2584 = vmatprep.subr.bf16.mxu0 0
    %2585 = vmatpush1.bf16.msra.mxu0 0
    %2586 = vmatprep.mubr.bf16.mxu0 0
    %2587 = vmatmul.mubr.bf16.gmra.mrb[0].mxu0 %v2552
    %v2588 = vpop.f32.mrb[0].mxu0
    %v2589 = vadd.f32 0.0, %v2588
    %v2590 = vpop.f32.mrb[0].mxu0
    %v2591 = vpop.f32.mrb[0].mxu0
    %v2592 = vpop.f32.mrb[0].mxu0
    %2593 = vdwg.mxu0
    %v2594 = vadd.f32 %v2533, %v2589
    %v2595 = vxor.u32 %v2594, 2147483648
    %v2596 = vmul.f32 %v2595, 1.442695
    %v2597 = vpow.pop %v2596
    %v2598 = vadd.f32 %v2597, 1.0
    %v2599 = vrcp.pop %v2598
    %v2600 = vmul.f32 1.0, %v2599
    %v2601 = vld [vmem:[%s5] sm:$0x1]
    %v2603 = vlaneseq
    %v2604 = vshrl.u32 %v2603, 7
    %v2605 = vsub.s32 0, %v2604
    %v2606 = vrot.slane %v2601, %v2605
    %2607 = vrot.lane.b32.xlu0 %v2606, 64
    %v2608 = vpop.permute.xlu0 %2607
    %v2610 = vadd.f32 %v2589, %v2608
    %2612 = vrot.lane.b32.xlu0 %v2610, 64
    %v2613 = vpop.permute.xlu0 %2612
    %v2615 = vmul.f32 %v2600, %v2613
    %2617 = vrot.lane.b32.xlu0 %v2615, 64
    %v2618 = vpop.permute.xlu0 %2617
    %v2620 = vadd.f32 %v2533, %v2618
    %v2621 = vtanh.pop %v2620
    %2623 = vrot.lane.b32.xlu0 %v2621, 64
    %v2624 = vpop.permute.xlu0 %2623
    %v2626 = vsub.f32 %v2532, %v2624
    %2628 = vrot.lane.b32.xlu0 %v2626, 32
    %v2629 = vpop.permute.xlu0 %2628
    %v2631 = vmul.f32 %v2600, %v2629
    %2633 = vrot.lane.b32.xlu0 %v2631, 32
    %v2634 = vpop.permute.xlu0 %2633
    %v2636 = vadd.f32 %v2621, %v2634
    %v2637 = vld [vmem:[%s2493] sm:$0x3]
    %2639 = vset.pattern.permute.xlu0 0
    %2640 = vperm.xlu0 %2639, %v2637
    %v2641 = vpop.permute.xlu0 %2640
    %vm2643 = vcmp.gt.f32.partialorder %v2641, 0.0
    %2645 = vrot.lane.b32.xlu0 %v2532, 64
    %v2646 = vpop.permute.xlu0 %2645
    %v2648 = vsel %vm2643, %v2636, %v2646
    %2650 = vrot.lane.b32.xlu0 %v2648, 64
    %v2651 = vpop.permute.xlu0 %2650
    %2653 = vst.msk [vmem:[#allocation4] sm:$0x3] %vm42, %v2651
    %v2654 = vpack.c.bf16 %v2648, %v2648
    %v2657 = vunpack.c.l.s4 1966171168
    %v2658 = vunpack.c.0.s8 %v2657
    %v2659 = vlaneseq
    %v2660 = vshrl.u32 %v2659, 7
    %v2661 = vsub.s32 %v2658, %v2660
    %v2662 = vrot.slane %v2654, %v2661
    %v2664 = vunpack.c.l.s4 1966171168
    %v2665 = vunpack.c.0.s8 %v2664
    %v2666 = vlaneseq
    %v2667 = vshrl.u32 %v2666, 7
    %v2668 = vsub.s32 %v2665, %v2667
    %v2669 = vrot.slane %v2662, %v2668
    %2670 = vrot.lane.b32.xlu0 %v2669, 64
    %v2671 = vpop.permute.xlu0 %2670
    %s2673 = scalar_lea.vmem [#allocation6], 4
    %2674 = vst.msk [vmem:[%s2673] sm:$0x1] %vm1522, %v2671
    %v2675 = vld [vmem:[#allocation5] sm:$0x3]
    %v2676 = vld [vmem:[%s710] sm:$0x3]
    %v2677 = vpack.c.bf16 %v2675, %v2675
    %v2678 = vld [vmem:[%s7] sm:$0xf]
    %v2679 = vld [vmem:[%s7 + $0x4] sm:$0xf]
    %v2680 = vld [vmem:[%s7 + $0x8] sm:$0xf]
    %v2681 = vld [vmem:[%s7 + $0xc] sm:$0xf]
    %v2686 = vunpack.c.l.b16 %v2678
    %v2687 = vunpack.c.l.b16 %v2679
    %v2688 = vunpack.c.l.b16 %v2680
    %v2689 = vunpack.c.l.b16 %v2681
    %v2690 = vpack.c.b16 %v2687, %v2686
    %v2691 = vpack.c.b16 %v2689, %v2688
    %v2695 = vsel %vm1399, %v2677, 0
    %2697 = vmatprep.subr.bf16.mxu0 0
    %2698 = vmatpush1.bf16.msra.mxu0 %v2690
    %2699 = vmatprep.subr.bf16.mxu0 0
    %2700 = vmatpush1.bf16.msra.mxu0 %v2691
    %2701 = vmatprep.subr.bf16.mxu0 0
    %2702 = vmatpush1.bf16.msra.mxu0 0
    %2703 = vmatprep.subr.bf16.mxu0 0
    %2704 = vmatpush1.bf16.msra.mxu0 0
    %2705 = vmatprep.subr.bf16.mxu0 0
    %2706 = vmatpush1.bf16.msra.mxu0 0
    %2707 = vmatprep.subr.bf16.mxu0 0
    %2708 = vmatpush1.bf16.msra.mxu0 0
    %2709 = vmatprep.subr.bf16.mxu0 0
    %2710 = vmatpush1.bf16.msra.mxu0 0
    %2711 = vmatprep.subr.bf16.mxu0 0
    %2712 = vmatpush1.bf16.msra.mxu0 0
    %2713 = vmatprep.subr.bf16.mxu0 0
    %2714 = vmatpush1.bf16.msra.mxu0 0
    %2715 = vmatprep.subr.bf16.mxu0 0
    %2716 = vmatpush1.bf16.msra.mxu0 0
    %2717 = vmatprep.subr.bf16.mxu0 0
    %2718 = vmatpush1.bf16.msra.mxu0 0
    %2719 = vmatprep.subr.bf16.mxu0 0
    %2720 = vmatpush1.bf16.msra.mxu0 0
    %2721 = vmatprep.subr.bf16.mxu0 0
    %2722 = vmatpush1.bf16.msra.mxu0 0
    %2723 = vmatprep.subr.bf16.mxu0 0
    %2724 = vmatpush1.bf16.msra.mxu0 0
    %2725 = vmatprep.subr.bf16.mxu0 0
    %2726 = vmatpush1.bf16.msra.mxu0 0
    %2727 = vmatprep.subr.bf16.mxu0 0
    %2728 = vmatpush1.bf16.msra.mxu0 0
    %2729 = vmatprep.mubr.bf16.mxu0 0
    %2730 = vmatmul.mubr.bf16.gmra.mrb[0].mxu0 %v2695
    %v2731 = vpop.f32.mrb[0].mxu0
    %v2732 = vadd.f32 0.0, %v2731
    %v2733 = vpop.f32.mrb[0].mxu0
    %v2734 = vpop.f32.mrb[0].mxu0
    %v2735 = vpop.f32.mrb[0].mxu0
    %2736 = vdwg.mxu0
    %v2737 = vadd.f32 %v2676, %v2732
    %v2738 = vxor.u32 %v2737, 2147483648
    %v2739 = vmul.f32 %v2738, 1.442695
    %v2740 = vpow.pop %v2739
    %v2741 = vadd.f32 %v2740, 1.0
    %v2742 = vrcp.pop %v2741
    %v2743 = vmul.f32 1.0, %v2742
    %v2744 = vld [vmem:[%s9] sm:$0x1]
    %v2746 = vlaneseq
    %v2747 = vshrl.u32 %v2746, 7
    %v2748 = vsub.s32 0, %v2747
    %v2749 = vrot.slane %v2744, %v2748
    %2750 = vrot.lane.b32.xlu0 %v2749, 64
    %v2751 = vpop.permute.xlu0 %2750
    %v2753 = vadd.f32 %v2732, %v2751
    %2755 = vrot.lane.b32.xlu0 %v2753, 64
    %v2756 = vpop.permute.xlu0 %2755
    %v2758 = vmul.f32 %v2743, %v2756
    %2760 = vrot.lane.b32.xlu0 %v2758, 64
    %v2761 = vpop.permute.xlu0 %2760
    %v2763 = vadd.f32 %v2676, %v2761
    %v2764 = vtanh.pop %v2763
    %2766 = vrot.lane.b32.xlu0 %v2764, 64
    %v2767 = vpop.permute.xlu0 %2766
    %v2769 = vsub.f32 %v2675, %v2767
    %2771 = vrot.lane.b32.xlu0 %v2769, 32
    %v2772 = vpop.permute.xlu0 %2771
    %v2774 = vmul.f32 %v2743, %v2772
    %2776 = vrot.lane.b32.xlu0 %v2774, 32
    %v2777 = vpop.permute.xlu0 %2776
    %v2779 = vadd.f32 %v2764, %v2777
    %v2780 = vld [vmem:[%s2349] sm:$0x3]
    %2782 = vset.pattern.permute.xlu0 0
    %2783 = vperm.xlu0 %2782, %v2780
    %v2784 = vpop.permute.xlu0 %2783
    %vm2786 = vcmp.gt.f32.partialorder %v2784, 0.0
    %2788 = vrot.lane.b32.xlu0 %v2675, 64
    %v2789 = vpop.permute.xlu0 %2788
    %v2791 = vsel %vm2786, %v2779, %v2789
    %2793 = vrot.lane.b32.xlu0 %v2791, 64
    %v2794 = vpop.permute.xlu0 %2793
    %2796 = vst.msk [vmem:[#allocation5] sm:$0x3] %vm42, %v2794
    %v2797 = vpack.c.bf16 %v2791, %v2791
    %v2800 = vunpack.c.l.s4 1966171168
    %v2801 = vunpack.c.0.s8 %v2800
    %v2802 = vlaneseq
    %v2803 = vshrl.u32 %v2802, 7
    %v2804 = vsub.s32 %v2801, %v2803
    %v2805 = vrot.slane %v2797, %v2804
    %v2807 = vunpack.c.l.s4 1966171168
    %v2808 = vunpack.c.0.s8 %v2807
    %v2809 = vlaneseq
    %v2810 = vshrl.u32 %v2809, 7
    %v2811 = vsub.s32 %v2808, %v2810
    %v2812 = vrot.slane %v2805, %v2811
    %2813 = vrot.lane.b32.xlu0 %v2812, 64
    %v2814 = vpop.permute.xlu0 %2813
    %s2816 = scalar_lea.vmem [#allocation8], 3
    %2817 = vst.msk [vmem:[%s2816] sm:$0x1] %vm1522, %v2814
    %v2818 = vld [vmem:[#allocation4] sm:$0x3]
    %v2819 = vld [vmem:[%s963] sm:$0x3]
    %v2820 = vpack.c.bf16 %v2818, %v2818
    %v2821 = vld [vmem:[%s3] sm:$0xf]
    %v2822 = vld [vmem:[%s3 + $0x4] sm:$0xf]
    %v2823 = vld [vmem:[%s3 + $0x8] sm:$0xf]
    %v2824 = vld [vmem:[%s3 + $0xc] sm:$0xf]
    %v2829 = vunpack.c.l.b16 %v2821
    %v2830 = vunpack.c.l.b16 %v2822
    %v2831 = vunpack.c.l.b16 %v2823
    %v2832 = vunpack.c.l.b16 %v2824
    %v2833 = vpack.c.b16 %v2830, %v2829
    %v2834 = vpack.c.b16 %v2832, %v2831
    %v2838 = vsel %vm1399, %v2820, 0
    %2840 = vmatprep.subr.bf16.mxu0 0
    %2841 = vmatpush1.bf16.msra.mxu0 %v2833
    %2842 = vmatprep.subr.bf16.mxu0 0
    %2843 = vmatpush1.bf16.msra.mxu0 %v2834
    %2844 = vmatprep.subr.bf16.mxu0 0
    %2845 = vmatpush1.bf16.msra.mxu0 0
    %2846 = vmatprep.subr.bf16.mxu0 0
    %2847 = vmatpush1.bf16.msra.mxu0 0
    %2848 = vmatprep.subr.bf16.mxu0 0
    %2849 = vmatpush1.bf16.msra.mxu0 0
    %2850 = vmatprep.subr.bf16.mxu0 0
    %2851 = vmatpush1.bf16.msra.mxu0 0
    %2852 = vmatprep.subr.bf16.mxu0 0
    %2853 = vmatpush1.bf16.msra.mxu0 0
    %2854 = vmatprep.subr.bf16.mxu0 0
    %2855 = vmatpush1.bf16.msra.mxu0 0
    %2856 = vmatprep.subr.bf16.mxu0 0
    %2857 = vmatpush1.bf16.msra.mxu0 0
    %2858 = vmatprep.subr.bf16.mxu0 0
    %2859 = vmatpush1.bf16.msra.mxu0 0
    %2860 = vmatprep.subr.bf16.mxu0 0
    %2861 = vmatpush1.bf16.msra.mxu0 0
    %2862 = vmatprep.subr.bf16.mxu0 0
    %2863 = vmatpush1.bf16.msra.mxu0 0
    %2864 = vmatprep.subr.bf16.mxu0 0
    %2865 = vmatpush1.bf16.msra.mxu0 0
    %2866 = vmatprep.subr.bf16.mxu0 0
    %2867 = vmatpush1.bf16.msra.mxu0 0
    %2868 = vmatprep.subr.bf16.mxu0 0
    %2869 = vmatpush1.bf16.msra.mxu0 0
    %2870 = vmatprep.subr.bf16.mxu0 0
    %2871 = vmatpush1.bf16.msra.mxu0 0
    %2872 = vmatprep.mubr.bf16.mxu0 0
    %2873 = vmatmul.mubr.bf16.gmra.mrb[0].mxu0 %v2838
    %v2874 = vpop.f32.mrb[0].mxu0
    %v2875 = vadd.f32 0.0, %v2874
    %v2876 = vpop.f32.mrb[0].mxu0
    %v2877 = vpop.f32.mrb[0].mxu0
    %v2878 = vpop.f32.mrb[0].mxu0
    %2879 = vdwg.mxu0
    %v2880 = vadd.f32 %v2819, %v2875
    %v2881 = vxor.u32 %v2880, 2147483648
    %v2882 = vmul.f32 %v2881, 1.442695
    %v2883 = vpow.pop %v2882
    %v2884 = vadd.f32 %v2883, 1.0
    %v2885 = vrcp.pop %v2884
    %v2886 = vmul.f32 1.0, %v2885
    %v2887 = vld [vmem:[%s5] sm:$0x1]
    %v2889 = vlaneseq
    %v2890 = vshrl.u32 %v2889, 7
    %v2891 = vsub.s32 0, %v2890
    %v2892 = vrot.slane %v2887, %v2891
    %2893 = vrot.lane.b32.xlu0 %v2892, 64
    %v2894 = vpop.permute.xlu0 %2893
    %v2896 = vadd.f32 %v2875, %v2894
    %2898 = vrot.lane.b32.xlu0 %v2896, 64
    %v2899 = vpop.permute.xlu0 %2898
    %v2901 = vmul.f32 %v2886, %v2899
    %2903 = vrot.lane.b32.xlu0 %v2901, 64
    %v2904 = vpop.permute.xlu0 %2903
    %v2906 = vadd.f32 %v2819, %v2904
    %v2907 = vtanh.pop %v2906
    %2909 = vrot.lane.b32.xlu0 %v2907, 64
    %v2910 = vpop.permute.xlu0 %2909
    %v2912 = vsub.f32 %v2818, %v2910
    %2914 = vrot.lane.b32.xlu0 %v2912, 32
    %v2915 = vpop.permute.xlu0 %2914
    %v2917 = vmul.f32 %v2886, %v2915
    %2919 = vrot.lane.b32.xlu0 %v2917, 32
    %v2920 = vpop.permute.xlu0 %2919
    %v2922 = vadd.f32 %v2907, %v2920
    %v2923 = vld [vmem:[%s2205] sm:$0x3]
    %2925 = vset.pattern.permute.xlu0 0
    %2926 = vperm.xlu0 %2925, %v2923
    %v2927 = vpop.permute.xlu0 %2926
    %vm2929 = vcmp.gt.f32.partialorder %v2927, 0.0
    %2931 = vrot.lane.b32.xlu0 %v2818, 64
    %v2932 = vpop.permute.xlu0 %2931
    %v2934 = vsel %vm2929, %v2922, %v2932
    %2936 = vrot.lane.b32.xlu0 %v2934, 64
    %v2937 = vpop.permute.xlu0 %2936
    %2939 = vst.msk [vmem:[#allocation4] sm:$0x3] %vm42, %v2937
    %v2940 = vpack.c.bf16 %v2934, %v2934
    %v2943 = vunpack.c.l.s4 1966171168
    %v2944 = vunpack.c.0.s8 %v2943
    %v2945 = vlaneseq
    %v2946 = vshrl.u32 %v2945, 7
    %v2947 = vsub.s32 %v2944, %v2946
    %v2948 = vrot.slane %v2940, %v2947
    %v2950 = vunpack.c.l.s4 1966171168
    %v2951 = vunpack.c.0.s8 %v2950
    %v2952 = vlaneseq
    %v2953 = vshrl.u32 %v2952, 7
    %v2954 = vsub.s32 %v2951, %v2953
    %v2955 = vrot.slane %v2948, %v2954
    %2956 = vrot.lane.b32.xlu0 %v2955, 64
    %v2957 = vpop.permute.xlu0 %2956
    %s2959 = scalar_lea.vmem [#allocation6], 5
    %2960 = vst.msk [vmem:[%s2959] sm:$0x1] %vm1522, %v2957
    %v2961 = vld [vmem:[#allocation5] sm:$0x3]
    %v2962 = vld [vmem:[%s543] sm:$0x3]
    %v2963 = vpack.c.bf16 %v2961, %v2961
    %v2964 = vld [vmem:[%s7] sm:$0xf]
    %v2965 = vld [vmem:[%s7 + $0x4] sm:$0xf]
    %v2966 = vld [vmem:[%s7 + $0x8] sm:$0xf]
    %v2967 = vld [vmem:[%s7 + $0xc] sm:$0xf]
    %v2972 = vunpack.c.l.b16 %v2964
    %v2973 = vunpack.c.l.b16 %v2965
    %v2974 = vunpack.c.l.b16 %v2966
    %v2975 = vunpack.c.l.b16 %v2967
    %v2976 = vpack.c.b16 %v2973, %v2972
    %v2977 = vpack.c.b16 %v2975, %v2974
    %v2981 = vsel %vm1399, %v2963, 0
    %2983 = vmatprep.subr.bf16.mxu0 0
    %2984 = vmatpush1.bf16.msra.mxu0 %v2976
    %2985 = vmatprep.subr.bf16.mxu0 0
    %2986 = vmatpush1.bf16.msra.mxu0 %v2977
    %2987 = vmatprep.subr.bf16.mxu0 0
    %2988 = vmatpush1.bf16.msra.mxu0 0
    %2989 = vmatprep.subr.bf16.mxu0 0
    %2990 = vmatpush1.bf16.msra.mxu0 0
    %2991 = vmatprep.subr.bf16.mxu0 0
    %2992 = vmatpush1.bf16.msra.mxu0 0
    %2993 = vmatprep.subr.bf16.mxu0 0
    %2994 = vmatpush1.bf16.msra.mxu0 0
    %2995 = vmatprep.subr.bf16.mxu0 0
    %2996 = vmatpush1.bf16.msra.mxu0 0
    %2997 = vmatprep.subr.bf16.mxu0 0
    %2998 = vmatpush1.bf16.msra.mxu0 0
    %2999 = vmatprep.subr.bf16.mxu0 0
    %3000 = vmatpush1.bf16.msra.mxu0 0
    %3001 = vmatprep.subr.bf16.mxu0 0
    %3002 = vmatpush1.bf16.msra.mxu0 0
    %3003 = vmatprep.subr.bf16.mxu0 0
    %3004 = vmatpush1.bf16.msra.mxu0 0
    %3005 = vmatprep.subr.bf16.mxu0 0
    %3006 = vmatpush1.bf16.msra.mxu0 0
    %3007 = vmatprep.subr.bf16.mxu0 0
    %3008 = vmatpush1.bf16.msra.mxu0 0
    %3009 = vmatprep.subr.bf16.mxu0 0
    %3010 = vmatpush1.bf16.msra.mxu0 0
    %3011 = vmatprep.subr.bf16.mxu0 0
    %3012 = vmatpush1.bf16.msra.mxu0 0
    %3013 = vmatprep.subr.bf16.mxu0 0
    %3014 = vmatpush1.bf16.msra.mxu0 0
    %3015 = vmatprep.mubr.bf16.mxu0 0
    %3016 = vmatmul.mubr.bf16.gmra.mrb[0].mxu0 %v2981
    %v3017 = vpop.f32.mrb[0].mxu0
    %v3018 = vadd.f32 0.0, %v3017
    %v3019 = vpop.f32.mrb[0].mxu0
    %v3020 = vpop.f32.mrb[0].mxu0
    %v3021 = vpop.f32.mrb[0].mxu0
    %3022 = vdwg.mxu0
    %v3023 = vadd.f32 %v2962, %v3018
    %v3024 = vxor.u32 %v3023, 2147483648
    %v3025 = vmul.f32 %v3024, 1.442695
    %v3026 = vpow.pop %v3025
    %v3027 = vadd.f32 %v3026, 1.0
    %v3028 = vrcp.pop %v3027
    %v3029 = vmul.f32 1.0, %v3028
    %v3030 = vld [vmem:[%s9] sm:$0x1]
    %v3032 = vlaneseq
    %v3033 = vshrl.u32 %v3032, 7
    %v3034 = vsub.s32 0, %v3033
    %v3035 = vrot.slane %v3030, %v3034
    %3036 = vrot.lane.b32.xlu0 %v3035, 64
    %v3037 = vpop.permute.xlu0 %3036
    %v3039 = vadd.f32 %v3018, %v3037
    %3041 = vrot.lane.b32.xlu0 %v3039, 64
    %v3042 = vpop.permute.xlu0 %3041
    %v3044 = vmul.f32 %v3029, %v3042
    %3046 = vrot.lane.b32.xlu0 %v3044, 64
    %v3047 = vpop.permute.xlu0 %3046
    %v3049 = vadd.f32 %v2962, %v3047
    %v3050 = vtanh.pop %v3049
    %3052 = vrot.lane.b32.xlu0 %v3050, 64
    %v3053 = vpop.permute.xlu0 %3052
    %v3055 = vsub.f32 %v2961, %v3053
    %3057 = vrot.lane.b32.xlu0 %v3055, 32
    %v3058 = vpop.permute.xlu0 %3057
    %v3060 = vmul.f32 %v3029, %v3058
    %3062 = vrot.lane.b32.xlu0 %v3060, 32
    %v3063 = vpop.permute.xlu0 %3062
    %v3065 = vadd.f32 %v3050, %v3063
    %v3066 = vld [vmem:[%s2061] sm:$0x3]
    %3068 = vset.pattern.permute.xlu0 0
    %3069 = vperm.xlu0 %3068, %v3066
    %v3070 = vpop.permute.xlu0 %3069
    %vm3072 = vcmp.gt.f32.partialorder %v3070, 0.0
    %3074 = vrot.lane.b32.xlu0 %v2961, 64
    %v3075 = vpop.permute.xlu0 %3074
    %v3077 = vsel %vm3072, %v3065, %v3075
    %3079 = vrot.lane.b32.xlu0 %v3077, 64
    %v3080 = vpop.permute.xlu0 %3079
    %3082 = vst.msk [vmem:[#allocation5] sm:$0x3] %vm42, %v3080
    %v3083 = vpack.c.bf16 %v3077, %v3077
    %v3086 = vunpack.c.l.s4 1966171168
    %v3087 = vunpack.c.0.s8 %v3086
    %v3088 = vlaneseq
    %v3089 = vshrl.u32 %v3088, 7
    %v3090 = vsub.s32 %v3087, %v3089
    %v3091 = vrot.slane %v3083, %v3090
    %v3093 = vunpack.c.l.s4 1966171168
    %v3094 = vunpack.c.0.s8 %v3093
    %v3095 = vlaneseq
    %v3096 = vshrl.u32 %v3095, 7
    %v3097 = vsub.s32 %v3094, %v3096
    %v3098 = vrot.slane %v3091, %v3097
    %3099 = vrot.lane.b32.xlu0 %v3098, 64
    %v3100 = vpop.permute.xlu0 %3099
    %s3102 = scalar_lea.vmem [#allocation8], 2
    %3103 = vst.msk [vmem:[%s3102] sm:$0x1] %vm1522, %v3100
    %v3104 = vld [vmem:[#allocation4] sm:$0x3]
    %v3105 = vld [vmem:[%s1130] sm:$0x3]
    %v3106 = vpack.c.bf16 %v3104, %v3104
    %v3107 = vld [vmem:[%s3] sm:$0xf]
    %v3108 = vld [vmem:[%s3 + $0x4] sm:$0xf]
    %v3109 = vld [vmem:[%s3 + $0x8] sm:$0xf]
    %v3110 = vld [vmem:[%s3 + $0xc] sm:$0xf]
    %v3115 = vunpack.c.l.b16 %v3107
    %v3116 = vunpack.c.l.b16 %v3108
    %v3117 = vunpack.c.l.b16 %v3109
    %v3118 = vunpack.c.l.b16 %v3110
    %v3119 = vpack.c.b16 %v3116, %v3115
    %v3120 = vpack.c.b16 %v3118, %v3117
    %v3124 = vsel %vm1399, %v3106, 0
    %3126 = vmatprep.subr.bf16.mxu0 0
    %3127 = vmatpush1.bf16.msra.mxu0 %v3119
    %3128 = vmatprep.subr.bf16.mxu0 0
    %3129 = vmatpush1.bf16.msra.mxu0 %v3120
    %3130 = vmatprep.subr.bf16.mxu0 0
    %3131 = vmatpush1.bf16.msra.mxu0 0
    %3132 = vmatprep.subr.bf16.mxu0 0
    %3133 = vmatpush1.bf16.msra.mxu0 0
    %3134 = vmatprep.subr.bf16.mxu0 0
    %3135 = vmatpush1.bf16.msra.mxu0 0
    %3136 = vmatprep.subr.bf16.mxu0 0
    %3137 = vmatpush1.bf16.msra.mxu0 0
    %3138 = vmatprep.subr.bf16.mxu0 0
    %3139 = vmatpush1.bf16.msra.mxu0 0
    %3140 = vmatprep.subr.bf16.mxu0 0
    %3141 = vmatpush1.bf16.msra.mxu0 0
    %3142 = vmatprep.subr.bf16.mxu0 0
    %3143 = vmatpush1.bf16.msra.mxu0 0
    %3144 = vmatprep.subr.bf16.mxu0 0
    %3145 = vmatpush1.bf16.msra.mxu0 0
    %3146 = vmatprep.subr.bf16.mxu0 0
    %3147 = vmatpush1.bf16.msra.mxu0 0
    %3148 = vmatprep.subr.bf16.mxu0 0
    %3149 = vmatpush1.bf16.msra.mxu0 0
    %3150 = vmatprep.subr.bf16.mxu0 0
    %3151 = vmatpush1.bf16.msra.mxu0 0
    %3152 = vmatprep.subr.bf16.mxu0 0
    %3153 = vmatpush1.bf16.msra.mxu0 0
    %3154 = vmatprep.subr.bf16.mxu0 0
    %3155 = vmatpush1.bf16.msra.mxu0 0
    %3156 = vmatprep.subr.bf16.mxu0 0
    %3157 = vmatpush1.bf16.msra.mxu0 0
    %3158 = vmatprep.mubr.bf16.mxu0 0
    %3159 = vmatmul.mubr.bf16.gmra.mrb[0].mxu0 %v3124
    %v3160 = vpop.f32.mrb[0].mxu0
    %v3161 = vadd.f32 0.0, %v3160
    %v3162 = vpop.f32.mrb[0].mxu0
    %v3163 = vpop.f32.mrb[0].mxu0
    %v3164 = vpop.f32.mrb[0].mxu0
    %3165 = vdwg.mxu0
    %v3166 = vadd.f32 %v3105, %v3161
    %v3167 = vxor.u32 %v3166, 2147483648
    %v3168 = vmul.f32 %v3167, 1.442695
    %v3169 = vpow.pop %v3168
    %v3170 = vadd.f32 %v3169, 1.0
    %v3171 = vrcp.pop %v3170
    %v3172 = vmul.f32 1.0, %v3171
    %v3173 = vld [vmem:[%s5] sm:$0x1]
    %v3175 = vlaneseq
    %v3176 = vshrl.u32 %v3175, 7
    %v3177 = vsub.s32 0, %v3176
    %v3178 = vrot.slane %v3173, %v3177
    %3179 = vrot.lane.b32.xlu0 %v3178, 64
    %v3180 = vpop.permute.xlu0 %3179
    %v3182 = vadd.f32 %v3161, %v3180
    %3184 = vrot.lane.b32.xlu0 %v3182, 64
    %v3185 = vpop.permute.xlu0 %3184
    %v3187 = vmul.f32 %v3172, %v3185
    %3189 = vrot.lane.b32.xlu0 %v3187, 64
    %v3190 = vpop.permute.xlu0 %3189
    %v3192 = vadd.f32 %v3105, %v3190
    %v3193 = vtanh.pop %v3192
    %3195 = vrot.lane.b32.xlu0 %v3193, 64
    %v3196 = vpop.permute.xlu0 %3195
    %v3198 = vsub.f32 %v3104, %v3196
    %3200 = vrot.lane.b32.xlu0 %v3198, 32
    %v3201 = vpop.permute.xlu0 %3200
    %v3203 = vmul.f32 %v3172, %v3201
    %3205 = vrot.lane.b32.xlu0 %v3203, 32
    %v3206 = vpop.permute.xlu0 %3205
    %v3208 = vadd.f32 %v3193, %v3206
    %v3209 = vld [vmem:[%s1917] sm:$0x3]
    %3211 = vset.pattern.permute.xlu0 0
    %3212 = vperm.xlu0 %3211, %v3209
    %v3213 = vpop.permute.xlu0 %3212
    %vm3215 = vcmp.gt.f32.partialorder %v3213, 0.0
    %3217 = vrot.lane.b32.xlu0 %v3104, 64
    %v3218 = vpop.permute.xlu0 %3217
    %v3220 = vsel %vm3215, %v3208, %v3218
    %3222 = vrot.lane.b32.xlu0 %v3220, 64
    %v3223 = vpop.permute.xlu0 %3222
    %3225 = vst.msk [vmem:[#allocation4] sm:$0x3] %vm42, %v3223
    %v3226 = vpack.c.bf16 %v3220, %v3220
    %v3229 = vunpack.c.l.s4 1966171168
    %v3230 = vunpack.c.0.s8 %v3229
    %v3231 = vlaneseq
    %v3232 = vshrl.u32 %v3231, 7
    %v3233 = vsub.s32 %v3230, %v3232
    %v3234 = vrot.slane %v3226, %v3233
    %v3236 = vunpack.c.l.s4 1966171168
    %v3237 = vunpack.c.0.s8 %v3236
    %v3238 = vlaneseq
    %v3239 = vshrl.u32 %v3238, 7
    %v3240 = vsub.s32 %v3237, %v3239
    %v3241 = vrot.slane %v3234, %v3240
    %3242 = vrot.lane.b32.xlu0 %v3241, 64
    %v3243 = vpop.permute.xlu0 %3242
    %s3245 = scalar_lea.vmem [#allocation6], 6
    %3246 = vst.msk [vmem:[%s3245] sm:$0x1] %vm1522, %v3243
    %v3247 = vld [vmem:[#allocation5] sm:$0x3]
    %v3248 = vld [vmem:[%s376] sm:$0x3]
    %v3249 = vpack.c.bf16 %v3247, %v3247
    %v3250 = vld [vmem:[%s7] sm:$0xf]
    %v3251 = vld [vmem:[%s7 + $0x4] sm:$0xf]
    %v3252 = vld [vmem:[%s7 + $0x8] sm:$0xf]
    %v3253 = vld [vmem:[%s7 + $0xc] sm:$0xf]
    %v3258 = vunpack.c.l.b16 %v3250
    %v3259 = vunpack.c.l.b16 %v3251
    %v3260 = vunpack.c.l.b16 %v3252
    %v3261 = vunpack.c.l.b16 %v3253
    %v3262 = vpack.c.b16 %v3259, %v3258
    %v3263 = vpack.c.b16 %v3261, %v3260
    %v3267 = vsel %vm1399, %v3249, 0
    %3269 = vmatprep.subr.bf16.mxu0 0
    %3270 = vmatpush1.bf16.msra.mxu0 %v3262
    %3271 = vmatprep.subr.bf16.mxu0 0
    %3272 = vmatpush1.bf16.msra.mxu0 %v3263
    %3273 = vmatprep.subr.bf16.mxu0 0
    %3274 = vmatpush1.bf16.msra.mxu0 0
    %3275 = vmatprep.subr.bf16.mxu0 0
    %3276 = vmatpush1.bf16.msra.mxu0 0
    %3277 = vmatprep.subr.bf16.mxu0 0
    %3278 = vmatpush1.bf16.msra.mxu0 0
    %3279 = vmatprep.subr.bf16.mxu0 0
    %3280 = vmatpush1.bf16.msra.mxu0 0
    %3281 = vmatprep.subr.bf16.mxu0 0
    %3282 = vmatpush1.bf16.msra.mxu0 0
    %3283 = vmatprep.subr.bf16.mxu0 0
    %3284 = vmatpush1.bf16.msra.mxu0 0
    %3285 = vmatprep.subr.bf16.mxu0 0
    %3286 = vmatpush1.bf16.msra.mxu0 0
    %3287 = vmatprep.subr.bf16.mxu0 0
    %3288 = vmatpush1.bf16.msra.mxu0 0
    %3289 = vmatprep.subr.bf16.mxu0 0
    %3290 = vmatpush1.bf16.msra.mxu0 0
    %3291 = vmatprep.subr.bf16.mxu0 0
    %3292 = vmatpush1.bf16.msra.mxu0 0
    %3293 = vmatprep.subr.bf16.mxu0 0
    %3294 = vmatpush1.bf16.msra.mxu0 0
    %3295 = vmatprep.subr.bf16.mxu0 0
    %3296 = vmatpush1.bf16.msra.mxu0 0
    %3297 = vmatprep.subr.bf16.mxu0 0
    %3298 = vmatpush1.bf16.msra.mxu0 0
    %3299 = vmatprep.subr.bf16.mxu0 0
    %3300 = vmatpush1.bf16.msra.mxu0 0
    %3301 = vmatprep.mubr.bf16.mxu0 0
    %3302 = vmatmul.mubr.bf16.gmra.mrb[0].mxu0 %v3267
    %v3303 = vpop.f32.mrb[0].mxu0
    %v3304 = vadd.f32 0.0, %v3303
    %v3305 = vpop.f32.mrb[0].mxu0
    %v3306 = vpop.f32.mrb[0].mxu0
    %v3307 = vpop.f32.mrb[0].mxu0
    %3308 = vdwg.mxu0
    %v3309 = vadd.f32 %v3248, %v3304
    %v3310 = vxor.u32 %v3309, 2147483648
    %v3311 = vmul.f32 %v3310, 1.442695
    %v3312 = vpow.pop %v3311
    %v3313 = vadd.f32 %v3312, 1.0
    %v3314 = vrcp.pop %v3313
    %v3315 = vmul.f32 1.0, %v3314
    %v3316 = vld [vmem:[%s9] sm:$0x1]
    %v3318 = vlaneseq
    %v3319 = vshrl.u32 %v3318, 7
    %v3320 = vsub.s32 0, %v3319
    %v3321 = vrot.slane %v3316, %v3320
    %3322 = vrot.lane.b32.xlu0 %v3321, 64
    %v3323 = vpop.permute.xlu0 %3322
    %v3325 = vadd.f32 %v3304, %v3323
    %3327 = vrot.lane.b32.xlu0 %v3325, 64
    %v3328 = vpop.permute.xlu0 %3327
    %v3330 = vmul.f32 %v3315, %v3328
    %3332 = vrot.lane.b32.xlu0 %v3330, 64
    %v3333 = vpop.permute.xlu0 %3332
    %v3335 = vadd.f32 %v3248, %v3333
    %v3336 = vtanh.pop %v3335
    %3338 = vrot.lane.b32.xlu0 %v3336, 64
    %v3339 = vpop.permute.xlu0 %3338
    %v3341 = vsub.f32 %v3247, %v3339
    %3343 = vrot.lane.b32.xlu0 %v3341, 32
    %v3344 = vpop.permute.xlu0 %3343
    %v3346 = vmul.f32 %v3315, %v3344
    %3348 = vrot.lane.b32.xlu0 %v3346, 32
    %v3349 = vpop.permute.xlu0 %3348
    %v3351 = vadd.f32 %v3336, %v3349
    %v3352 = vld [vmem:[%s1773] sm:$0x3]
    %3354 = vset.pattern.permute.xlu0 0
    %3355 = vperm.xlu0 %3354, %v3352
    %v3356 = vpop.permute.xlu0 %3355
    %vm3358 = vcmp.gt.f32.partialorder %v3356, 0.0
    %3360 = vrot.lane.b32.xlu0 %v3247, 64
    %v3361 = vpop.permute.xlu0 %3360
    %v3363 = vsel %vm3358, %v3351, %v3361
    %3365 = vrot.lane.b32.xlu0 %v3363, 64
    %v3366 = vpop.permute.xlu0 %3365
    %3368 = vst.msk [vmem:[#allocation5] sm:$0x3] %vm42, %v3366
    %v3369 = vpack.c.bf16 %v3363, %v3363
    %v3372 = vunpack.c.l.s4 1966171168
    %v3373 = vunpack.c.0.s8 %v3372
    %v3374 = vlaneseq
    %v3375 = vshrl.u32 %v3374, 7
    %v3376 = vsub.s32 %v3373, %v3375
    %v3377 = vrot.slane %v3369, %v3376
    %v3379 = vunpack.c.l.s4 1966171168
    %v3380 = vunpack.c.0.s8 %v3379
    %v3381 = vlaneseq
    %v3382 = vshrl.u32 %v3381, 7
    %v3383 = vsub.s32 %v3380, %v3382
    %v3384 = vrot.slane %v3377, %v3383
    %3385 = vrot.lane.b32.xlu0 %v3384, 64
    %v3386 = vpop.permute.xlu0 %3385
    %s3388 = scalar_lea.vmem [#allocation8], 1
    %3389 = vst.msk [vmem:[%s3388] sm:$0x1] %vm1522, %v3386
    %v3390 = vld [vmem:[#allocation4] sm:$0x3]
    %v3391 = vld [vmem:[%s1297] sm:$0x3]
    %v3392 = vpack.c.bf16 %v3390, %v3390
    %v3393 = vld [vmem:[%s3] sm:$0xf]
    %v3394 = vld [vmem:[%s3 + $0x4] sm:$0xf]
    %v3395 = vld [vmem:[%s3 + $0x8] sm:$0xf]
    %v3396 = vld [vmem:[%s3 + $0xc] sm:$0xf]
    %v3401 = vunpack.c.l.b16 %v3393
    %v3402 = vunpack.c.l.b16 %v3394
    %v3403 = vunpack.c.l.b16 %v3395
    %v3404 = vunpack.c.l.b16 %v3396
    %v3405 = vpack.c.b16 %v3402, %v3401
    %v3406 = vpack.c.b16 %v3404, %v3403
    %v3410 = vsel %vm1399, %v3392, 0
    %3412 = vmatprep.subr.bf16.mxu0 0
    %3413 = vmatpush1.bf16.msra.mxu0 %v3405
    %3414 = vmatprep.subr.bf16.mxu0 0
    %3415 = vmatpush1.bf16.msra.mxu0 %v3406
    %3416 = vmatprep.subr.bf16.mxu0 0
    %3417 = vmatpush1.bf16.msra.mxu0 0
    %3418 = vmatprep.subr.bf16.mxu0 0
    %3419 = vmatpush1.bf16.msra.mxu0 0
    %3420 = vmatprep.subr.bf16.mxu0 0
    %3421 = vmatpush1.bf16.msra.mxu0 0
    %3422 = vmatprep.subr.bf16.mxu0 0
    %3423 = vmatpush1.bf16.msra.mxu0 0
    %3424 = vmatprep.subr.bf16.mxu0 0
    %3425 = vmatpush1.bf16.msra.mxu0 0
    %3426 = vmatprep.subr.bf16.mxu0 0
    %3427 = vmatpush1.bf16.msra.mxu0 0
    %3428 = vmatprep.subr.bf16.mxu0 0
    %3429 = vmatpush1.bf16.msra.mxu0 0
    %3430 = vmatprep.subr.bf16.mxu0 0
    %3431 = vmatpush1.bf16.msra.mxu0 0
    %3432 = vmatprep.subr.bf16.mxu0 0
    %3433 = vmatpush1.bf16.msra.mxu0 0
    %3434 = vmatprep.subr.bf16.mxu0 0
    %3435 = vmatpush1.bf16.msra.mxu0 0
    %3436 = vmatprep.subr.bf16.mxu0 0
    %3437 = vmatpush1.bf16.msra.mxu0 0
    %3438 = vmatprep.subr.bf16.mxu0 0
    %3439 = vmatpush1.bf16.msra.mxu0 0
    %3440 = vmatprep.subr.bf16.mxu0 0
    %3441 = vmatpush1.bf16.msra.mxu0 0
    %3442 = vmatprep.subr.bf16.mxu0 0
    %3443 = vmatpush1.bf16.msra.mxu0 0
    %3444 = vmatprep.mubr.bf16.mxu0 0
    %3445 = vmatmul.mubr.bf16.gmra.mrb[0].mxu0 %v3410
    %v3446 = vpop.f32.mrb[0].mxu0
    %v3447 = vadd.f32 0.0, %v3446
    %v3448 = vpop.f32.mrb[0].mxu0
    %v3449 = vpop.f32.mrb[0].mxu0
    %v3450 = vpop.f32.mrb[0].mxu0
    %3451 = vdwg.mxu0
    %v3452 = vadd.f32 %v3391, %v3447
    %v3453 = vxor.u32 %v3452, 2147483648
    %v3454 = vmul.f32 %v3453, 1.442695
    %v3455 = vpow.pop %v3454
    %v3456 = vadd.f32 %v3455, 1.0
    %v3457 = vrcp.pop %v3456
    %v3458 = vmul.f32 1.0, %v3457
    %v3459 = vld [vmem:[%s5] sm:$0x1]
    %v3461 = vlaneseq
    %v3462 = vshrl.u32 %v3461, 7
    %v3463 = vsub.s32 0, %v3462
    %v3464 = vrot.slane %v3459, %v3463
    %3465 = vrot.lane.b32.xlu0 %v3464, 64
    %v3466 = vpop.permute.xlu0 %3465
    %v3468 = vadd.f32 %v3447, %v3466
    %3470 = vrot.lane.b32.xlu0 %v3468, 64
    %v3471 = vpop.permute.xlu0 %3470
    %v3473 = vmul.f32 %v3458, %v3471
    %3475 = vrot.lane.b32.xlu0 %v3473, 64
    %v3476 = vpop.permute.xlu0 %3475
    %v3478 = vadd.f32 %v3391, %v3476
    %v3479 = vtanh.pop %v3478
    %3481 = vrot.lane.b32.xlu0 %v3479, 64
    %v3482 = vpop.permute.xlu0 %3481
    %v3484 = vsub.f32 %v3390, %v3482
    %3486 = vrot.lane.b32.xlu0 %v3484, 32
    %v3487 = vpop.permute.xlu0 %3486
    %v3489 = vmul.f32 %v3458, %v3487
    %3491 = vrot.lane.b32.xlu0 %v3489, 32
    %v3492 = vpop.permute.xlu0 %3491
    %v3494 = vadd.f32 %v3479, %v3492
    %v3495 = vld [vmem:[%s1629] sm:$0x3]
    %3497 = vset.pattern.permute.xlu0 0
    %3498 = vperm.xlu0 %3497, %v3495
    %v3499 = vpop.permute.xlu0 %3498
    %vm3501 = vcmp.gt.f32.partialorder %v3499, 0.0
    %3503 = vrot.lane.b32.xlu0 %v3390, 64
    %v3504 = vpop.permute.xlu0 %3503
    %v3506 = vsel %vm3501, %v3494, %v3504
    %3508 = vrot.lane.b32.xlu0 %v3506, 64
    %v3509 = vpop.permute.xlu0 %3508
    %3511 = vst.msk [vmem:[#allocation4] sm:$0x3] %vm42, %v3509
    %v3512 = vpack.c.bf16 %v3506, %v3506
    %v3515 = vunpack.c.l.s4 1966171168
    %v3516 = vunpack.c.0.s8 %v3515
    %v3517 = vlaneseq
    %v3518 = vshrl.u32 %v3517, 7
    %v3519 = vsub.s32 %v3516, %v3518
    %v3520 = vrot.slane %v3512, %v3519
    %v3522 = vunpack.c.l.s4 1966171168
    %v3523 = vunpack.c.0.s8 %v3522
    %v3524 = vlaneseq
    %v3525 = vshrl.u32 %v3524, 7
    %v3526 = vsub.s32 %v3523, %v3525
    %v3527 = vrot.slane %v3520, %v3526
    %3528 = vrot.lane.b32.xlu0 %v3527, 64
    %v3529 = vpop.permute.xlu0 %3528
    %s3531 = scalar_lea.vmem [#allocation6], 7
    %3532 = vst.msk [vmem:[%s3531] sm:$0x1] %vm1522, %v3529
    %v3533 = vld [vmem:[#allocation5] sm:$0x3]
    %v3534 = vld [vmem:[#allocation3] sm:$0x3]
    %v3535 = vpack.c.bf16 %v3533, %v3533
    %v3536 = vld [vmem:[%s7] sm:$0xf]
    %v3537 = vld [vmem:[%s7 + $0x4] sm:$0xf]
    %v3538 = vld [vmem:[%s7 + $0x8] sm:$0xf]
    %v3539 = vld [vmem:[%s7 + $0xc] sm:$0xf]
    %v3544 = vunpack.c.l.b16 %v3536
    %v3545 = vunpack.c.l.b16 %v3537
    %v3546 = vunpack.c.l.b16 %v3538
    %v3547 = vunpack.c.l.b16 %v3539
    %v3548 = vpack.c.b16 %v3545, %v3544
    %v3549 = vpack.c.b16 %v3547, %v3546
    %v3553 = vsel %vm1399, %v3535, 0
    %3555 = vmatprep.subr.bf16.mxu0 0
    %3556 = vmatpush1.bf16.msra.mxu0 %v3548
    %3557 = vmatprep.subr.bf16.mxu0 0
    %3558 = vmatpush1.bf16.msra.mxu0 %v3549
    %3559 = vmatprep.subr.bf16.mxu0 0
    %3560 = vmatpush1.bf16.msra.mxu0 0
    %3561 = vmatprep.subr.bf16.mxu0 0
    %3562 = vmatpush1.bf16.msra.mxu0 0
    %3563 = vmatprep.subr.bf16.mxu0 0
    %3564 = vmatpush1.bf16.msra.mxu0 0
    %3565 = vmatprep.subr.bf16.mxu0 0
    %3566 = vmatpush1.bf16.msra.mxu0 0
    %3567 = vmatprep.subr.bf16.mxu0 0
    %3568 = vmatpush1.bf16.msra.mxu0 0
    %3569 = vmatprep.subr.bf16.mxu0 0
    %3570 = vmatpush1.bf16.msra.mxu0 0
    %3571 = vmatprep.subr.bf16.mxu0 0
    %3572 = vmatpush1.bf16.msra.mxu0 0
    %3573 = vmatprep.subr.bf16.mxu0 0
    %3574 = vmatpush1.bf16.msra.mxu0 0
    %3575 = vmatprep.subr.bf16.mxu0 0
    %3576 = vmatpush1.bf16.msra.mxu0 0
    %3577 = vmatprep.subr.bf16.mxu0 0
    %3578 = vmatpush1.bf16.msra.mxu0 0
    %3579 = vmatprep.subr.bf16.mxu0 0
    %3580 = vmatpush1.bf16.msra.mxu0 0
    %3581 = vmatprep.subr.bf16.mxu0 0
    %3582 = vmatpush1.bf16.msra.mxu0 0
    %3583 = vmatprep.subr.bf16.mxu0 0
    %3584 = vmatpush1.bf16.msra.mxu0 0
    %3585 = vmatprep.subr.bf16.mxu0 0
    %3586 = vmatpush1.bf16.msra.mxu0 0
    %3587 = vmatprep.mubr.bf16.mxu0 0
    %3588 = vmatmul.mubr.bf16.gmra.mrb[0].mxu0 %v3553
    %v3589 = vpop.f32.mrb[0].mxu0
    %v3590 = vadd.f32 0.0, %v3589
    %v3591 = vpop.f32.mrb[0].mxu0
    %v3592 = vpop.f32.mrb[0].mxu0
    %v3593 = vpop.f32.mrb[0].mxu0
    %3594 = vdwg.mxu0
    %v3595 = vadd.f32 %v3534, %v3590
    %v3596 = vxor.u32 %v3595, 2147483648
    %v3597 = vmul.f32 %v3596, 1.442695
    %v3598 = vpow.pop %v3597
    %v3599 = vadd.f32 %v3598, 1.0
    %v3600 = vrcp.pop %v3599
    %v3601 = vmul.f32 1.0, %v3600
    %v3602 = vld [vmem:[%s9] sm:$0x1]
    %v3604 = vlaneseq
    %v3605 = vshrl.u32 %v3604, 7
    %v3606 = vsub.s32 0, %v3605
    %v3607 = vrot.slane %v3602, %v3606
    %3608 = vrot.lane.b32.xlu0 %v3607, 64
    %v3609 = vpop.permute.xlu0 %3608
    %v3611 = vadd.f32 %v3590, %v3609
    %3613 = vrot.lane.b32.xlu0 %v3611, 64
    %v3614 = vpop.permute.xlu0 %3613
    %v3616 = vmul.f32 %v3601, %v3614
    %3618 = vrot.lane.b32.xlu0 %v3616, 64
    %v3619 = vpop.permute.xlu0 %3618
    %v3621 = vadd.f32 %v3534, %v3619
    %v3622 = vtanh.pop %v3621
    %3624 = vrot.lane.b32.xlu0 %v3622, 64
    %v3625 = vpop.permute.xlu0 %3624
    %v3627 = vsub.f32 %v3533, %v3625
    %3629 = vrot.lane.b32.xlu0 %v3627, 32
    %v3630 = vpop.permute.xlu0 %3629
    %v3632 = vmul.f32 %v3601, %v3630
    %3634 = vrot.lane.b32.xlu0 %v3632, 32
    %v3635 = vpop.permute.xlu0 %3634
    %v3637 = vadd.f32 %v3622, %v3635
    %v3638 = vld [vmem:[%s1] sm:$0x3]
    %3640 = vset.pattern.permute.xlu0 0
    %3641 = vperm.xlu0 %3640, %v3638
    %v3642 = vpop.permute.xlu0 %3641
    %vm3644 = vcmp.gt.f32.partialorder %v3642, 0.0
    %3646 = vrot.lane.b32.xlu0 %v3533, 64
    %v3647 = vpop.permute.xlu0 %3646
    %v3649 = vsel %vm3644, %v3637, %v3647
    %3651 = vrot.lane.b32.xlu0 %v3649, 64
    %v3652 = vpop.permute.xlu0 %3651
    %3654 = vst.msk [vmem:[#allocation5] sm:$0x3] %vm42, %v3652
    %v3655 = vpack.c.bf16 %v3649, %v3649
    %v3658 = vunpack.c.l.s4 1966171168
    %v3659 = vunpack.c.0.s8 %v3658
    %v3660 = vlaneseq
    %v3661 = vshrl.u32 %v3660, 7
    %v3662 = vsub.s32 %v3659, %v3661
    %v3663 = vrot.slane %v3655, %v3662
    %v3665 = vunpack.c.l.s4 1966171168
    %v3666 = vunpack.c.0.s8 %v3665
    %v3667 = vlaneseq
    %v3668 = vshrl.u32 %v3667, 7
    %v3669 = vsub.s32 %v3666, %v3668
    %v3670 = vrot.slane %v3663, %v3669
    %3671 = vrot.lane.b32.xlu0 %v3670, 64
    %v3672 = vpop.permute.xlu0 %3671
    %3674 = vst.msk [vmem:[#allocation8] sm:$0x1] %vm1522, %v3672
    %v3675 = vld [vmem:[#allocation4] sm:$0x3]
    %3676 = vst.msk [vmem:[%s12] sm:$0x3] %vm42, %v3675
    %v3677 = vld [vmem:[#allocation5] sm:$0x3]
    %3678 = vst.msk [vmem:[%s13] sm:$0x3] %vm42, %v3677
    // Predicated region
    $region42: #{rnn_encoder_forward.4} parent=1 // pred_check
      _
    $region43: #{rnn_encoder_forward.4} parent=1 // pred_check_branch
      %3680 = sbr.rel (0) target = $region45
    $region44: #{rnn_encoder_forward.4} parent=1 // pred_region
      %s3682 = ssub.s32 128, 128
      %3683 = vsyncadd [#allocation7], %s3682
      %s3684 = sshll.u32 [#allocation6], 4
      %s3685 = int_to_ptr.vmem [resolvable:$true] %s3684
      %3690 = dma.vmem_to_hbm [thread:$0]  %s3685, 128, %s10, [#allocation7], 16, 16, 1
    $region45: #{rnn_encoder_forward.4} parent=1 // pred_fallthru
      _
    // Predicated region
    $region46: #{rnn_encoder_forward.4} parent=1 // pred_check
      _
    $region47: #{rnn_encoder_forward.4} parent=1 // pred_check_branch
      %3692 = sbr.rel (0) target = $region49
    $region48: #{rnn_encoder_forward.4} parent=1 // pred_region
      %s3694 = ssub.s32 128, 128
      %3695 = vsyncadd [#allocation9], %s3694
      %s3696 = sshll.u32 [#allocation8], 4
      %s3697 = int_to_ptr.vmem [resolvable:$true] %s3696
      %3702 = dma.vmem_to_hbm [thread:$0]  %s3697, 128, %s11, [#allocation9], 16, 16, 1
    $region49: #{rnn_encoder_forward.4} parent=1 // pred_fallthru
      _
    // Predicated region
    $region50: #{rnn_encoder_forward.4} parent=1 // pred_check
      _
    $region51: #{rnn_encoder_forward.4} parent=1 // pred_check_branch
      %3704 = sbr.rel (0) target = $region53
    $region52: #{rnn_encoder_forward.4} parent=1 // pred_region
      _
    $region53: #{rnn_encoder_forward.4} parent=1 // pred_fallthru
      _
    // Predicated region
    $region54: #{rnn_encoder_forward.4} parent=1 // pred_check
      _
    $region55: #{rnn_encoder_forward.4} parent=1 // pred_check_branch
      %3706 = sbr.rel (0) target = $region57
    $region56: #{rnn_encoder_forward.4} parent=1 // pred_region
      _
    $region57: #{rnn_encoder_forward.4} parent=1 // pred_fallthru
      _
    // Predicated region
    $region58: #{rnn_encoder_forward.4} parent=1 // pred_check
      _
    $region59: #{rnn_encoder_forward.4} parent=1 // pred_check_branch
      %3708 = sbr.rel (0) target = $region61
    $region60: #{rnn_encoder_forward.4} parent=1 // pred_region
      %3709 = dma.done [#allocation7], 128
    $region61: #{rnn_encoder_forward.4} parent=1 // pred_fallthru
      _
    // Predicated region
    $region62: #{rnn_encoder_forward.4} parent=1 // pred_check
      _
    $region63: #{rnn_encoder_forward.4} parent=1 // pred_check_branch
      %3711 = sbr.rel (0) target = $region65
    $region64: #{rnn_encoder_forward.4} parent=1 // pred_region
      %3712 = dma.done [#allocation9], 128
    $region65: #{rnn_encoder_forward.4} parent=1 // pred_fallthru
      _
    // Predicated region
    $region66: #{rnn_encoder_forward.4} parent=1 // pred_check
      _
    $region67: #{rnn_encoder_forward.4} parent=1 // pred_check_branch
      %3714 = sbr.rel (0) target = $region69
    $region68: #{rnn_encoder_forward.4} parent=1 // pred_region
      _
    $region69: #{rnn_encoder_forward.4} parent=1 // pred_fallthru
      _
    // Predicated region
    $region70: #{rnn_encoder_forward.4} parent=1 // pred_check
      _
    $region71: #{rnn_encoder_forward.4} parent=1 // pred_check_branch
      %3716 = sbr.rel (0) target = $region73
    $region72: #{rnn_encoder_forward.4} parent=1 // pred_region
      _
    $region73: #{rnn_encoder_forward.4} parent=1 // pred_fallthru
      _
    %3717 = vsyncpa [#allocation7], 1
    %3718 = vsyncpa [#allocation9], 1

// kernel: rnn_encoder_forward.3
$region0: #{rnn_encoder_forward.3}
  #allocation0 [shape = 'u32[]', space=smem, size = 0x4, offset = 0x4, fixed_abs, tag = 'smem constant byte address 0x4 - core index']
  #allocation1 [shape = 'u32[144,128]{1,0:T(1,128)}', space=vmem, size = 0x12000, scoped, tag = 'internal scratch']
  #allocation2 [shape = 'f32[8,2,96]{2,1,0:T(2,128)}', space=vmem, size = 0x2000, scoped, tag = 'scratch operand']
  #allocation3 [shape = 'f32[8,2,96]{2,1,0:T(2,128)}', space=vmem, size = 0x2000, scoped, tag = 'scratch operand']
  #allocation4 [shape = 'f32[2,32]{1,0:T(2,128)}', space=vmem, size = 0x400, scoped, tag = 'scratch operand']
  #allocation5 [shape = 'f32[2,32]{1,0:T(2,128)}', space=vmem, size = 0x400, scoped, tag = 'scratch operand']
  %s0 = inlined_call_operand.vmem [shape: bf16[8,2,32], index: 0, kind: input, shape index: {}]
  %s1 = inlined_call_operand.vmem [shape: f32[8,2,1], index: 1, kind: input, shape index: {}]
  %s2 = inlined_call_operand.vmem [shape: bf16[32,96], index: 2, kind: input, shape index: {}]
  %s3 = inlined_call_operand.vmem [shape: bf16[32,96], index: 3, kind: input, shape index: {}]
  %s4 = inlined_call_operand.vmem [shape: f32[1,96], index: 4, kind: input, shape index: {}]
  %s5 = inlined_call_operand.vmem [shape: f32[1,32], index: 5, kind: input, shape index: {}]
  %s6 = inlined_call_operand.vmem [shape: bf16[32,96], index: 6, kind: input, shape index: {}]
  %s7 = inlined_call_operand.vmem [shape: bf16[32,96], index: 7, kind: input, shape index: {}]
  %s8 = inlined_call_operand.vmem [shape: f32[1,96], index: 8, kind: input, shape index: {}]
  %s9 = inlined_call_operand.vmem [shape: f32[1,32], index: 9, kind: input, shape index: {}]
  %s10 = inlined_call_operand.vmem [shape: bf16[8,2,32], index: 10, kind: output, shape index: {0}]
  %s11 = inlined_call_operand.vmem [shape: bf16[8,2,32], index: 11, kind: output, shape index: {1}]
  %s12 = inlined_call_operand.vmem [shape: f32[2,32], index: 12, kind: output, shape index: {2}]
  %s13 = inlined_call_operand.vmem [shape: f32[2,32], index: 13, kind: output, shape index: {3}]
  %14 = xla_tuple %s10, %s11, %s12, %s13
  %s15 = sld [smem:[#allocation0]]
  $region74: #{rnn_encoder_forward.3} parent=0
    _
  %s17 = ssub.s32 1, %s15
  %s18 = scalar_select 0, %s17, %s15
  // Predicated region
  $region2: #{rnn_encoder_forward.3} parent=0 // pred_check
    _
  $region3: #{rnn_encoder_forward.3} parent=0 // pred_check_branch
    %20 = sbr.rel (0) target = $region5
  $region4: #{rnn_encoder_forward.3} parent=0 // pred_region
    _
  $region5: #{rnn_encoder_forward.3} parent=0 // pred_fallthru
    _
  // Predicated region
  $region6: #{rnn_encoder_forward.3} parent=0 // pred_check
    _
  $region7: #{rnn_encoder_forward.3} parent=0 // pred_check_branch
    %22 = sbr.rel (0) target = $region9
  $region8: #{rnn_encoder_forward.3} parent=0 // pred_region
    _
  $region9: #{rnn_encoder_forward.3} parent=0 // pred_fallthru
    _
  // Predicated region
  $region10: #{rnn_encoder_forward.3} parent=0 // pred_check
    _
  $region11: #{rnn_encoder_forward.3} parent=0 // pred_check_branch
    %24 = sbr.rel (0) target = $region13
  $region12: #{rnn_encoder_forward.3} parent=0 // pred_region
    _
  $region13: #{rnn_encoder_forward.3} parent=0 // pred_fallthru
    _
  // Predicated region
  $region14: #{rnn_encoder_forward.3} parent=0 // pred_check
    _
  $region15: #{rnn_encoder_forward.3} parent=0 // pred_check_branch
    %26 = sbr.rel (0) target = $region17
  $region16: #{rnn_encoder_forward.3} parent=0 // pred_region
    _
  $region17: #{rnn_encoder_forward.3} parent=0 // pred_fallthru
    _
  // Predicated region
  $region18: #{rnn_encoder_forward.3} parent=0 // pred_check
    _
  $region19: #{rnn_encoder_forward.3} parent=0 // pred_check_branch
    %28 = sbr.rel (0) target = $region21
  $region20: #{rnn_encoder_forward.3} parent=0 // pred_region
    _
  $region21: #{rnn_encoder_forward.3} parent=0 // pred_fallthru
    _
  // Predicated region
  $region22: #{rnn_encoder_forward.3} parent=0 // pred_check
    _
  $region23: #{rnn_encoder_forward.3} parent=0 // pred_check_branch
    %30 = sbr.rel (0) target = $region25
  $region24: #{rnn_encoder_forward.3} parent=0 // pred_region
    _
  $region25: #{rnn_encoder_forward.3} parent=0 // pred_fallthru
    _
  // Predicated region
  $region26: #{rnn_encoder_forward.3} parent=0 // pred_check
    _
  $region27: #{rnn_encoder_forward.3} parent=0 // pred_check_branch
    %32 = sbr.rel (0) target = $region29
  $region28: #{rnn_encoder_forward.3} parent=0 // pred_region
    _
  $region29: #{rnn_encoder_forward.3} parent=0 // pred_fallthru
    _
  // Predicated region
  $region30: #{rnn_encoder_forward.3} parent=0 // pred_check
    _
  $region31: #{rnn_encoder_forward.3} parent=0 // pred_check_branch
    %34 = sbr.rel (0) target = $region33
  $region32: #{rnn_encoder_forward.3} parent=0 // pred_region
    _
  $region33: #{rnn_encoder_forward.3} parent=0 // pred_fallthru
    _
  // Predicated region
  $region34: #{rnn_encoder_forward.3} parent=0 // pred_check
    _
  $region35: #{rnn_encoder_forward.3} parent=0 // pred_check_branch
    %36 = sbr.rel (0) target = $region37
  $region36: #{rnn_encoder_forward.3} parent=0 // pred_region
    _
  $region37: #{rnn_encoder_forward.3} parent=0 // pred_fallthru
    _
  // Predicated region
  $region38: #{rnn_encoder_forward.3} parent=0 // pred_check
    _
  $region39: #{rnn_encoder_forward.3} parent=0 // pred_check_branch
    %38 = sbr.rel (0) target = $region41
  $region40: #{rnn_encoder_forward.3} parent=0 // pred_region
    _
  $region41: #{rnn_encoder_forward.3} parent=0 // pred_fallthru
    _
  %vm40 = vcmask 254976
  %41 = vst.msk [vmem:[#allocation4] sm:$0x3] %vm40, 0.0
  %42 = vst.msk [vmem:[#allocation5] sm:$0x3] %vm40, 0.0
  %v43 = vld [vmem:[%s0] sm:$0x1]
  %v44 = vld [vmem:[%s2] sm:$0xf]
  %v45 = vld [vmem:[%s2 + $0x4] sm:$0xf]
  %v46 = vld [vmem:[%s2 + $0x8] sm:$0xf]
  %v47 = vld [vmem:[%s2 + $0xc] sm:$0xf]
  %v48 = vld [vmem:[%s4] sm:$0x1]
  %v50 = vlaneseq
  %v51 = vshrl.u32 %v50, 7
  %v52 = vsub.s32 0, %v51
  %v53 = vrot.slane %v48, %v52
  %v59 = vunpack.c.l.b16 %v44
  %v60 = vunpack.c.l.b16 %v45
  %v61 = vunpack.c.l.b16 %v46
  %v62 = vunpack.c.l.b16 %v47
  %v63 = vpack.c.b16 %v60, %v59
  %v64 = vpack.c.b16 %v62, %v61
  %vm67 = vcmask 261120
  %v69 = vsel %vm67, %v43, 0
  %71 = vmatprep.subr.bf16.mxu0 0
  %72 = vmatpush1.bf16.msra.mxu0 %v63
  %73 = vmatprep.subr.bf16.mxu0 0
  %74 = vmatpush1.bf16.msra.mxu0 %v64
  %75 = vmatprep.subr.bf16.mxu0 0
  %76 = vmatpush1.bf16.msra.mxu0 0
  %77 = vmatprep.subr.bf16.mxu0 0
  %78 = vmatpush1.bf16.msra.mxu0 0
  %79 = vmatprep.subr.bf16.mxu0 0
  %80 = vmatpush1.bf16.msra.mxu0 0
  %81 = vmatprep.subr.bf16.mxu0 0
  %82 = vmatpush1.bf16.msra.mxu0 0
  %83 = vmatprep.subr.bf16.mxu0 0
  %84 = vmatpush1.bf16.msra.mxu0 0
  %85 = vmatprep.subr.bf16.mxu0 0
  %86 = vmatpush1.bf16.msra.mxu0 0
  %87 = vmatprep.subr.bf16.mxu0 0
  %88 = vmatpush1.bf16.msra.mxu0 0
  %89 = vmatprep.subr.bf16.mxu0 0
  %90 = vmatpush1.bf16.msra.mxu0 0
  %91 = vmatprep.subr.bf16.mxu0 0
  %92 = vmatpush1.bf16.msra.mxu0 0
  %93 = vmatprep.subr.bf16.mxu0 0
  %94 = vmatpush1.bf16.msra.mxu0 0
  %95 = vmatprep.subr.bf16.mxu0 0
  %96 = vmatpush1.bf16.msra.mxu0 0
  %97 = vmatprep.subr.bf16.mxu0 0
  %98 = vmatpush1.bf16.msra.mxu0 0
  %99 = vmatprep.subr.bf16.mxu0 0
  %100 = vmatpush1.bf16.msra.mxu0 0
  %101 = vmatprep.subr.bf16.mxu0 0
  %102 = vmatpush1.bf16.msra.mxu0 0
  %103 = vmatprep.mubr.bf16.mxu0 0
  %104 = vmatmul.mubr.bf16.gmra.mrb[0].mxu0 %v69
  %v105 = vpop.f32.mrb[0].mxu0
  %v106 = vadd.f32 %v53, %v105
  %v107 = vpop.f32.mrb[0].mxu0
  %v108 = vpop.f32.mrb[0].mxu0
  %v109 = vpop.f32.mrb[0].mxu0
  %110 = vdwg.mxu0
  %vm111 = vcmask 779264
  %112 = vst.msk [vmem:[#allocation2] sm:$0x3] %vm111, %v106
  %v113 = vld [vmem:[%s6] sm:$0xf]
  %v114 = vld [vmem:[%s6 + $0x4] sm:$0xf]
  %v115 = vld [vmem:[%s6 + $0x8] sm:$0xf]
  %v116 = vld [vmem:[%s6 + $0xc] sm:$0xf]
  %v117 = vld [vmem:[%s8] sm:$0x1]
  %v119 = vlaneseq
  %v120 = vshrl.u32 %v119, 7
  %v121 = vsub.s32 0, %v120
  %v122 = vrot.slane %v117, %v121
  %v128 = vunpack.c.l.b16 %v113
  %v129 = vunpack.c.l.b16 %v114
  %v130 = vunpack.c.l.b16 %v115
  %v131 = vunpack.c.l.b16 %v116
  %v132 = vpack.c.b16 %v129, %v128
  %v133 = vpack.c.b16 %v131, %v130
  %136 = vmatprep.subr.bf16.mxu0 0
  %137 = vmatpush1.bf16.msra.mxu0 %v132
  %138 = vmatprep.subr.bf16.mxu0 0
  %139 = vmatpush1.bf16.msra.mxu0 %v133
  %140 = vmatprep.subr.bf16.mxu0 0
  %141 = vmatpush1.bf16.msra.mxu0 0
  %142 = vmatprep.subr.bf16.mxu0 0
  %143 = vmatpush1.bf16.msra.mxu0 0
  %144 = vmatprep.subr.bf16.mxu0 0
  %145 = vmatpush1.bf16.msra.mxu0 0
  %146 = vmatprep.subr.bf16.mxu0 0
  %147 = vmatpush1.bf16.msra.mxu0 0
  %148 = vmatprep.subr.bf16.mxu0 0
  %149 = vmatpush1.bf16.msra.mxu0 0
  %150 = vmatprep.subr.bf16.mxu0 0
  %151 = vmatpush1.bf16.msra.mxu0 0
  %152 = vmatprep.subr.bf16.mxu0 0
  %153 = vmatpush1.bf16.msra.mxu0 0
  %154 = vmatprep.subr.bf16.mxu0 0
  %155 = vmatpush1.bf16.msra.mxu0 0
  %156 = vmatprep.subr.bf16.mxu0 0
  %157 = vmatpush1.bf16.msra.mxu0 0
  %158 = vmatprep.subr.bf16.mxu0 0
  %159 = vmatpush1.bf16.msra.mxu0 0
  %160 = vmatprep.subr.bf16.mxu0 0
  %161 = vmatpush1.bf16.msra.mxu0 0
  %162 = vmatprep.subr.bf16.mxu0 0
  %163 = vmatpush1.bf16.msra.mxu0 0
  %164 = vmatprep.subr.bf16.mxu0 0
  %165 = vmatpush1.bf16.msra.mxu0 0
  %166 = vmatprep.subr.bf16.mxu0 0
  %167 = vmatpush1.bf16.msra.mxu0 0
  %168 = vmatprep.mubr.bf16.mxu0 0
  %169 = vmatmul.mubr.bf16.gmra.mrb[0].mxu0 %v69
  %v170 = vpop.f32.mrb[0].mxu0
  %v171 = vadd.f32 %v122, %v170
  %v172 = vpop.f32.mrb[0].mxu0
  %v173 = vpop.f32.mrb[0].mxu0
  %v174 = vpop.f32.mrb[0].mxu0
  %175 = vdwg.mxu0
  %176 = vst.msk [vmem:[#allocation3] sm:$0x3] %vm111, %v171
  %s177 = scalar_lea.vmem %s0, 1
  %v178 = vld [vmem:[%s177] sm:$0x1]
  %v179 = vld [vmem:[%s2] sm:$0xf]
  %v180 = vld [vmem:[%s2 + $0x4] sm:$0xf]
  %v181 = vld [vmem:[%s2 + $0x8] sm:$0xf]
  %v182 = vld [vmem:[%s2 + $0xc] sm:$0xf]
  %v183 = vld [vmem:[%s4] sm:$0x1]
  %v185 = vlaneseq
  %v186 = vshrl.u32 %v185, 7
  %v187 = vsub.s32 0, %v186
  %v188 = vrot.slane %v183, %v187
  %v194 = vunpack.c.l.b16 %v179
  %v195 = vunpack.c.l.b16 %v180
  %v196 = vunpack.c.l.b16 %v181
  %v197 = vunpack.c.l.b16 %v182
  %v198 = vpack.c.b16 %v195, %v194
  %v199 = vpack.c.b16 %v197, %v196
  %v203 = vsel %vm67, %v178, 0
  %205 = vmatprep.subr.bf16.mxu0 0
  %206 = vmatpush1.bf16.msra.mxu0 %v198
  %207 = vmatprep.subr.bf16.mxu0 0
  %208 = vmatpush1.bf16.msra.mxu0 %v199
  %209 = vmatprep.subr.bf16.mxu0 0
  %210 = vmatpush1.bf16.msra.mxu0 0
  %211 = vmatprep.subr.bf16.mxu0 0
  %212 = vmatpush1.bf16.msra.mxu0 0
  %213 = vmatprep.subr.bf16.mxu0 0
  %214 = vmatpush1.bf16.msra.mxu0 0
  %215 = vmatprep.subr.bf16.mxu0 0
  %216 = vmatpush1.bf16.msra.mxu0 0
  %217 = vmatprep.subr.bf16.mxu0 0
  %218 = vmatpush1.bf16.msra.mxu0 0
  %219 = vmatprep.subr.bf16.mxu0 0
  %220 = vmatpush1.bf16.msra.mxu0 0
  %221 = vmatprep.subr.bf16.mxu0 0
  %222 = vmatpush1.bf16.msra.mxu0 0
  %223 = vmatprep.subr.bf16.mxu0 0
  %224 = vmatpush1.bf16.msra.mxu0 0
  %225 = vmatprep.subr.bf16.mxu0 0
  %226 = vmatpush1.bf16.msra.mxu0 0
  %227 = vmatprep.subr.bf16.mxu0 0
  %228 = vmatpush1.bf16.msra.mxu0 0
  %229 = vmatprep.subr.bf16.mxu0 0
  %230 = vmatpush1.bf16.msra.mxu0 0
  %231 = vmatprep.subr.bf16.mxu0 0
  %232 = vmatpush1.bf16.msra.mxu0 0
  %233 = vmatprep.subr.bf16.mxu0 0
  %234 = vmatpush1.bf16.msra.mxu0 0
  %235 = vmatprep.subr.bf16.mxu0 0
  %236 = vmatpush1.bf16.msra.mxu0 0
  %237 = vmatprep.mubr.bf16.mxu0 0
  %238 = vmatmul.mubr.bf16.gmra.mrb[0].mxu0 %v203
  %v239 = vpop.f32.mrb[0].mxu0
  %v240 = vadd.f32 %v188, %v239
  %v241 = vpop.f32.mrb[0].mxu0
  %v242 = vpop.f32.mrb[0].mxu0
  %v243 = vpop.f32.mrb[0].mxu0
  %244 = vdwg.mxu0
  %s245 = scalar_lea.vmem [#allocation2], 2
  %246 = vst.msk [vmem:[%s245] sm:$0x3] %vm111, %v240
  %v247 = vld [vmem:[%s6] sm:$0xf]
  %v248 = vld [vmem:[%s6 + $0x4] sm:$0xf]
  %v249 = vld [vmem:[%s6 + $0x8] sm:$0xf]
  %v250 = vld [vmem:[%s6 + $0xc] sm:$0xf]
  %v251 = vld [vmem:[%s8] sm:$0x1]
  %v253 = vlaneseq
  %v254 = vshrl.u32 %v253, 7
  %v255 = vsub.s32 0, %v254
  %v256 = vrot.slane %v251, %v255
  %v262 = vunpack.c.l.b16 %v247
  %v263 = vunpack.c.l.b16 %v248
  %v264 = vunpack.c.l.b16 %v249
  %v265 = vunpack.c.l.b16 %v250
  %v266 = vpack.c.b16 %v263, %v262
  %v267 = vpack.c.b16 %v265, %v264
  %270 = vmatprep.subr.bf16.mxu0 0
  %271 = vmatpush1.bf16.msra.mxu0 %v266
  %272 = vmatprep.subr.bf16.mxu0 0
  %273 = vmatpush1.bf16.msra.mxu0 %v267
  %274 = vmatprep.subr.bf16.mxu0 0
  %275 = vmatpush1.bf16.msra.mxu0 0
  %276 = vmatprep.subr.bf16.mxu0 0
  %277 = vmatpush1.bf16.msra.mxu0 0
  %278 = vmatprep.subr.bf16.mxu0 0
  %279 = vmatpush1.bf16.msra.mxu0 0
  %280 = vmatprep.subr.bf16.mxu0 0
  %281 = vmatpush1.bf16.msra.mxu0 0
  %282 = vmatprep.subr.bf16.mxu0 0
  %283 = vmatpush1.bf16.msra.mxu0 0
  %284 = vmatprep.subr.bf16.mxu0 0
  %285 = vmatpush1.bf16.msra.mxu0 0
  %286 = vmatprep.subr.bf16.mxu0 0
  %287 = vmatpush1.bf16.msra.mxu0 0
  %288 = vmatprep.subr.bf16.mxu0 0
  %289 = vmatpush1.bf16.msra.mxu0 0
  %290 = vmatprep.subr.bf16.mxu0 0
  %291 = vmatpush1.bf16.msra.mxu0 0
  %292 = vmatprep.subr.bf16.mxu0 0
  %293 = vmatpush1.bf16.msra.mxu0 0
  %294 = vmatprep.subr.bf16.mxu0 0
  %295 = vmatpush1.bf16.msra.mxu0 0
  %296 = vmatprep.subr.bf16.mxu0 0
  %297 = vmatpush1.bf16.msra.mxu0 0
  %298 = vmatprep.subr.bf16.mxu0 0
  %299 = vmatpush1.bf16.msra.mxu0 0
  %300 = vmatprep.subr.bf16.mxu0 0
  %301 = vmatpush1.bf16.msra.mxu0 0
  %302 = vmatprep.mubr.bf16.mxu0 0
  %303 = vmatmul.mubr.bf16.gmra.mrb[0].mxu0 %v203
  %v304 = vpop.f32.mrb[0].mxu0
  %v305 = vadd.f32 %v256, %v304
  %v306 = vpop.f32.mrb[0].mxu0
  %v307 = vpop.f32.mrb[0].mxu0
  %v308 = vpop.f32.mrb[0].mxu0
  %309 = vdwg.mxu0
  %s310 = scalar_lea.vmem [#allocation3], 2
  %311 = vst.msk [vmem:[%s310] sm:$0x3] %vm111, %v305
  %s312 = scalar_lea.vmem %s0, 2
  %v313 = vld [vmem:[%s312] sm:$0x1]
  %v314 = vld [vmem:[%s2] sm:$0xf]
  %v315 = vld [vmem:[%s2 + $0x4] sm:$0xf]
  %v316 = vld [vmem:[%s2 + $0x8] sm:$0xf]
  %v317 = vld [vmem:[%s2 + $0xc] sm:$0xf]
  %v318 = vld [vmem:[%s4] sm:$0x1]
  %v320 = vlaneseq
  %v321 = vshrl.u32 %v320, 7
  %v322 = vsub.s32 0, %v321
  %v323 = vrot.slane %v318, %v322
  %v329 = vunpack.c.l.b16 %v314
  %v330 = vunpack.c.l.b16 %v315
  %v331 = vunpack.c.l.b16 %v316
  %v332 = vunpack.c.l.b16 %v317
  %v333 = vpack.c.b16 %v330, %v329
  %v334 = vpack.c.b16 %v332, %v331
  %v338 = vsel %vm67, %v313, 0
  %340 = vmatprep.subr.bf16.mxu0 0
  %341 = vmatpush1.bf16.msra.mxu0 %v333
  %342 = vmatprep.subr.bf16.mxu0 0
  %343 = vmatpush1.bf16.msra.mxu0 %v334
  %344 = vmatprep.subr.bf16.mxu0 0
  %345 = vmatpush1.bf16.msra.mxu0 0
  %346 = vmatprep.subr.bf16.mxu0 0
  %347 = vmatpush1.bf16.msra.mxu0 0
  %348 = vmatprep.subr.bf16.mxu0 0
  %349 = vmatpush1.bf16.msra.mxu0 0
  %350 = vmatprep.subr.bf16.mxu0 0
  %351 = vmatpush1.bf16.msra.mxu0 0
  %352 = vmatprep.subr.bf16.mxu0 0
  %353 = vmatpush1.bf16.msra.mxu0 0
  %354 = vmatprep.subr.bf16.mxu0 0
  %355 = vmatpush1.bf16.msra.mxu0 0
  %356 = vmatprep.subr.bf16.mxu0 0
  %357 = vmatpush1.bf16.msra.mxu0 0
  %358 = vmatprep.subr.bf16.mxu0 0
  %359 = vmatpush1.bf16.msra.mxu0 0
  %360 = vmatprep.subr.bf16.mxu0 0
  %361 = vmatpush1.bf16.msra.mxu0 0
  %362 = vmatprep.subr.bf16.mxu0 0
  %363 = vmatpush1.bf16.msra.mxu0 0
  %364 = vmatprep.subr.bf16.mxu0 0
  %365 = vmatpush1.bf16.msra.mxu0 0
  %366 = vmatprep.subr.bf16.mxu0 0
  %367 = vmatpush1.bf16.msra.mxu0 0
  %368 = vmatprep.subr.bf16.mxu0 0
  %369 = vmatpush1.bf16.msra.mxu0 0
  %370 = vmatprep.subr.bf16.mxu0 0
  %371 = vmatpush1.bf16.msra.mxu0 0
  %372 = vmatprep.mubr.bf16.mxu0 0
  %373 = vmatmul.mubr.bf16.gmra.mrb[0].mxu0 %v338
  %v374 = vpop.f32.mrb[0].mxu0
  %v375 = vadd.f32 %v323, %v374
  %v376 = vpop.f32.mrb[0].mxu0
  %v377 = vpop.f32.mrb[0].mxu0
  %v378 = vpop.f32.mrb[0].mxu0
  %379 = vdwg.mxu0
  %s380 = scalar_lea.vmem [#allocation2], 4
  %381 = vst.msk [vmem:[%s380] sm:$0x3] %vm111, %v375
  %v382 = vld [vmem:[%s6] sm:$0xf]
  %v383 = vld [vmem:[%s6 + $0x4] sm:$0xf]
  %v384 = vld [vmem:[%s6 + $0x8] sm:$0xf]
  %v385 = vld [vmem:[%s6 + $0xc] sm:$0xf]
  %v386 = vld [vmem:[%s8] sm:$0x1]
  %v388 = vlaneseq
  %v389 = vshrl.u32 %v388, 7
  %v390 = vsub.s32 0, %v389
  %v391 = vrot.slane %v386, %v390
  %v397 = vunpack.c.l.b16 %v382
  %v398 = vunpack.c.l.b16 %v383
  %v399 = vunpack.c.l.b16 %v384
  %v400 = vunpack.c.l.b16 %v385
  %v401 = vpack.c.b16 %v398, %v397
  %v402 = vpack.c.b16 %v400, %v399
  %405 = vmatprep.subr.bf16.mxu0 0
  %406 = vmatpush1.bf16.msra.mxu0 %v401
  %407 = vmatprep.subr.bf16.mxu0 0
  %408 = vmatpush1.bf16.msra.mxu0 %v402
  %409 = vmatprep.subr.bf16.mxu0 0
  %410 = vmatpush1.bf16.msra.mxu0 0
  %411 = vmatprep.subr.bf16.mxu0 0
  %412 = vmatpush1.bf16.msra.mxu0 0
  %413 = vmatprep.subr.bf16.mxu0 0
  %414 = vmatpush1.bf16.msra.mxu0 0
  %415 = vmatprep.subr.bf16.mxu0 0
  %416 = vmatpush1.bf16.msra.mxu0 0
  %417 = vmatprep.subr.bf16.mxu0 0
  %418 = vmatpush1.bf16.msra.mxu0 0
  %419 = vmatprep.subr.bf16.mxu0 0
  %420 = vmatpush1.bf16.msra.mxu0 0
  %421 = vmatprep.subr.bf16.mxu0 0
  %422 = vmatpush1.bf16.msra.mxu0 0
  %423 = vmatprep.subr.bf16.mxu0 0
  %424 = vmatpush1.bf16.msra.mxu0 0
  %425 = vmatprep.subr.bf16.mxu0 0
  %426 = vmatpush1.bf16.msra.mxu0 0
  %427 = vmatprep.subr.bf16.mxu0 0
  %428 = vmatpush1.bf16.msra.mxu0 0
  %429 = vmatprep.subr.bf16.mxu0 0
  %430 = vmatpush1.bf16.msra.mxu0 0
  %431 = vmatprep.subr.bf16.mxu0 0
  %432 = vmatpush1.bf16.msra.mxu0 0
  %433 = vmatprep.subr.bf16.mxu0 0
  %434 = vmatpush1.bf16.msra.mxu0 0
  %435 = vmatprep.subr.bf16.mxu0 0
  %436 = vmatpush1.bf16.msra.mxu0 0
  %437 = vmatprep.mubr.bf16.mxu0 0
  %438 = vmatmul.mubr.bf16.gmra.mrb[0].mxu0 %v338
  %v439 = vpop.f32.mrb[0].mxu0
  %v440 = vadd.f32 %v391, %v439
  %v441 = vpop.f32.mrb[0].mxu0
  %v442 = vpop.f32.mrb[0].mxu0
  %v443 = vpop.f32.mrb[0].mxu0
  %444 = vdwg.mxu0
  %s445 = scalar_lea.vmem [#allocation3], 4
  %446 = vst.msk [vmem:[%s445] sm:$0x3] %vm111, %v440
  %s447 = scalar_lea.vmem %s0, 3
  %v448 = vld [vmem:[%s447] sm:$0x1]
  %v449 = vld [vmem:[%s2] sm:$0xf]
  %v450 = vld [vmem:[%s2 + $0x4] sm:$0xf]
  %v451 = vld [vmem:[%s2 + $0x8] sm:$0xf]
  %v452 = vld [vmem:[%s2 + $0xc] sm:$0xf]
  %v453 = vld [vmem:[%s4] sm:$0x1]
  %v455 = vlaneseq
  %v456 = vshrl.u32 %v455, 7
  %v457 = vsub.s32 0, %v456
  %v458 = vrot.slane %v453, %v457
  %v464 = vunpack.c.l.b16 %v449
  %v465 = vunpack.c.l.b16 %v450
  %v466 = vunpack.c.l.b16 %v451
  %v467 = vunpack.c.l.b16 %v452
  %v468 = vpack.c.b16 %v465, %v464
  %v469 = vpack.c.b16 %v467, %v466
  %v473 = vsel %vm67, %v448, 0
  %475 = vmatprep.subr.bf16.mxu0 0
  %476 = vmatpush1.bf16.msra.mxu0 %v468
  %477 = vmatprep.subr.bf16.mxu0 0
  %478 = vmatpush1.bf16.msra.mxu0 %v469
  %479 = vmatprep.subr.bf16.mxu0 0
  %480 = vmatpush1.bf16.msra.mxu0 0
  %481 = vmatprep.subr.bf16.mxu0 0
  %482 = vmatpush1.bf16.msra.mxu0 0
  %483 = vmatprep.subr.bf16.mxu0 0
  %484 = vmatpush1.bf16.msra.mxu0 0
  %485 = vmatprep.subr.bf16.mxu0 0
  %486 = vmatpush1.bf16.msra.mxu0 0
  %487 = vmatprep.subr.bf16.mxu0 0
  %488 = vmatpush1.bf16.msra.mxu0 0
  %489 = vmatprep.subr.bf16.mxu0 0
  %490 = vmatpush1.bf16.msra.mxu0 0
  %491 = vmatprep.subr.bf16.mxu0 0
  %492 = vmatpush1.bf16.msra.mxu0 0
  %493 = vmatprep.subr.bf16.mxu0 0
  %494 = vmatpush1.bf16.msra.mxu0 0
  %495 = vmatprep.subr.bf16.mxu0 0
  %496 = vmatpush1.bf16.msra.mxu0 0
  %497 = vmatprep.subr.bf16.mxu0 0
  %498 = vmatpush1.bf16.msra.mxu0 0
  %499 = vmatprep.subr.bf16.mxu0 0
  %500 = vmatpush1.bf16.msra.mxu0 0
  %501 = vmatprep.subr.bf16.mxu0 0
  %502 = vmatpush1.bf16.msra.mxu0 0
  %503 = vmatprep.subr.bf16.mxu0 0
  %504 = vmatpush1.bf16.msra.mxu0 0
  %505 = vmatprep.subr.bf16.mxu0 0
  %506 = vmatpush1.bf16.msra.mxu0 0
  %507 = vmatprep.mubr.bf16.mxu0 0
  %508 = vmatmul.mubr.bf16.gmra.mrb[0].mxu0 %v473
  %v509 = vpop.f32.mrb[0].mxu0
  %v510 = vadd.f32 %v458, %v509
  %v511 = vpop.f32.mrb[0].mxu0
  %v512 = vpop.f32.mrb[0].mxu0
  %v513 = vpop.f32.mrb[0].mxu0
  %514 = vdwg.mxu0
  %s515 = scalar_lea.vmem [#allocation2], 6
  %516 = vst.msk [vmem:[%s515] sm:$0x3] %vm111, %v510
  %v517 = vld [vmem:[%s6] sm:$0xf]
  %v518 = vld [vmem:[%s6 + $0x4] sm:$0xf]
  %v519 = vld [vmem:[%s6 + $0x8] sm:$0xf]
  %v520 = vld [vmem:[%s6 + $0xc] sm:$0xf]
  %v521 = vld [vmem:[%s8] sm:$0x1]
  %v523 = vlaneseq
  %v524 = vshrl.u32 %v523, 7
  %v525 = vsub.s32 0, %v524
  %v526 = vrot.slane %v521, %v525
  %v532 = vunpack.c.l.b16 %v517
  %v533 = vunpack.c.l.b16 %v518
  %v534 = vunpack.c.l.b16 %v519
  %v535 = vunpack.c.l.b16 %v520
  %v536 = vpack.c.b16 %v533, %v532
  %v537 = vpack.c.b16 %v535, %v534
  %540 = vmatprep.subr.bf16.mxu0 0
  %541 = vmatpush1.bf16.msra.mxu0 %v536
  %542 = vmatprep.subr.bf16.mxu0 0
  %543 = vmatpush1.bf16.msra.mxu0 %v537
  %544 = vmatprep.subr.bf16.mxu0 0
  %545 = vmatpush1.bf16.msra.mxu0 0
  %546 = vmatprep.subr.bf16.mxu0 0
  %547 = vmatpush1.bf16.msra.mxu0 0
  %548 = vmatprep.subr.bf16.mxu0 0
  %549 = vmatpush1.bf16.msra.mxu0 0
  %550 = vmatprep.subr.bf16.mxu0 0
  %551 = vmatpush1.bf16.msra.mxu0 0
  %552 = vmatprep.subr.bf16.mxu0 0
  %553 = vmatpush1.bf16.msra.mxu0 0
  %554 = vmatprep.subr.bf16.mxu0 0
  %555 = vmatpush1.bf16.msra.mxu0 0
  %556 = vmatprep.subr.bf16.mxu0 0
  %557 = vmatpush1.bf16.msra.mxu0 0
  %558 = vmatprep.subr.bf16.mxu0 0
  %559 = vmatpush1.bf16.msra.mxu0 0
  %560 = vmatprep.subr.bf16.mxu0 0
  %561 = vmatpush1.bf16.msra.mxu0 0
  %562 = vmatprep.subr.bf16.mxu0 0
  %563 = vmatpush1.bf16.msra.mxu0 0
  %564 = vmatprep.subr.bf16.mxu0 0
  %565 = vmatpush1.bf16.msra.mxu0 0
  %566 = vmatprep.subr.bf16.mxu0 0
  %567 = vmatpush1.bf16.msra.mxu0 0
  %568 = vmatprep.subr.bf16.mxu0 0
  %569 = vmatpush1.bf16.msra.mxu0 0
  %570 = vmatprep.subr.bf16.mxu0 0
  %571 = vmatpush1.bf16.msra.mxu0 0
  %572 = vmatprep.mubr.bf16.mxu0 0
  %573 = vmatmul.mubr.bf16.gmra.mrb[0].mxu0 %v473
  %v574 = vpop.f32.mrb[0].mxu0
  %v575 = vadd.f32 %v526, %v574
  %v576 = vpop.f32.mrb[0].mxu0
  %v577 = vpop.f32.mrb[0].mxu0
  %v578 = vpop.f32.mrb[0].mxu0
  %579 = vdwg.mxu0
  %s580 = scalar_lea.vmem [#allocation3], 6
  %581 = vst.msk [vmem:[%s580] sm:$0x3] %vm111, %v575
  %s582 = scalar_lea.vmem %s0, 4
  %v583 = vld [vmem:[%s582] sm:$0x1]
  %v584 = vld [vmem:[%s2] sm:$0xf]
  %v585 = vld [vmem:[%s2 + $0x4] sm:$0xf]
  %v586 = vld [vmem:[%s2 + $0x8] sm:$0xf]
  %v587 = vld [vmem:[%s2 + $0xc] sm:$0xf]
  %v588 = vld [vmem:[%s4] sm:$0x1]
  %v590 = vlaneseq
  %v591 = vshrl.u32 %v590, 7
  %v592 = vsub.s32 0, %v591
  %v593 = vrot.slane %v588, %v592
  %v599 = vunpack.c.l.b16 %v584
  %v600 = vunpack.c.l.b16 %v585
  %v601 = vunpack.c.l.b16 %v586
  %v602 = vunpack.c.l.b16 %v587
  %v603 = vpack.c.b16 %v600, %v599
  %v604 = vpack.c.b16 %v602, %v601
  %v608 = vsel %vm67, %v583, 0
  %610 = vmatprep.subr.bf16.mxu0 0
  %611 = vmatpush1.bf16.msra.mxu0 %v603
  %612 = vmatprep.subr.bf16.mxu0 0
  %613 = vmatpush1.bf16.msra.mxu0 %v604
  %614 = vmatprep.subr.bf16.mxu0 0
  %615 = vmatpush1.bf16.msra.mxu0 0
  %616 = vmatprep.subr.bf16.mxu0 0
  %617 = vmatpush1.bf16.msra.mxu0 0
  %618 = vmatprep.subr.bf16.mxu0 0
  %619 = vmatpush1.bf16.msra.mxu0 0
  %620 = vmatprep.subr.bf16.mxu0 0
  %621 = vmatpush1.bf16.msra.mxu0 0
  %622 = vmatprep.subr.bf16.mxu0 0
  %623 = vmatpush1.bf16.msra.mxu0 0
  %624 = vmatprep.subr.bf16.mxu0 0
  %625 = vmatpush1.bf16.msra.mxu0 0
  %626 = vmatprep.subr.bf16.mxu0 0
  %627 = vmatpush1.bf16.msra.mxu0 0
  %628 = vmatprep.subr.bf16.mxu0 0
  %629 = vmatpush1.bf16.msra.mxu0 0
  %630 = vmatprep.subr.bf16.mxu0 0
  %631 = vmatpush1.bf16.msra.mxu0 0
  %632 = vmatprep.subr.bf16.mxu0 0
  %633 = vmatpush1.bf16.msra.mxu0 0
  %634 = vmatprep.subr.bf16.mxu0 0
  %635 = vmatpush1.bf16.msra.mxu0 0
  %636 = vmatprep.subr.bf16.mxu0 0
  %637 = vmatpush1.bf16.msra.mxu0 0
  %638 = vmatprep.subr.bf16.mxu0 0
  %639 = vmatpush1.bf16.msra.mxu0 0
  %640 = vmatprep.subr.bf16.mxu0 0
  %641 = vmatpush1.bf16.msra.mxu0 0
  %642 = vmatprep.mubr.bf16.mxu0 0
  %643 = vmatmul.mubr.bf16.gmra.mrb[0].mxu0 %v608
  %v644 = vpop.f32.mrb[0].mxu0
  %v645 = vadd.f32 %v593, %v644
  %v646 = vpop.f32.mrb[0].mxu0
  %v647 = vpop.f32.mrb[0].mxu0
  %v648 = vpop.f32.mrb[0].mxu0
  %649 = vdwg.mxu0
  %s650 = scalar_lea.vmem [#allocation2], 8
  %651 = vst.msk [vmem:[%s650] sm:$0x3] %vm111, %v645
  %v652 = vld [vmem:[%s6] sm:$0xf]
  %v653 = vld [vmem:[%s6 + $0x4] sm:$0xf]
  %v654 = vld [vmem:[%s6 + $0x8] sm:$0xf]
  %v655 = vld [vmem:[%s6 + $0xc] sm:$0xf]
  %v656 = vld [vmem:[%s8] sm:$0x1]
  %v658 = vlaneseq
  %v659 = vshrl.u32 %v658, 7
  %v660 = vsub.s32 0, %v659
  %v661 = vrot.slane %v656, %v660
  %v667 = vunpack.c.l.b16 %v652
  %v668 = vunpack.c.l.b16 %v653
  %v669 = vunpack.c.l.b16 %v654
  %v670 = vunpack.c.l.b16 %v655
  %v671 = vpack.c.b16 %v668, %v667
  %v672 = vpack.c.b16 %v670, %v669
  %675 = vmatprep.subr.bf16.mxu0 0
  %676 = vmatpush1.bf16.msra.mxu0 %v671
  %677 = vmatprep.subr.bf16.mxu0 0
  %678 = vmatpush1.bf16.msra.mxu0 %v672
  %679 = vmatprep.subr.bf16.mxu0 0
  %680 = vmatpush1.bf16.msra.mxu0 0
  %681 = vmatprep.subr.bf16.mxu0 0
  %682 = vmatpush1.bf16.msra.mxu0 0
  %683 = vmatprep.subr.bf16.mxu0 0
  %684 = vmatpush1.bf16.msra.mxu0 0
  %685 = vmatprep.subr.bf16.mxu0 0
  %686 = vmatpush1.bf16.msra.mxu0 0
  %687 = vmatprep.subr.bf16.mxu0 0
  %688 = vmatpush1.bf16.msra.mxu0 0
  %689 = vmatprep.subr.bf16.mxu0 0
  %690 = vmatpush1.bf16.msra.mxu0 0
  %691 = vmatprep.subr.bf16.mxu0 0
  %692 = vmatpush1.bf16.msra.mxu0 0
  %693 = vmatprep.subr.bf16.mxu0 0
  %694 = vmatpush1.bf16.msra.mxu0 0
  %695 = vmatprep.subr.bf16.mxu0 0
  %696 = vmatpush1.bf16.msra.mxu0 0
  %697 = vmatprep.subr.bf16.mxu0 0
  %698 = vmatpush1.bf16.msra.mxu0 0
  %699 = vmatprep.subr.bf16.mxu0 0
  %700 = vmatpush1.bf16.msra.mxu0 0
  %701 = vmatprep.subr.bf16.mxu0 0
  %702 = vmatpush1.bf16.msra.mxu0 0
  %703 = vmatprep.subr.bf16.mxu0 0
  %704 = vmatpush1.bf16.msra.mxu0 0
  %705 = vmatprep.subr.bf16.mxu0 0
  %706 = vmatpush1.bf16.msra.mxu0 0
  %707 = vmatprep.mubr.bf16.mxu0 0
  %708 = vmatmul.mubr.bf16.gmra.mrb[0].mxu0 %v608
  %v709 = vpop.f32.mrb[0].mxu0
  %v710 = vadd.f32 %v661, %v709
  %v711 = vpop.f32.mrb[0].mxu0
  %v712 = vpop.f32.mrb[0].mxu0
  %v713 = vpop.f32.mrb[0].mxu0
  %714 = vdwg.mxu0
  %s715 = scalar_lea.vmem [#allocation3], 8
  %716 = vst.msk [vmem:[%s715] sm:$0x3] %vm111, %v710
  %s717 = scalar_lea.vmem %s0, 5
  %v718 = vld [vmem:[%s717] sm:$0x1]
  %v719 = vld [vmem:[%s2] sm:$0xf]
  %v720 = vld [vmem:[%s2 + $0x4] sm:$0xf]
  %v721 = vld [vmem:[%s2 + $0x8] sm:$0xf]
  %v722 = vld [vmem:[%s2 + $0xc] sm:$0xf]
  %v723 = vld [vmem:[%s4] sm:$0x1]
  %v725 = vlaneseq
  %v726 = vshrl.u32 %v725, 7
  %v727 = vsub.s32 0, %v726
  %v728 = vrot.slane %v723, %v727
  %v734 = vunpack.c.l.b16 %v719
  %v735 = vunpack.c.l.b16 %v720
  %v736 = vunpack.c.l.b16 %v721
  %v737 = vunpack.c.l.b16 %v722
  %v738 = vpack.c.b16 %v735, %v734
  %v739 = vpack.c.b16 %v737, %v736
  %v743 = vsel %vm67, %v718, 0
  %745 = vmatprep.subr.bf16.mxu0 0
  %746 = vmatpush1.bf16.msra.mxu0 %v738
  %747 = vmatprep.subr.bf16.mxu0 0
  %748 = vmatpush1.bf16.msra.mxu0 %v739
  %749 = vmatprep.subr.bf16.mxu0 0
  %750 = vmatpush1.bf16.msra.mxu0 0
  %751 = vmatprep.subr.bf16.mxu0 0
  %752 = vmatpush1.bf16.msra.mxu0 0
  %753 = vmatprep.subr.bf16.mxu0 0
  %754 = vmatpush1.bf16.msra.mxu0 0
  %755 = vmatprep.subr.bf16.mxu0 0
  %756 = vmatpush1.bf16.msra.mxu0 0
  %757 = vmatprep.subr.bf16.mxu0 0
  %758 = vmatpush1.bf16.msra.mxu0 0
  %759 = vmatprep.subr.bf16.mxu0 0
  %760 = vmatpush1.bf16.msra.mxu0 0
  %761 = vmatprep.subr.bf16.mxu0 0
  %762 = vmatpush1.bf16.msra.mxu0 0
  %763 = vmatprep.subr.bf16.mxu0 0
  %764 = vmatpush1.bf16.msra.mxu0 0
  %765 = vmatprep.subr.bf16.mxu0 0
  %766 = vmatpush1.bf16.msra.mxu0 0
  %767 = vmatprep.subr.bf16.mxu0 0
  %768 = vmatpush1.bf16.msra.mxu0 0
  %769 = vmatprep.subr.bf16.mxu0 0
  %770 = vmatpush1.bf16.msra.mxu0 0
  %771 = vmatprep.subr.bf16.mxu0 0
  %772 = vmatpush1.bf16.msra.mxu0 0
  %773 = vmatprep.subr.bf16.mxu0 0
  %774 = vmatpush1.bf16.msra.mxu0 0
  %775 = vmatprep.subr.bf16.mxu0 0
  %776 = vmatpush1.bf16.msra.mxu0 0
  %777 = vmatprep.mubr.bf16.mxu0 0
  %778 = vmatmul.mubr.bf16.gmra.mrb[0].mxu0 %v743
  %v779 = vpop.f32.mrb[0].mxu0
  %v780 = vadd.f32 %v728, %v779
  %v781 = vpop.f32.mrb[0].mxu0
  %v782 = vpop.f32.mrb[0].mxu0
  %v783 = vpop.f32.mrb[0].mxu0
  %784 = vdwg.mxu0
  %s785 = scalar_lea.vmem [#allocation2], 10
  %786 = vst.msk [vmem:[%s785] sm:$0x3] %vm111, %v780
  %v787 = vld [vmem:[%s6] sm:$0xf]
  %v788 = vld [vmem:[%s6 + $0x4] sm:$0xf]
  %v789 = vld [vmem:[%s6 + $0x8] sm:$0xf]
  %v790 = vld [vmem:[%s6 + $0xc] sm:$0xf]
  %v791 = vld [vmem:[%s8] sm:$0x1]
  %v793 = vlaneseq
  %v794 = vshrl.u32 %v793, 7
  %v795 = vsub.s32 0, %v794
  %v796 = vrot.slane %v791, %v795
  %v802 = vunpack.c.l.b16 %v787
  %v803 = vunpack.c.l.b16 %v788
  %v804 = vunpack.c.l.b16 %v789
  %v805 = vunpack.c.l.b16 %v790
  %v806 = vpack.c.b16 %v803, %v802
  %v807 = vpack.c.b16 %v805, %v804
  %810 = vmatprep.subr.bf16.mxu0 0
  %811 = vmatpush1.bf16.msra.mxu0 %v806
  %812 = vmatprep.subr.bf16.mxu0 0
  %813 = vmatpush1.bf16.msra.mxu0 %v807
  %814 = vmatprep.subr.bf16.mxu0 0
  %815 = vmatpush1.bf16.msra.mxu0 0
  %816 = vmatprep.subr.bf16.mxu0 0
  %817 = vmatpush1.bf16.msra.mxu0 0
  %818 = vmatprep.subr.bf16.mxu0 0
  %819 = vmatpush1.bf16.msra.mxu0 0
  %820 = vmatprep.subr.bf16.mxu0 0
  %821 = vmatpush1.bf16.msra.mxu0 0
  %822 = vmatprep.subr.bf16.mxu0 0
  %823 = vmatpush1.bf16.msra.mxu0 0
  %824 = vmatprep.subr.bf16.mxu0 0
  %825 = vmatpush1.bf16.msra.mxu0 0
  %826 = vmatprep.subr.bf16.mxu0 0
  %827 = vmatpush1.bf16.msra.mxu0 0
  %828 = vmatprep.subr.bf16.mxu0 0
  %829 = vmatpush1.bf16.msra.mxu0 0
  %830 = vmatprep.subr.bf16.mxu0 0
  %831 = vmatpush1.bf16.msra.mxu0 0
  %832 = vmatprep.subr.bf16.mxu0 0
  %833 = vmatpush1.bf16.msra.mxu0 0
  %834 = vmatprep.subr.bf16.mxu0 0
  %835 = vmatpush1.bf16.msra.mxu0 0
  %836 = vmatprep.subr.bf16.mxu0 0
  %837 = vmatpush1.bf16.msra.mxu0 0
  %838 = vmatprep.subr.bf16.mxu0 0
  %839 = vmatpush1.bf16.msra.mxu0 0
  %840 = vmatprep.subr.bf16.mxu0 0
  %841 = vmatpush1.bf16.msra.mxu0 0
  %842 = vmatprep.mubr.bf16.mxu0 0
  %843 = vmatmul.mubr.bf16.gmra.mrb[0].mxu0 %v743
  %v844 = vpop.f32.mrb[0].mxu0
  %v845 = vadd.f32 %v796, %v844
  %v846 = vpop.f32.mrb[0].mxu0
  %v847 = vpop.f32.mrb[0].mxu0
  %v848 = vpop.f32.mrb[0].mxu0
  %849 = vdwg.mxu0
  %s850 = scalar_lea.vmem [#allocation3], 10
  %851 = vst.msk [vmem:[%s850] sm:$0x3] %vm111, %v845
  %s852 = scalar_lea.vmem %s0, 6
  %v853 = vld [vmem:[%s852] sm:$0x1]
  %v854 = vld [vmem:[%s2] sm:$0xf]
  %v855 = vld [vmem:[%s2 + $0x4] sm:$0xf]
  %v856 = vld [vmem:[%s2 + $0x8] sm:$0xf]
  %v857 = vld [vmem:[%s2 + $0xc] sm:$0xf]
  %v858 = vld [vmem:[%s4] sm:$0x1]
  %v860 = vlaneseq
  %v861 = vshrl.u32 %v860, 7
  %v862 = vsub.s32 0, %v861
  %v863 = vrot.slane %v858, %v862
  %v869 = vunpack.c.l.b16 %v854
  %v870 = vunpack.c.l.b16 %v855
  %v871 = vunpack.c.l.b16 %v856
  %v872 = vunpack.c.l.b16 %v857
  %v873 = vpack.c.b16 %v870, %v869
  %v874 = vpack.c.b16 %v872, %v871
  %v878 = vsel %vm67, %v853, 0
  %880 = vmatprep.subr.bf16.mxu0 0
  %881 = vmatpush1.bf16.msra.mxu0 %v873
  %882 = vmatprep.subr.bf16.mxu0 0
  %883 = vmatpush1.bf16.msra.mxu0 %v874
  %884 = vmatprep.subr.bf16.mxu0 0
  %885 = vmatpush1.bf16.msra.mxu0 0
  %886 = vmatprep.subr.bf16.mxu0 0
  %887 = vmatpush1.bf16.msra.mxu0 0
  %888 = vmatprep.subr.bf16.mxu0 0
  %889 = vmatpush1.bf16.msra.mxu0 0
  %890 = vmatprep.subr.bf16.mxu0 0
  %891 = vmatpush1.bf16.msra.mxu0 0
  %892 = vmatprep.subr.bf16.mxu0 0
  %893 = vmatpush1.bf16.msra.mxu0 0
  %894 = vmatprep.subr.bf16.mxu0 0
  %895 = vmatpush1.bf16.msra.mxu0 0
  %896 = vmatprep.subr.bf16.mxu0 0
  %897 = vmatpush1.bf16.msra.mxu0 0
  %898 = vmatprep.subr.bf16.mxu0 0
  %899 = vmatpush1.bf16.msra.mxu0 0
  %900 = vmatprep.subr.bf16.mxu0 0
  %901 = vmatpush1.bf16.msra.mxu0 0
  %902 = vmatprep.subr.bf16.mxu0 0
  %903 = vmatpush1.bf16.msra.mxu0 0
  %904 = vmatprep.subr.bf16.mxu0 0
  %905 = vmatpush1.bf16.msra.mxu0 0
  %906 = vmatprep.subr.bf16.mxu0 0
  %907 = vmatpush1.bf16.msra.mxu0 0
  %908 = vmatprep.subr.bf16.mxu0 0
  %909 = vmatpush1.bf16.msra.mxu0 0
  %910 = vmatprep.subr.bf16.mxu0 0
  %911 = vmatpush1.bf16.msra.mxu0 0
  %912 = vmatprep.mubr.bf16.mxu0 0
  %913 = vmatmul.mubr.bf16.gmra.mrb[0].mxu0 %v878
  %v914 = vpop.f32.mrb[0].mxu0
  %v915 = vadd.f32 %v863, %v914
  %v916 = vpop.f32.mrb[0].mxu0
  %v917 = vpop.f32.mrb[0].mxu0
  %v918 = vpop.f32.mrb[0].mxu0
  %919 = vdwg.mxu0
  %s920 = scalar_lea.vmem [#allocation2], 12
  %921 = vst.msk [vmem:[%s920] sm:$0x3] %vm111, %v915
  %v922 = vld [vmem:[%s6] sm:$0xf]
  %v923 = vld [vmem:[%s6 + $0x4] sm:$0xf]
  %v924 = vld [vmem:[%s6 + $0x8] sm:$0xf]
  %v925 = vld [vmem:[%s6 + $0xc] sm:$0xf]
  %v926 = vld [vmem:[%s8] sm:$0x1]
  %v928 = vlaneseq
  %v929 = vshrl.u32 %v928, 7
  %v930 = vsub.s32 0, %v929
  %v931 = vrot.slane %v926, %v930
  %v937 = vunpack.c.l.b16 %v922
  %v938 = vunpack.c.l.b16 %v923
  %v939 = vunpack.c.l.b16 %v924
  %v940 = vunpack.c.l.b16 %v925
  %v941 = vpack.c.b16 %v938, %v937
  %v942 = vpack.c.b16 %v940, %v939
  %945 = vmatprep.subr.bf16.mxu0 0
  %946 = vmatpush1.bf16.msra.mxu0 %v941
  %947 = vmatprep.subr.bf16.mxu0 0
  %948 = vmatpush1.bf16.msra.mxu0 %v942
  %949 = vmatprep.subr.bf16.mxu0 0
  %950 = vmatpush1.bf16.msra.mxu0 0
  %951 = vmatprep.subr.bf16.mxu0 0
  %952 = vmatpush1.bf16.msra.mxu0 0
  %953 = vmatprep.subr.bf16.mxu0 0
  %954 = vmatpush1.bf16.msra.mxu0 0
  %955 = vmatprep.subr.bf16.mxu0 0
  %956 = vmatpush1.bf16.msra.mxu0 0
  %957 = vmatprep.subr.bf16.mxu0 0
  %958 = vmatpush1.bf16.msra.mxu0 0
  %959 = vmatprep.subr.bf16.mxu0 0
  %960 = vmatpush1.bf16.msra.mxu0 0
  %961 = vmatprep.subr.bf16.mxu0 0
  %962 = vmatpush1.bf16.msra.mxu0 0
  %963 = vmatprep.subr.bf16.mxu0 0
  %964 = vmatpush1.bf16.msra.mxu0 0
  %965 = vmatprep.subr.bf16.mxu0 0
  %966 = vmatpush1.bf16.msra.mxu0 0
  %967 = vmatprep.subr.bf16.mxu0 0
  %968 = vmatpush1.bf16.msra.mxu0 0
  %969 = vmatprep.subr.bf16.mxu0 0
  %970 = vmatpush1.bf16.msra.mxu0 0
  %971 = vmatprep.subr.bf16.mxu0 0
  %972 = vmatpush1.bf16.msra.mxu0 0
  %973 = vmatprep.subr.bf16.mxu0 0
  %974 = vmatpush1.bf16.msra.mxu0 0
  %975 = vmatprep.subr.bf16.mxu0 0
  %976 = vmatpush1.bf16.msra.mxu0 0
  %977 = vmatprep.mubr.bf16.mxu0 0
  %978 = vmatmul.mubr.bf16.gmra.mrb[0].mxu0 %v878
  %v979 = vpop.f32.mrb[0].mxu0
  %v980 = vadd.f32 %v931, %v979
  %v981 = vpop.f32.mrb[0].mxu0
  %v982 = vpop.f32.mrb[0].mxu0
  %v983 = vpop.f32.mrb[0].mxu0
  %984 = vdwg.mxu0
  %s985 = scalar_lea.vmem [#allocation3], 12
  %986 = vst.msk [vmem:[%s985] sm:$0x3] %vm111, %v980
  %s987 = scalar_lea.vmem %s0, 7
  %v988 = vld [vmem:[%s987] sm:$0x1]
  %v989 = vld [vmem:[%s2] sm:$0xf]
  %v990 = vld [vmem:[%s2 + $0x4] sm:$0xf]
  %v991 = vld [vmem:[%s2 + $0x8] sm:$0xf]
  %v992 = vld [vmem:[%s2 + $0xc] sm:$0xf]
  %v993 = vld [vmem:[%s4] sm:$0x1]
  %v995 = vlaneseq
  %v996 = vshrl.u32 %v995, 7
  %v997 = vsub.s32 0, %v996
  %v998 = vrot.slane %v993, %v997
  %v1004 = vunpack.c.l.b16 %v989
  %v1005 = vunpack.c.l.b16 %v990
  %v1006 = vunpack.c.l.b16 %v991
  %v1007 = vunpack.c.l.b16 %v992
  %v1008 = vpack.c.b16 %v1005, %v1004
  %v1009 = vpack.c.b16 %v1007, %v1006
  %v1013 = vsel %vm67, %v988, 0
  %1015 = vmatprep.subr.bf16.mxu0 0
  %1016 = vmatpush1.bf16.msra.mxu0 %v1008
  %1017 = vmatprep.subr.bf16.mxu0 0
  %1018 = vmatpush1.bf16.msra.mxu0 %v1009
  %1019 = vmatprep.subr.bf16.mxu0 0
  %1020 = vmatpush1.bf16.msra.mxu0 0
  %1021 = vmatprep.subr.bf16.mxu0 0
  %1022 = vmatpush1.bf16.msra.mxu0 0
  %1023 = vmatprep.subr.bf16.mxu0 0
  %1024 = vmatpush1.bf16.msra.mxu0 0
  %1025 = vmatprep.subr.bf16.mxu0 0
  %1026 = vmatpush1.bf16.msra.mxu0 0
  %1027 = vmatprep.subr.bf16.mxu0 0
  %1028 = vmatpush1.bf16.msra.mxu0 0
  %1029 = vmatprep.subr.bf16.mxu0 0
  %1030 = vmatpush1.bf16.msra.mxu0 0
  %1031 = vmatprep.subr.bf16.mxu0 0
  %1032 = vmatpush1.bf16.msra.mxu0 0
  %1033 = vmatprep.subr.bf16.mxu0 0
  %1034 = vmatpush1.bf16.msra.mxu0 0
  %1035 = vmatprep.subr.bf16.mxu0 0
  %1036 = vmatpush1.bf16.msra.mxu0 0
  %1037 = vmatprep.subr.bf16.mxu0 0
  %1038 = vmatpush1.bf16.msra.mxu0 0
  %1039 = vmatprep.subr.bf16.mxu0 0
  %1040 = vmatpush1.bf16.msra.mxu0 0
  %1041 = vmatprep.subr.bf16.mxu0 0
  %1042 = vmatpush1.bf16.msra.mxu0 0
  %1043 = vmatprep.subr.bf16.mxu0 0
  %1044 = vmatpush1.bf16.msra.mxu0 0
  %1045 = vmatprep.subr.bf16.mxu0 0
  %1046 = vmatpush1.bf16.msra.mxu0 0
  %1047 = vmatprep.mubr.bf16.mxu0 0
  %1048 = vmatmul.mubr.bf16.gmra.mrb[0].mxu0 %v1013
  %v1049 = vpop.f32.mrb[0].mxu0
  %v1050 = vadd.f32 %v998, %v1049
  %v1051 = vpop.f32.mrb[0].mxu0
  %v1052 = vpop.f32.mrb[0].mxu0
  %v1053 = vpop.f32.mrb[0].mxu0
  %1054 = vdwg.mxu0
  %s1055 = scalar_lea.vmem [#allocation2], 14
  %1056 = vst.msk [vmem:[%s1055] sm:$0x3] %vm111, %v1050
  %v1057 = vld [vmem:[%s6] sm:$0xf]
  %v1058 = vld [vmem:[%s6 + $0x4] sm:$0xf]
  %v1059 = vld [vmem:[%s6 + $0x8] sm:$0xf]
  %v1060 = vld [vmem:[%s6 + $0xc] sm:$0xf]
  %v1061 = vld [vmem:[%s8] sm:$0x1]
  %v1063 = vlaneseq
  %v1064 = vshrl.u32 %v1063, 7
  %v1065 = vsub.s32 0, %v1064
  %v1066 = vrot.slane %v1061, %v1065
  %v1072 = vunpack.c.l.b16 %v1057
  %v1073 = vunpack.c.l.b16 %v1058
  %v1074 = vunpack.c.l.b16 %v1059
  %v1075 = vunpack.c.l.b16 %v1060
  %v1076 = vpack.c.b16 %v1073, %v1072
  %v1077 = vpack.c.b16 %v1075, %v1074
  %1080 = vmatprep.subr.bf16.mxu0 0
  %1081 = vmatpush1.bf16.msra.mxu0 %v1076
  %1082 = vmatprep.subr.bf16.mxu0 0
  %1083 = vmatpush1.bf16.msra.mxu0 %v1077
  %1084 = vmatprep.subr.bf16.mxu0 0
  %1085 = vmatpush1.bf16.msra.mxu0 0
  %1086 = vmatprep.subr.bf16.mxu0 0
  %1087 = vmatpush1.bf16.msra.mxu0 0
  %1088 = vmatprep.subr.bf16.mxu0 0
  %1089 = vmatpush1.bf16.msra.mxu0 0
  %1090 = vmatprep.subr.bf16.mxu0 0
  %1091 = vmatpush1.bf16.msra.mxu0 0
  %1092 = vmatprep.subr.bf16.mxu0 0
  %1093 = vmatpush1.bf16.msra.mxu0 0
  %1094 = vmatprep.subr.bf16.mxu0 0
  %1095 = vmatpush1.bf16.msra.mxu0 0
  %1096 = vmatprep.subr.bf16.mxu0 0
  %1097 = vmatpush1.bf16.msra.mxu0 0
  %1098 = vmatprep.subr.bf16.mxu0 0
  %1099 = vmatpush1.bf16.msra.mxu0 0
  %1100 = vmatprep.subr.bf16.mxu0 0
  %1101 = vmatpush1.bf16.msra.mxu0 0
  %1102 = vmatprep.subr.bf16.mxu0 0
  %1103 = vmatpush1.bf16.msra.mxu0 0
  %1104 = vmatprep.subr.bf16.mxu0 0
  %1105 = vmatpush1.bf16.msra.mxu0 0
  %1106 = vmatprep.subr.bf16.mxu0 0
  %1107 = vmatpush1.bf16.msra.mxu0 0
  %1108 = vmatprep.subr.bf16.mxu0 0
  %1109 = vmatpush1.bf16.msra.mxu0 0
  %1110 = vmatprep.subr.bf16.mxu0 0
  %1111 = vmatpush1.bf16.msra.mxu0 0
  %1112 = vmatprep.mubr.bf16.mxu0 0
  %1113 = vmatmul.mubr.bf16.gmra.mrb[0].mxu0 %v1013
  %v1114 = vpop.f32.mrb[0].mxu0
  %v1115 = vadd.f32 %v1066, %v1114
  %v1116 = vpop.f32.mrb[0].mxu0
  %v1117 = vpop.f32.mrb[0].mxu0
  %v1118 = vpop.f32.mrb[0].mxu0
  %1119 = vdwg.mxu0
  %s1120 = scalar_lea.vmem [#allocation3], 14
  %1121 = vst.msk [vmem:[%s1120] sm:$0x3] %vm111, %v1115
  %v1122 = vld [vmem:[#allocation4] sm:$0x3]
  %v1123 = vld [vmem:[#allocation2] sm:$0x3]
  %v1124 = vpack.c.bf16 %v1122, %v1122
  %v1125 = vld [vmem:[%s3] sm:$0xf]
  %v1126 = vld [vmem:[%s3 + $0x4] sm:$0xf]
  %v1127 = vld [vmem:[%s3 + $0x8] sm:$0xf]
  %v1128 = vld [vmem:[%s3 + $0xc] sm:$0xf]
  %v1133 = vunpack.c.l.b16 %v1125
  %v1134 = vunpack.c.l.b16 %v1126
  %v1135 = vunpack.c.l.b16 %v1127
  %v1136 = vunpack.c.l.b16 %v1128
  %v1137 = vpack.c.b16 %v1134, %v1133
  %v1138 = vpack.c.b16 %v1136, %v1135
  %v1142 = vsel %vm67, %v1124, 0
  %1144 = vmatprep.subr.bf16.mxu0 0
  %1145 = vmatpush1.bf16.msra.mxu0 %v1137
  %1146 = vmatprep.subr.bf16.mxu0 0
  %1147 = vmatpush1.bf16.msra.mxu0 %v1138
  %1148 = vmatprep.subr.bf16.mxu0 0
  %1149 = vmatpush1.bf16.msra.mxu0 0
  %1150 = vmatprep.subr.bf16.mxu0 0
  %1151 = vmatpush1.bf16.msra.mxu0 0
  %1152 = vmatprep.subr.bf16.mxu0 0
  %1153 = vmatpush1.bf16.msra.mxu0 0
  %1154 = vmatprep.subr.bf16.mxu0 0
  %1155 = vmatpush1.bf16.msra.mxu0 0
  %1156 = vmatprep.subr.bf16.mxu0 0
  %1157 = vmatpush1.bf16.msra.mxu0 0
  %1158 = vmatprep.subr.bf16.mxu0 0
  %1159 = vmatpush1.bf16.msra.mxu0 0
  %1160 = vmatprep.subr.bf16.mxu0 0
  %1161 = vmatpush1.bf16.msra.mxu0 0
  %1162 = vmatprep.subr.bf16.mxu0 0
  %1163 = vmatpush1.bf16.msra.mxu0 0
  %1164 = vmatprep.subr.bf16.mxu0 0
  %1165 = vmatpush1.bf16.msra.mxu0 0
  %1166 = vmatprep.subr.bf16.mxu0 0
  %1167 = vmatpush1.bf16.msra.mxu0 0
  %1168 = vmatprep.subr.bf16.mxu0 0
  %1169 = vmatpush1.bf16.msra.mxu0 0
  %1170 = vmatprep.subr.bf16.mxu0 0
  %1171 = vmatpush1.bf16.msra.mxu0 0
  %1172 = vmatprep.subr.bf16.mxu0 0
  %1173 = vmatpush1.bf16.msra.mxu0 0
  %1174 = vmatprep.subr.bf16.mxu0 0
  %1175 = vmatpush1.bf16.msra.mxu0 0
  %1176 = vmatprep.mubr.bf16.mxu0 0
  %1177 = vmatmul.mubr.bf16.gmra.mrb[0].mxu0 %v1142
  %v1178 = vpop.f32.mrb[0].mxu0
  %v1179 = vadd.f32 0.0, %v1178
  %v1180 = vpop.f32.mrb[0].mxu0
  %v1181 = vpop.f32.mrb[0].mxu0
  %v1182 = vpop.f32.mrb[0].mxu0
  %1183 = vdwg.mxu0
  %v1184 = vadd.f32 %v1123, %v1179
  %v1185 = vxor.u32 %v1184, 2147483648
  %v1186 = vmul.f32 %v1185, 1.442695
  %v1187 = vpow.pop %v1186
  %v1188 = vadd.f32 %v1187, 1.0
  %v1189 = vrcp.pop %v1188
  %v1190 = vmul.f32 1.0, %v1189
  %v1191 = vld [vmem:[%s5] sm:$0x1]
  %v1193 = vlaneseq
  %v1194 = vshrl.u32 %v1193, 7
  %v1195 = vsub.s32 0, %v1194
  %v1196 = vrot.slane %v1191, %v1195
  %1197 = vrot.lane.b32.xlu0 %v1196, 64
  %v1198 = vpop.permute.xlu0 %1197
  %v1200 = vadd.f32 %v1179, %v1198
  %1202 = vrot.lane.b32.xlu0 %v1200, 64
  %v1203 = vpop.permute.xlu0 %1202
  %v1205 = vmul.f32 %v1190, %v1203
  %1207 = vrot.lane.b32.xlu0 %v1205, 64
  %v1208 = vpop.permute.xlu0 %1207
  %v1210 = vadd.f32 %v1123, %v1208
  %v1211 = vtanh.pop %v1210
  %1213 = vrot.lane.b32.xlu0 %v1211, 64
  %v1214 = vpop.permute.xlu0 %1213
  %v1216 = vsub.f32 %v1122, %v1214
  %1218 = vrot.lane.b32.xlu0 %v1216, 32
  %v1219 = vpop.permute.xlu0 %1218
  %v1221 = vmul.f32 %v1190, %v1219
  %1223 = vrot.lane.b32.xlu0 %v1221, 32
  %v1224 = vpop.permute.xlu0 %1223
  %v1226 = vadd.f32 %v1211, %v1224
  %v1227 = vld [vmem:[%s1] sm:$0x3]
  %1229 = vset.pattern.permute.xlu0 0
  %1230 = vperm.xlu0 %1229, %v1227
  %v1231 = vpop.permute.xlu0 %1230
  %vm1233 = vcmp.gt.f32.partialorder %v1231, 0.0
  %1235 = vrot.lane.b32.xlu0 %v1122, 64
  %v1236 = vpop.permute.xlu0 %1235
  %v1238 = vsel %vm1233, %v1226, %v1236
  %1240 = vrot.lane.b32.xlu0 %v1238, 64
  %v1241 = vpop.permute.xlu0 %1240
  %1243 = vst.msk [vmem:[#allocation4] sm:$0x3] %vm40, %v1241
  %v1244 = vpack.c.bf16 %v1238, %v1238
  %v1247 = vunpack.c.l.s4 1966171168
  %v1248 = vunpack.c.0.s8 %v1247
  %v1249 = vlaneseq
  %v1250 = vshrl.u32 %v1249, 7
  %v1251 = vsub.s32 %v1248, %v1250
  %v1252 = vrot.slane %v1244, %v1251
  %v1254 = vunpack.c.l.s4 1966171168
  %v1255 = vunpack.c.0.s8 %v1254
  %v1256 = vlaneseq
  %v1257 = vshrl.u32 %v1256, 7
  %v1258 = vsub.s32 %v1255, %v1257
  %v1259 = vrot.slane %v1252, %v1258
  %1260 = vrot.lane.b32.xlu0 %v1259, 64
  %v1261 = vpop.permute.xlu0 %1260
  %vm1263 = vcmask 253952
  %1264 = vst.msk [vmem:[%s10] sm:$0x1] %vm1263, %v1261
  %v1265 = vld [vmem:[#allocation5] sm:$0x3]
  %v1266 = vld [vmem:[%s1120] sm:$0x3]
  %v1267 = vpack.c.bf16 %v1265, %v1265
  %v1268 = vld [vmem:[%s7] sm:$0xf]
  %v1269 = vld [vmem:[%s7 + $0x4] sm:$0xf]
  %v1270 = vld [vmem:[%s7 + $0x8] sm:$0xf]
  %v1271 = vld [vmem:[%s7 + $0xc] sm:$0xf]
  %v1276 = vunpack.c.l.b16 %v1268
  %v1277 = vunpack.c.l.b16 %v1269
  %v1278 = vunpack.c.l.b16 %v1270
  %v1279 = vunpack.c.l.b16 %v1271
  %v1280 = vpack.c.b16 %v1277, %v1276
  %v1281 = vpack.c.b16 %v1279, %v1278
  %v1285 = vsel %vm67, %v1267, 0
  %1287 = vmatprep.subr.bf16.mxu0 0
  %1288 = vmatpush1.bf16.msra.mxu0 %v1280
  %1289 = vmatprep.subr.bf16.mxu0 0
  %1290 = vmatpush1.bf16.msra.mxu0 %v1281
  %1291 = vmatprep.subr.bf16.mxu0 0
  %1292 = vmatpush1.bf16.msra.mxu0 0
  %1293 = vmatprep.subr.bf16.mxu0 0
  %1294 = vmatpush1.bf16.msra.mxu0 0
  %1295 = vmatprep.subr.bf16.mxu0 0
  %1296 = vmatpush1.bf16.msra.mxu0 0
  %1297 = vmatprep.subr.bf16.mxu0 0
  %1298 = vmatpush1.bf16.msra.mxu0 0
  %1299 = vmatprep.subr.bf16.mxu0 0
  %1300 = vmatpush1.bf16.msra.mxu0 0
  %1301 = vmatprep.subr.bf16.mxu0 0
  %1302 = vmatpush1.bf16.msra.mxu0 0
  %1303 = vmatprep.subr.bf16.mxu0 0
  %1304 = vmatpush1.bf16.msra.mxu0 0
  %1305 = vmatprep.subr.bf16.mxu0 0
  %1306 = vmatpush1.bf16.msra.mxu0 0
  %1307 = vmatprep.subr.bf16.mxu0 0
  %1308 = vmatpush1.bf16.msra.mxu0 0
  %1309 = vmatprep.subr.bf16.mxu0 0
  %1310 = vmatpush1.bf16.msra.mxu0 0
  %1311 = vmatprep.subr.bf16.mxu0 0
  %1312 = vmatpush1.bf16.msra.mxu0 0
  %1313 = vmatprep.subr.bf16.mxu0 0
  %1314 = vmatpush1.bf16.msra.mxu0 0
  %1315 = vmatprep.subr.bf16.mxu0 0
  %1316 = vmatpush1.bf16.msra.mxu0 0
  %1317 = vmatprep.subr.bf16.mxu0 0
  %1318 = vmatpush1.bf16.msra.mxu0 0
  %1319 = vmatprep.mubr.bf16.mxu0 0
  %1320 = vmatmul.mubr.bf16.gmra.mrb[0].mxu0 %v1285
  %v1321 = vpop.f32.mrb[0].mxu0
  %v1322 = vadd.f32 0.0, %v1321
  %v1323 = vpop.f32.mrb[0].mxu0
  %v1324 = vpop.f32.mrb[0].mxu0
  %v1325 = vpop.f32.mrb[0].mxu0
  %1326 = vdwg.mxu0
  %v1327 = vadd.f32 %v1266, %v1322
  %v1328 = vxor.u32 %v1327, 2147483648
  %v1329 = vmul.f32 %v1328, 1.442695
  %v1330 = vpow.pop %v1329
  %v1331 = vadd.f32 %v1330, 1.0
  %v1332 = vrcp.pop %v1331
  %v1333 = vmul.f32 1.0, %v1332
  %v1334 = vld [vmem:[%s9] sm:$0x1]
  %v1336 = vlaneseq
  %v1337 = vshrl.u32 %v1336, 7
  %v1338 = vsub.s32 0, %v1337
  %v1339 = vrot.slane %v1334, %v1338
  %1340 = vrot.lane.b32.xlu0 %v1339, 64
  %v1341 = vpop.permute.xlu0 %1340
  %v1343 = vadd.f32 %v1322, %v1341
  %1345 = vrot.lane.b32.xlu0 %v1343, 64
  %v1346 = vpop.permute.xlu0 %1345
  %v1348 = vmul.f32 %v1333, %v1346
  %1350 = vrot.lane.b32.xlu0 %v1348, 64
  %v1351 = vpop.permute.xlu0 %1350
  %v1353 = vadd.f32 %v1266, %v1351
  %v1354 = vtanh.pop %v1353
  %1356 = vrot.lane.b32.xlu0 %v1354, 64
  %v1357 = vpop.permute.xlu0 %1356
  %v1359 = vsub.f32 %v1265, %v1357
  %1361 = vrot.lane.b32.xlu0 %v1359, 32
  %v1362 = vpop.permute.xlu0 %1361
  %v1364 = vmul.f32 %v1333, %v1362
  %1366 = vrot.lane.b32.xlu0 %v1364, 32
  %v1367 = vpop.permute.xlu0 %1366
  %v1369 = vadd.f32 %v1354, %v1367
  %s1370 = scalar_lea.vmem %s1, 14
  %v1371 = vld [vmem:[%s1370] sm:$0x3]
  %1373 = vset.pattern.permute.xlu0 0
  %1374 = vperm.xlu0 %1373, %v1371
  %v1375 = vpop.permute.xlu0 %1374
  %vm1377 = vcmp.gt.f32.partialorder %v1375, 0.0
  %1379 = vrot.lane.b32.xlu0 %v1265, 64
  %v1380 = vpop.permute.xlu0 %1379
  %v1382 = vsel %vm1377, %v1369, %v1380
  %1384 = vrot.lane.b32.xlu0 %v1382, 64
  %v1385 = vpop.permute.xlu0 %1384
  %1387 = vst.msk [vmem:[#allocation5] sm:$0x3] %vm40, %v1385
  %v1388 = vpack.c.bf16 %v1382, %v1382
  %v1391 = vunpack.c.l.s4 1966171168
  %v1392 = vunpack.c.0.s8 %v1391
  %v1393 = vlaneseq
  %v1394 = vshrl.u32 %v1393, 7
  %v1395 = vsub.s32 %v1392, %v1394
  %v1396 = vrot.slane %v1388, %v1395
  %v1398 = vunpack.c.l.s4 1966171168
  %v1399 = vunpack.c.0.s8 %v1398
  %v1400 = vlaneseq
  %v1401 = vshrl.u32 %v1400, 7
  %v1402 = vsub.s32 %v1399, %v1401
  %v1403 = vrot.slane %v1396, %v1402
  %1404 = vrot.lane.b32.xlu0 %v1403, 64
  %v1405 = vpop.permute.xlu0 %1404
  %s1407 = scalar_lea.vmem %s11, 7
  %1408 = vst.msk [vmem:[%s1407] sm:$0x1] %vm1263, %v1405
  %v1409 = vld [vmem:[#allocation4] sm:$0x3]
  %v1410 = vld [vmem:[%s245] sm:$0x3]
  %v1411 = vpack.c.bf16 %v1409, %v1409
  %v1412 = vld [vmem:[%s3] sm:$0xf]
  %v1413 = vld [vmem:[%s3 + $0x4] sm:$0xf]
  %v1414 = vld [vmem:[%s3 + $0x8] sm:$0xf]
  %v1415 = vld [vmem:[%s3 + $0xc] sm:$0xf]
  %v1420 = vunpack.c.l.b16 %v1412
  %v1421 = vunpack.c.l.b16 %v1413
  %v1422 = vunpack.c.l.b16 %v1414
  %v1423 = vunpack.c.l.b16 %v1415
  %v1424 = vpack.c.b16 %v1421, %v1420
  %v1425 = vpack.c.b16 %v1423, %v1422
  %v1429 = vsel %vm67, %v1411, 0
  %1431 = vmatprep.subr.bf16.mxu0 0
  %1432 = vmatpush1.bf16.msra.mxu0 %v1424
  %1433 = vmatprep.subr.bf16.mxu0 0
  %1434 = vmatpush1.bf16.msra.mxu0 %v1425
  %1435 = vmatprep.subr.bf16.mxu0 0
  %1436 = vmatpush1.bf16.msra.mxu0 0
  %1437 = vmatprep.subr.bf16.mxu0 0
  %1438 = vmatpush1.bf16.msra.mxu0 0
  %1439 = vmatprep.subr.bf16.mxu0 0
  %1440 = vmatpush1.bf16.msra.mxu0 0
  %1441 = vmatprep.subr.bf16.mxu0 0
  %1442 = vmatpush1.bf16.msra.mxu0 0
  %1443 = vmatprep.subr.bf16.mxu0 0
  %1444 = vmatpush1.bf16.msra.mxu0 0
  %1445 = vmatprep.subr.bf16.mxu0 0
  %1446 = vmatpush1.bf16.msra.mxu0 0
  %1447 = vmatprep.subr.bf16.mxu0 0
  %1448 = vmatpush1.bf16.msra.mxu0 0
  %1449 = vmatprep.subr.bf16.mxu0 0
  %1450 = vmatpush1.bf16.msra.mxu0 0
  %1451 = vmatprep.subr.bf16.mxu0 0
  %1452 = vmatpush1.bf16.msra.mxu0 0
  %1453 = vmatprep.subr.bf16.mxu0 0
  %1454 = vmatpush1.bf16.msra.mxu0 0
  %1455 = vmatprep.subr.bf16.mxu0 0
  %1456 = vmatpush1.bf16.msra.mxu0 0
  %1457 = vmatprep.subr.bf16.mxu0 0
  %1458 = vmatpush1.bf16.msra.mxu0 0
  %1459 = vmatprep.subr.bf16.mxu0 0
  %1460 = vmatpush1.bf16.msra.mxu0 0
  %1461 = vmatprep.subr.bf16.mxu0 0
  %1462 = vmatpush1.bf16.msra.mxu0 0
  %1463 = vmatprep.mubr.bf16.mxu0 0
  %1464 = vmatmul.mubr.bf16.gmra.mrb[0].mxu0 %v1429
  %v1465 = vpop.f32.mrb[0].mxu0
  %v1466 = vadd.f32 0.0, %v1465
  %v1467 = vpop.f32.mrb[0].mxu0
  %v1468 = vpop.f32.mrb[0].mxu0
  %v1469 = vpop.f32.mrb[0].mxu0
  %1470 = vdwg.mxu0
  %v1471 = vadd.f32 %v1410, %v1466
  %v1472 = vxor.u32 %v1471, 2147483648
  %v1473 = vmul.f32 %v1472, 1.442695
  %v1474 = vpow.pop %v1473
  %v1475 = vadd.f32 %v1474, 1.0
  %v1476 = vrcp.pop %v1475
  %v1477 = vmul.f32 1.0, %v1476
  %v1478 = vld [vmem:[%s5] sm:$0x1]
  %v1480 = vlaneseq
  %v1481 = vshrl.u32 %v1480, 7
  %v1482 = vsub.s32 0, %v1481
  %v1483 = vrot.slane %v1478, %v1482
  %1484 = vrot.lane.b32.xlu0 %v1483, 64
  %v1485 = vpop.permute.xlu0 %1484
  %v1487 = vadd.f32 %v1466, %v1485
  %1489 = vrot.lane.b32.xlu0 %v1487, 64
  %v1490 = vpop.permute.xlu0 %1489
  %v1492 = vmul.f32 %v1477, %v1490
  %1494 = vrot.lane.b32.xlu0 %v1492, 64
  %v1495 = vpop.permute.xlu0 %1494
  %v1497 = vadd.f32 %v1410, %v1495
  %v1498 = vtanh.pop %v1497
  %1500 = vrot.lane.b32.xlu0 %v1498, 64
  %v1501 = vpop.permute.xlu0 %1500
  %v1503 = vsub.f32 %v1409, %v1501
  %1505 = vrot.lane.b32.xlu0 %v1503, 32
  %v1506 = vpop.permute.xlu0 %1505
  %v1508 = vmul.f32 %v1477, %v1506
  %1510 = vrot.lane.b32.xlu0 %v1508, 32
  %v1511 = vpop.permute.xlu0 %1510
  %v1513 = vadd.f32 %v1498, %v1511
  %s1514 = scalar_lea.vmem %s1, 2
  %v1515 = vld [vmem:[%s1514] sm:$0x3]
  %1517 = vset.pattern.permute.xlu0 0
  %1518 = vperm.xlu0 %1517, %v1515
  %v1519 = vpop.permute.xlu0 %1518
  %vm1521 = vcmp.gt.f32.partialorder %v1519, 0.0
  %1523 = vrot.lane.b32.xlu0 %v1409, 64
  %v1524 = vpop.permute.xlu0 %1523
  %v1526 = vsel %vm1521, %v1513, %v1524
  %1528 = vrot.lane.b32.xlu0 %v1526, 64
  %v1529 = vpop.permute.xlu0 %1528
  %1531 = vst.msk [vmem:[#allocation4] sm:$0x3] %vm40, %v1529
  %v1532 = vpack.c.bf16 %v1526, %v1526
  %v1535 = vunpack.c.l.s4 1966171168
  %v1536 = vunpack.c.0.s8 %v1535
  %v1537 = vlaneseq
  %v1538 = vshrl.u32 %v1537, 7
  %v1539 = vsub.s32 %v1536, %v1538
  %v1540 = vrot.slane %v1532, %v1539
  %v1542 = vunpack.c.l.s4 1966171168
  %v1543 = vunpack.c.0.s8 %v1542
  %v1544 = vlaneseq
  %v1545 = vshrl.u32 %v1544, 7
  %v1546 = vsub.s32 %v1543, %v1545
  %v1547 = vrot.slane %v1540, %v1546
  %1548 = vrot.lane.b32.xlu0 %v1547, 64
  %v1549 = vpop.permute.xlu0 %1548
  %s1551 = scalar_lea.vmem %s10, 1
  %1552 = vst.msk [vmem:[%s1551] sm:$0x1] %vm1263, %v1549
  %v1553 = vld [vmem:[#allocation5] sm:$0x3]
  %v1554 = vld [vmem:[%s985] sm:$0x3]
  %v1555 = vpack.c.bf16 %v1553, %v1553
  %v1556 = vld [vmem:[%s7] sm:$0xf]
  %v1557 = vld [vmem:[%s7 + $0x4] sm:$0xf]
  %v1558 = vld [vmem:[%s7 + $0x8] sm:$0xf]
  %v1559 = vld [vmem:[%s7 + $0xc] sm:$0xf]
  %v1564 = vunpack.c.l.b16 %v1556
  %v1565 = vunpack.c.l.b16 %v1557
  %v1566 = vunpack.c.l.b16 %v1558
  %v1567 = vunpack.c.l.b16 %v1559
  %v1568 = vpack.c.b16 %v1565, %v1564
  %v1569 = vpack.c.b16 %v1567, %v1566
  %v1573 = vsel %vm67, %v1555, 0
  %1575 = vmatprep.subr.bf16.mxu0 0
  %1576 = vmatpush1.bf16.msra.mxu0 %v1568
  %1577 = vmatprep.subr.bf16.mxu0 0
  %1578 = vmatpush1.bf16.msra.mxu0 %v1569
  %1579 = vmatprep.subr.bf16.mxu0 0
  %1580 = vmatpush1.bf16.msra.mxu0 0
  %1581 = vmatprep.subr.bf16.mxu0 0
  %1582 = vmatpush1.bf16.msra.mxu0 0
  %1583 = vmatprep.subr.bf16.mxu0 0
  %1584 = vmatpush1.bf16.msra.mxu0 0
  %1585 = vmatprep.subr.bf16.mxu0 0
  %1586 = vmatpush1.bf16.msra.mxu0 0
  %1587 = vmatprep.subr.bf16.mxu0 0
  %1588 = vmatpush1.bf16.msra.mxu0 0
  %1589 = vmatprep.subr.bf16.mxu0 0
  %1590 = vmatpush1.bf16.msra.mxu0 0
  %1591 = vmatprep.subr.bf16.mxu0 0
  %1592 = vmatpush1.bf16.msra.mxu0 0
  %1593 = vmatprep.subr.bf16.mxu0 0
  %1594 = vmatpush1.bf16.msra.mxu0 0
  %1595 = vmatprep.subr.bf16.mxu0 0
  %1596 = vmatpush1.bf16.msra.mxu0 0
  %1597 = vmatprep.subr.bf16.mxu0 0
  %1598 = vmatpush1.bf16.msra.mxu0 0
  %1599 = vmatprep.subr.bf16.mxu0 0
  %1600 = vmatpush1.bf16.msra.mxu0 0
  %1601 = vmatprep.subr.bf16.mxu0 0
  %1602 = vmatpush1.bf16.msra.mxu0 0
  %1603 = vmatprep.subr.bf16.mxu0 0
  %1604 = vmatpush1.bf16.msra.mxu0 0
  %1605 = vmatprep.subr.bf16.mxu0 0
  %1606 = vmatpush1.bf16.msra.mxu0 0
  %1607 = vmatprep.mubr.bf16.mxu0 0
  %1608 = vmatmul.mubr.bf16.gmra.mrb[0].mxu0 %v1573
  %v1609 = vpop.f32.mrb[0].mxu0
  %v1610 = vadd.f32 0.0, %v1609
  %v1611 = vpop.f32.mrb[0].mxu0
  %v1612 = vpop.f32.mrb[0].mxu0
  %v1613 = vpop.f32.mrb[0].mxu0
  %1614 = vdwg.mxu0
  %v1615 = vadd.f32 %v1554, %v1610
  %v1616 = vxor.u32 %v1615, 2147483648
  %v1617 = vmul.f32 %v1616, 1.442695
  %v1618 = vpow.pop %v1617
  %v1619 = vadd.f32 %v1618, 1.0
  %v1620 = vrcp.pop %v1619
  %v1621 = vmul.f32 1.0, %v1620
  %v1622 = vld [vmem:[%s9] sm:$0x1]
  %v1624 = vlaneseq
  %v1625 = vshrl.u32 %v1624, 7
  %v1626 = vsub.s32 0, %v1625
  %v1627 = vrot.slane %v1622, %v1626
  %1628 = vrot.lane.b32.xlu0 %v1627, 64
  %v1629 = vpop.permute.xlu0 %1628
  %v1631 = vadd.f32 %v1610, %v1629
  %1633 = vrot.lane.b32.xlu0 %v1631, 64
  %v1634 = vpop.permute.xlu0 %1633
  %v1636 = vmul.f32 %v1621, %v1634
  %1638 = vrot.lane.b32.xlu0 %v1636, 64
  %v1639 = vpop.permute.xlu0 %1638
  %v1641 = vadd.f32 %v1554, %v1639
  %v1642 = vtanh.pop %v1641
  %1644 = vrot.lane.b32.xlu0 %v1642, 64
  %v1645 = vpop.permute.xlu0 %1644
  %v1647 = vsub.f32 %v1553, %v1645
  %1649 = vrot.lane.b32.xlu0 %v1647, 32
  %v1650 = vpop.permute.xlu0 %1649
  %v1652 = vmul.f32 %v1621, %v1650
  %1654 = vrot.lane.b32.xlu0 %v1652, 32
  %v1655 = vpop.permute.xlu0 %1654
  %v1657 = vadd.f32 %v1642, %v1655
  %s1658 = scalar_lea.vmem %s1, 12
  %v1659 = vld [vmem:[%s1658] sm:$0x3]
  %1661 = vset.pattern.permute.xlu0 0
  %1662 = vperm.xlu0 %1661, %v1659
  %v1663 = vpop.permute.xlu0 %1662
  %vm1665 = vcmp.gt.f32.partialorder %v1663, 0.0
  %1667 = vrot.lane.b32.xlu0 %v1553, 64
  %v1668 = vpop.permute.xlu0 %1667
  %v1670 = vsel %vm1665, %v1657, %v1668
  %1672 = vrot.lane.b32.xlu0 %v1670, 64
  %v1673 = vpop.permute.xlu0 %1672
  %1675 = vst.msk [vmem:[#allocation5] sm:$0x3] %vm40, %v1673
  %v1676 = vpack.c.bf16 %v1670, %v1670
  %v1679 = vunpack.c.l.s4 1966171168
  %v1680 = vunpack.c.0.s8 %v1679
  %v1681 = vlaneseq
  %v1682 = vshrl.u32 %v1681, 7
  %v1683 = vsub.s32 %v1680, %v1682
  %v1684 = vrot.slane %v1676, %v1683
  %v1686 = vunpack.c.l.s4 1966171168
  %v1687 = vunpack.c.0.s8 %v1686
  %v1688 = vlaneseq
  %v1689 = vshrl.u32 %v1688, 7
  %v1690 = vsub.s32 %v1687, %v1689
  %v1691 = vrot.slane %v1684, %v1690
  %1692 = vrot.lane.b32.xlu0 %v1691, 64
  %v1693 = vpop.permute.xlu0 %1692
  %s1695 = scalar_lea.vmem %s11, 6
  %1696 = vst.msk [vmem:[%s1695] sm:$0x1] %vm1263, %v1693
  %v1697 = vld [vmem:[#allocation4] sm:$0x3]
  %v1698 = vld [vmem:[%s380] sm:$0x3]
  %v1699 = vpack.c.bf16 %v1697, %v1697
  %v1700 = vld [vmem:[%s3] sm:$0xf]
  %v1701 = vld [vmem:[%s3 + $0x4] sm:$0xf]
  %v1702 = vld [vmem:[%s3 + $0x8] sm:$0xf]
  %v1703 = vld [vmem:[%s3 + $0xc] sm:$0xf]
  %v1708 = vunpack.c.l.b16 %v1700
  %v1709 = vunpack.c.l.b16 %v1701
  %v1710 = vunpack.c.l.b16 %v1702
  %v1711 = vunpack.c.l.b16 %v1703
  %v1712 = vpack.c.b16 %v1709, %v1708
  %v1713 = vpack.c.b16 %v1711, %v1710
  %v1717 = vsel %vm67, %v1699, 0
  %1719 = vmatprep.subr.bf16.mxu0 0
  %1720 = vmatpush1.bf16.msra.mxu0 %v1712
  %1721 = vmatprep.subr.bf16.mxu0 0
  %1722 = vmatpush1.bf16.msra.mxu0 %v1713
  %1723 = vmatprep.subr.bf16.mxu0 0
  %1724 = vmatpush1.bf16.msra.mxu0 0
  %1725 = vmatprep.subr.bf16.mxu0 0
  %1726 = vmatpush1.bf16.msra.mxu0 0
  %1727 = vmatprep.subr.bf16.mxu0 0
  %1728 = vmatpush1.bf16.msra.mxu0 0
  %1729 = vmatprep.subr.bf16.mxu0 0
  %1730 = vmatpush1.bf16.msra.mxu0 0
  %1731 = vmatprep.subr.bf16.mxu0 0
  %1732 = vmatpush1.bf16.msra.mxu0 0
  %1733 = vmatprep.subr.bf16.mxu0 0
  %1734 = vmatpush1.bf16.msra.mxu0 0
  %1735 = vmatprep.subr.bf16.mxu0 0
  %1736 = vmatpush1.bf16.msra.mxu0 0
  %1737 = vmatprep.subr.bf16.mxu0 0
  %1738 = vmatpush1.bf16.msra.mxu0 0
  %1739 = vmatprep.subr.bf16.mxu0 0
  %1740 = vmatpush1.bf16.msra.mxu0 0
  %1741 = vmatprep.subr.bf16.mxu0 0
  %1742 = vmatpush1.bf16.msra.mxu0 0
  %1743 = vmatprep.subr.bf16.mxu0 0
  %1744 = vmatpush1.bf16.msra.mxu0 0
  %1745 = vmatprep.subr.bf16.mxu0 0
  %1746 = vmatpush1.bf16.msra.mxu0 0
  %1747 = vmatprep.subr.bf16.mxu0 0
  %1748 = vmatpush1.bf16.msra.mxu0 0
  %1749 = vmatprep.subr.bf16.mxu0 0
  %1750 = vmatpush1.bf16.msra.mxu0 0
  %1751 = vmatprep.mubr.bf16.mxu0 0
  %1752 = vmatmul.mubr.bf16.gmra.mrb[0].mxu0 %v1717
  %v1753 = vpop.f32.mrb[0].mxu0
  %v1754 = vadd.f32 0.0, %v1753
  %v1755 = vpop.f32.mrb[0].mxu0
  %v1756 = vpop.f32.mrb[0].mxu0
  %v1757 = vpop.f32.mrb[0].mxu0
  %1758 = vdwg.mxu0
  %v1759 = vadd.f32 %v1698, %v1754
  %v1760 = vxor.u32 %v1759, 2147483648
  %v1761 = vmul.f32 %v1760, 1.442695
  %v1762 = vpow.pop %v1761
  %v1763 = vadd.f32 %v1762, 1.0
  %v1764 = vrcp.pop %v1763
  %v1765 = vmul.f32 1.0, %v1764
  %v1766 = vld [vmem:[%s5] sm:$0x1]
  %v1768 = vlaneseq
  %v1769 = vshrl.u32 %v1768, 7
  %v1770 = vsub.s32 0, %v1769
  %v1771 = vrot.slane %v1766, %v1770
  %1772 = vrot.lane.b32.xlu0 %v1771, 64
  %v1773 = vpop.permute.xlu0 %1772
  %v1775 = vadd.f32 %v1754, %v1773
  %1777 = vrot.lane.b32.xlu0 %v1775, 64
  %v1778 = vpop.permute.xlu0 %1777
  %v1780 = vmul.f32 %v1765, %v1778
  %1782 = vrot.lane.b32.xlu0 %v1780, 64
  %v1783 = vpop.permute.xlu0 %1782
  %v1785 = vadd.f32 %v1698, %v1783
  %v1786 = vtanh.pop %v1785
  %1788 = vrot.lane.b32.xlu0 %v1786, 64
  %v1789 = vpop.permute.xlu0 %1788
  %v1791 = vsub.f32 %v1697, %v1789
  %1793 = vrot.lane.b32.xlu0 %v1791, 32
  %v1794 = vpop.permute.xlu0 %1793
  %v1796 = vmul.f32 %v1765, %v1794
  %1798 = vrot.lane.b32.xlu0 %v1796, 32
  %v1799 = vpop.permute.xlu0 %1798
  %v1801 = vadd.f32 %v1786, %v1799
  %s1802 = scalar_lea.vmem %s1, 4
  %v1803 = vld [vmem:[%s1802] sm:$0x3]
  %1805 = vset.pattern.permute.xlu0 0
  %1806 = vperm.xlu0 %1805, %v1803
  %v1807 = vpop.permute.xlu0 %1806
  %vm1809 = vcmp.gt.f32.partialorder %v1807, 0.0
  %1811 = vrot.lane.b32.xlu0 %v1697, 64
  %v1812 = vpop.permute.xlu0 %1811
  %v1814 = vsel %vm1809, %v1801, %v1812
  %1816 = vrot.lane.b32.xlu0 %v1814, 64
  %v1817 = vpop.permute.xlu0 %1816
  %1819 = vst.msk [vmem:[#allocation4] sm:$0x3] %vm40, %v1817
  %v1820 = vpack.c.bf16 %v1814, %v1814
  %v1823 = vunpack.c.l.s4 1966171168
  %v1824 = vunpack.c.0.s8 %v1823
  %v1825 = vlaneseq
  %v1826 = vshrl.u32 %v1825, 7
  %v1827 = vsub.s32 %v1824, %v1826
  %v1828 = vrot.slane %v1820, %v1827
  %v1830 = vunpack.c.l.s4 1966171168
  %v1831 = vunpack.c.0.s8 %v1830
  %v1832 = vlaneseq
  %v1833 = vshrl.u32 %v1832, 7
  %v1834 = vsub.s32 %v1831, %v1833
  %v1835 = vrot.slane %v1828, %v1834
  %1836 = vrot.lane.b32.xlu0 %v1835, 64
  %v1837 = vpop.permute.xlu0 %1836
  %s1839 = scalar_lea.vmem %s10, 2
  %1840 = vst.msk [vmem:[%s1839] sm:$0x1] %vm1263, %v1837
  %v1841 = vld [vmem:[#allocation5] sm:$0x3]
  %v1842 = vld [vmem:[%s850] sm:$0x3]
  %v1843 = vpack.c.bf16 %v1841, %v1841
  %v1844 = vld [vmem:[%s7] sm:$0xf]
  %v1845 = vld [vmem:[%s7 + $0x4] sm:$0xf]
  %v1846 = vld [vmem:[%s7 + $0x8] sm:$0xf]
  %v1847 = vld [vmem:[%s7 + $0xc] sm:$0xf]
  %v1852 = vunpack.c.l.b16 %v1844
  %v1853 = vunpack.c.l.b16 %v1845
  %v1854 = vunpack.c.l.b16 %v1846
  %v1855 = vunpack.c.l.b16 %v1847
  %v1856 = vpack.c.b16 %v1853, %v1852
  %v1857 = vpack.c.b16 %v1855, %v1854
  %v1861 = vsel %vm67, %v1843, 0
  %1863 = vmatprep.subr.bf16.mxu0 0
  %1864 = vmatpush1.bf16.msra.mxu0 %v1856
  %1865 = vmatprep.subr.bf16.mxu0 0
  %1866 = vmatpush1.bf16.msra.mxu0 %v1857
  %1867 = vmatprep.subr.bf16.mxu0 0
  %1868 = vmatpush1.bf16.msra.mxu0 0
  %1869 = vmatprep.subr.bf16.mxu0 0
  %1870 = vmatpush1.bf16.msra.mxu0 0
  %1871 = vmatprep.subr.bf16.mxu0 0
  %1872 = vmatpush1.bf16.msra.mxu0 0
  %1873 = vmatprep.subr.bf16.mxu0 0
  %1874 = vmatpush1.bf16.msra.mxu0 0
  %1875 = vmatprep.subr.bf16.mxu0 0
  %1876 = vmatpush1.bf16.msra.mxu0 0
  %1877 = vmatprep.subr.bf16.mxu0 0
  %1878 = vmatpush1.bf16.msra.mxu0 0
  %1879 = vmatprep.subr.bf16.mxu0 0
  %1880 = vmatpush1.bf16.msra.mxu0 0
  %1881 = vmatprep.subr.bf16.mxu0 0
  %1882 = vmatpush1.bf16.msra.mxu0 0
  %1883 = vmatprep.subr.bf16.mxu0 0
  %1884 = vmatpush1.bf16.msra.mxu0 0
  %1885 = vmatprep.subr.bf16.mxu0 0
  %1886 = vmatpush1.bf16.msra.mxu0 0
  %1887 = vmatprep.subr.bf16.mxu0 0
  %1888 = vmatpush1.bf16.msra.mxu0 0
  %1889 = vmatprep.subr.bf16.mxu0 0
  %1890 = vmatpush1.bf16.msra.mxu0 0
  %1891 = vmatprep.subr.bf16.mxu0 0
  %1892 = vmatpush1.bf16.msra.mxu0 0
  %1893 = vmatprep.subr.bf16.mxu0 0
  %1894 = vmatpush1.bf16.msra.mxu0 0
  %1895 = vmatprep.mubr.bf16.mxu0 0
  %1896 = vmatmul.mubr.bf16.gmra.mrb[0].mxu0 %v1861
  %v1897 = vpop.f32.mrb[0].mxu0
  %v1898 = vadd.f32 0.0, %v1897
  %v1899 = vpop.f32.mrb[0].mxu0
  %v1900 = vpop.f32.mrb[0].mxu0
  %v1901 = vpop.f32.mrb[0].mxu0
  %1902 = vdwg.mxu0
  %v1903 = vadd.f32 %v1842, %v1898
  %v1904 = vxor.u32 %v1903, 2147483648
  %v1905 = vmul.f32 %v1904, 1.442695
  %v1906 = vpow.pop %v1905
  %v1907 = vadd.f32 %v1906, 1.0
  %v1908 = vrcp.pop %v1907
  %v1909 = vmul.f32 1.0, %v1908
  %v1910 = vld [vmem:[%s9] sm:$0x1]
  %v1912 = vlaneseq
  %v1913 = vshrl.u32 %v1912, 7
  %v1914 = vsub.s32 0, %v1913
  %v1915 = vrot.slane %v1910, %v1914
  %1916 = vrot.lane.b32.xlu0 %v1915, 64
  %v1917 = vpop.permute.xlu0 %1916
  %v1919 = vadd.f32 %v1898, %v1917
  %1921 = vrot.lane.b32.xlu0 %v1919, 64
  %v1922 = vpop.permute.xlu0 %1921
  %v1924 = vmul.f32 %v1909, %v1922
  %1926 = vrot.lane.b32.xlu0 %v1924, 64
  %v1927 = vpop.permute.xlu0 %1926
  %v1929 = vadd.f32 %v1842, %v1927
  %v1930 = vtanh.pop %v1929
  %1932 = vrot.lane.b32.xlu0 %v1930, 64
  %v1933 = vpop.permute.xlu0 %1932
  %v1935 = vsub.f32 %v1841, %v1933
  %1937 = vrot.lane.b32.xlu0 %v1935, 32
  %v1938 = vpop.permute.xlu0 %1937
  %v1940 = vmul.f32 %v1909, %v1938
  %1942 = vrot.lane.b32.xlu0 %v1940, 32
  %v1943 = vpop.permute.xlu0 %1942
  %v1945 = vadd.f32 %v1930, %v1943
  %s1946 = scalar_lea.vmem %s1, 10
  %v1947 = vld [vmem:[%s1946] sm:$0x3]
  %1949 = vset.pattern.permute.xlu0 0
  %1950 = vperm.xlu0 %1949, %v1947
  %v1951 = vpop.permute.xlu0 %1950
  %vm1953 = vcmp.gt.f32.partialorder %v1951, 0.0
  %1955 = vrot.lane.b32.xlu0 %v1841, 64
  %v1956 = vpop.permute.xlu0 %1955
  %v1958 = vsel %vm1953, %v1945, %v1956
  %1960 = vrot.lane.b32.xlu0 %v1958, 64
  %v1961 = vpop.permute.xlu0 %1960
  %1963 = vst.msk [vmem:[#allocation5] sm:$0x3] %vm40, %v1961
  %v1964 = vpack.c.bf16 %v1958, %v1958
  %v1967 = vunpack.c.l.s4 1966171168
  %v1968 = vunpack.c.0.s8 %v1967
  %v1969 = vlaneseq
  %v1970 = vshrl.u32 %v1969, 7
  %v1971 = vsub.s32 %v1968, %v1970
  %v1972 = vrot.slane %v1964, %v1971
  %v1974 = vunpack.c.l.s4 1966171168
  %v1975 = vunpack.c.0.s8 %v1974
  %v1976 = vlaneseq
  %v1977 = vshrl.u32 %v1976, 7
  %v1978 = vsub.s32 %v1975, %v1977
  %v1979 = vrot.slane %v1972, %v1978
  %1980 = vrot.lane.b32.xlu0 %v1979, 64
  %v1981 = vpop.permute.xlu0 %1980
  %s1983 = scalar_lea.vmem %s11, 5
  %1984 = vst.msk [vmem:[%s1983] sm:$0x1] %vm1263, %v1981
  %v1985 = vld [vmem:[#allocation4] sm:$0x3]
  %v1986 = vld [vmem:[%s515] sm:$0x3]
  %v1987 = vpack.c.bf16 %v1985, %v1985
  %v1988 = vld [vmem:[%s3] sm:$0xf]
  %v1989 = vld [vmem:[%s3 + $0x4] sm:$0xf]
  %v1990 = vld [vmem:[%s3 + $0x8] sm:$0xf]
  %v1991 = vld [vmem:[%s3 + $0xc] sm:$0xf]
  %v1996 = vunpack.c.l.b16 %v1988
  %v1997 = vunpack.c.l.b16 %v1989
  %v1998 = vunpack.c.l.b16 %v1990
  %v1999 = vunpack.c.l.b16 %v1991
  %v2000 = vpack.c.b16 %v1997, %v1996
  %v2001 = vpack.c.b16 %v1999, %v1998
  %v2005 = vsel %vm67, %v1987, 0
  %2007 = vmatprep.subr.bf16.mxu0 0
  %2008 = vmatpush1.bf16.msra.mxu0 %v2000
  %2009 = vmatprep.subr.bf16.mxu0 0
  %2010 = vmatpush1.bf16.msra.mxu0 %v2001
  %2011 = vmatprep.subr.bf16.mxu0 0
  %2012 = vmatpush1.bf16.msra.mxu0 0
  %2013 = vmatprep.subr.bf16.mxu0 0
  %2014 = vmatpush1.bf16.msra.mxu0 0
  %2015 = vmatprep.subr.bf16.mxu0 0
  %2016 = vmatpush1.bf16.msra.mxu0 0
  %2017 = vmatprep.subr.bf16.mxu0 0
  %2018 = vmatpush1.bf16.msra.mxu0 0
  %2019 = vmatprep.subr.bf16.mxu0 0
  %2020 = vmatpush1.bf16.msra.mxu0 0
  %2021 = vmatprep.subr.bf16.mxu0 0
  %2022 = vmatpush1.bf16.msra.mxu0 0
  %2023 = vmatprep.subr.bf16.mxu0 0
  %2024 = vmatpush1.bf16.msra.mxu0 0
  %2025 = vmatprep.subr.bf16.mxu0 0
  %2026 = vmatpush1.bf16.msra.mxu0 0
  %2027 = vmatprep.subr.bf16.mxu0 0
  %2028 = vmatpush1.bf16.msra.mxu0 0
  %2029 = vmatprep.subr.bf16.mxu0 0
  %2030 = vmatpush1.bf16.msra.mxu0 0
  %2031 = vmatprep.subr.bf16.mxu0 0
  %2032 = vmatpush1.bf16.msra.mxu0 0
  %2033 = vmatprep.subr.bf16.mxu0 0
  %2034 = vmatpush1.bf16.msra.mxu0 0
  %2035 = vmatprep.subr.bf16.mxu0 0
  %2036 = vmatpush1.bf16.msra.mxu0 0
  %2037 = vmatprep.subr.bf16.mxu0 0
  %2038 = vmatpush1.bf16.msra.mxu0 0
  %2039 = vmatprep.mubr.bf16.mxu0 0
  %2040 = vmatmul.mubr.bf16.gmra.mrb[0].mxu0 %v2005
  %v2041 = vpop.f32.mrb[0].mxu0
  %v2042 = vadd.f32 0.0, %v2041
  %v2043 = vpop.f32.mrb[0].mxu0
  %v2044 = vpop.f32.mrb[0].mxu0
  %v2045 = vpop.f32.mrb[0].mxu0
  %2046 = vdwg.mxu0
  %v2047 = vadd.f32 %v1986, %v2042
  %v2048 = vxor.u32 %v2047, 2147483648
  %v2049 = vmul.f32 %v2048, 1.442695
  %v2050 = vpow.pop %v2049
  %v2051 = vadd.f32 %v2050, 1.0
  %v2052 = vrcp.pop %v2051
  %v2053 = vmul.f32 1.0, %v2052
  %v2054 = vld [vmem:[%s5] sm:$0x1]
  %v2056 = vlaneseq
  %v2057 = vshrl.u32 %v2056, 7
  %v2058 = vsub.s32 0, %v2057
  %v2059 = vrot.slane %v2054, %v2058
  %2060 = vrot.lane.b32.xlu0 %v2059, 64
  %v2061 = vpop.permute.xlu0 %2060
  %v2063 = vadd.f32 %v2042, %v2061
  %2065 = vrot.lane.b32.xlu0 %v2063, 64
  %v2066 = vpop.permute.xlu0 %2065
  %v2068 = vmul.f32 %v2053, %v2066
  %2070 = vrot.lane.b32.xlu0 %v2068, 64
  %v2071 = vpop.permute.xlu0 %2070
  %v2073 = vadd.f32 %v1986, %v2071
  %v2074 = vtanh.pop %v2073
  %2076 = vrot.lane.b32.xlu0 %v2074, 64
  %v2077 = vpop.permute.xlu0 %2076
  %v2079 = vsub.f32 %v1985, %v2077
  %2081 = vrot.lane.b32.xlu0 %v2079, 32
  %v2082 = vpop.permute.xlu0 %2081
  %v2084 = vmul.f32 %v2053, %v2082
  %2086 = vrot.lane.b32.xlu0 %v2084, 32
  %v2087 = vpop.permute.xlu0 %2086
  %v2089 = vadd.f32 %v2074, %v2087
  %s2090 = scalar_lea.vmem %s1, 6
  %v2091 = vld [vmem:[%s2090] sm:$0x3]
  %2093 = vset.pattern.permute.xlu0 0
  %2094 = vperm.xlu0 %2093, %v2091
  %v2095 = vpop.permute.xlu0 %2094
  %vm2097 = vcmp.gt.f32.partialorder %v2095, 0.0
  %2099 = vrot.lane.b32.xlu0 %v1985, 64
  %v2100 = vpop.permute.xlu0 %2099
  %v2102 = vsel %vm2097, %v2089, %v2100
  %2104 = vrot.lane.b32.xlu0 %v2102, 64
  %v2105 = vpop.permute.xlu0 %2104
  %2107 = vst.msk [vmem:[#allocation4] sm:$0x3] %vm40, %v2105
  %v2108 = vpack.c.bf16 %v2102, %v2102
  %v2111 = vunpack.c.l.s4 1966171168
  %v2112 = vunpack.c.0.s8 %v2111
  %v2113 = vlaneseq
  %v2114 = vshrl.u32 %v2113, 7
  %v2115 = vsub.s32 %v2112, %v2114
  %v2116 = vrot.slane %v2108, %v2115
  %v2118 = vunpack.c.l.s4 1966171168
  %v2119 = vunpack.c.0.s8 %v2118
  %v2120 = vlaneseq
  %v2121 = vshrl.u32 %v2120, 7
  %v2122 = vsub.s32 %v2119, %v2121
  %v2123 = vrot.slane %v2116, %v2122
  %2124 = vrot.lane.b32.xlu0 %v2123, 64
  %v2125 = vpop.permute.xlu0 %2124
  %s2127 = scalar_lea.vmem %s10, 3
  %2128 = vst.msk [vmem:[%s2127] sm:$0x1] %vm1263, %v2125
  %v2129 = vld [vmem:[#allocation5] sm:$0x3]
  %v2130 = vld [vmem:[%s715] sm:$0x3]
  %v2131 = vpack.c.bf16 %v2129, %v2129
  %v2132 = vld [vmem:[%s7] sm:$0xf]
  %v2133 = vld [vmem:[%s7 + $0x4] sm:$0xf]
  %v2134 = vld [vmem:[%s7 + $0x8] sm:$0xf]
  %v2135 = vld [vmem:[%s7 + $0xc] sm:$0xf]
  %v2140 = vunpack.c.l.b16 %v2132
  %v2141 = vunpack.c.l.b16 %v2133
  %v2142 = vunpack.c.l.b16 %v2134
  %v2143 = vunpack.c.l.b16 %v2135
  %v2144 = vpack.c.b16 %v2141, %v2140
  %v2145 = vpack.c.b16 %v2143, %v2142
  %v2149 = vsel %vm67, %v2131, 0
  %2151 = vmatprep.subr.bf16.mxu0 0
  %2152 = vmatpush1.bf16.msra.mxu0 %v2144
  %2153 = vmatprep.subr.bf16.mxu0 0
  %2154 = vmatpush1.bf16.msra.mxu0 %v2145
  %2155 = vmatprep.subr.bf16.mxu0 0
  %2156 = vmatpush1.bf16.msra.mxu0 0
  %2157 = vmatprep.subr.bf16.mxu0 0
  %2158 = vmatpush1.bf16.msra.mxu0 0
  %2159 = vmatprep.subr.bf16.mxu0 0
  %2160 = vmatpush1.bf16.msra.mxu0 0
  %2161 = vmatprep.subr.bf16.mxu0 0
  %2162 = vmatpush1.bf16.msra.mxu0 0
  %2163 = vmatprep.subr.bf16.mxu0 0
  %2164 = vmatpush1.bf16.msra.mxu0 0
  %2165 = vmatprep.subr.bf16.mxu0 0
  %2166 = vmatpush1.bf16.msra.mxu0 0
  %2167 = vmatprep.subr.bf16.mxu0 0
  %2168 = vmatpush1.bf16.msra.mxu0 0
  %2169 = vmatprep.subr.bf16.mxu0 0
  %2170 = vmatpush1.bf16.msra.mxu0 0
  %2171 = vmatprep.subr.bf16.mxu0 0
  %2172 = vmatpush1.bf16.msra.mxu0 0
  %2173 = vmatprep.subr.bf16.mxu0 0
  %2174 = vmatpush1.bf16.msra.mxu0 0
  %2175 = vmatprep.subr.bf16.mxu0 0
  %2176 = vmatpush1.bf16.msra.mxu0 0
  %2177 = vmatprep.subr.bf16.mxu0 0
  %2178 = vmatpush1.bf16.msra.mxu0 0
  %2179 = vmatprep.subr.bf16.mxu0 0
  %2180 = vmatpush1.bf16.msra.mxu0 0
  %2181 = vmatprep.subr.bf16.mxu0 0
  %2182 = vmatpush1.bf16.msra.mxu0 0
  %2183 = vmatprep.mubr.bf16.mxu0 0
  %2184 = vmatmul.mubr.bf16.gmra.mrb[0].mxu0 %v2149
  %v2185 = vpop.f32.mrb[0].mxu0
  %v2186 = vadd.f32 0.0, %v2185
  %v2187 = vpop.f32.mrb[0].mxu0
  %v2188 = vpop.f32.mrb[0].mxu0
  %v2189 = vpop.f32.mrb[0].mxu0
  %2190 = vdwg.mxu0
  %v2191 = vadd.f32 %v2130, %v2186
  %v2192 = vxor.u32 %v2191, 2147483648
  %v2193 = vmul.f32 %v2192, 1.442695
  %v2194 = vpow.pop %v2193
  %v2195 = vadd.f32 %v2194, 1.0
  %v2196 = vrcp.pop %v2195
  %v2197 = vmul.f32 1.0, %v2196
  %v2198 = vld [vmem:[%s9] sm:$0x1]
  %v2200 = vlaneseq
  %v2201 = vshrl.u32 %v2200, 7
  %v2202 = vsub.s32 0, %v2201
  %v2203 = vrot.slane %v2198, %v2202
  %2204 = vrot.lane.b32.xlu0 %v2203, 64
  %v2205 = vpop.permute.xlu0 %2204
  %v2207 = vadd.f32 %v2186, %v2205
  %2209 = vrot.lane.b32.xlu0 %v2207, 64
  %v2210 = vpop.permute.xlu0 %2209
  %v2212 = vmul.f32 %v2197, %v2210
  %2214 = vrot.lane.b32.xlu0 %v2212, 64
  %v2215 = vpop.permute.xlu0 %2214
  %v2217 = vadd.f32 %v2130, %v2215
  %v2218 = vtanh.pop %v2217
  %2220 = vrot.lane.b32.xlu0 %v2218, 64
  %v2221 = vpop.permute.xlu0 %2220
  %v2223 = vsub.f32 %v2129, %v2221
  %2225 = vrot.lane.b32.xlu0 %v2223, 32
  %v2226 = vpop.permute.xlu0 %2225
  %v2228 = vmul.f32 %v2197, %v2226
  %2230 = vrot.lane.b32.xlu0 %v2228, 32
  %v2231 = vpop.permute.xlu0 %2230
  %v2233 = vadd.f32 %v2218, %v2231
  %s2234 = scalar_lea.vmem %s1, 8
  %v2235 = vld [vmem:[%s2234] sm:$0x3]
  %2237 = vset.pattern.permute.xlu0 0
  %2238 = vperm.xlu0 %2237, %v2235
  %v2239 = vpop.permute.xlu0 %2238
  %vm2241 = vcmp.gt.f32.partialorder %v2239, 0.0
  %2243 = vrot.lane.b32.xlu0 %v2129, 64
  %v2244 = vpop.permute.xlu0 %2243
  %v2246 = vsel %vm2241, %v2233, %v2244
  %2248 = vrot.lane.b32.xlu0 %v2246, 64
  %v2249 = vpop.permute.xlu0 %2248
  %2251 = vst.msk [vmem:[#allocation5] sm:$0x3] %vm40, %v2249
  %v2252 = vpack.c.bf16 %v2246, %v2246
  %v2255 = vunpack.c.l.s4 1966171168
  %v2256 = vunpack.c.0.s8 %v2255
  %v2257 = vlaneseq
  %v2258 = vshrl.u32 %v2257, 7
  %v2259 = vsub.s32 %v2256, %v2258
  %v2260 = vrot.slane %v2252, %v2259
  %v2262 = vunpack.c.l.s4 1966171168
  %v2263 = vunpack.c.0.s8 %v2262
  %v2264 = vlaneseq
  %v2265 = vshrl.u32 %v2264, 7
  %v2266 = vsub.s32 %v2263, %v2265
  %v2267 = vrot.slane %v2260, %v2266
  %2268 = vrot.lane.b32.xlu0 %v2267, 64
  %v2269 = vpop.permute.xlu0 %2268
  %s2271 = scalar_lea.vmem %s11, 4
  %2272 = vst.msk [vmem:[%s2271] sm:$0x1] %vm1263, %v2269
  %v2273 = vld [vmem:[#allocation4] sm:$0x3]
  %v2274 = vld [vmem:[%s650] sm:$0x3]
  %v2275 = vpack.c.bf16 %v2273, %v2273
  %v2276 = vld [vmem:[%s3] sm:$0xf]
  %v2277 = vld [vmem:[%s3 + $0x4] sm:$0xf]
  %v2278 = vld [vmem:[%s3 + $0x8] sm:$0xf]
  %v2279 = vld [vmem:[%s3 + $0xc] sm:$0xf]
  %v2284 = vunpack.c.l.b16 %v2276
  %v2285 = vunpack.c.l.b16 %v2277
  %v2286 = vunpack.c.l.b16 %v2278
  %v2287 = vunpack.c.l.b16 %v2279
  %v2288 = vpack.c.b16 %v2285, %v2284
  %v2289 = vpack.c.b16 %v2287, %v2286
  %v2293 = vsel %vm67, %v2275, 0
  %2295 = vmatprep.subr.bf16.mxu0 0
  %2296 = vmatpush1.bf16.msra.mxu0 %v2288
  %2297 = vmatprep.subr.bf16.mxu0 0
  %2298 = vmatpush1.bf16.msra.mxu0 %v2289
  %2299 = vmatprep.subr.bf16.mxu0 0
  %2300 = vmatpush1.bf16.msra.mxu0 0
  %2301 = vmatprep.subr.bf16.mxu0 0
  %2302 = vmatpush1.bf16.msra.mxu0 0
  %2303 = vmatprep.subr.bf16.mxu0 0
  %2304 = vmatpush1.bf16.msra.mxu0 0
  %2305 = vmatprep.subr.bf16.mxu0 0
  %2306 = vmatpush1.bf16.msra.mxu0 0
  %2307 = vmatprep.subr.bf16.mxu0 0
  %2308 = vmatpush1.bf16.msra.mxu0 0
  %2309 = vmatprep.subr.bf16.mxu0 0
  %2310 = vmatpush1.bf16.msra.mxu0 0
  %2311 = vmatprep.subr.bf16.mxu0 0
  %2312 = vmatpush1.bf16.msra.mxu0 0
  %2313 = vmatprep.subr.bf16.mxu0 0
  %2314 = vmatpush1.bf16.msra.mxu0 0
  %2315 = vmatprep.subr.bf16.mxu0 0
  %2316 = vmatpush1.bf16.msra.mxu0 0
  %2317 = vmatprep.subr.bf16.mxu0 0
  %2318 = vmatpush1.bf16.msra.mxu0 0
  %2319 = vmatprep.subr.bf16.mxu0 0
  %2320 = vmatpush1.bf16.msra.mxu0 0
  %2321 = vmatprep.subr.bf16.mxu0 0
  %2322 = vmatpush1.bf16.msra.mxu0 0
  %2323 = vmatprep.subr.bf16.mxu0 0
  %2324 = vmatpush1.bf16.msra.mxu0 0
  %2325 = vmatprep.subr.bf16.mxu0 0
  %2326 = vmatpush1.bf16.msra.mxu0 0
  %2327 = vmatprep.mubr.bf16.mxu0 0
  %2328 = vmatmul.mubr.bf16.gmra.mrb[0].mxu0 %v2293
  %v2329 = vpop.f32.mrb[0].mxu0
  %v2330 = vadd.f32 0.0, %v2329
  %v2331 = vpop.f32.mrb[0].mxu0
  %v2332 = vpop.f32.mrb[0].mxu0
  %v2333 = vpop.f32.mrb[0].mxu0
  %2334 = vdwg.mxu0
  %v2335 = vadd.f32 %v2274, %v2330
  %v2336 = vxor.u32 %v2335, 2147483648
  %v2337 = vmul.f32 %v2336, 1.442695
  %v2338 = vpow.pop %v2337
  %v2339 = vadd.f32 %v2338, 1.0
  %v2340 = vrcp.pop %v2339
  %v2341 = vmul.f32 1.0, %v2340
  %v2342 = vld [vmem:[%s5] sm:$0x1]
  %v2344 = vlaneseq
  %v2345 = vshrl.u32 %v2344, 7
  %v2346 = vsub.s32 0, %v2345
  %v2347 = vrot.slane %v2342, %v2346
  %2348 = vrot.lane.b32.xlu0 %v2347, 64
  %v2349 = vpop.permute.xlu0 %2348
  %v2351 = vadd.f32 %v2330, %v2349
  %2353 = vrot.lane.b32.xlu0 %v2351, 64
  %v2354 = vpop.permute.xlu0 %2353
  %v2356 = vmul.f32 %v2341, %v2354
  %2358 = vrot.lane.b32.xlu0 %v2356, 64
  %v2359 = vpop.permute.xlu0 %2358
  %v2361 = vadd.f32 %v2274, %v2359
  %v2362 = vtanh.pop %v2361
  %2364 = vrot.lane.b32.xlu0 %v2362, 64
  %v2365 = vpop.permute.xlu0 %2364
  %v2367 = vsub.f32 %v2273, %v2365
  %2369 = vrot.lane.b32.xlu0 %v2367, 32
  %v2370 = vpop.permute.xlu0 %2369
  %v2372 = vmul.f32 %v2341, %v2370
  %2374 = vrot.lane.b32.xlu0 %v2372, 32
  %v2375 = vpop.permute.xlu0 %2374
  %v2377 = vadd.f32 %v2362, %v2375
  %v2378 = vld [vmem:[%s2234] sm:$0x3]
  %2380 = vset.pattern.permute.xlu0 0
  %2381 = vperm.xlu0 %2380, %v2378
  %v2382 = vpop.permute.xlu0 %2381
  %vm2384 = vcmp.gt.f32.partialorder %v2382, 0.0
  %2386 = vrot.lane.b32.xlu0 %v2273, 64
  %v2387 = vpop.permute.xlu0 %2386
  %v2389 = vsel %vm2384, %v2377, %v2387
  %2391 = vrot.lane.b32.xlu0 %v2389, 64
  %v2392 = vpop.permute.xlu0 %2391
  %2394 = vst.msk [vmem:[#allocation4] sm:$0x3] %vm40, %v2392
  %v2395 = vpack.c.bf16 %v2389, %v2389
  %v2398 = vunpack.c.l.s4 1966171168
  %v2399 = vunpack.c.0.s8 %v2398
  %v2400 = vlaneseq
  %v2401 = vshrl.u32 %v2400, 7
  %v2402 = vsub.s32 %v2399, %v2401
  %v2403 = vrot.slane %v2395, %v2402
  %v2405 = vunpack.c.l.s4 1966171168
  %v2406 = vunpack.c.0.s8 %v2405
  %v2407 = vlaneseq
  %v2408 = vshrl.u32 %v2407, 7
  %v2409 = vsub.s32 %v2406, %v2408
  %v2410 = vrot.slane %v2403, %v2409
  %2411 = vrot.lane.b32.xlu0 %v2410, 64
  %v2412 = vpop.permute.xlu0 %2411
  %s2414 = scalar_lea.vmem %s10, 4
  %2415 = vst.msk [vmem:[%s2414] sm:$0x1] %vm1263, %v2412
  %v2416 = vld [vmem:[#allocation5] sm:$0x3]
  %v2417 = vld [vmem:[%s580] sm:$0x3]
  %v2418 = vpack.c.bf16 %v2416, %v2416
  %v2419 = vld [vmem:[%s7] sm:$0xf]
  %v2420 = vld [vmem:[%s7 + $0x4] sm:$0xf]
  %v2421 = vld [vmem:[%s7 + $0x8] sm:$0xf]
  %v2422 = vld [vmem:[%s7 + $0xc] sm:$0xf]
  %v2427 = vunpack.c.l.b16 %v2419
  %v2428 = vunpack.c.l.b16 %v2420
  %v2429 = vunpack.c.l.b16 %v2421
  %v2430 = vunpack.c.l.b16 %v2422
  %v2431 = vpack.c.b16 %v2428, %v2427
  %v2432 = vpack.c.b16 %v2430, %v2429
  %v2436 = vsel %vm67, %v2418, 0
  %2438 = vmatprep.subr.bf16.mxu0 0
  %2439 = vmatpush1.bf16.msra.mxu0 %v2431
  %2440 = vmatprep.subr.bf16.mxu0 0
  %2441 = vmatpush1.bf16.msra.mxu0 %v2432
  %2442 = vmatprep.subr.bf16.mxu0 0
  %2443 = vmatpush1.bf16.msra.mxu0 0
  %2444 = vmatprep.subr.bf16.mxu0 0
  %2445 = vmatpush1.bf16.msra.mxu0 0
  %2446 = vmatprep.subr.bf16.mxu0 0
  %2447 = vmatpush1.bf16.msra.mxu0 0
  %2448 = vmatprep.subr.bf16.mxu0 0
  %2449 = vmatpush1.bf16.msra.mxu0 0
  %2450 = vmatprep.subr.bf16.mxu0 0
  %2451 = vmatpush1.bf16.msra.mxu0 0
  %2452 = vmatprep.subr.bf16.mxu0 0
  %2453 = vmatpush1.bf16.msra.mxu0 0
  %2454 = vmatprep.subr.bf16.mxu0 0
  %2455 = vmatpush1.bf16.msra.mxu0 0
  %2456 = vmatprep.subr.bf16.mxu0 0
  %2457 = vmatpush1.bf16.msra.mxu0 0
  %2458 = vmatprep.subr.bf16.mxu0 0
  %2459 = vmatpush1.bf16.msra.mxu0 0
  %2460 = vmatprep.subr.bf16.mxu0 0
  %2461 = vmatpush1.bf16.msra.mxu0 0
  %2462 = vmatprep.subr.bf16.mxu0 0
  %2463 = vmatpush1.bf16.msra.mxu0 0
  %2464 = vmatprep.subr.bf16.mxu0 0
  %2465 = vmatpush1.bf16.msra.mxu0 0
  %2466 = vmatprep.subr.bf16.mxu0 0
  %2467 = vmatpush1.bf16.msra.mxu0 0
  %2468 = vmatprep.subr.bf16.mxu0 0
  %2469 = vmatpush1.bf16.msra.mxu0 0
  %2470 = vmatprep.mubr.bf16.mxu0 0
  %2471 = vmatmul.mubr.bf16.gmra.mrb[0].mxu0 %v2436
  %v2472 = vpop.f32.mrb[0].mxu0
  %v2473 = vadd.f32 0.0, %v2472
  %v2474 = vpop.f32.mrb[0].mxu0
  %v2475 = vpop.f32.mrb[0].mxu0
  %v2476 = vpop.f32.mrb[0].mxu0
  %2477 = vdwg.mxu0
  %v2478 = vadd.f32 %v2417, %v2473
  %v2479 = vxor.u32 %v2478, 2147483648
  %v2480 = vmul.f32 %v2479, 1.442695
  %v2481 = vpow.pop %v2480
  %v2482 = vadd.f32 %v2481, 1.0
  %v2483 = vrcp.pop %v2482
  %v2484 = vmul.f32 1.0, %v2483
  %v2485 = vld [vmem:[%s9] sm:$0x1]
  %v2487 = vlaneseq
  %v2488 = vshrl.u32 %v2487, 7
  %v2489 = vsub.s32 0, %v2488
  %v2490 = vrot.slane %v2485, %v2489
  %2491 = vrot.lane.b32.xlu0 %v2490, 64
  %v2492 = vpop.permute.xlu0 %2491
  %v2494 = vadd.f32 %v2473, %v2492
  %2496 = vrot.lane.b32.xlu0 %v2494, 64
  %v2497 = vpop.permute.xlu0 %2496
  %v2499 = vmul.f32 %v2484, %v2497
  %2501 = vrot.lane.b32.xlu0 %v2499, 64
  %v2502 = vpop.permute.xlu0 %2501
  %v2504 = vadd.f32 %v2417, %v2502
  %v2505 = vtanh.pop %v2504
  %2507 = vrot.lane.b32.xlu0 %v2505, 64
  %v2508 = vpop.permute.xlu0 %2507
  %v2510 = vsub.f32 %v2416, %v2508
  %2512 = vrot.lane.b32.xlu0 %v2510, 32
  %v2513 = vpop.permute.xlu0 %2512
  %v2515 = vmul.f32 %v2484, %v2513
  %2517 = vrot.lane.b32.xlu0 %v2515, 32
  %v2518 = vpop.permute.xlu0 %2517
  %v2520 = vadd.f32 %v2505, %v2518
  %v2521 = vld [vmem:[%s2090] sm:$0x3]
  %2523 = vset.pattern.permute.xlu0 0
  %2524 = vperm.xlu0 %2523, %v2521
  %v2525 = vpop.permute.xlu0 %2524
  %vm2527 = vcmp.gt.f32.partialorder %v2525, 0.0
  %2529 = vrot.lane.b32.xlu0 %v2416, 64
  %v2530 = vpop.permute.xlu0 %2529
  %v2532 = vsel %vm2527, %v2520, %v2530
  %2534 = vrot.lane.b32.xlu0 %v2532, 64
  %v2535 = vpop.permute.xlu0 %2534
  %2537 = vst.msk [vmem:[#allocation5] sm:$0x3] %vm40, %v2535
  %v2538 = vpack.c.bf16 %v2532, %v2532
  %v2541 = vunpack.c.l.s4 1966171168
  %v2542 = vunpack.c.0.s8 %v2541
  %v2543 = vlaneseq
  %v2544 = vshrl.u32 %v2543, 7
  %v2545 = vsub.s32 %v2542, %v2544
  %v2546 = vrot.slane %v2538, %v2545
  %v2548 = vunpack.c.l.s4 1966171168
  %v2549 = vunpack.c.0.s8 %v2548
  %v2550 = vlaneseq
  %v2551 = vshrl.u32 %v2550, 7
  %v2552 = vsub.s32 %v2549, %v2551
  %v2553 = vrot.slane %v2546, %v2552
  %2554 = vrot.lane.b32.xlu0 %v2553, 64
  %v2555 = vpop.permute.xlu0 %2554
  %s2557 = scalar_lea.vmem %s11, 3
  %2558 = vst.msk [vmem:[%s2557] sm:$0x1] %vm1263, %v2555
  %v2559 = vld [vmem:[#allocation4] sm:$0x3]
  %v2560 = vld [vmem:[%s785] sm:$0x3]
  %v2561 = vpack.c.bf16 %v2559, %v2559
  %v2562 = vld [vmem:[%s3] sm:$0xf]
  %v2563 = vld [vmem:[%s3 + $0x4] sm:$0xf]
  %v2564 = vld [vmem:[%s3 + $0x8] sm:$0xf]
  %v2565 = vld [vmem:[%s3 + $0xc] sm:$0xf]
  %v2570 = vunpack.c.l.b16 %v2562
  %v2571 = vunpack.c.l.b16 %v2563
  %v2572 = vunpack.c.l.b16 %v2564
  %v2573 = vunpack.c.l.b16 %v2565
  %v2574 = vpack.c.b16 %v2571, %v2570
  %v2575 = vpack.c.b16 %v2573, %v2572
  %v2579 = vsel %vm67, %v2561, 0
  %2581 = vmatprep.subr.bf16.mxu0 0
  %2582 = vmatpush1.bf16.msra.mxu0 %v2574
  %2583 = vmatprep.subr.bf16.mxu0 0
  %2584 = vmatpush1.bf16.msra.mxu0 %v2575
  %2585 = vmatprep.subr.bf16.mxu0 0
  %2586 = vmatpush1.bf16.msra.mxu0 0
  %2587 = vmatprep.subr.bf16.mxu0 0
  %2588 = vmatpush1.bf16.msra.mxu0 0
  %2589 = vmatprep.subr.bf16.mxu0 0
  %2590 = vmatpush1.bf16.msra.mxu0 0
  %2591 = vmatprep.subr.bf16.mxu0 0
  %2592 = vmatpush1.bf16.msra.mxu0 0
  %2593 = vmatprep.subr.bf16.mxu0 0
  %2594 = vmatpush1.bf16.msra.mxu0 0
  %2595 = vmatprep.subr.bf16.mxu0 0
  %2596 = vmatpush1.bf16.msra.mxu0 0
  %2597 = vmatprep.subr.bf16.mxu0 0
  %2598 = vmatpush1.bf16.msra.mxu0 0
  %2599 = vmatprep.subr.bf16.mxu0 0
  %2600 = vmatpush1.bf16.msra.mxu0 0
  %2601 = vmatprep.subr.bf16.mxu0 0
  %2602 = vmatpush1.bf16.msra.mxu0 0
  %2603 = vmatprep.subr.bf16.mxu0 0
  %2604 = vmatpush1.bf16.msra.mxu0 0
  %2605 = vmatprep.subr.bf16.mxu0 0
  %2606 = vmatpush1.bf16.msra.mxu0 0
  %2607 = vmatprep.subr.bf16.mxu0 0
  %2608 = vmatpush1.bf16.msra.mxu0 0
  %2609 = vmatprep.subr.bf16.mxu0 0
  %2610 = vmatpush1.bf16.msra.mxu0 0
  %2611 = vmatprep.subr.bf16.mxu0 0
  %2612 = vmatpush1.bf16.msra.mxu0 0
  %2613 = vmatprep.mubr.bf16.mxu0 0
  %2614 = vmatmul.mubr.bf16.gmra.mrb[0].mxu0 %v2579
  %v2615 = vpop.f32.mrb[0].mxu0
  %v2616 = vadd.f32 0.0, %v2615
  %v2617 = vpop.f32.mrb[0].mxu0
  %v2618 = vpop.f32.mrb[0].mxu0
  %v2619 = vpop.f32.mrb[0].mxu0
  %2620 = vdwg.mxu0
  %v2621 = vadd.f32 %v2560, %v2616
  %v2622 = vxor.u32 %v2621, 2147483648
  %v2623 = vmul.f32 %v2622, 1.442695
  %v2624 = vpow.pop %v2623
  %v2625 = vadd.f32 %v2624, 1.0
  %v2626 = vrcp.pop %v2625
  %v2627 = vmul.f32 1.0, %v2626
  %v2628 = vld [vmem:[%s5] sm:$0x1]
  %v2630 = vlaneseq
  %v2631 = vshrl.u32 %v2630, 7
  %v2632 = vsub.s32 0, %v2631
  %v2633 = vrot.slane %v2628, %v2632
  %2634 = vrot.lane.b32.xlu0 %v2633, 64
  %v2635 = vpop.permute.xlu0 %2634
  %v2637 = vadd.f32 %v2616, %v2635
  %2639 = vrot.lane.b32.xlu0 %v2637, 64
  %v2640 = vpop.permute.xlu0 %2639
  %v2642 = vmul.f32 %v2627, %v2640
  %2644 = vrot.lane.b32.xlu0 %v2642, 64
  %v2645 = vpop.permute.xlu0 %2644
  %v2647 = vadd.f32 %v2560, %v2645
  %v2648 = vtanh.pop %v2647
  %2650 = vrot.lane.b32.xlu0 %v2648, 64
  %v2651 = vpop.permute.xlu0 %2650
  %v2653 = vsub.f32 %v2559, %v2651
  %2655 = vrot.lane.b32.xlu0 %v2653, 32
  %v2656 = vpop.permute.xlu0 %2655
  %v2658 = vmul.f32 %v2627, %v2656
  %2660 = vrot.lane.b32.xlu0 %v2658, 32
  %v2661 = vpop.permute.xlu0 %2660
  %v2663 = vadd.f32 %v2648, %v2661
  %v2664 = vld [vmem:[%s1946] sm:$0x3]
  %2666 = vset.pattern.permute.xlu0 0
  %2667 = vperm.xlu0 %2666, %v2664
  %v2668 = vpop.permute.xlu0 %2667
  %vm2670 = vcmp.gt.f32.partialorder %v2668, 0.0
  %2672 = vrot.lane.b32.xlu0 %v2559, 64
  %v2673 = vpop.permute.xlu0 %2672
  %v2675 = vsel %vm2670, %v2663, %v2673
  %2677 = vrot.lane.b32.xlu0 %v2675, 64
  %v2678 = vpop.permute.xlu0 %2677
  %2680 = vst.msk [vmem:[#allocation4] sm:$0x3] %vm40, %v2678
  %v2681 = vpack.c.bf16 %v2675, %v2675
  %v2684 = vunpack.c.l.s4 1966171168
  %v2685 = vunpack.c.0.s8 %v2684
  %v2686 = vlaneseq
  %v2687 = vshrl.u32 %v2686, 7
  %v2688 = vsub.s32 %v2685, %v2687
  %v2689 = vrot.slane %v2681, %v2688
  %v2691 = vunpack.c.l.s4 1966171168
  %v2692 = vunpack.c.0.s8 %v2691
  %v2693 = vlaneseq
  %v2694 = vshrl.u32 %v2693, 7
  %v2695 = vsub.s32 %v2692, %v2694
  %v2696 = vrot.slane %v2689, %v2695
  %2697 = vrot.lane.b32.xlu0 %v2696, 64
  %v2698 = vpop.permute.xlu0 %2697
  %s2700 = scalar_lea.vmem %s10, 5
  %2701 = vst.msk [vmem:[%s2700] sm:$0x1] %vm1263, %v2698
  %v2702 = vld [vmem:[#allocation5] sm:$0x3]
  %v2703 = vld [vmem:[%s445] sm:$0x3]
  %v2704 = vpack.c.bf16 %v2702, %v2702
  %v2705 = vld [vmem:[%s7] sm:$0xf]
  %v2706 = vld [vmem:[%s7 + $0x4] sm:$0xf]
  %v2707 = vld [vmem:[%s7 + $0x8] sm:$0xf]
  %v2708 = vld [vmem:[%s7 + $0xc] sm:$0xf]
  %v2713 = vunpack.c.l.b16 %v2705
  %v2714 = vunpack.c.l.b16 %v2706
  %v2715 = vunpack.c.l.b16 %v2707
  %v2716 = vunpack.c.l.b16 %v2708
  %v2717 = vpack.c.b16 %v2714, %v2713
  %v2718 = vpack.c.b16 %v2716, %v2715
  %v2722 = vsel %vm67, %v2704, 0
  %2724 = vmatprep.subr.bf16.mxu0 0
  %2725 = vmatpush1.bf16.msra.mxu0 %v2717
  %2726 = vmatprep.subr.bf16.mxu0 0
  %2727 = vmatpush1.bf16.msra.mxu0 %v2718
  %2728 = vmatprep.subr.bf16.mxu0 0
  %2729 = vmatpush1.bf16.msra.mxu0 0
  %2730 = vmatprep.subr.bf16.mxu0 0
  %2731 = vmatpush1.bf16.msra.mxu0 0
  %2732 = vmatprep.subr.bf16.mxu0 0
  %2733 = vmatpush1.bf16.msra.mxu0 0
  %2734 = vmatprep.subr.bf16.mxu0 0
  %2735 = vmatpush1.bf16.msra.mxu0 0
  %2736 = vmatprep.subr.bf16.mxu0 0
  %2737 = vmatpush1.bf16.msra.mxu0 0
  %2738 = vmatprep.subr.bf16.mxu0 0
  %2739 = vmatpush1.bf16.msra.mxu0 0
  %2740 = vmatprep.subr.bf16.mxu0 0
  %2741 = vmatpush1.bf16.msra.mxu0 0
  %2742 = vmatprep.subr.bf16.mxu0 0
  %2743 = vmatpush1.bf16.msra.mxu0 0
  %2744 = vmatprep.subr.bf16.mxu0 0
  %2745 = vmatpush1.bf16.msra.mxu0 0
  %2746 = vmatprep.subr.bf16.mxu0 0
  %2747 = vmatpush1.bf16.msra.mxu0 0
  %2748 = vmatprep.subr.bf16.mxu0 0
  %2749 = vmatpush1.bf16.msra.mxu0 0
  %2750 = vmatprep.subr.bf16.mxu0 0
  %2751 = vmatpush1.bf16.msra.mxu0 0
  %2752 = vmatprep.subr.bf16.mxu0 0
  %2753 = vmatpush1.bf16.msra.mxu0 0
  %2754 = vmatprep.subr.bf16.mxu0 0
  %2755 = vmatpush1.bf16.msra.mxu0 0
  %2756 = vmatprep.mubr.bf16.mxu0 0
  %2757 = vmatmul.mubr.bf16.gmra.mrb[0].mxu0 %v2722
  %v2758 = vpop.f32.mrb[0].mxu0
  %v2759 = vadd.f32 0.0, %v2758
  %v2760 = vpop.f32.mrb[0].mxu0
  %v2761 = vpop.f32.mrb[0].mxu0
  %v2762 = vpop.f32.mrb[0].mxu0
  %2763 = vdwg.mxu0
  %v2764 = vadd.f32 %v2703, %v2759
  %v2765 = vxor.u32 %v2764, 2147483648
  %v2766 = vmul.f32 %v2765, 1.442695
  %v2767 = vpow.pop %v2766
  %v2768 = vadd.f32 %v2767, 1.0
  %v2769 = vrcp.pop %v2768
  %v2770 = vmul.f32 1.0, %v2769
  %v2771 = vld [vmem:[%s9] sm:$0x1]
  %v2773 = vlaneseq
  %v2774 = vshrl.u32 %v2773, 7
  %v2775 = vsub.s32 0, %v2774
  %v2776 = vrot.slane %v2771, %v2775
  %2777 = vrot.lane.b32.xlu0 %v2776, 64
  %v2778 = vpop.permute.xlu0 %2777
  %v2780 = vadd.f32 %v2759, %v2778
  %2782 = vrot.lane.b32.xlu0 %v2780, 64
  %v2783 = vpop.permute.xlu0 %2782
  %v2785 = vmul.f32 %v2770, %v2783
  %2787 = vrot.lane.b32.xlu0 %v2785, 64
  %v2788 = vpop.permute.xlu0 %2787
  %v2790 = vadd.f32 %v2703, %v2788
  %v2791 = vtanh.pop %v2790
  %2793 = vrot.lane.b32.xlu0 %v2791, 64
  %v2794 = vpop.permute.xlu0 %2793
  %v2796 = vsub.f32 %v2702, %v2794
  %2798 = vrot.lane.b32.xlu0 %v2796, 32
  %v2799 = vpop.permute.xlu0 %2798
  %v2801 = vmul.f32 %v2770, %v2799
  %2803 = vrot.lane.b32.xlu0 %v2801, 32
  %v2804 = vpop.permute.xlu0 %2803
  %v2806 = vadd.f32 %v2791, %v2804
  %v2807 = vld [vmem:[%s1802] sm:$0x3]
  %2809 = vset.pattern.permute.xlu0 0
  %2810 = vperm.xlu0 %2809, %v2807
  %v2811 = vpop.permute.xlu0 %2810
  %vm2813 = vcmp.gt.f32.partialorder %v2811, 0.0
  %2815 = vrot.lane.b32.xlu0 %v2702, 64
  %v2816 = vpop.permute.xlu0 %2815
  %v2818 = vsel %vm2813, %v2806, %v2816
  %2820 = vrot.lane.b32.xlu0 %v2818, 64
  %v2821 = vpop.permute.xlu0 %2820
  %2823 = vst.msk [vmem:[#allocation5] sm:$0x3] %vm40, %v2821
  %v2824 = vpack.c.bf16 %v2818, %v2818
  %v2827 = vunpack.c.l.s4 1966171168
  %v2828 = vunpack.c.0.s8 %v2827
  %v2829 = vlaneseq
  %v2830 = vshrl.u32 %v2829, 7
  %v2831 = vsub.s32 %v2828, %v2830
  %v2832 = vrot.slane %v2824, %v2831
  %v2834 = vunpack.c.l.s4 1966171168
  %v2835 = vunpack.c.0.s8 %v2834
  %v2836 = vlaneseq
  %v2837 = vshrl.u32 %v2836, 7
  %v2838 = vsub.s32 %v2835, %v2837
  %v2839 = vrot.slane %v2832, %v2838
  %2840 = vrot.lane.b32.xlu0 %v2839, 64
  %v2841 = vpop.permute.xlu0 %2840
  %s2843 = scalar_lea.vmem %s11, 2
  %2844 = vst.msk [vmem:[%s2843] sm:$0x1] %vm1263, %v2841
  %v2845 = vld [vmem:[#allocation4] sm:$0x3]
  %v2846 = vld [vmem:[%s920] sm:$0x3]
  %v2847 = vpack.c.bf16 %v2845, %v2845
  %v2848 = vld [vmem:[%s3] sm:$0xf]
  %v2849 = vld [vmem:[%s3 + $0x4] sm:$0xf]
  %v2850 = vld [vmem:[%s3 + $0x8] sm:$0xf]
  %v2851 = vld [vmem:[%s3 + $0xc] sm:$0xf]
  %v2856 = vunpack.c.l.b16 %v2848
  %v2857 = vunpack.c.l.b16 %v2849
  %v2858 = vunpack.c.l.b16 %v2850
  %v2859 = vunpack.c.l.b16 %v2851
  %v2860 = vpack.c.b16 %v2857, %v2856
  %v2861 = vpack.c.b16 %v2859, %v2858
  %v2865 = vsel %vm67, %v2847, 0
  %2867 = vmatprep.subr.bf16.mxu0 0
  %2868 = vmatpush1.bf16.msra.mxu0 %v2860
  %2869 = vmatprep.subr.bf16.mxu0 0
  %2870 = vmatpush1.bf16.msra.mxu0 %v2861
  %2871 = vmatprep.subr.bf16.mxu0 0
  %2872 = vmatpush1.bf16.msra.mxu0 0
  %2873 = vmatprep.subr.bf16.mxu0 0
  %2874 = vmatpush1.bf16.msra.mxu0 0
  %2875 = vmatprep.subr.bf16.mxu0 0
  %2876 = vmatpush1.bf16.msra.mxu0 0
  %2877 = vmatprep.subr.bf16.mxu0 0
  %2878 = vmatpush1.bf16.msra.mxu0 0
  %2879 = vmatprep.subr.bf16.mxu0 0
  %2880 = vmatpush1.bf16.msra.mxu0 0
  %2881 = vmatprep.subr.bf16.mxu0 0
  %2882 = vmatpush1.bf16.msra.mxu0 0
  %2883 = vmatprep.subr.bf16.mxu0 0
  %2884 = vmatpush1.bf16.msra.mxu0 0
  %2885 = vmatprep.subr.bf16.mxu0 0
  %2886 = vmatpush1.bf16.msra.mxu0 0
  %2887 = vmatprep.subr.bf16.mxu0 0
  %2888 = vmatpush1.bf16.msra.mxu0 0
  %2889 = vmatprep.subr.bf16.mxu0 0
  %2890 = vmatpush1.bf16.msra.mxu0 0
  %2891 = vmatprep.subr.bf16.mxu0 0
  %2892 = vmatpush1.bf16.msra.mxu0 0
  %2893 = vmatprep.subr.bf16.mxu0 0
  %2894 = vmatpush1.bf16.msra.mxu0 0
  %2895 = vmatprep.subr.bf16.mxu0 0
  %2896 = vmatpush1.bf16.msra.mxu0 0
  %2897 = vmatprep.subr.bf16.mxu0 0
  %2898 = vmatpush1.bf16.msra.mxu0 0
  %2899 = vmatprep.mubr.bf16.mxu0 0
  %2900 = vmatmul.mubr.bf16.gmra.mrb[0].mxu0 %v2865
  %v2901 = vpop.f32.mrb[0].mxu0
  %v2902 = vadd.f32 0.0, %v2901
  %v2903 = vpop.f32.mrb[0].mxu0
  %v2904 = vpop.f32.mrb[0].mxu0
  %v2905 = vpop.f32.mrb[0].mxu0
  %2906 = vdwg.mxu0
  %v2907 = vadd.f32 %v2846, %v2902
  %v2908 = vxor.u32 %v2907, 2147483648
  %v2909 = vmul.f32 %v2908, 1.442695
  %v2910 = vpow.pop %v2909
  %v2911 = vadd.f32 %v2910, 1.0
  %v2912 = vrcp.pop %v2911
  %v2913 = vmul.f32 1.0, %v2912
  %v2914 = vld [vmem:[%s5] sm:$0x1]
  %v2916 = vlaneseq
  %v2917 = vshrl.u32 %v2916, 7
  %v2918 = vsub.s32 0, %v2917
  %v2919 = vrot.slane %v2914, %v2918
  %2920 = vrot.lane.b32.xlu0 %v2919, 64
  %v2921 = vpop.permute.xlu0 %2920
  %v2923 = vadd.f32 %v2902, %v2921
  %2925 = vrot.lane.b32.xlu0 %v2923, 64
  %v2926 = vpop.permute.xlu0 %2925
  %v2928 = vmul.f32 %v2913, %v2926
  %2930 = vrot.lane.b32.xlu0 %v2928, 64
  %v2931 = vpop.permute.xlu0 %2930
  %v2933 = vadd.f32 %v2846, %v2931
  %v2934 = vtanh.pop %v2933
  %2936 = vrot.lane.b32.xlu0 %v2934, 64
  %v2937 = vpop.permute.xlu0 %2936
  %v2939 = vsub.f32 %v2845, %v2937
  %2941 = vrot.lane.b32.xlu0 %v2939, 32
  %v2942 = vpop.permute.xlu0 %2941
  %v2944 = vmul.f32 %v2913, %v2942
  %2946 = vrot.lane.b32.xlu0 %v2944, 32
  %v2947 = vpop.permute.xlu0 %2946
  %v2949 = vadd.f32 %v2934, %v2947
  %v2950 = vld [vmem:[%s1658] sm:$0x3]
  %2952 = vset.pattern.permute.xlu0 0
  %2953 = vperm.xlu0 %2952, %v2950
  %v2954 = vpop.permute.xlu0 %2953
  %vm2956 = vcmp.gt.f32.partialorder %v2954, 0.0
  %2958 = vrot.lane.b32.xlu0 %v2845, 64
  %v2959 = vpop.permute.xlu0 %2958
  %v2961 = vsel %vm2956, %v2949, %v2959
  %2963 = vrot.lane.b32.xlu0 %v2961, 64
  %v2964 = vpop.permute.xlu0 %2963
  %2966 = vst.msk [vmem:[#allocation4] sm:$0x3] %vm40, %v2964
  %v2967 = vpack.c.bf16 %v2961, %v2961
  %v2970 = vunpack.c.l.s4 1966171168
  %v2971 = vunpack.c.0.s8 %v2970
  %v2972 = vlaneseq
  %v2973 = vshrl.u32 %v2972, 7
  %v2974 = vsub.s32 %v2971, %v2973
  %v2975 = vrot.slane %v2967, %v2974
  %v2977 = vunpack.c.l.s4 1966171168
  %v2978 = vunpack.c.0.s8 %v2977
  %v2979 = vlaneseq
  %v2980 = vshrl.u32 %v2979, 7
  %v2981 = vsub.s32 %v2978, %v2980
  %v2982 = vrot.slane %v2975, %v2981
  %2983 = vrot.lane.b32.xlu0 %v2982, 64
  %v2984 = vpop.permute.xlu0 %2983
  %s2986 = scalar_lea.vmem %s10, 6
  %2987 = vst.msk [vmem:[%s2986] sm:$0x1] %vm1263, %v2984
  %v2988 = vld [vmem:[#allocation5] sm:$0x3]
  %v2989 = vld [vmem:[%s310] sm:$0x3]
  %v2990 = vpack.c.bf16 %v2988, %v2988
  %v2991 = vld [vmem:[%s7] sm:$0xf]
  %v2992 = vld [vmem:[%s7 + $0x4] sm:$0xf]
  %v2993 = vld [vmem:[%s7 + $0x8] sm:$0xf]
  %v2994 = vld [vmem:[%s7 + $0xc] sm:$0xf]
  %v2999 = vunpack.c.l.b16 %v2991
  %v3000 = vunpack.c.l.b16 %v2992
  %v3001 = vunpack.c.l.b16 %v2993
  %v3002 = vunpack.c.l.b16 %v2994
  %v3003 = vpack.c.b16 %v3000, %v2999
  %v3004 = vpack.c.b16 %v3002, %v3001
  %v3008 = vsel %vm67, %v2990, 0
  %3010 = vmatprep.subr.bf16.mxu0 0
  %3011 = vmatpush1.bf16.msra.mxu0 %v3003
  %3012 = vmatprep.subr.bf16.mxu0 0
  %3013 = vmatpush1.bf16.msra.mxu0 %v3004
  %3014 = vmatprep.subr.bf16.mxu0 0
  %3015 = vmatpush1.bf16.msra.mxu0 0
  %3016 = vmatprep.subr.bf16.mxu0 0
  %3017 = vmatpush1.bf16.msra.mxu0 0
  %3018 = vmatprep.subr.bf16.mxu0 0
  %3019 = vmatpush1.bf16.msra.mxu0 0
  %3020 = vmatprep.subr.bf16.mxu0 0
  %3021 = vmatpush1.bf16.msra.mxu0 0
  %3022 = vmatprep.subr.bf16.mxu0 0
  %3023 = vmatpush1.bf16.msra.mxu0 0
  %3024 = vmatprep.subr.bf16.mxu0 0
  %3025 = vmatpush1.bf16.msra.mxu0 0
  %3026 = vmatprep.subr.bf16.mxu0 0
  %3027 = vmatpush1.bf16.msra.mxu0 0
  %3028 = vmatprep.subr.bf16.mxu0 0
  %3029 = vmatpush1.bf16.msra.mxu0 0
  %3030 = vmatprep.subr.bf16.mxu0 0
  %3031 = vmatpush1.bf16.msra.mxu0 0
  %3032 = vmatprep.subr.bf16.mxu0 0
  %3033 = vmatpush1.bf16.msra.mxu0 0
  %3034 = vmatprep.subr.bf16.mxu0 0
  %3035 = vmatpush1.bf16.msra.mxu0 0
  %3036 = vmatprep.subr.bf16.mxu0 0
  %3037 = vmatpush1.bf16.msra.mxu0 0
  %3038 = vmatprep.subr.bf16.mxu0 0
  %3039 = vmatpush1.bf16.msra.mxu0 0
  %3040 = vmatprep.subr.bf16.mxu0 0
  %3041 = vmatpush1.bf16.msra.mxu0 0
  %3042 = vmatprep.mubr.bf16.mxu0 0
  %3043 = vmatmul.mubr.bf16.gmra.mrb[0].mxu0 %v3008
  %v3044 = vpop.f32.mrb[0].mxu0
  %v3045 = vadd.f32 0.0, %v3044
  %v3046 = vpop.f32.mrb[0].mxu0
  %v3047 = vpop.f32.mrb[0].mxu0
  %v3048 = vpop.f32.mrb[0].mxu0
  %3049 = vdwg.mxu0
  %v3050 = vadd.f32 %v2989, %v3045
  %v3051 = vxor.u32 %v3050, 2147483648
  %v3052 = vmul.f32 %v3051, 1.442695
  %v3053 = vpow.pop %v3052
  %v3054 = vadd.f32 %v3053, 1.0
  %v3055 = vrcp.pop %v3054
  %v3056 = vmul.f32 1.0, %v3055
  %v3057 = vld [vmem:[%s9] sm:$0x1]
  %v3059 = vlaneseq
  %v3060 = vshrl.u32 %v3059, 7
  %v3061 = vsub.s32 0, %v3060
  %v3062 = vrot.slane %v3057, %v3061
  %3063 = vrot.lane.b32.xlu0 %v3062, 64
  %v3064 = vpop.permute.xlu0 %3063
  %v3066 = vadd.f32 %v3045, %v3064
  %3068 = vrot.lane.b32.xlu0 %v3066, 64
  %v3069 = vpop.permute.xlu0 %3068
  %v3071 = vmul.f32 %v3056, %v3069
  %3073 = vrot.lane.b32.xlu0 %v3071, 64
  %v3074 = vpop.permute.xlu0 %3073
  %v3076 = vadd.f32 %v2989, %v3074
  %v3077 = vtanh.pop %v3076
  %3079 = vrot.lane.b32.xlu0 %v3077, 64
  %v3080 = vpop.permute.xlu0 %3079
  %v3082 = vsub.f32 %v2988, %v3080
  %3084 = vrot.lane.b32.xlu0 %v3082, 32
  %v3085 = vpop.permute.xlu0 %3084
  %v3087 = vmul.f32 %v3056, %v3085
  %3089 = vrot.lane.b32.xlu0 %v3087, 32
  %v3090 = vpop.permute.xlu0 %3089
  %v3092 = vadd.f32 %v3077, %v3090
  %v3093 = vld [vmem:[%s1514] sm:$0x3]
  %3095 = vset.pattern.permute.xlu0 0
  %3096 = vperm.xlu0 %3095, %v3093
  %v3097 = vpop.permute.xlu0 %3096
  %vm3099 = vcmp.gt.f32.partialorder %v3097, 0.0
  %3101 = vrot.lane.b32.xlu0 %v2988, 64
  %v3102 = vpop.permute.xlu0 %3101
  %v3104 = vsel %vm3099, %v3092, %v3102
  %3106 = vrot.lane.b32.xlu0 %v3104, 64
  %v3107 = vpop.permute.xlu0 %3106
  %3109 = vst.msk [vmem:[#allocation5] sm:$0x3] %vm40, %v3107
  %v3110 = vpack.c.bf16 %v3104, %v3104
  %v3113 = vunpack.c.l.s4 1966171168
  %v3114 = vunpack.c.0.s8 %v3113
  %v3115 = vlaneseq
  %v3116 = vshrl.u32 %v3115, 7
  %v3117 = vsub.s32 %v3114, %v3116
  %v3118 = vrot.slane %v3110, %v3117
  %v3120 = vunpack.c.l.s4 1966171168
  %v3121 = vunpack.c.0.s8 %v3120
  %v3122 = vlaneseq
  %v3123 = vshrl.u32 %v3122, 7
  %v3124 = vsub.s32 %v3121, %v3123
  %v3125 = vrot.slane %v3118, %v3124
  %3126 = vrot.lane.b32.xlu0 %v3125, 64
  %v3127 = vpop.permute.xlu0 %3126
  %s3129 = scalar_lea.vmem %s11, 1
  %3130 = vst.msk [vmem:[%s3129] sm:$0x1] %vm1263, %v3127
  %v3131 = vld [vmem:[#allocation4] sm:$0x3]
  %v3132 = vld [vmem:[%s1055] sm:$0x3]
  %v3133 = vpack.c.bf16 %v3131, %v3131
  %v3134 = vld [vmem:[%s3] sm:$0xf]
  %v3135 = vld [vmem:[%s3 + $0x4] sm:$0xf]
  %v3136 = vld [vmem:[%s3 + $0x8] sm:$0xf]
  %v3137 = vld [vmem:[%s3 + $0xc] sm:$0xf]
  %v3142 = vunpack.c.l.b16 %v3134
  %v3143 = vunpack.c.l.b16 %v3135
  %v3144 = vunpack.c.l.b16 %v3136
  %v3145 = vunpack.c.l.b16 %v3137
  %v3146 = vpack.c.b16 %v3143, %v3142
  %v3147 = vpack.c.b16 %v3145, %v3144
  %v3151 = vsel %vm67, %v3133, 0
  %3153 = vmatprep.subr.bf16.mxu0 0
  %3154 = vmatpush1.bf16.msra.mxu0 %v3146
  %3155 = vmatprep.subr.bf16.mxu0 0
  %3156 = vmatpush1.bf16.msra.mxu0 %v3147
  %3157 = vmatprep.subr.bf16.mxu0 0
  %3158 = vmatpush1.bf16.msra.mxu0 0
  %3159 = vmatprep.subr.bf16.mxu0 0
  %3160 = vmatpush1.bf16.msra.mxu0 0
  %3161 = vmatprep.subr.bf16.mxu0 0
  %3162 = vmatpush1.bf16.msra.mxu0 0
  %3163 = vmatprep.subr.bf16.mxu0 0
  %3164 = vmatpush1.bf16.msra.mxu0 0
  %3165 = vmatprep.subr.bf16.mxu0 0
  %3166 = vmatpush1.bf16.msra.mxu0 0
  %3167 = vmatprep.subr.bf16.mxu0 0
  %3168 = vmatpush1.bf16.msra.mxu0 0
  %3169 = vmatprep.subr.bf16.mxu0 0
  %3170 = vmatpush1.bf16.msra.mxu0 0
  %3171 = vmatprep.subr.bf16.mxu0 0
  %3172 = vmatpush1.bf16.msra.mxu0 0
  %3173 = vmatprep.subr.bf16.mxu0 0
  %3174 = vmatpush1.bf16.msra.mxu0 0
  %3175 = vmatprep.subr.bf16.mxu0 0
  %3176 = vmatpush1.bf16.msra.mxu0 0
  %3177 = vmatprep.subr.bf16.mxu0 0
  %3178 = vmatpush1.bf16.msra.mxu0 0
  %3179 = vmatprep.subr.bf16.mxu0 0
  %3180 = vmatpush1.bf16.msra.mxu0 0
  %3181 = vmatprep.subr.bf16.mxu0 0
  %3182 = vmatpush1.bf16.msra.mxu0 0
  %3183 = vmatprep.subr.bf16.mxu0 0
  %3184 = vmatpush1.bf16.msra.mxu0 0
  %3185 = vmatprep.mubr.bf16.mxu0 0
  %3186 = vmatmul.mubr.bf16.gmra.mrb[0].mxu0 %v3151
  %v3187 = vpop.f32.mrb[0].mxu0
  %v3188 = vadd.f32 0.0, %v3187
  %v3189 = vpop.f32.mrb[0].mxu0
  %v3190 = vpop.f32.mrb[0].mxu0
  %v3191 = vpop.f32.mrb[0].mxu0
  %3192 = vdwg.mxu0
  %v3193 = vadd.f32 %v3132, %v3188
  %v3194 = vxor.u32 %v3193, 2147483648
  %v3195 = vmul.f32 %v3194, 1.442695
  %v3196 = vpow.pop %v3195
  %v3197 = vadd.f32 %v3196, 1.0
  %v3198 = vrcp.pop %v3197
  %v3199 = vmul.f32 1.0, %v3198
  %v3200 = vld [vmem:[%s5] sm:$0x1]
  %v3202 = vlaneseq
  %v3203 = vshrl.u32 %v3202, 7
  %v3204 = vsub.s32 0, %v3203
  %v3205 = vrot.slane %v3200, %v3204
  %3206 = vrot.lane.b32.xlu0 %v3205, 64
  %v3207 = vpop.permute.xlu0 %3206
  %v3209 = vadd.f32 %v3188, %v3207
  %3211 = vrot.lane.b32.xlu0 %v3209, 64
  %v3212 = vpop.permute.xlu0 %3211
  %v3214 = vmul.f32 %v3199, %v3212
  %3216 = vrot.lane.b32.xlu0 %v3214, 64
  %v3217 = vpop.permute.xlu0 %3216
  %v3219 = vadd.f32 %v3132, %v3217
  %v3220 = vtanh.pop %v3219
  %3222 = vrot.lane.b32.xlu0 %v3220, 64
  %v3223 = vpop.permute.xlu0 %3222
  %v3225 = vsub.f32 %v3131, %v3223
  %3227 = vrot.lane.b32.xlu0 %v3225, 32
  %v3228 = vpop.permute.xlu0 %3227
  %v3230 = vmul.f32 %v3199, %v3228
  %3232 = vrot.lane.b32.xlu0 %v3230, 32
  %v3233 = vpop.permute.xlu0 %3232
  %v3235 = vadd.f32 %v3220, %v3233
  %v3236 = vld [vmem:[%s1370] sm:$0x3]
  %3238 = vset.pattern.permute.xlu0 0
  %3239 = vperm.xlu0 %3238, %v3236
  %v3240 = vpop.permute.xlu0 %3239
  %vm3242 = vcmp.gt.f32.partialorder %v3240, 0.0
  %3244 = vrot.lane.b32.xlu0 %v3131, 64
  %v3245 = vpop.permute.xlu0 %3244
  %v3247 = vsel %vm3242, %v3235, %v3245
  %3249 = vrot.lane.b32.xlu0 %v3247, 64
  %v3250 = vpop.permute.xlu0 %3249
  %3252 = vst.msk [vmem:[#allocation4] sm:$0x3] %vm40, %v3250
  %v3253 = vpack.c.bf16 %v3247, %v3247
  %v3256 = vunpack.c.l.s4 1966171168
  %v3257 = vunpack.c.0.s8 %v3256
  %v3258 = vlaneseq
  %v3259 = vshrl.u32 %v3258, 7
  %v3260 = vsub.s32 %v3257, %v3259
  %v3261 = vrot.slane %v3253, %v3260
  %v3263 = vunpack.c.l.s4 1966171168
  %v3264 = vunpack.c.0.s8 %v3263
  %v3265 = vlaneseq
  %v3266 = vshrl.u32 %v3265, 7
  %v3267 = vsub.s32 %v3264, %v3266
  %v3268 = vrot.slane %v3261, %v3267
  %3269 = vrot.lane.b32.xlu0 %v3268, 64
  %v3270 = vpop.permute.xlu0 %3269
  %s3272 = scalar_lea.vmem %s10, 7
  %3273 = vst.msk [vmem:[%s3272] sm:$0x1] %vm1263, %v3270
  %v3274 = vld [vmem:[#allocation5] sm:$0x3]
  %v3275 = vld [vmem:[#allocation3] sm:$0x3]
  %v3276 = vpack.c.bf16 %v3274, %v3274
  %v3277 = vld [vmem:[%s7] sm:$0xf]
  %v3278 = vld [vmem:[%s7 + $0x4] sm:$0xf]
  %v3279 = vld [vmem:[%s7 + $0x8] sm:$0xf]
  %v3280 = vld [vmem:[%s7 + $0xc] sm:$0xf]
  %v3285 = vunpack.c.l.b16 %v3277
  %v3286 = vunpack.c.l.b16 %v3278
  %v3287 = vunpack.c.l.b16 %v3279
  %v3288 = vunpack.c.l.b16 %v3280
  %v3289 = vpack.c.b16 %v3286, %v3285
  %v3290 = vpack.c.b16 %v3288, %v3287
  %v3294 = vsel %vm67, %v3276, 0
  %3296 = vmatprep.subr.bf16.mxu0 0
  %3297 = vmatpush1.bf16.msra.mxu0 %v3289
  %3298 = vmatprep.subr.bf16.mxu0 0
  %3299 = vmatpush1.bf16.msra.mxu0 %v3290
  %3300 = vmatprep.subr.bf16.mxu0 0
  %3301 = vmatpush1.bf16.msra.mxu0 0
  %3302 = vmatprep.subr.bf16.mxu0 0
  %3303 = vmatpush1.bf16.msra.mxu0 0
  %3304 = vmatprep.subr.bf16.mxu0 0
  %3305 = vmatpush1.bf16.msra.mxu0 0
  %3306 = vmatprep.subr.bf16.mxu0 0
  %3307 = vmatpush1.bf16.msra.mxu0 0
  %3308 = vmatprep.subr.bf16.mxu0 0
  %3309 = vmatpush1.bf16.msra.mxu0 0
  %3310 = vmatprep.subr.bf16.mxu0 0
  %3311 = vmatpush1.bf16.msra.mxu0 0
  %3312 = vmatprep.subr.bf16.mxu0 0
  %3313 = vmatpush1.bf16.msra.mxu0 0
  %3314 = vmatprep.subr.bf16.mxu0 0
  %3315 = vmatpush1.bf16.msra.mxu0 0
  %3316 = vmatprep.subr.bf16.mxu0 0
  %3317 = vmatpush1.bf16.msra.mxu0 0
  %3318 = vmatprep.subr.bf16.mxu0 0
  %3319 = vmatpush1.bf16.msra.mxu0 0
  %3320 = vmatprep.subr.bf16.mxu0 0
  %3321 = vmatpush1.bf16.msra.mxu0 0
  %3322 = vmatprep.subr.bf16.mxu0 0
  %3323 = vmatpush1.bf16.msra.mxu0 0
  %3324 = vmatprep.subr.bf16.mxu0 0
  %3325 = vmatpush1.bf16.msra.mxu0 0
  %3326 = vmatprep.subr.bf16.mxu0 0
  %3327 = vmatpush1.bf16.msra.mxu0 0
  %3328 = vmatprep.mubr.bf16.mxu0 0
  %3329 = vmatmul.mubr.bf16.gmra.mrb[0].mxu0 %v3294
  %v3330 = vpop.f32.mrb[0].mxu0
  %v3331 = vadd.f32 0.0, %v3330
  %v3332 = vpop.f32.mrb[0].mxu0
  %v3333 = vpop.f32.mrb[0].mxu0
  %v3334 = vpop.f32.mrb[0].mxu0
  %3335 = vdwg.mxu0
  %v3336 = vadd.f32 %v3275, %v3331
  %v3337 = vxor.u32 %v3336, 2147483648
  %v3338 = vmul.f32 %v3337, 1.442695
  %v3339 = vpow.pop %v3338
  %v3340 = vadd.f32 %v3339, 1.0
  %v3341 = vrcp.pop %v3340
  %v3342 = vmul.f32 1.0, %v3341
  %v3343 = vld [vmem:[%s9] sm:$0x1]
  %v3345 = vlaneseq
  %v3346 = vshrl.u32 %v3345, 7
  %v3347 = vsub.s32 0, %v3346
  %v3348 = vrot.slane %v3343, %v3347
  %3349 = vrot.lane.b32.xlu0 %v3348, 64
  %v3350 = vpop.permute.xlu0 %3349
  %v3352 = vadd.f32 %v3331, %v3350
  %3354 = vrot.lane.b32.xlu0 %v3352, 64
  %v3355 = vpop.permute.xlu0 %3354
  %v3357 = vmul.f32 %v3342, %v3355
  %3359 = vrot.lane.b32.xlu0 %v3357, 64
  %v3360 = vpop.permute.xlu0 %3359
  %v3362 = vadd.f32 %v3275, %v3360
  %v3363 = vtanh.pop %v3362
  %3365 = vrot.lane.b32.xlu0 %v3363, 64
  %v3366 = vpop.permute.xlu0 %3365
  %v3368 = vsub.f32 %v3274, %v3366
  %3370 = vrot.lane.b32.xlu0 %v3368, 32
  %v3371 = vpop.permute.xlu0 %3370
  %v3373 = vmul.f32 %v3342, %v3371
  %3375 = vrot.lane.b32.xlu0 %v3373, 32
  %v3376 = vpop.permute.xlu0 %3375
  %v3378 = vadd.f32 %v3363, %v3376
  %v3379 = vld [vmem:[%s1] sm:$0x3]
  %3381 = vset.pattern.permute.xlu0 0
  %3382 = vperm.xlu0 %3381, %v3379
  %v3383 = vpop.permute.xlu0 %3382
  %vm3385 = vcmp.gt.f32.partialorder %v3383, 0.0
  %3387 = vrot.lane.b32.xlu0 %v3274, 64
  %v3388 = vpop.permute.xlu0 %3387
  %v3390 = vsel %vm3385, %v3378, %v3388
  %3392 = vrot.lane.b32.xlu0 %v3390, 64
  %v3393 = vpop.permute.xlu0 %3392
  %3395 = vst.msk [vmem:[#allocation5] sm:$0x3] %vm40, %v3393
  %v3396 = vpack.c.bf16 %v3390, %v3390
  %v3399 = vunpack.c.l.s4 1966171168
  %v3400 = vunpack.c.0.s8 %v3399
  %v3401 = vlaneseq
  %v3402 = vshrl.u32 %v3401, 7
  %v3403 = vsub.s32 %v3400, %v3402
  %v3404 = vrot.slane %v3396, %v3403
  %v3406 = vunpack.c.l.s4 1966171168
  %v3407 = vunpack.c.0.s8 %v3406
  %v3408 = vlaneseq
  %v3409 = vshrl.u32 %v3408, 7
  %v3410 = vsub.s32 %v3407, %v3409
  %v3411 = vrot.slane %v3404, %v3410
  %3412 = vrot.lane.b32.xlu0 %v3411, 64
  %v3413 = vpop.permute.xlu0 %3412
  %3415 = vst.msk [vmem:[%s11] sm:$0x1] %vm1263, %v3413
  %v3416 = vld [vmem:[#allocation4] sm:$0x3]
  %3417 = vst.msk [vmem:[%s12] sm:$0x3] %vm40, %v3416
  %v3418 = vld [vmem:[#allocation5] sm:$0x3]
  %3419 = vst.msk [vmem:[%s13] sm:$0x3] %vm40, %v3418
  // Predicated region
  $region42: #{rnn_encoder_forward.3} parent=0 // pred_check
    _
  $region43: #{rnn_encoder_forward.3} parent=0 // pred_check_branch
    %3421 = sbr.rel (0) target = $region45
  $region44: #{rnn_encoder_forward.3} parent=0 // pred_region
    _
  $region45: #{rnn_encoder_forward.3} parent=0 // pred_fallthru
    _
  // Predicated region
  $region46: #{rnn_encoder_forward.3} parent=0 // pred_check
    _
  $region47: #{rnn_encoder_forward.3} parent=0 // pred_check_branch
    %3423 = sbr.rel (0) target = $region49
  $region48: #{rnn_encoder_forward.3} parent=0 // pred_region
    _
  $region49: #{rnn_encoder_forward.3} parent=0 // pred_fallthru
    _
  // Predicated region
  $region50: #{rnn_encoder_forward.3} parent=0 // pred_check
    _
  $region51: #{rnn_encoder_forward.3} parent=0 // pred_check_branch
    %3425 = sbr.rel (0) target = $region53
  $region52: #{rnn_encoder_forward.3} parent=0 // pred_region
    _
  $region53: #{rnn_encoder_forward.3} parent=0 // pred_fallthru
    _
  // Predicated region
  $region54: #{rnn_encoder_forward.3} parent=0 // pred_check
    _
  $region55: #{rnn_encoder_forward.3} parent=0 // pred_check_branch
    %3427 = sbr.rel (0) target = $region57
  $region56: #{rnn_encoder_forward.3} parent=0 // pred_region
    _
  $region57: #{rnn_encoder_forward.3} parent=0 // pred_fallthru
    _
  // Predicated region
  $region58: #{rnn_encoder_forward.3} parent=0 // pred_check
    _
  $region59: #{rnn_encoder_forward.3} parent=0 // pred_check_branch
    %3429 = sbr.rel (0) target = $region61
  $region60: #{rnn_encoder_forward.3} parent=0 // pred_region
    _
  $region61: #{rnn_encoder_forward.3} parent=0 // pred_fallthru
    _
  // Predicated region
  $region62: #{rnn_encoder_forward.3} parent=0 // pred_check
    _
  $region63: #{rnn_encoder_forward.3} parent=0 // pred_check_branch
    %3431 = sbr.rel (0) target = $region65
  $region64: #{rnn_encoder_forward.3} parent=0 // pred_region
    _
  $region65: #{rnn_encoder_forward.3} parent=0 // pred_fallthru
    _
  // Predicated region
  $region66: #{rnn_encoder_forward.3} parent=0 // pred_check
    _
  $region67: #{rnn_encoder_forward.3} parent=0 // pred_check_branch
    %3433 = sbr.rel (0) target = $region69
  $region68: #{rnn_encoder_forward.3} parent=0 // pred_region
    _
  $region69: #{rnn_encoder_forward.3} parent=0 // pred_fallthru
    _
  // Predicated region
  $region70: #{rnn_encoder_forward.3} parent=0 // pred_check
    _
  $region71: #{rnn_encoder_forward.3} parent=0 // pred_check_branch
    %3435 = sbr.rel (0) target = $region73
  $region72: #{rnn_encoder_forward.3} parent=0 // pred_region
    _
  $region73: #{rnn_encoder_forward.3} parent=0 // pred_fallthru
    _

</llo_original>
